<compile_context>
chip_gen: v7x
topology: tpu7x:2x2x1
jax: 0.10.0
libtpu: 0.0.40
codegen_flags: <defaults>
</compile_context>

<pallas_src>
import functools

import jax
import jax.numpy as jnp
from jax import lax
from jax.experimental import pallas as pl
from jax.experimental.pallas import tpu as pltpu

_BN_EPS = 1e-5
_LANE = 128                      # output-channel (lane) padding granularity


def _round_up(x: int, m: int) -> int:
    return (x + m - 1) // m * m


def _vmem_capacity_bytes() -> int:
    try:
        info = pltpu.get_tpu_info()
        cap = getattr(info, "vmem_capacity_bytes", None)
        if cap:
            return int(cap)
    except Exception:
        pass
    return 64 * 1024 * 1024      # conservative fallback (v7x per-core VMEM)


_VMEM_CAP = _vmem_capacity_bytes()
_BIG_VMEM = _VMEM_CAP >= 96 * 1024 * 1024            # v5e / v6e: 128 MiB
_VMEM_LIMIT = min(int(_VMEM_CAP * 0.65), 100 * 1024 * 1024)
_CONV_ROW_CAP = 1024                                  # pixels per conv tile
_AFFINE_ROW_CAP = 4096 if _BIG_VMEM else 2048         # pixels per affine tile


def _largest_mult8_divisor(m: int, limit: int):
    for d in range(min(limit, m), 7, -1):
        if d % 8 == 0 and m % d == 0:
            return d
    return None


def _pick_rows(m: int, cap: int) -> int:
    """Largest divisor of m that is a multiple of 8 and <= cap.

    Prefers a choice giving >= 2 grid steps (megacore sharding on v7x).
    """
    limit = min(cap, m // 2) if m >= 16 else min(cap, m)
    d = _largest_mult8_divisor(m, limit)
    if d is None:
        d = _largest_mult8_divisor(m, cap)
    if d is None:
        raise ValueError(f"pixel count {m} must have a divisor that is a "
                         "multiple of 8")
    return d


def _pick_row_strip(h: int, w: int, n_batch: int) -> int:
    """Output-row strip height TH (divides h) for the in-kernel-im2col conv."""
    cap = max(1, _CONV_ROW_CAP // w)
    th = 1
    for cand in range(min(h, cap), 0, -1):
        if h % cand == 0:
            th = cand
            break
    if n_batch == 1 and th == h and h > 1:    # keep >= 2 grid steps
        for cand in range(h // 2, 0, -1):
            if h % cand == 0:
                th = cand
                break
    return th


# ----------------------------------------------------------------------------
# Training-mode BN: combine per-tile (sum, M2) partials (Chan's formula)
# ----------------------------------------------------------------------------
def _bn_scale_shift(s1, m2, n_per_tile, m_total, gamma, beta, c_pad):
    mean_t = s1 / n_per_tile                              # (G, C)
    mean = jnp.sum(s1, axis=0) / m_total                  # (C,)
    m2_tot = (jnp.sum(m2, axis=0)
              + n_per_tile * jnp.sum((mean_t - mean) ** 2, axis=0))
    var = m2_tot / m_total                                # biased, BN training
    f_out = gamma.shape[0]
    g = jnp.pad(gamma.astype(jnp.float32), (0, c_pad - f_out),
                constant_values=1.0)
    b = jnp.pad(beta.astype(jnp.float32), (0, c_pad - f_out))
    scale = g * lax.rsqrt(var + _BN_EPS)
    shift = b - mean * scale
    return scale.reshape(1, c_pad), shift.reshape(1, c_pad)


# ----------------------------------------------------------------------------
# Pass 1a: stride-1 3x3 conv with IN-KERNEL im2col + BN partial statistics
# ----------------------------------------------------------------------------
def _conv3x3_s1(x_nhwc, w_fused, gamma, beta, c_pad):
    """3x3 stride-1 conv; im2col done inside the kernel (9 shifted slices).

    x_nhwc : (N, H, W, Cin) bf16  (Cin = true channels, or c_pad for chained
             activations; padded channels must be zero).
    w_fused: (9*Cin_real, f_out) f32, rows ordered (ky, kx, ci).
    Returns conv (N, H, W, c_pad) bf16 and per-channel BN (scale, shift).
    """
    n, h, w, cin = x_nhwc.shape
    assert w % 8 == 0, "TODO(synk): relax the W % 8 == 0 layout requirement"
    f_out = w_fused.shape[1]
    cin_w = w_fused.shape[0] // 9
    assert cin_w <= cin

    th = _pick_row_strip(h, w, n)
    r_steps = h // th
    rows = th * w

    xp = jnp.pad(x_nhwc, ((0, 0), (1, 1), (1, 1), (0, 0)))   # spatial halo
    hp, wp = h + 2, w + 2

    # Per-tap weight blocks padded to (cin, c_pad) so in-kernel K-slices line up.
    wk = w_fused.astype(jnp.float32).reshape(9, cin_w, f_out)
    wk = jnp.pad(wk, ((0, 0), (0, cin - cin_w), (0, c_pad - f_out)))
    wk = wk.reshape(9 * cin, c_pad).astype(jnp.bfloat16)

    def kernel(xp_ref, w_ref, out_ref, stats_ref):
        h0 = pl.program_id(1) * th
        acc = jnp.zeros((rows, c_pad), jnp.float32)
        for dy in range(3):
            for dx in range(3):
                tap = xp_ref[0, pl.ds(h0 + dy, th), pl.ds(dx, w), :]
                tap = tap.reshape(rows, cin)
                k0 = (dy * 3 + dx) * cin
                acc = acc + jnp.dot(tap, w_ref[k0:k0 + cin, :],
                                    preferred_element_type=jnp.float32)
        out_ref[0] = acc.reshape(th, w, c_pad).astype(out_ref.dtype)
        # Per-tile BN partials: sum and sum of squared deviations (direct stores).
        s1 = jnp.sum(acc, axis=0, keepdims=True)
        d = acc - s1 * (1.0 / rows)
        m2 = jnp.sum(d * d, axis=0, keepdims=True)
        stats_ref[0, 0, 0:1, :] = s1
        stats_ref[0, 0, 1:2, :] = m2

    cost = pl.CostEstimate(
        flops=2 * n * h * w * 9 * cin * c_pad,
        transcendentals=0,
        bytes_accessed=int(xp.size * 2 + wk.size * 2 + n * h * w * c_pad * 2
                           + n * r_steps * 2 * c_pad * 4))

    conv, stats = pl.pallas_call(
        kernel,
        grid=(n, r_steps),
        in_specs=[
            pl.BlockSpec((1, hp, wp, cin), lambda b, r: (b, 0, 0, 0)),
            pl.BlockSpec((9 * cin, c_pad), lambda b, r: (0, 0)),
        ],
        out_specs=(
            pl.BlockSpec((1, th, w, c_pad), lambda b, r: (b, r, 0, 0)),
            pl.BlockSpec((1, 1, 2, c_pad), lambda b, r: (b, r, 0, 0)),
        ),
        out_shape=(
            jax.ShapeDtypeStruct((n, h, w, c_pad), jnp.bfloat16),
            jax.ShapeDtypeStruct((n, r_steps, 2, c_pad), jnp.float32),
        ),
        compiler_params=pltpu.CompilerParams(
            dimension_semantics=("parallel", "parallel"),
            vmem_limit_bytes=_VMEM_LIMIT),
        cost_estimate=cost,
    )(xp, wk)

    stats = stats.reshape(n * r_steps, 2, c_pad)
    scale, shift = _bn_scale_shift(stats[:, 0, :], stats[:, 1, :],
                                   rows, n * h * w, gamma, beta, c_pad)
    return conv, scale, shift


# ----------------------------------------------------------------------------
# Pass 1b: stride-2 3x3 conv (taps matmul) + fused projected shortcut + stats
# ----------------------------------------------------------------------------
def _conv_taps_with_shortcut(taps, w_fused, gamma, beta, wsc, gsc, bsc,
                             cin, c_pad):
    """Fused (M, 9*Cin)@(9*Cin, c_pad) conv1 + 1x1/stride-2 shortcut conv
    (its taps are exactly the center-tap channel slice of `taps`) + BN
    partials for both, in a single kernel / single grid pass."""
    m, k = taps.shape
    f_out = w_fused.shape[1]
    tr = _pick_rows(m, _CONV_ROW_CAP)
    grid = m // tr

    wk = jnp.pad(w_fused.astype(jnp.float32),
                 ((0, 0), (0, c_pad - f_out))).astype(jnp.bfloat16)
    wsck = jnp.pad(wsc.astype(jnp.float32),
                   ((0, 0), (0, c_pad - f_out))).astype(jnp.bfloat16)

    def kernel(t_ref, w_ref, ws_ref, out_ref, sc_ref, stats_ref):
        t = t_ref[...]
        acc = jnp.dot(t, w_ref[...], preferred_element_type=jnp.float32)
        out_ref[...] = acc.astype(out_ref.dtype)
        acc_sc = jnp.dot(t[:, 4 * cin:5 * cin], ws_ref[...],
                         preferred_element_type=jnp.float32)
        sc_ref[...] = acc_sc.astype(sc_ref.dtype)
        for row, a in ((0, acc), (2, acc_sc)):
            s1 = jnp.sum(a, axis=0, keepdims=True)
            d = a - s1 * (1.0 / tr)
            m2 = jnp.sum(d * d, axis=0, keepdims=True)
            stats_ref[0, row:row + 1, :] = s1
            stats_ref[0, row + 1:row + 2, :] = m2

    cost = pl.CostEstimate(
        flops=2 * m * (k + cin) * c_pad,
        transcendentals=0,
        bytes_accessed=int(taps.size * 2 + (wk.size + wsck.size) * 2
                           + 2 * m * c_pad * 2 + grid * 4 * c_pad * 4))

    conv, sc, stats = pl.pallas_call(
        kernel,
        grid=(grid,),
        in_specs=[
            pl.BlockSpec((tr, k), lambda i: (i, 0)),
            pl.BlockSpec((k, c_pad), lambda i: (0, 0)),
            pl.BlockSpec((cin, c_pad), lambda i: (0, 0)),
        ],
        out_specs=(
            pl.BlockSpec((tr, c_pad), lambda i: (i, 0)),
            pl.BlockSpec((tr, c_pad), lambda i: (i, 0)),
            pl.BlockSpec((1, 4, c_pad), lambda i: (i, 0, 0)),
        ),
        out_shape=(
            jax.ShapeDtypeStruct((m, c_pad), jnp.bfloat16),
            jax.ShapeDtypeStruct((m, c_pad), jnp.bfloat16),
            jax.ShapeDtypeStruct((grid, 4, c_pad), jnp.float32),
        ),
        compiler_params=pltpu.CompilerParams(
            dimension_semantics=("parallel",),
            vmem_limit_bytes=_VMEM_LIMIT),
        cost_estimate=cost,
    )(taps, wk, wsck)

    scale, shift = _bn_scale_shift(stats[:, 0, :], stats[:, 1, :], tr, m,
                                   gamma, beta, c_pad)
    rsc, rsh = _bn_scale_shift(stats[:, 2, :], stats[:, 3, :], tr, m,
                               gsc, bsc, c_pad)
    return conv, scale, shift, sc, rsc, rsh


# ----------------------------------------------------------------------------
# Pass 2: BN affine + optional residual (with its own BN affine) + relu
# ----------------------------------------------------------------------------
def _make_affine_kernel(has_res: bool, res_affine: bool, apply_relu: bool):
    def kernel(*refs):
        if has_res and res_affine:
            x_ref, sc_ref, sh_ref, r_ref, rsc_ref, rsh_ref, o_ref = refs
        elif has_res:
            x_ref, sc_ref, sh_ref, r_ref, o_ref = refs
        else:
            x_ref, sc_ref, sh_ref, o_ref = refs
        y = x_ref[...].astype(jnp.float32) * sc_ref[...] + sh_ref[...]
        if has_res:
            r = r_ref[...].astype(jnp.float32)
            if res_affine:
                r = r * rsc_ref[...] + rsh_ref[...]
            y = y + r
        if apply_relu:
            y = jnp.maximum(y, 0.0)
        o_ref[...] = y.astype(o_ref.dtype)

    return kernel


def _affine_pass(x, scale, shift, *, residual=None, res_scale=None,
                 res_shift=None, apply_relu=True, out_dtype=jnp.float32):
    m, c_pad = x.shape
    tr = _pick_rows(m, _AFFINE_ROW_CAP)
    grid = m // tr
    has_res = residual is not None
    res_affine = res_scale is not None

    row_spec = pl.BlockSpec((tr, c_pad), lambda i: (i, 0))
    vec_spec = pl.BlockSpec((1, c_pad), lambda i: (0, 0))

    inputs = [x, scale, shift]
    in_specs = [row_spec, vec_spec, vec_spec]
    if has_res:
        inputs.append(residual)
        in_specs.append(row_spec)
        if res_affine:
            inputs += [res_scale, res_shift]
            in_specs += [vec_spec, vec_spec]

    return pl.pallas_call(
        _make_affine_kernel(has_res, res_affine, apply_relu),
        grid=(grid,),
        in_specs=in_specs,
        out_specs=row_spec,
        out_shape=jax.ShapeDtypeStruct((m, c_pad), out_dtype),
        compiler_params=pltpu.CompilerParams(
            dimension_semantics=("parallel",),
            vmem_limit_bytes=_VMEM_LIMIT),
    )(*inputs)


# ----------------------------------------------------------------------------
# JAX-side im2col (only used for the stride-2 conv1)
# ----------------------------------------------------------------------------
def _im2col(x_nhwc, ksize: int, stride: int):
    """NHWC -> (N*H_out*W_out, k*k*C); tap order dy outer, dx inner, c minor."""
    n, h, w, c = x_nhwc.shape
    pad = (ksize - 1) // 2
    h_out = (h + 2 * pad - ksize) // stride + 1
    w_out = (w + 2 * pad - ksize) // stride + 1
    xp = jnp.pad(x_nhwc, ((0, 0), (pad, pad), (pad, pad), (0, 0)))
    cols = []
    for dy in range(ksize):
        for dx in range(ksize):
            cols.append(xp[:, dy:dy + stride * (h_out - 1) + 1:stride,
                           dx:dx + stride * (w_out - 1) + 1:stride, :])
    taps = jnp.concatenate(cols, axis=-1)
    return taps.reshape(n * h_out * w_out, ksize * ksize * c), (n, h_out, w_out)


def torch_conv_weight_to_fused(w_oihw):
    """(Cout, Cin, kh, kw) PyTorch weight -> (kh*kw*Cin, Cout) fused layout."""
    co, ci, kh, kw = w_oihw.shape
    return jnp.transpose(w_oihw, (2, 3, 1, 0)).reshape(kh * kw * ci, co)


# ----------------------------------------------------------------------------
# The full ResNet Block forward
# ----------------------------------------------------------------------------
def init_block_params(key, f_in: int, f_out: int, downsample: bool):
    ks = jax.random.split(key, 8)
    p = {
        "w1": 0.1 * jax.random.normal(ks[0], (9 * f_in, f_out), jnp.float32),
        "g1": 1.0 + 0.1 * jax.random.normal(ks[1], (f_out,), jnp.float32),
        "b1": 0.1 * jax.random.normal(ks[2], (f_out,), jnp.float32),
        "w2": 0.1 * jax.random.normal(ks[3], (9 * f_out, f_out), jnp.float32),
        "g2": 1.0 + 0.1 * jax.random.normal(ks[4], (f_out,), jnp.float32),
        "b2": 0.1 * jax.random.normal(ks[5], (f_out,), jnp.float32),
    }
    if downsample or f_in != f_out:
        p["wsc"] = 0.1 * jax.random.normal(ks[6], (f_in, f_out), jnp.float32)
        p["gsc"] = jnp.ones((f_out,), jnp.float32)
        p["bsc"] = jnp.zeros((f_out,), jnp.float32)
    return p


@functools.partial(jax.jit, static_argnames=("f_in", "f_out", "downsample"))
def block_forward(x_nchw, params, *, f_in: int, f_out: int, downsample: bool):
    # The PyTorch module hardcodes a stride-2 1x1 conv in the projection
    # shortcut; downsample=False with f_in != f_out would shape-mismatch in
    # the residual add, so that (unreachable) configuration is rejected.
    assert downsample or f_in == f_out, \
        "unsupported configuration: f_in != f_out without downsample"
    c_pad = _round_up(f_out, _LANE)

    x = jnp.transpose(x_nchw, (0, 2, 3, 1))              # NCHW -> NHWC
    x_bf = x.astype(jnp.bfloat16)                         # MXU operand dtype
    n, h, w, _ = x.shape

    if downsample:
        # conv1: 3x3 stride 2, fused with the projected shortcut (1x1 stride 2)
        taps1, (_, h1, w1) = _im2col(x_bf, 3, 2)
        conv1, sc1, sh1, residual, rsc, rsh = _conv_taps_with_shortcut(
            taps1, params["w1"], params["g1"], params["b1"],
            params["wsc"], params["gsc"], params["bsc"], f_in, c_pad)
    else:
        h1, w1 = h, w
        conv1, sc1, sh1 = _conv3x3_s1(x_bf, params["w1"], params["g1"],
                                      params["b1"], c_pad)
        conv1 = conv1.reshape(n * h1 * w1, c_pad)         # free reshape
        # identity shortcut: x itself, channel-padded to the lane-dense layout
        residual = jnp.pad(
            x_bf, ((0, 0), (0, 0), (0, 0), (0, c_pad - f_in))
        ).reshape(n * h1 * w1, c_pad)
        rsc = rsh = None

    m = n * h1 * w1

    # bn1 + relu; output stays in the padded bf16 layout for conv2.
    out1 = _affine_pass(conv1, sc1, sh1, apply_relu=True,
                        out_dtype=jnp.bfloat16)
    out1_nhwc = out1.reshape(n, h1, w1, c_pad)            # free reshape

    # conv2: 3x3 stride 1, in-kernel im2col + bn2 statistics.
    conv2, sc2, sh2 = _conv3x3_s1(out1_nhwc, params["w2"], params["g2"],
                                  params["b2"], c_pad)
    conv2 = conv2.reshape(m, c_pad)

    # bn2 affine + residual (+ shortcut BN affine) + relu.
    out2 = _affine_pass(conv2, sc2, sh2, residual=residual, res_scale=rsc,
                        res_shift=rsh, apply_relu=True, out_dtype=jnp.float32)

    # TODO(synk): when blocks are chained, keep the padded bf16 NHWC layout
    # between blocks instead of slicing/transposing back to f32 NCHW here.
    out = out2[:, :f_out].reshape(n, h1, w1, f_out)
    return jnp.transpose(out, (0, 3, 1, 2))               # NHWC -> NCHW


# ----------------------------------------------------------------------------
# Pure-JAX f32 reference (same math as the PyTorch module in training mode)
# ----------------------------------------------------------------------------
def _reference_block(x_nchw, params, f_in, f_out, downsample):
    stride = 2 if downsample else 1
    x = jnp.transpose(x_nchw, (0, 2, 3, 1)).astype(jnp.float32)

    def conv(v, w_fused, k, s, pad):
        cin = v.shape[-1]
        wgt = w_fused.reshape(k, k, cin, -1)   # HWIO, matches fused tap order
        return lax.conv_general_dilated(
            v, wgt, (s, s), [(pad, pad), (pad, pad)],
            dimension_numbers=("NHWC", "HWIO", "NHWC"))

    def bn(v, g, b):
        mean = jnp.mean(v, axis=(0, 1, 2))
        var = jnp.mean((v - mean) ** 2, axis=(0, 1, 2))
        return (v - mean) * lax.rsqrt(var + _BN_EPS) * g + b

    o = jax.nn.relu(bn(conv(x, params["w1"], 3, stride, 1),
                       params["g1"], params["b1"]))
    o = bn(conv(o, params["w2"], 3, 1, 1), params["g2"], params["b2"])
    if downsample or f_in != f_out:
        s = bn(conv(x, params["wsc"], 1, 2, 0), params["gsc"], params["bsc"])
    else:
        s = x
    return jnp.transpose(jax.nn.relu(o + s), (0, 3, 1, 2))


if __name__ == "__main__":
    key = jax.random.PRNGKey(0)
    kx, kp1, kp2 = jax.random.split(key, 3)

    x = jax.random.normal(kx, (2, 4, 16, 16), jnp.float32)  # NCHW

    # Case 1: identity shortcut (f_in == f_out, no downsample)
    params1 = init_block_params(kp1, 4, 4, downsample=False)
    y1 = block_forward(x, params1, f_in=4, f_out=4, downsample=False)
    jax.block_until_ready(y1)
    assert y1.shape == (2, 4, 16, 16), y1.shape
    ref1 = _reference_block(x, params1, 4, 4, False)
    err1 = float(jnp.max(jnp.abs(y1 - ref1)))
    assert err1 < 0.2, err1   # loose tolerance: bf16 operands/intermediates

    # Case 2: downsampling block (1x1-conv stride-2 + BN projected shortcut)
    params2 = init_block_params(kp2, 4, 8, downsample=True)
    y2 = block_forward(x, params2, f_in=4, f_out=8, downsample=True)
    jax.block_until_ready(y2)
    assert y2.shape == (2, 8, 8, 8), y2.shape
    ref2 = _reference_block(x, params2, 4, 8, True)
    err2 = float(jnp.max(jnp.abs(y2 - ref2)))
    assert err2 < 0.2, err2

    print("KERNEL_OK")
</pallas_src>

<mosaic_0001>
module attributes {stable_mosaic.version = 11 : i64} {
  func.func @kernel(%arg0: i32, %arg1: i32, %arg2: memref<1x18x18x4xbf16, #tpu.memory_space<vmem>>, %arg3: memref<36x128xbf16, #tpu.memory_space<vmem>>, %arg4: memref<1x16x16x128xbf16, #tpu.memory_space<vmem>>, %arg5: memref<1x1x2x128xf32, #tpu.memory_space<vmem>>) attributes {dimension_semantics = [#tpu.dimension_semantics<parallel>, #tpu.dimension_semantics<parallel>], iteration_bounds = array<i64: 2, 1>, scalar_prefetch = 0 : i64, scratch_operands = 0 : i64, tpu.core_type = #tpu.core_type<tc>, window_params = [{transform_indices = @transform_0, window_bounds = array<i64: 1, 18, 18, 4>}, {pipeline_mode = #tpu.pipeline_mode<synchronous>, transform_indices = @transform_1, window_bounds = array<i64: 36, 128>}, {transform_indices = @transform_2, window_bounds = array<i64: 1, 16, 16, 128>}, {transform_indices = @transform_3, window_bounds = array<i64: 1, 1, 2, 128>}]} {
    %c16_i32 = arith.constant 16 : i32
    %0 = arith.muli %arg1, %c16_i32 : i32
    %cst = arith.constant 0.000000e+00 : f32
    %1 = vector.broadcast %cst : f32 to vector<256x128xf32>
    %c0_i32 = arith.constant 0 : i32
    %2 = arith.addi %0, %c0_i32 : i32
    %c0 = arith.constant 0 : index
    %3 = arith.index_cast %2 : i32 to index
    %c0_0 = arith.constant 0 : index
    %c0_1 = arith.constant 0 : index
    %4 = vector.load %arg2[%c0, %3, %c0_0, %c0_1] : memref<1x18x18x4xbf16, #tpu.memory_space<vmem>>, vector<1x16x16x4xbf16>
    %5 = vector.shape_cast %4 : vector<1x16x16x4xbf16> to vector<16x16x4xbf16>
    %6 = vector.shape_cast %5 : vector<16x16x4xbf16> to vector<256x4xbf16>
    %c0_2 = arith.constant 0 : index
    %c0_3 = arith.constant 0 : index
    %7 = vector.load %arg3[%c0_2, %c0_3] : memref<36x128xbf16, #tpu.memory_space<vmem>>, vector<4x128xbf16>
    %cst_4 = arith.constant dense<0.000000e+00> : vector<256x128xf32>
    %8 = tpu.matmul %6, %7, %cst_4 {dimension_numbers = #tpu.dot_dimension_numbers<[1], [0], [0], [1], [0, 0, 1, 1], [], []>} : vector<256x4xbf16>, vector<4x128xbf16>, vector<256x128xf32> -> vector<256x128xf32>
    %9 = arith.addf %1, %8 : vector<256x128xf32>
    %c0_i32_5 = arith.constant 0 : i32
    %10 = arith.addi %0, %c0_i32_5 : i32
    %c0_6 = arith.constant 0 : index
    %11 = arith.index_cast %10 : i32 to index
    %c1 = arith.constant 1 : index
    %c0_7 = arith.constant 0 : index
    %12 = vector.load %arg2[%c0_6, %11, %c1, %c0_7] : memref<1x18x18x4xbf16, #tpu.memory_space<vmem>>, vector<1x16x16x4xbf16>
    %13 = vector.shape_cast %12 : vector<1x16x16x4xbf16> to vector<16x16x4xbf16>
    %14 = vector.shape_cast %13 : vector<16x16x4xbf16> to vector<256x4xbf16>
    %c4 = arith.constant 4 : index
    %c0_8 = arith.constant 0 : index
    %15 = vector.load %arg3[%c4, %c0_8] : memref<36x128xbf16, #tpu.memory_space<vmem>>, vector<4x128xbf16>
    %cst_9 = arith.constant dense<0.000000e+00> : vector<256x128xf32>
    %16 = tpu.matmul %14, %15, %cst_9 {dimension_numbers = #tpu.dot_dimension_numbers<[1], [0], [0], [1], [0, 0, 1, 1], [], []>} : vector<256x4xbf16>, vector<4x128xbf16>, vector<256x128xf32> -> vector<256x128xf32>
    %17 = arith.addf %9, %16 : vector<256x128xf32>
    %c0_i32_10 = arith.constant 0 : i32
    %18 = arith.addi %0, %c0_i32_10 : i32
    %c0_11 = arith.constant 0 : index
    %19 = arith.index_cast %18 : i32 to index
    %c2 = arith.constant 2 : index
    %c0_12 = arith.constant 0 : index
    %20 = vector.load %arg2[%c0_11, %19, %c2, %c0_12] : memref<1x18x18x4xbf16, #tpu.memory_space<vmem>>, vector<1x16x16x4xbf16>
    %21 = vector.shape_cast %20 : vector<1x16x16x4xbf16> to vector<16x16x4xbf16>
    %22 = vector.shape_cast %21 : vector<16x16x4xbf16> to vector<256x4xbf16>
    %c8 = arith.constant 8 : index
    %c0_13 = arith.constant 0 : index
    %23 = vector.load %arg3[%c8, %c0_13] : memref<36x128xbf16, #tpu.memory_space<vmem>>, vector<4x128xbf16>
    %cst_14 = arith.constant dense<0.000000e+00> : vector<256x128xf32>
    %24 = tpu.matmul %22, %23, %cst_14 {dimension_numbers = #tpu.dot_dimension_numbers<[1], [0], [0], [1], [0, 0, 1, 1], [], []>} : vector<256x4xbf16>, vector<4x128xbf16>, vector<256x128xf32> -> vector<256x128xf32>
    %25 = arith.addf %17, %24 : vector<256x128xf32>
    %c1_i32 = arith.constant 1 : i32
    %26 = arith.addi %0, %c1_i32 : i32
    %c0_15 = arith.constant 0 : index
    %27 = arith.index_cast %26 : i32 to index
    %c0_16 = arith.constant 0 : index
    %c0_17 = arith.constant 0 : index
    %28 = vector.load %arg2[%c0_15, %27, %c0_16, %c0_17] : memref<1x18x18x4xbf16, #tpu.memory_space<vmem>>, vector<1x16x16x4xbf16>
    %29 = vector.shape_cast %28 : vector<1x16x16x4xbf16> to vector<16x16x4xbf16>
    %30 = vector.shape_cast %29 : vector<16x16x4xbf16> to vector<256x4xbf16>
    %c12 = arith.constant 12 : index
    %c0_18 = arith.constant 0 : index
    %31 = vector.load %arg3[%c12, %c0_18] : memref<36x128xbf16, #tpu.memory_space<vmem>>, vector<4x128xbf16>
    %cst_19 = arith.constant dense<0.000000e+00> : vector<256x128xf32>
    %32 = tpu.matmul %30, %31, %cst_19 {dimension_numbers = #tpu.dot_dimension_numbers<[1], [0], [0], [1], [0, 0, 1, 1], [], []>} : vector<256x4xbf16>, vector<4x128xbf16>, vector<256x128xf32> -> vector<256x128xf32>
    %33 = arith.addf %25, %32 : vector<256x128xf32>
    %c1_i32_20 = arith.constant 1 : i32
    %34 = arith.addi %0, %c1_i32_20 : i32
    %c0_21 = arith.constant 0 : index
    %35 = arith.index_cast %34 : i32 to index
    %c1_22 = arith.constant 1 : index
    %c0_23 = arith.constant 0 : index
    %36 = vector.load %arg2[%c0_21, %35, %c1_22, %c0_23] : memref<1x18x18x4xbf16, #tpu.memory_space<vmem>>, vector<1x16x16x4xbf16>
    %37 = vector.shape_cast %36 : vector<1x16x16x4xbf16> to vector<16x16x4xbf16>
    %38 = vector.shape_cast %37 : vector<16x16x4xbf16> to vector<256x4xbf16>
    %c16 = arith.constant 16 : index
    %c0_24 = arith.constant 0 : index
    %39 = vector.load %arg3[%c16, %c0_24] : memref<36x128xbf16, #tpu.memory_space<vmem>>, vector<4x128xbf16>
    %cst_25 = arith.constant dense<0.000000e+00> : vector<256x128xf32>
    %40 = tpu.matmul %38, %39, %cst_25 {dimension_numbers = #tpu.dot_dimension_numbers<[1], [0], [0], [1], [0, 0, 1, 1], [], []>} : vector<256x4xbf16>, vector<4x128xbf16>, vector<256x128xf32> -> vector<256x128xf32>
    %41 = arith.addf %33, %40 : vector<256x128xf32>
    %c1_i32_26 = arith.constant 1 : i32
    %42 = arith.addi %0, %c1_i32_26 : i32
    %c0_27 = arith.constant 0 : index
    %43 = arith.index_cast %42 : i32 to index
    %c2_28 = arith.constant 2 : index
    %c0_29 = arith.constant 0 : index
    %44 = vector.load %arg2[%c0_27, %43, %c2_28, %c0_29] : memref<1x18x18x4xbf16, #tpu.memory_space<vmem>>, vector<1x16x16x4xbf16>
    %45 = vector.shape_cast %44 : vector<1x16x16x4xbf16> to vector<16x16x4xbf16>
    %46 = vector.shape_cast %45 : vector<16x16x4xbf16> to vector<256x4xbf16>
    %c20 = arith.constant 20 : index
    %c0_30 = arith.constant 0 : index
    %47 = vector.load %arg3[%c20, %c0_30] : memref<36x128xbf16, #tpu.memory_space<vmem>>, vector<4x128xbf16>
    %cst_31 = arith.constant dense<0.000000e+00> : vector<256x128xf32>
    %48 = tpu.matmul %46, %47, %cst_31 {dimension_numbers = #tpu.dot_dimension_numbers<[1], [0], [0], [1], [0, 0, 1, 1], [], []>} : vector<256x4xbf16>, vector<4x128xbf16>, vector<256x128xf32> -> vector<256x128xf32>
    %49 = arith.addf %41, %48 : vector<256x128xf32>
    %c2_i32 = arith.constant 2 : i32
    %50 = arith.addi %0, %c2_i32 : i32
    %c0_32 = arith.constant 0 : index
    %51 = arith.index_cast %50 : i32 to index
    %c0_33 = arith.constant 0 : index
    %c0_34 = arith.constant 0 : index
    %52 = vector.load %arg2[%c0_32, %51, %c0_33, %c0_34] : memref<1x18x18x4xbf16, #tpu.memory_space<vmem>>, vector<1x16x16x4xbf16>
    %53 = vector.shape_cast %52 : vector<1x16x16x4xbf16> to vector<16x16x4xbf16>
    %54 = vector.shape_cast %53 : vector<16x16x4xbf16> to vector<256x4xbf16>
    %c24 = arith.constant 24 : index
    %c0_35 = arith.constant 0 : index
    %55 = vector.load %arg3[%c24, %c0_35] : memref<36x128xbf16, #tpu.memory_space<vmem>>, vector<4x128xbf16>
    %cst_36 = arith.constant dense<0.000000e+00> : vector<256x128xf32>
    %56 = tpu.matmul %54, %55, %cst_36 {dimension_numbers = #tpu.dot_dimension_numbers<[1], [0], [0], [1], [0, 0, 1, 1], [], []>} : vector<256x4xbf16>, vector<4x128xbf16>, vector<256x128xf32> -> vector<256x128xf32>
    %57 = arith.addf %49, %56 : vector<256x128xf32>
    %c2_i32_37 = arith.constant 2 : i32
    %58 = arith.addi %0, %c2_i32_37 : i32
    %c0_38 = arith.constant 0 : index
    %59 = arith.index_cast %58 : i32 to index
    %c1_39 = arith.constant 1 : index
    %c0_40 = arith.constant 0 : index
    %60 = vector.load %arg2[%c0_38, %59, %c1_39, %c0_40] : memref<1x18x18x4xbf16, #tpu.memory_space<vmem>>, vector<1x16x16x4xbf16>
    %61 = vector.shape_cast %60 : vector<1x16x16x4xbf16> to vector<16x16x4xbf16>
    %62 = vector.shape_cast %61 : vector<16x16x4xbf16> to vector<256x4xbf16>
    %c28 = arith.constant 28 : index
    %c0_41 = arith.constant 0 : index
    %63 = vector.load %arg3[%c28, %c0_41] : memref<36x128xbf16, #tpu.memory_space<vmem>>, vector<4x128xbf16>
    %cst_42 = arith.constant dense<0.000000e+00> : vector<256x128xf32>
    %64 = tpu.matmul %62, %63, %cst_42 {dimension_numbers = #tpu.dot_dimension_numbers<[1], [0], [0], [1], [0, 0, 1, 1], [], []>} : vector<256x4xbf16>, vector<4x128xbf16>, vector<256x128xf32> -> vector<256x128xf32>
    %65 = arith.addf %57, %64 : vector<256x128xf32>
    %c2_i32_43 = arith.constant 2 : i32
    %66 = arith.addi %0, %c2_i32_43 : i32
    %c0_44 = arith.constant 0 : index
    %67 = arith.index_cast %66 : i32 to index
    %c2_45 = arith.constant 2 : index
    %c0_46 = arith.constant 0 : index
    %68 = vector.load %arg2[%c0_44, %67, %c2_45, %c0_46] : memref<1x18x18x4xbf16, #tpu.memory_space<vmem>>, vector<1x16x16x4xbf16>
    %69 = vector.shape_cast %68 : vector<1x16x16x4xbf16> to vector<16x16x4xbf16>
    %70 = vector.shape_cast %69 : vector<16x16x4xbf16> to vector<256x4xbf16>
    %c32 = arith.constant 32 : index
    %c0_47 = arith.constant 0 : index
    %71 = vector.load %arg3[%c32, %c0_47] : memref<36x128xbf16, #tpu.memory_space<vmem>>, vector<4x128xbf16>
    %cst_48 = arith.constant dense<0.000000e+00> : vector<256x128xf32>
    %72 = tpu.matmul %70, %71, %cst_48 {dimension_numbers = #tpu.dot_dimension_numbers<[1], [0], [0], [1], [0, 0, 1, 1], [], []>} : vector<256x4xbf16>, vector<4x128xbf16>, vector<256x128xf32> -> vector<256x128xf32>
    %73 = arith.addf %65, %72 : vector<256x128xf32>
    %74 = vector.shape_cast %73 : vector<256x128xf32> to vector<16x16x128xf32>
    %75 = arith.truncf %74 : vector<16x16x128xf32> to vector<16x16x128xbf16>
    %c0_49 = arith.constant 0 : index
    %c0_50 = arith.constant 0 : index
    %c0_51 = arith.constant 0 : index
    %c0_52 = arith.constant 0 : index
    %76 = vector.load %arg4[%c0_49, %c0_50, %c0_51, %c0_52] : memref<1x16x16x128xbf16, #tpu.memory_space<vmem>>, vector<1x16x16x128xbf16>
    %77 = vector.shape_cast %76 : vector<1x16x16x128xbf16> to vector<16x16x128xbf16>
    %78 = vector.shape_cast %75 : vector<16x16x128xbf16> to vector<1x16x16x128xbf16>
    tpu.vector_store %arg4[%c0_49, %c0_50, %c0_51, %c0_52], %78 {strides = array<i32>} : memref<1x16x16x128xbf16, #tpu.memory_space<vmem>>, vector<1x16x16x128xbf16>,
    %cst_53 = arith.constant dense<0.000000e+00> : vector<128xf32>
    %79 = vector.multi_reduction <add>, %73, %cst_53 [0] : vector<256x128xf32> to vector<128xf32>
    %80 = vector.shape_cast %79 : vector<128xf32> to vector<1x128xf32>
    %cst_54 = arith.constant 3.906250e-03 : f32
    %81 = vector.broadcast %cst_54 : f32 to vector<1x128xf32>
    %82 = arith.mulf %80, %81 : vector<1x128xf32>
    %83 = vector.broadcast %82 : vector<1x128xf32> to vector<256x128xf32>
    %84 = arith.subf %73, %83 : vector<256x128xf32>
    %85 = arith.mulf %84, %84 : vector<256x128xf32>
    %cst_55 = arith.constant dense<0.000000e+00> : vector<128xf32>
    %86 = vector.multi_reduction <add>, %85, %cst_55 [0] : vector<256x128xf32> to vector<128xf32>
    %87 = vector.shape_cast %86 : vector<128xf32> to vector<1x128xf32>
    %c0_56 = arith.constant 0 : index
    %c0_57 = arith.constant 0 : index
    %c0_58 = arith.constant 0 : index
    %c0_59 = arith.constant 0 : index
    %88 = vector.load %arg5[%c0_56, %c0_57, %c0_58, %c0_59] : memref<1x1x2x128xf32, #tpu.memory_space<vmem>>, vector<1x1x1x128xf32>
    %89 = vector.shape_cast %88 : vector<1x1x1x128xf32> to vector<1x128xf32>
    %90 = vector.shape_cast %80 : vector<1x128xf32> to vector<1x1x1x128xf32>
    tpu.vector_store %arg5[%c0_56, %c0_57, %c0_58, %c0_59], %90 {strides = array<i32>} : memref<1x1x2x128xf32, #tpu.memory_space<vmem>>, vector<1x1x1x128xf32>,
    %c0_60 = arith.constant 0 : index
    %c0_61 = arith.constant 0 : index
    %c1_62 = arith.constant 1 : index
    %c0_63 = arith.constant 0 : index
    %91 = vector.load %arg5[%c0_60, %c0_61, %c1_62, %c0_63] : memref<1x1x2x128xf32, #tpu.memory_space<vmem>>, vector<1x1x1x128xf32>
    %92 = vector.shape_cast %91 : vector<1x1x1x128xf32> to vector<1x128xf32>
    %93 = vector.shape_cast %87 : vector<1x128xf32> to vector<1x1x1x128xf32>
    tpu.vector_store %arg5[%c0_60, %c0_61, %c1_62, %c0_63], %93 {strides = array<i32>} : memref<1x1x2x128xf32, #tpu.memory_space<vmem>>, vector<1x1x1x128xf32>,
    return
  }
  func.func @transform_0(%arg0: i32, %arg1: i32) -> (i32, i32, i32, i32) {
    %c0_i32 = arith.constant 0 : i32
    %c0_i32_0 = arith.constant 0 : i32
    %c0_i32_1 = arith.constant 0 : i32
    %c0_i32_2 = arith.constant 0 : i32
    return %arg0, %c0_i32, %c0_i32_0, %c0_i32_1 : i32, i32, i32, i32
  }
  func.func @transform_1(%arg0: i32, %arg1: i32) -> (i32, i32) {
    %c0_i32 = arith.constant 0 : i32
    %c0_i32_0 = arith.constant 0 : i32
    %c0_i32_1 = arith.constant 0 : i32
    return %c0_i32, %c0_i32_0 : i32, i32
  }
  func.func @transform_2(%arg0: i32, %arg1: i32) -> (i32, i32, i32, i32) {
    %c0_i32 = arith.constant 0 : i32
    %c0_i32_0 = arith.constant 0 : i32
    %c0_i32_1 = arith.constant 0 : i32
    return %arg0, %arg1, %c0_i32, %c0_i32_0 : i32, i32, i32, i32
  }
  func.func @transform_3(%arg0: i32, %arg1: i32) -> (i32, i32, i32, i32) {
    %c0_i32 = arith.constant 0 : i32
    %c0_i32_0 = arith.constant 0 : i32
    %c0_i32_1 = arith.constant 0 : i32
    return %arg0, %arg1, %c0_i32, %c0_i32_0 : i32, i32, i32, i32
  }
}

module attributes {stable_mosaic.version = 11 : i64} {
  func.func @kernel(%arg0: i32, %arg1: memref<256x128xbf16, #tpu.memory_space<vmem>>, %arg2: memref<1x128xf32, #tpu.memory_space<vmem>>, %arg3: memref<1x128xf32, #tpu.memory_space<vmem>>, %arg4: memref<256x128xbf16, #tpu.memory_space<vmem>>) attributes {dimension_semantics = [#tpu.dimension_semantics<parallel>], iteration_bounds = array<i64: 2>, scalar_prefetch = 0 : i64, scratch_operands = 0 : i64, tpu.core_type = #tpu.core_type<tc>, window_params = [{transform_indices = @transform_0, window_bounds = array<i64: 256, 128>}, {pipeline_mode = #tpu.pipeline_mode<synchronous>, transform_indices = @transform_1, window_bounds = array<i64: 1, 128>}, {pipeline_mode = #tpu.pipeline_mode<synchronous>, transform_indices = @transform_2, window_bounds = array<i64: 1, 128>}, {transform_indices = @transform_3, window_bounds = array<i64: 256, 128>}]} {
    %c0 = arith.constant 0 : index
    %c0_0 = arith.constant 0 : index
    %0 = vector.load %arg1[%c0, %c0_0] : memref<256x128xbf16, #tpu.memory_space<vmem>>, vector<256x128xbf16>
    %1 = arith.extf %0 : vector<256x128xbf16> to vector<256x128xf32>
    %c0_1 = arith.constant 0 : index
    %c0_2 = arith.constant 0 : index
    %2 = vector.load %arg2[%c0_1, %c0_2] : memref<1x128xf32, #tpu.memory_space<vmem>>, vector<1x128xf32>
    %3 = vector.broadcast %2 : vector<1x128xf32> to vector<256x128xf32>
    %4 = arith.mulf %1, %3 : vector<256x128xf32>
    %c0_3 = arith.constant 0 : index
    %c0_4 = arith.constant 0 : index
    %5 = vector.load %arg3[%c0_3, %c0_4] : memref<1x128xf32, #tpu.memory_space<vmem>>, vector<1x128xf32>
    %6 = vector.broadcast %5 : vector<1x128xf32> to vector<256x128xf32>
    %7 = arith.addf %4, %6 : vector<256x128xf32>
    %cst = arith.constant 0.000000e+00 : f32
    %8 = vector.broadcast %cst : f32 to vector<256x128xf32>
    %9 = arith.maximumf %7, %8 : vector<256x128xf32>
    %10 = arith.truncf %9 : vector<256x128xf32> to vector<256x128xbf16>
    %c0_5 = arith.constant 0 : index
    %c0_6 = arith.constant 0 : index
    %11 = vector.load %arg4[%c0_5, %c0_6] : memref<256x128xbf16, #tpu.memory_space<vmem>>, vector<256x128xbf16>
    tpu.vector_store %arg4[%c0_5, %c0_6], %10 {strides = array<i32>} : memref<256x128xbf16, #tpu.memory_space<vmem>>, vector<256x128xbf16>,
    return
  }
  func.func @transform_0(%arg0: i32) -> (i32, i32) {
    %c0_i32 = arith.constant 0 : i32
    %c0_i32_0 = arith.constant 0 : i32
    return %arg0, %c0_i32 : i32, i32
  }
  func.func @transform_1(%arg0: i32) -> (i32, i32) {
    %c0_i32 = arith.constant 0 : i32
    %c0_i32_0 = arith.constant 0 : i32
    %c0_i32_1 = arith.constant 0 : i32
    return %c0_i32, %c0_i32_0 : i32, i32
  }
  func.func @transform_2(%arg0: i32) -> (i32, i32) {
    %c0_i32 = arith.constant 0 : i32
    %c0_i32_0 = arith.constant 0 : i32
    %c0_i32_1 = arith.constant 0 : i32
    return %c0_i32, %c0_i32_0 : i32, i32
  }
  func.func @transform_3(%arg0: i32) -> (i32, i32) {
    %c0_i32 = arith.constant 0 : i32
    %c0_i32_0 = arith.constant 0 : i32
    return %arg0, %c0_i32 : i32, i32
  }
}

module attributes {stable_mosaic.version = 11 : i64} {
  func.func @kernel(%arg0: i32, %arg1: i32, %arg2: memref<1x18x18x128xbf16, #tpu.memory_space<vmem>>, %arg3: memref<1152x128xbf16, #tpu.memory_space<vmem>>, %arg4: memref<1x16x16x128xbf16, #tpu.memory_space<vmem>>, %arg5: memref<1x1x2x128xf32, #tpu.memory_space<vmem>>) attributes {dimension_semantics = [#tpu.dimension_semantics<parallel>, #tpu.dimension_semantics<parallel>], iteration_bounds = array<i64: 2, 1>, scalar_prefetch = 0 : i64, scratch_operands = 0 : i64, tpu.core_type = #tpu.core_type<tc>, window_params = [{transform_indices = @transform_0, window_bounds = array<i64: 1, 18, 18, 128>}, {pipeline_mode = #tpu.pipeline_mode<synchronous>, transform_indices = @transform_1, window_bounds = array<i64: 1152, 128>}, {transform_indices = @transform_2, window_bounds = array<i64: 1, 16, 16, 128>}, {transform_indices = @transform_3, window_bounds = array<i64: 1, 1, 2, 128>}]} {
    %c16_i32 = arith.constant 16 : i32
    %0 = arith.muli %arg1, %c16_i32 : i32
    %cst = arith.constant 0.000000e+00 : f32
    %1 = vector.broadcast %cst : f32 to vector<256x128xf32>
    %c0_i32 = arith.constant 0 : i32
    %2 = arith.addi %0, %c0_i32 : i32
    %c0 = arith.constant 0 : index
    %3 = arith.index_cast %2 : i32 to index
    %c0_0 = arith.constant 0 : index
    %c0_1 = arith.constant 0 : index
    %4 = vector.load %arg2[%c0, %3, %c0_0, %c0_1] : memref<1x18x18x128xbf16, #tpu.memory_space<vmem>>, vector<1x16x16x128xbf16>
    %5 = vector.shape_cast %4 : vector<1x16x16x128xbf16> to vector<16x16x128xbf16>
    %6 = vector.shape_cast %5 : vector<16x16x128xbf16> to vector<256x128xbf16>
    %c0_2 = arith.constant 0 : index
    %c0_3 = arith.constant 0 : index
    %7 = vector.load %arg3[%c0_2, %c0_3] : memref<1152x128xbf16, #tpu.memory_space<vmem>>, vector<128x128xbf16>
    %cst_4 = arith.constant dense<0.000000e+00> : vector<256x128xf32>
    %8 = tpu.matmul %6, %7, %cst_4 {dimension_numbers = #tpu.dot_dimension_numbers<[1], [0], [0], [1], [0, 0, 1, 1], [], []>} : vector<256x128xbf16>, vector<128x128xbf16>, vector<256x128xf32> -> vector<256x128xf32>
    %9 = arith.addf %1, %8 : vector<256x128xf32>
    %c0_i32_5 = arith.constant 0 : i32
    %10 = arith.addi %0, %c0_i32_5 : i32
    %c0_6 = arith.constant 0 : index
    %11 = arith.index_cast %10 : i32 to index
    %c1 = arith.constant 1 : index
    %c0_7 = arith.constant 0 : index
    %12 = vector.load %arg2[%c0_6, %11, %c1, %c0_7] : memref<1x18x18x128xbf16, #tpu.memory_space<vmem>>, vector<1x16x16x128xbf16>
    %13 = vector.shape_cast %12 : vector<1x16x16x128xbf16> to vector<16x16x128xbf16>
    %14 = vector.shape_cast %13 : vector<16x16x128xbf16> to vector<256x128xbf16>
    %c128 = arith.constant 128 : index
    %c0_8 = arith.constant 0 : index
    %15 = vector.load %arg3[%c128, %c0_8] : memref<1152x128xbf16, #tpu.memory_space<vmem>>, vector<128x128xbf16>
    %cst_9 = arith.constant dense<0.000000e+00> : vector<256x128xf32>
    %16 = tpu.matmul %14, %15, %cst_9 {dimension_numbers = #tpu.dot_dimension_numbers<[1], [0], [0], [1], [0, 0, 1, 1], [], []>} : vector<256x128xbf16>, vector<128x128xbf16>, vector<256x128xf32> -> vector<256x128xf32>
    %17 = arith.addf %9, %16 : vector<256x128xf32>
    %c0_i32_10 = arith.constant 0 : i32
    %18 = arith.addi %0, %c0_i32_10 : i32
    %c0_11 = arith.constant 0 : index
    %19 = arith.index_cast %18 : i32 to index
    %c2 = arith.constant 2 : index
    %c0_12 = arith.constant 0 : index
    %20 = vector.load %arg2[%c0_11, %19, %c2, %c0_12] : memref<1x18x18x128xbf16, #tpu.memory_space<vmem>>, vector<1x16x16x128xbf16>
    %21 = vector.shape_cast %20 : vector<1x16x16x128xbf16> to vector<16x16x128xbf16>
    %22 = vector.shape_cast %21 : vector<16x16x128xbf16> to vector<256x128xbf16>
    %c256 = arith.constant 256 : index
    %c0_13 = arith.constant 0 : index
    %23 = vector.load %arg3[%c256, %c0_13] : memref<1152x128xbf16, #tpu.memory_space<vmem>>, vector<128x128xbf16>
    %cst_14 = arith.constant dense<0.000000e+00> : vector<256x128xf32>
    %24 = tpu.matmul %22, %23, %cst_14 {dimension_numbers = #tpu.dot_dimension_numbers<[1], [0], [0], [1], [0, 0, 1, 1], [], []>} : vector<256x128xbf16>, vector<128x128xbf16>, vector<256x128xf32> -> vector<256x128xf32>
    %25 = arith.addf %17, %24 : vector<256x128xf32>
    %c1_i32 = arith.constant 1 : i32
    %26 = arith.addi %0, %c1_i32 : i32
    %c0_15 = arith.constant 0 : index
    %27 = arith.index_cast %26 : i32 to index
    %c0_16 = arith.constant 0 : index
    %c0_17 = arith.constant 0 : index
    %28 = vector.load %arg2[%c0_15, %27, %c0_16, %c0_17] : memref<1x18x18x128xbf16, #tpu.memory_space<vmem>>, vector<1x16x16x128xbf16>
    %29 = vector.shape_cast %28 : vector<1x16x16x128xbf16> to vector<16x16x128xbf16>
    %30 = vector.shape_cast %29 : vector<16x16x128xbf16> to vector<256x128xbf16>
    %c384 = arith.constant 384 : index
    %c0_18 = arith.constant 0 : index
    %31 = vector.load %arg3[%c384, %c0_18] : memref<1152x128xbf16, #tpu.memory_space<vmem>>, vector<128x128xbf16>
    %cst_19 = arith.constant dense<0.000000e+00> : vector<256x128xf32>
    %32 = tpu.matmul %30, %31, %cst_19 {dimension_numbers = #tpu.dot_dimension_numbers<[1], [0], [0], [1], [0, 0, 1, 1], [], []>} : vector<256x128xbf16>, vector<128x128xbf16>, vector<256x128xf32> -> vector<256x128xf32>
    %33 = arith.addf %25, %32 : vector<256x128xf32>
    %c1_i32_20 = arith.constant 1 : i32
    %34 = arith.addi %0, %c1_i32_20 : i32
    %c0_21 = arith.constant 0 : index
    %35 = arith.index_cast %34 : i32 to index
    %c1_22 = arith.constant 1 : index
    %c0_23 = arith.constant 0 : index
    %36 = vector.load %arg2[%c0_21, %35, %c1_22, %c0_23] : memref<1x18x18x128xbf16, #tpu.memory_space<vmem>>, vector<1x16x16x128xbf16>
    %37 = vector.shape_cast %36 : vector<1x16x16x128xbf16> to vector<16x16x128xbf16>
    %38 = vector.shape_cast %37 : vector<16x16x128xbf16> to vector<256x128xbf16>
    %c512 = arith.constant 512 : index
    %c0_24 = arith.constant 0 : index
    %39 = vector.load %arg3[%c512, %c0_24] : memref<1152x128xbf16, #tpu.memory_space<vmem>>, vector<128x128xbf16>
    %cst_25 = arith.constant dense<0.000000e+00> : vector<256x128xf32>
    %40 = tpu.matmul %38, %39, %cst_25 {dimension_numbers = #tpu.dot_dimension_numbers<[1], [0], [0], [1], [0, 0, 1, 1], [], []>} : vector<256x128xbf16>, vector<128x128xbf16>, vector<256x128xf32> -> vector<256x128xf32>
    %41 = arith.addf %33, %40 : vector<256x128xf32>
    %c1_i32_26 = arith.constant 1 : i32
    %42 = arith.addi %0, %c1_i32_26 : i32
    %c0_27 = arith.constant 0 : index
    %43 = arith.index_cast %42 : i32 to index
    %c2_28 = arith.constant 2 : index
    %c0_29 = arith.constant 0 : index
    %44 = vector.load %arg2[%c0_27, %43, %c2_28, %c0_29] : memref<1x18x18x128xbf16, #tpu.memory_space<vmem>>, vector<1x16x16x128xbf16>
    %45 = vector.shape_cast %44 : vector<1x16x16x128xbf16> to vector<16x16x128xbf16>
    %46 = vector.shape_cast %45 : vector<16x16x128xbf16> to vector<256x128xbf16>
    %c640 = arith.constant 640 : index
    %c0_30 = arith.constant 0 : index
    %47 = vector.load %arg3[%c640, %c0_30] : memref<1152x128xbf16, #tpu.memory_space<vmem>>, vector<128x128xbf16>
    %cst_31 = arith.constant dense<0.000000e+00> : vector<256x128xf32>
    %48 = tpu.matmul %46, %47, %cst_31 {dimension_numbers = #tpu.dot_dimension_numbers<[1], [0], [0], [1], [0, 0, 1, 1], [], []>} : vector<256x128xbf16>, vector<128x128xbf16>, vector<256x128xf32> -> vector<256x128xf32>
    %49 = arith.addf %41, %48 : vector<256x128xf32>
    %c2_i32 = arith.constant 2 : i32
    %50 = arith.addi %0, %c2_i32 : i32
    %c0_32 = arith.constant 0 : index
    %51 = arith.index_cast %50 : i32 to index
    %c0_33 = arith.constant 0 : index
    %c0_34 = arith.constant 0 : index
    %52 = vector.load %arg2[%c0_32, %51, %c0_33, %c0_34] : memref<1x18x18x128xbf16, #tpu.memory_space<vmem>>, vector<1x16x16x128xbf16>
    %53 = vector.shape_cast %52 : vector<1x16x16x128xbf16> to vector<16x16x128xbf16>
    %54 = vector.shape_cast %53 : vector<16x16x128xbf16> to vector<256x128xbf16>
    %c768 = arith.constant 768 : index
    %c0_35 = arith.constant 0 : index
    %55 = vector.load %arg3[%c768, %c0_35] : memref<1152x128xbf16, #tpu.memory_space<vmem>>, vector<128x128xbf16>
    %cst_36 = arith.constant dense<0.000000e+00> : vector<256x128xf32>
    %56 = tpu.matmul %54, %55, %cst_36 {dimension_numbers = #tpu.dot_dimension_numbers<[1], [0], [0], [1], [0, 0, 1, 1], [], []>} : vector<256x128xbf16>, vector<128x128xbf16>, vector<256x128xf32> -> vector<256x128xf32>
    %57 = arith.addf %49, %56 : vector<256x128xf32>
    %c2_i32_37 = arith.constant 2 : i32
    %58 = arith.addi %0, %c2_i32_37 : i32
    %c0_38 = arith.constant 0 : index
    %59 = arith.index_cast %58 : i32 to index
    %c1_39 = arith.constant 1 : index
    %c0_40 = arith.constant 0 : index
    %60 = vector.load %arg2[%c0_38, %59, %c1_39, %c0_40] : memref<1x18x18x128xbf16, #tpu.memory_space<vmem>>, vector<1x16x16x128xbf16>
    %61 = vector.shape_cast %60 : vector<1x16x16x128xbf16> to vector<16x16x128xbf16>
    %62 = vector.shape_cast %61 : vector<16x16x128xbf16> to vector<256x128xbf16>
    %c896 = arith.constant 896 : index
    %c0_41 = arith.constant 0 : index
    %63 = vector.load %arg3[%c896, %c0_41] : memref<1152x128xbf16, #tpu.memory_space<vmem>>, vector<128x128xbf16>
    %cst_42 = arith.constant dense<0.000000e+00> : vector<256x128xf32>
    %64 = tpu.matmul %62, %63, %cst_42 {dimension_numbers = #tpu.dot_dimension_numbers<[1], [0], [0], [1], [0, 0, 1, 1], [], []>} : vector<256x128xbf16>, vector<128x128xbf16>, vector<256x128xf32> -> vector<256x128xf32>
    %65 = arith.addf %57, %64 : vector<256x128xf32>
    %c2_i32_43 = arith.constant 2 : i32
    %66 = arith.addi %0, %c2_i32_43 : i32
    %c0_44 = arith.constant 0 : index
    %67 = arith.index_cast %66 : i32 to index
    %c2_45 = arith.constant 2 : index
    %c0_46 = arith.constant 0 : index
    %68 = vector.load %arg2[%c0_44, %67, %c2_45, %c0_46] : memref<1x18x18x128xbf16, #tpu.memory_space<vmem>>, vector<1x16x16x128xbf16>
    %69 = vector.shape_cast %68 : vector<1x16x16x128xbf16> to vector<16x16x128xbf16>
    %70 = vector.shape_cast %69 : vector<16x16x128xbf16> to vector<256x128xbf16>
    %c1024 = arith.constant 1024 : index
    %c0_47 = arith.constant 0 : index
    %71 = vector.load %arg3[%c1024, %c0_47] : memref<1152x128xbf16, #tpu.memory_space<vmem>>, vector<128x128xbf16>
    %cst_48 = arith.constant dense<0.000000e+00> : vector<256x128xf32>
    %72 = tpu.matmul %70, %71, %cst_48 {dimension_numbers = #tpu.dot_dimension_numbers<[1], [0], [0], [1], [0, 0, 1, 1], [], []>} : vector<256x128xbf16>, vector<128x128xbf16>, vector<256x128xf32> -> vector<256x128xf32>
    %73 = arith.addf %65, %72 : vector<256x128xf32>
    %74 = vector.shape_cast %73 : vector<256x128xf32> to vector<16x16x128xf32>
    %75 = arith.truncf %74 : vector<16x16x128xf32> to vector<16x16x128xbf16>
    %c0_49 = arith.constant 0 : index
    %c0_50 = arith.constant 0 : index
    %c0_51 = arith.constant 0 : index
    %c0_52 = arith.constant 0 : index
    %76 = vector.load %arg4[%c0_49, %c0_50, %c0_51, %c0_52] : memref<1x16x16x128xbf16, #tpu.memory_space<vmem>>, vector<1x16x16x128xbf16>
    %77 = vector.shape_cast %76 : vector<1x16x16x128xbf16> to vector<16x16x128xbf16>
    %78 = vector.shape_cast %75 : vector<16x16x128xbf16> to vector<1x16x16x128xbf16>
    tpu.vector_store %arg4[%c0_49, %c0_50, %c0_51, %c0_52], %78 {strides = array<i32>} : memref<1x16x16x128xbf16, #tpu.memory_space<vmem>>, vector<1x16x16x128xbf16>,
    %cst_53 = arith.constant dense<0.000000e+00> : vector<128xf32>
    %79 = vector.multi_reduction <add>, %73, %cst_53 [0] : vector<256x128xf32> to vector<128xf32>
    %80 = vector.shape_cast %79 : vector<128xf32> to vector<1x128xf32>
    %cst_54 = arith.constant 3.906250e-03 : f32
    %81 = vector.broadcast %cst_54 : f32 to vector<1x128xf32>
    %82 = arith.mulf %80, %81 : vector<1x128xf32>
    %83 = vector.broadcast %82 : vector<1x128xf32> to vector<256x128xf32>
    %84 = arith.subf %73, %83 : vector<256x128xf32>
    %85 = arith.mulf %84, %84 : vector<256x128xf32>
    %cst_55 = arith.constant dense<0.000000e+00> : vector<128xf32>
    %86 = vector.multi_reduction <add>, %85, %cst_55 [0] : vector<256x128xf32> to vector<128xf32>
    %87 = vector.shape_cast %86 : vector<128xf32> to vector<1x128xf32>
    %c0_56 = arith.constant 0 : index
    %c0_57 = arith.constant 0 : index
    %c0_58 = arith.constant 0 : index
    %c0_59 = arith.constant 0 : index
    %88 = vector.load %arg5[%c0_56, %c0_57, %c0_58, %c0_59] : memref<1x1x2x128xf32, #tpu.memory_space<vmem>>, vector<1x1x1x128xf32>
    %89 = vector.shape_cast %88 : vector<1x1x1x128xf32> to vector<1x128xf32>
    %90 = vector.shape_cast %80 : vector<1x128xf32> to vector<1x1x1x128xf32>
    tpu.vector_store %arg5[%c0_56, %c0_57, %c0_58, %c0_59], %90 {strides = array<i32>} : memref<1x1x2x128xf32, #tpu.memory_space<vmem>>, vector<1x1x1x128xf32>,
    %c0_60 = arith.constant 0 : index
    %c0_61 = arith.constant 0 : index
    %c1_62 = arith.constant 1 : index
    %c0_63 = arith.constant 0 : index
    %91 = vector.load %arg5[%c0_60, %c0_61, %c1_62, %c0_63] : memref<1x1x2x128xf32, #tpu.memory_space<vmem>>, vector<1x1x1x128xf32>
    %92 = vector.shape_cast %91 : vector<1x1x1x128xf32> to vector<1x128xf32>
    %93 = vector.shape_cast %87 : vector<1x128xf32> to vector<1x1x1x128xf32>
    tpu.vector_store %arg5[%c0_60, %c0_61, %c1_62, %c0_63], %93 {strides = array<i32>} : memref<1x1x2x128xf32, #tpu.memory_space<vmem>>, vector<1x1x1x128xf32>,
    return
  }
  func.func @transform_0(%arg0: i32, %arg1: i32) -> (i32, i32, i32, i32) {
    %c0_i32 = arith.constant 0 : i32
    %c0_i32_0 = arith.constant 0 : i32
    %c0_i32_1 = arith.constant 0 : i32
    %c0_i32_2 = arith.constant 0 : i32
    return %arg0, %c0_i32, %c0_i32_0, %c0_i32_1 : i32, i32, i32, i32
  }
  func.func @transform_1(%arg0: i32, %arg1: i32) -> (i32, i32) {
    %c0_i32 = arith.constant 0 : i32
    %c0_i32_0 = arith.constant 0 : i32
    %c0_i32_1 = arith.constant 0 : i32
    return %c0_i32, %c0_i32_0 : i32, i32
  }
  func.func @transform_2(%arg0: i32, %arg1: i32) -> (i32, i32, i32, i32) {
    %c0_i32 = arith.constant 0 : i32
    %c0_i32_0 = arith.constant 0 : i32
    %c0_i32_1 = arith.constant 0 : i32
    return %arg0, %arg1, %c0_i32, %c0_i32_0 : i32, i32, i32, i32
  }
  func.func @transform_3(%arg0: i32, %arg1: i32) -> (i32, i32, i32, i32) {
    %c0_i32 = arith.constant 0 : i32
    %c0_i32_0 = arith.constant 0 : i32
    %c0_i32_1 = arith.constant 0 : i32
    return %arg0, %arg1, %c0_i32, %c0_i32_0 : i32, i32, i32, i32
  }
}

module attributes {stable_mosaic.version = 11 : i64} {
  func.func @kernel(%arg0: i32, %arg1: memref<256x128xbf16, #tpu.memory_space<vmem>>, %arg2: memref<1x128xf32, #tpu.memory_space<vmem>>, %arg3: memref<1x128xf32, #tpu.memory_space<vmem>>, %arg4: memref<256x128xbf16, #tpu.memory_space<vmem>>, %arg5: memref<256x128xf32, #tpu.memory_space<vmem>>) attributes {dimension_semantics = [#tpu.dimension_semantics<parallel>], iteration_bounds = array<i64: 2>, scalar_prefetch = 0 : i64, scratch_operands = 0 : i64, tpu.core_type = #tpu.core_type<tc>, window_params = [{transform_indices = @transform_0, window_bounds = array<i64: 256, 128>}, {pipeline_mode = #tpu.pipeline_mode<synchronous>, transform_indices = @transform_1, window_bounds = array<i64: 1, 128>}, {pipeline_mode = #tpu.pipeline_mode<synchronous>, transform_indices = @transform_2, window_bounds = array<i64: 1, 128>}, {transform_indices = @transform_3, window_bounds = array<i64: 256, 128>}, {transform_indices = @transform_4, window_bounds = array<i64: 256, 128>}]} {
    %c0 = arith.constant 0 : index
    %c0_0 = arith.constant 0 : index
    %0 = vector.load %arg1[%c0, %c0_0] : memref<256x128xbf16, #tpu.memory_space<vmem>>, vector<256x128xbf16>
    %1 = arith.extf %0 : vector<256x128xbf16> to vector<256x128xf32>
    %c0_1 = arith.constant 0 : index
    %c0_2 = arith.constant 0 : index
    %2 = vector.load %arg2[%c0_1, %c0_2] : memref<1x128xf32, #tpu.memory_space<vmem>>, vector<1x128xf32>
    %3 = vector.broadcast %2 : vector<1x128xf32> to vector<256x128xf32>
    %4 = arith.mulf %1, %3 : vector<256x128xf32>
    %c0_3 = arith.constant 0 : index
    %c0_4 = arith.constant 0 : index
    %5 = vector.load %arg3[%c0_3, %c0_4] : memref<1x128xf32, #tpu.memory_space<vmem>>, vector<1x128xf32>
    %6 = vector.broadcast %5 : vector<1x128xf32> to vector<256x128xf32>
    %7 = arith.addf %4, %6 : vector<256x128xf32>
    %c0_5 = arith.constant 0 : index
    %c0_6 = arith.constant 0 : index
    %8 = vector.load %arg4[%c0_5, %c0_6] : memref<256x128xbf16, #tpu.memory_space<vmem>>, vector<256x128xbf16>
    %9 = arith.extf %8 : vector<256x128xbf16> to vector<256x128xf32>
    %10 = arith.addf %7, %9 : vector<256x128xf32>
    %cst = arith.constant 0.000000e+00 : f32
    %11 = vector.broadcast %cst : f32 to vector<256x128xf32>
    %12 = arith.maximumf %10, %11 : vector<256x128xf32>
    %c0_7 = arith.constant 0 : index
    %c0_8 = arith.constant 0 : index
    %13 = vector.load %arg5[%c0_7, %c0_8] : memref<256x128xf32, #tpu.memory_space<vmem>>, vector<256x128xf32>
    tpu.vector_store %arg5[%c0_7, %c0_8], %12 {strides = array<i32>} : memref<256x128xf32, #tpu.memory_space<vmem>>, vector<256x128xf32>,
    return
  }
  func.func @transform_0(%arg0: i32) -> (i32, i32) {
    %c0_i32 = arith.constant 0 : i32
    %c0_i32_0 = arith.constant 0 : i32
    return %arg0, %c0_i32 : i32, i32
  }
  func.func @transform_1(%arg0: i32) -> (i32, i32) {
    %c0_i32 = arith.constant 0 : i32
    %c0_i32_0 = arith.constant 0 : i32
    %c0_i32_1 = arith.constant 0 : i32
    return %c0_i32, %c0_i32_0 : i32, i32
  }
  func.func @transform_2(%arg0: i32) -> (i32, i32) {
    %c0_i32 = arith.constant 0 : i32
    %c0_i32_0 = arith.constant 0 : i32
    %c0_i32_1 = arith.constant 0 : i32
    return %c0_i32, %c0_i32_0 : i32, i32
  }
  func.func @transform_3(%arg0: i32) -> (i32, i32) {
    %c0_i32 = arith.constant 0 : i32
    %c0_i32_0 = arith.constant 0 : i32
    return %arg0, %c0_i32 : i32, i32
  }
  func.func @transform_4(%arg0: i32) -> (i32, i32) {
    %c0_i32 = arith.constant 0 : i32
    %c0_i32_0 = arith.constant 0 : i32
    return %arg0, %c0_i32 : i32, i32
  }
}

</mosaic_0001>

<llo_original>
// kernel: block_forward.5
$region0: #{block_forward.5}
  #allocation0 [shape = 'u32[]', space=smem, size = 0x4, offset = 0x4, fixed_abs, tag = 'smem constant byte address 0x4 - core index']
  #allocation1 [shape = 'u32[144,128]{1,0:T(1,128)}', space=vmem, size = 0x12000, scoped, tag = 'internal scratch']
  %s0 = inlined_call_operand.vmem [shape: bf16[512,128], index: 0, kind: input, shape index: {}]
  %s1 = inlined_call_operand.vmem [shape: f32[1,128], index: 1, kind: input, shape index: {}]
  %s2 = inlined_call_operand.vmem [shape: f32[1,128], index: 2, kind: input, shape index: {}]
  %s3 = inlined_call_operand.vmem [shape: bf16[512,128], index: 3, kind: output, shape index: {}]
  %s4 = sld [smem:[#allocation0]]
  $region45: #{block_forward.5} parent=0
    _
  %s6 = ssub.s32 1, %s4
  %s7 = scalar_select 0, %s6, %s4
  loop: start=0, step=1, limit=4
  $region2: #{block_forward.5} parent=0 // loop_pre_header
    _
  $region3: #{block_forward.5} parent=0 // loop_header
    %s9 = sphi 0, %s13
    %p10 = scmp.ge.s32.totalorder %s9, 4
    %s19 = sphi 0, %s21
    %s22 = sphi 0, %s19
    %s23 = sphi 0, %s22
    %s39 = sphi 0, %s23
    %s43 = sphi 0, %s43
    %s45 = sphi 0, %s43
    %s46 = sphi 0, %s45
    %s60 = sphi 0, %s46
    %s64 = sphi 0, %s64
    %s66 = sphi 0, %s64
    %s67 = sphi 0, %s66
    %s81 = sphi 0, %s67
    %s87 = sphi 0, %s89
    %s90 = sphi 0, %s87
    %s91 = sphi 0, %s90
    %s107 = sphi 0, %s91
  $region4: #{block_forward.5} parent=0 // loop_header_branch
    %12 = sbr.rel (%p10) target = $region8
  $region5: #{block_forward.5} parent=0 // loop_body
    %s14 = ssub.s32 %s9, 1
    %s15 = ssub.s32 %s9, 2
    %s16 = sadd.s32 %s9, 1
    %s17 = ssub.s32 %s9, %s16
    %p18 = scmp.eq.s32.totalorder %s17, 0
    %s20 = sadd.s32 %s19, 1
    %s21 = scalar_select %p18, %s19, %s20
    %p24 = pneg %p18
    %p25 = scmp.eq.s32.totalorder %s9, 1
    %p26 = por %p24, %p25
    %p27 = scmp.ne.s32.totalorder %s19, %s22
    %p28 = scmp.eq.s32.totalorder %s9, 0
    %p29 = por %p27, %p28
    %p30 = scmp.ne.s32.totalorder %s19, %s22
    %p31 = scmp.eq.s32.totalorder %s14, 1
    %p32 = por %p30, %p31
    %p33 = scmp.ne.s32.totalorder %s22, %s23
    %p34 = scmp.eq.s32.totalorder %s14, 0
    %p35 = por %p33, %p34
    %p36 = scmp.ne.s32.totalorder %s22, %s23
    %p37 = scmp.eq.s32.totalorder %s15, 1
    %p38 = por %p36, %p37
    %p40 = scmp.ne.s32.totalorder %s23, %s39
    %p41 = scmp.eq.s32.totalorder %s15, 0
    %p42 = por %p40, %p41
    %s44 = sadd.s32 %s43, 1
    %p47 = scmp.eq.s32.totalorder %s9, 1
    %p48 = scmp.ne.s32.totalorder %s43, %s45
    %p49 = scmp.eq.s32.totalorder %s9, 0
    %p50 = por %p48, %p49
    %p51 = scmp.ne.s32.totalorder %s43, %s45
    %p52 = scmp.eq.s32.totalorder %s14, 1
    %p53 = por %p51, %p52
    %p54 = scmp.ne.s32.totalorder %s45, %s46
    %p55 = scmp.eq.s32.totalorder %s14, 0
    %p56 = por %p54, %p55
    %p57 = scmp.ne.s32.totalorder %s45, %s46
    %p58 = scmp.eq.s32.totalorder %s15, 1
    %p59 = por %p57, %p58
    %p61 = scmp.ne.s32.totalorder %s46, %s60
    %p62 = scmp.eq.s32.totalorder %s15, 0
    %p63 = por %p61, %p62
    %s65 = sadd.s32 %s64, 1
    %p68 = scmp.eq.s32.totalorder %s9, 1
    %p69 = scmp.ne.s32.totalorder %s64, %s66
    %p70 = scmp.eq.s32.totalorder %s9, 0
    %p71 = por %p69, %p70
    %p72 = scmp.ne.s32.totalorder %s64, %s66
    %p73 = scmp.eq.s32.totalorder %s14, 1
    %p74 = por %p72, %p73
    %p75 = scmp.ne.s32.totalorder %s66, %s67
    %p76 = scmp.eq.s32.totalorder %s14, 0
    %p77 = por %p75, %p76
    %p78 = scmp.ne.s32.totalorder %s66, %s67
    %p79 = scmp.eq.s32.totalorder %s15, 1
    %p80 = por %p78, %p79
    %p82 = scmp.ne.s32.totalorder %s67, %s81
    %p83 = scmp.eq.s32.totalorder %s15, 0
    %p84 = por %p82, %p83
    %s85 = ssub.s32 %s9, %s16
    %p86 = scmp.eq.s32.totalorder %s85, 0
    %s88 = sadd.s32 %s87, 1
    %s89 = scalar_select %p86, %s87, %s88
    %p92 = pneg %p86
    %p93 = scmp.eq.s32.totalorder %s9, 1
    %p94 = por %p92, %p93
    %p95 = scmp.ne.s32.totalorder %s87, %s90
    %p96 = scmp.eq.s32.totalorder %s9, 0
    %p97 = por %p95, %p96
    %p98 = scmp.ne.s32.totalorder %s87, %s90
    %p99 = scmp.eq.s32.totalorder %s14, 1
    %p100 = por %p98, %p99
    %p101 = scmp.ne.s32.totalorder %s90, %s91
    %p102 = scmp.eq.s32.totalorder %s14, 0
    %p103 = por %p101, %p102
    %p104 = scmp.ne.s32.totalorder %s90, %s91
    %p105 = scmp.eq.s32.totalorder %s15, 1
    %p106 = por %p104, %p105
    %p108 = scmp.ne.s32.totalorder %s91, %s107
    %p109 = scmp.eq.s32.totalorder %s15, 0
    %p110 = por %p108, %p109
    %p111 = scmp.le.s32.totalorder 1, %s9
    %p112 = scmp.lt.s32.totalorder %s9, 3
    %p113 = pnand %p111, %p112
    %p114 = pneg %p113
    // Predicated region
    $region9: #{block_forward.5} parent=5 // pred_check
      _
    $region10: #{block_forward.5} parent=5 // pred_check_branch
      %116 = sbr.rel (%p113) target = $region12
    $region11: #{block_forward.5} parent=5 // pred_region
      %s117 = ssub.s32 %s9, 1
      // Predicated region
      $region13: #{block_forward.5} parent=11 // pred_check
        %p118 = pneg %p56
      $region14: #{block_forward.5} parent=11 // pred_check_branch
        %120 = sbr.rel (%p118) target = $region16
      $region15: #{block_forward.5} parent=11 // pred_region
        _
      $region16: #{block_forward.5} parent=11 // pred_fallthru
        _
      // Predicated region
      $region17: #{block_forward.5} parent=11 // pred_check
        %p121 = pneg %p77
      $region18: #{block_forward.5} parent=11 // pred_check_branch
        %123 = sbr.rel (%p121) target = $region20
      $region19: #{block_forward.5} parent=11 // pred_region
        _
      $region20: #{block_forward.5} parent=11 // pred_fallthru
        _
    $region12: #{block_forward.5} parent=5 // pred_fallthru
      _
    %p124 = scmp.lt.s32.totalorder %s9, 2
    // Predicated region
    $region21: #{block_forward.5} parent=5 // pred_check
      %p125 = pneg %p124
    $region22: #{block_forward.5} parent=5 // pred_check_branch
      %127 = sbr.rel (%p125) target = $region24
    $region23: #{block_forward.5} parent=5 // pred_region
      // Predicated region
      $region25: #{block_forward.5} parent=23 // pred_check
        %p128 = pneg %p29
      $region26: #{block_forward.5} parent=23 // pred_check_branch
        %130 = sbr.rel (%p128) target = $region28
      $region27: #{block_forward.5} parent=23 // pred_region
        %s131 = smul.u32 32, %s9
        %p132 = scmp.lt.s32.totalorder %s131, 63
        %s133 = scalar_select %p132, %s131, 63
        %s134 = smul.addr %s133, 4
        %s135 = scalar_lea.vmem %s0, %s134
        %s136 = smul.u32 32, %s9
      $region28: #{block_forward.5} parent=23 // pred_fallthru
        _
    $region24: #{block_forward.5} parent=5 // pred_fallthru
      _
    %p137 = scmp.le.s32.totalorder 1, %s9
    %p138 = scmp.lt.s32.totalorder %s9, 3
    %p139 = pnand %p137, %p138
    %p140 = pneg %p139
    // Predicated region
    $region29: #{block_forward.5} parent=5 // pred_check
      _
    $region30: #{block_forward.5} parent=5 // pred_check_branch
      %142 = sbr.rel (%p139) target = $region32
    $region31: #{block_forward.5} parent=5 // pred_region
      %s143 = ssub.s32 %s9, 1
      %s144 = smul.u32 32, %s14
      %p145 = scmp.lt.s32.totalorder %s144, 63
      %s146 = scalar_select %p145, %s144, 63
      %s147 = smul.addr %s146, 4
      %s148 = scalar_lea.vmem %s0, %s147
      %p149 = pneg %p35
      %p150 = pneg %p32
      %p151 = pneg %p56
      %p152 = pneg %p53
      %p153 = pneg %p77
      %p154 = pneg %p74
      %p155 = pneg %p103
      %p156 = pneg %p100
      %s157 = smul.u32 32, %s14
      %p158 = scmp.lt.s32.totalorder %s157, 63
      %s159 = scalar_select %p158, %s157, 63
      %s160 = smul.addr %s159, 4
      %s161 = scalar_lea.vmem %s3, %s160
      %s162 = smul.u32 32, %s14
      %p163 = scmp.lt.s32.totalorder %s162, 63
      %s164 = scalar_select %p163, %s162, 63
      %s165 = smul.addr %s164, 4
      %s166 = scalar_lea.vmem %s0, %s165
      %s167 = smul.u32 32, %s14
      %s168 = smul.u32 32, %s14
      %p169 = scmp.lt.s32.totalorder %s168, 63
      %s170 = scalar_select %p169, %s168, 63
      %s171 = smul.addr %s170, 4
      %s172 = scalar_lea.vmem %s3, %s171
      %s173 = smul.u32 32, %s14
      %v174 = vld [vmem:[%s166] sm:$0xf]
      %v175 = vld [vmem:[%s166 + $0x4] sm:$0xf]
      %v176 = vld [vmem:[%s166 + $0x8] sm:$0xf]
      %v177 = vld [vmem:[%s166 + $0xc] sm:$0xf]
      %v178 = vld [vmem:[%s166 + $0x10] sm:$0xf]
      %v179 = vld [vmem:[%s166 + $0x14] sm:$0xf]
      %v180 = vld [vmem:[%s166 + $0x18] sm:$0xf]
      %v181 = vld [vmem:[%s166 + $0x1c] sm:$0xf]
      %v182 = vld [vmem:[%s166 + $0x20] sm:$0xf]
      %v183 = vld [vmem:[%s166 + $0x24] sm:$0xf]
      %v184 = vld [vmem:[%s166 + $0x28] sm:$0xf]
      %v185 = vld [vmem:[%s166 + $0x2c] sm:$0xf]
      %v186 = vld [vmem:[%s166 + $0x30] sm:$0xf]
      %v187 = vld [vmem:[%s166 + $0x34] sm:$0xf]
      %v188 = vld [vmem:[%s166 + $0x38] sm:$0xf]
      %v189 = vld [vmem:[%s166 + $0x3c] sm:$0xf]
      %v190 = vld [vmem:[%s166 + $0x40] sm:$0xf]
      %v191 = vld [vmem:[%s166 + $0x44] sm:$0xf]
      %v192 = vld [vmem:[%s166 + $0x48] sm:$0xf]
      %v193 = vld [vmem:[%s166 + $0x4c] sm:$0xf]
      %v194 = vld [vmem:[%s166 + $0x50] sm:$0xf]
      %v195 = vld [vmem:[%s166 + $0x54] sm:$0xf]
      %v196 = vld [vmem:[%s166 + $0x58] sm:$0xf]
      %v197 = vld [vmem:[%s166 + $0x5c] sm:$0xf]
      %v198 = vld [vmem:[%s166 + $0x60] sm:$0xf]
      %v199 = vld [vmem:[%s166 + $0x64] sm:$0xf]
      %v200 = vld [vmem:[%s166 + $0x68] sm:$0xf]
      %v201 = vld [vmem:[%s166 + $0x6c] sm:$0xf]
      %v202 = vld [vmem:[%s166 + $0x70] sm:$0xf]
      %v203 = vld [vmem:[%s166 + $0x74] sm:$0xf]
      %v204 = vld [vmem:[%s166 + $0x78] sm:$0xf]
      %v205 = vld [vmem:[%s166 + $0x7c] sm:$0xf]
      %v206 = vunpack.c.l.bf16 %v174
      %v207 = vunpack.c.l.bf16 %v175
      %v208 = vunpack.c.l.bf16 %v176
      %v209 = vunpack.c.l.bf16 %v177
      %v210 = vunpack.c.l.bf16 %v178
      %v211 = vunpack.c.l.bf16 %v179
      %v212 = vunpack.c.l.bf16 %v180
      %v213 = vunpack.c.l.bf16 %v181
      %v214 = vunpack.c.l.bf16 %v182
      %v215 = vunpack.c.l.bf16 %v183
      %v216 = vunpack.c.l.bf16 %v184
      %v217 = vunpack.c.l.bf16 %v185
      %v218 = vunpack.c.l.bf16 %v186
      %v219 = vunpack.c.l.bf16 %v187
      %v220 = vunpack.c.l.bf16 %v188
      %v221 = vunpack.c.l.bf16 %v189
      %v222 = vunpack.c.l.bf16 %v190
      %v223 = vunpack.c.l.bf16 %v191
      %v224 = vunpack.c.l.bf16 %v192
      %v225 = vunpack.c.l.bf16 %v193
      %v226 = vunpack.c.l.bf16 %v194
      %v227 = vunpack.c.l.bf16 %v195
      %v228 = vunpack.c.l.bf16 %v196
      %v229 = vunpack.c.l.bf16 %v197
      %v230 = vunpack.c.l.bf16 %v198
      %v231 = vunpack.c.l.bf16 %v199
      %v232 = vunpack.c.l.bf16 %v200
      %v233 = vunpack.c.l.bf16 %v201
      %v234 = vunpack.c.l.bf16 %v202
      %v235 = vunpack.c.l.bf16 %v203
      %v236 = vunpack.c.l.bf16 %v204
      %v237 = vunpack.c.l.bf16 %v205
      %v238 = vld [vmem:[%s1] sm:$0x1]
      %v240 = vlaneseq
      %v241 = vshrl.u32 %v240, 7
      %v242 = vsub.s32 0, %v241
      %v243 = vrot.slane %v238, %v242
      %v245 = vmul.f32 %v206, %v243
      %v246 = vmul.f32 %v207, %v243
      %v247 = vmul.f32 %v208, %v243
      %v248 = vmul.f32 %v209, %v243
      %v249 = vmul.f32 %v210, %v243
      %v250 = vmul.f32 %v211, %v243
      %v251 = vmul.f32 %v212, %v243
      %v252 = vmul.f32 %v213, %v243
      %v253 = vmul.f32 %v214, %v243
      %v254 = vmul.f32 %v215, %v243
      %v255 = vmul.f32 %v216, %v243
      %v256 = vmul.f32 %v217, %v243
      %v257 = vmul.f32 %v218, %v243
      %v258 = vmul.f32 %v219, %v243
      %v259 = vmul.f32 %v220, %v243
      %v260 = vmul.f32 %v221, %v243
      %v261 = vmul.f32 %v222, %v243
      %v262 = vmul.f32 %v223, %v243
      %v263 = vmul.f32 %v224, %v243
      %v264 = vmul.f32 %v225, %v243
      %v265 = vmul.f32 %v226, %v243
      %v266 = vmul.f32 %v227, %v243
      %v267 = vmul.f32 %v228, %v243
      %v268 = vmul.f32 %v229, %v243
      %v269 = vmul.f32 %v230, %v243
      %v270 = vmul.f32 %v231, %v243
      %v271 = vmul.f32 %v232, %v243
      %v272 = vmul.f32 %v233, %v243
      %v273 = vmul.f32 %v234, %v243
      %v274 = vmul.f32 %v235, %v243
      %v275 = vmul.f32 %v236, %v243
      %v276 = vmul.f32 %v237, %v243
      %v277 = vld [vmem:[%s2] sm:$0x1]
      %v279 = vlaneseq
      %v280 = vshrl.u32 %v279, 7
      %v281 = vsub.s32 0, %v280
      %v282 = vrot.slane %v277, %v281
      %v284 = vadd.f32 %v245, %v282
      %v285 = vadd.f32 %v246, %v282
      %v286 = vadd.f32 %v247, %v282
      %v287 = vadd.f32 %v248, %v282
      %v288 = vadd.f32 %v249, %v282
      %v289 = vadd.f32 %v250, %v282
      %v290 = vadd.f32 %v251, %v282
      %v291 = vadd.f32 %v252, %v282
      %v292 = vadd.f32 %v253, %v282
      %v293 = vadd.f32 %v254, %v282
      %v294 = vadd.f32 %v255, %v282
      %v295 = vadd.f32 %v256, %v282
      %v296 = vadd.f32 %v257, %v282
      %v297 = vadd.f32 %v258, %v282
      %v298 = vadd.f32 %v259, %v282
      %v299 = vadd.f32 %v260, %v282
      %v300 = vadd.f32 %v261, %v282
      %v301 = vadd.f32 %v262, %v282
      %v302 = vadd.f32 %v263, %v282
      %v303 = vadd.f32 %v264, %v282
      %v304 = vadd.f32 %v265, %v282
      %v305 = vadd.f32 %v266, %v282
      %v306 = vadd.f32 %v267, %v282
      %v307 = vadd.f32 %v268, %v282
      %v308 = vadd.f32 %v269, %v282
      %v309 = vadd.f32 %v270, %v282
      %v310 = vadd.f32 %v271, %v282
      %v311 = vadd.f32 %v272, %v282
      %v312 = vadd.f32 %v273, %v282
      %v313 = vadd.f32 %v274, %v282
      %v314 = vadd.f32 %v275, %v282
      %v315 = vadd.f32 %v276, %v282
      %v316 = vmax.f32 %v284, 0.0
      %v317 = vmax.f32 %v285, 0.0
      %v318 = vmax.f32 %v286, 0.0
      %v319 = vmax.f32 %v287, 0.0
      %v320 = vmax.f32 %v288, 0.0
      %v321 = vmax.f32 %v289, 0.0
      %v322 = vmax.f32 %v290, 0.0
      %v323 = vmax.f32 %v291, 0.0
      %v324 = vmax.f32 %v292, 0.0
      %v325 = vmax.f32 %v293, 0.0
      %v326 = vmax.f32 %v294, 0.0
      %v327 = vmax.f32 %v295, 0.0
      %v328 = vmax.f32 %v296, 0.0
      %v329 = vmax.f32 %v297, 0.0
      %v330 = vmax.f32 %v298, 0.0
      %v331 = vmax.f32 %v299, 0.0
      %v332 = vmax.f32 %v300, 0.0
      %v333 = vmax.f32 %v301, 0.0
      %v334 = vmax.f32 %v302, 0.0
      %v335 = vmax.f32 %v303, 0.0
      %v336 = vmax.f32 %v304, 0.0
      %v337 = vmax.f32 %v305, 0.0
      %v338 = vmax.f32 %v306, 0.0
      %v339 = vmax.f32 %v307, 0.0
      %v340 = vmax.f32 %v308, 0.0
      %v341 = vmax.f32 %v309, 0.0
      %v342 = vmax.f32 %v310, 0.0
      %v343 = vmax.f32 %v311, 0.0
      %v344 = vmax.f32 %v312, 0.0
      %v345 = vmax.f32 %v313, 0.0
      %v346 = vmax.f32 %v314, 0.0
      %v347 = vmax.f32 %v315, 0.0
      %v348 = vpack.c.bf16 %v317, %v316
      %v349 = vpack.c.bf16 %v319, %v318
      %v350 = vpack.c.bf16 %v321, %v320
      %v351 = vpack.c.bf16 %v323, %v322
      %v352 = vpack.c.bf16 %v325, %v324
      %v353 = vpack.c.bf16 %v327, %v326
      %v354 = vpack.c.bf16 %v329, %v328
      %v355 = vpack.c.bf16 %v331, %v330
      %v356 = vpack.c.bf16 %v333, %v332
      %v357 = vpack.c.bf16 %v335, %v334
      %v358 = vpack.c.bf16 %v337, %v336
      %v359 = vpack.c.bf16 %v339, %v338
      %v360 = vpack.c.bf16 %v341, %v340
      %v361 = vpack.c.bf16 %v343, %v342
      %v362 = vpack.c.bf16 %v345, %v344
      %v363 = vpack.c.bf16 %v347, %v346
      %v380 = vunpack.c.l.b16 %v348
      %v381 = vunpack.c.h.b16 %v348
      %v382 = vunpack.c.l.b16 %v349
      %v383 = vunpack.c.h.b16 %v349
      %v384 = vunpack.c.l.b16 %v350
      %v385 = vunpack.c.h.b16 %v350
      %v386 = vunpack.c.l.b16 %v351
      %v387 = vunpack.c.h.b16 %v351
      %v388 = vunpack.c.l.b16 %v352
      %v389 = vunpack.c.h.b16 %v352
      %v390 = vunpack.c.l.b16 %v353
      %v391 = vunpack.c.h.b16 %v353
      %v392 = vunpack.c.l.b16 %v354
      %v393 = vunpack.c.h.b16 %v354
      %v394 = vunpack.c.l.b16 %v355
      %v395 = vunpack.c.h.b16 %v355
      %v396 = vunpack.c.l.b16 %v356
      %v397 = vunpack.c.h.b16 %v356
      %v398 = vunpack.c.l.b16 %v357
      %v399 = vunpack.c.h.b16 %v357
      %v400 = vunpack.c.l.b16 %v358
      %v401 = vunpack.c.h.b16 %v358
      %v402 = vunpack.c.l.b16 %v359
      %v403 = vunpack.c.h.b16 %v359
      %v404 = vunpack.c.l.b16 %v360
      %v405 = vunpack.c.h.b16 %v360
      %v406 = vunpack.c.l.b16 %v361
      %v407 = vunpack.c.h.b16 %v361
      %v408 = vunpack.c.l.b16 %v362
      %v409 = vunpack.c.h.b16 %v362
      %v410 = vunpack.c.l.b16 %v363
      %v411 = vunpack.c.h.b16 %v363
      %v412 = vpack.c.b16 %v380, %v380
      %v413 = vpack.c.b16 %v381, %v381
      %v414 = vpack.c.b16 %v382, %v382
      %v415 = vpack.c.b16 %v383, %v383
      %v416 = vpack.c.b16 %v384, %v384
      %v417 = vpack.c.b16 %v385, %v385
      %v418 = vpack.c.b16 %v386, %v386
      %v419 = vpack.c.b16 %v387, %v387
      %v420 = vpack.c.b16 %v388, %v388
      %v421 = vpack.c.b16 %v389, %v389
      %v422 = vpack.c.b16 %v390, %v390
      %v423 = vpack.c.b16 %v391, %v391
      %v424 = vpack.c.b16 %v392, %v392
      %v425 = vpack.c.b16 %v393, %v393
      %v426 = vpack.c.b16 %v394, %v394
      %v427 = vpack.c.b16 %v395, %v395
      %v428 = vpack.c.b16 %v396, %v396
      %v429 = vpack.c.b16 %v397, %v397
      %v430 = vpack.c.b16 %v398, %v398
      %v431 = vpack.c.b16 %v399, %v399
      %v432 = vpack.c.b16 %v400, %v400
      %v433 = vpack.c.b16 %v401, %v401
      %v434 = vpack.c.b16 %v402, %v402
      %v435 = vpack.c.b16 %v403, %v403
      %v436 = vpack.c.b16 %v404, %v404
      %v437 = vpack.c.b16 %v405, %v405
      %v438 = vpack.c.b16 %v406, %v406
      %v439 = vpack.c.b16 %v407, %v407
      %v440 = vpack.c.b16 %v408, %v408
      %v441 = vpack.c.b16 %v409, %v409
      %v442 = vpack.c.b16 %v410, %v410
      %v443 = vpack.c.b16 %v411, %v411
      %476 = vst [vmem:[%s172] sm:$0xf] %v412
      %477 = vst [vmem:[%s172 + $0x4] sm:$0xf] %v413
      %478 = vst [vmem:[%s172 + $0x8] sm:$0xf] %v414
      %479 = vst [vmem:[%s172 + $0xc] sm:$0xf] %v415
      %480 = vst [vmem:[%s172 + $0x10] sm:$0xf] %v416
      %481 = vst [vmem:[%s172 + $0x14] sm:$0xf] %v417
      %482 = vst [vmem:[%s172 + $0x18] sm:$0xf] %v418
      %483 = vst [vmem:[%s172 + $0x1c] sm:$0xf] %v419
      %484 = vst [vmem:[%s172 + $0x20] sm:$0xf] %v420
      %485 = vst [vmem:[%s172 + $0x24] sm:$0xf] %v421
      %486 = vst [vmem:[%s172 + $0x28] sm:$0xf] %v422
      %487 = vst [vmem:[%s172 + $0x2c] sm:$0xf] %v423
      %488 = vst [vmem:[%s172 + $0x30] sm:$0xf] %v424
      %489 = vst [vmem:[%s172 + $0x34] sm:$0xf] %v425
      %490 = vst [vmem:[%s172 + $0x38] sm:$0xf] %v426
      %491 = vst [vmem:[%s172 + $0x3c] sm:$0xf] %v427
      %492 = vst [vmem:[%s172 + $0x40] sm:$0xf] %v428
      %493 = vst [vmem:[%s172 + $0x44] sm:$0xf] %v429
      %494 = vst [vmem:[%s172 + $0x48] sm:$0xf] %v430
      %495 = vst [vmem:[%s172 + $0x4c] sm:$0xf] %v431
      %496 = vst [vmem:[%s172 + $0x50] sm:$0xf] %v432
      %497 = vst [vmem:[%s172 + $0x54] sm:$0xf] %v433
      %498 = vst [vmem:[%s172 + $0x58] sm:$0xf] %v434
      %499 = vst [vmem:[%s172 + $0x5c] sm:$0xf] %v435
      %500 = vst [vmem:[%s172 + $0x60] sm:$0xf] %v436
      %501 = vst [vmem:[%s172 + $0x64] sm:$0xf] %v437
      %502 = vst [vmem:[%s172 + $0x68] sm:$0xf] %v438
      %503 = vst [vmem:[%s172 + $0x6c] sm:$0xf] %v439
      %504 = vst [vmem:[%s172 + $0x70] sm:$0xf] %v440
      %505 = vst [vmem:[%s172 + $0x74] sm:$0xf] %v441
      %506 = vst [vmem:[%s172 + $0x78] sm:$0xf] %v442
      %507 = vst [vmem:[%s172 + $0x7c] sm:$0xf] %v443
      %s508 = smul.u32 32, %s14
      %p509 = scmp.lt.s32.totalorder %s508, 63
      %s510 = scalar_select %p509, %s508, 63
      %s511 = smul.addr %s510, 4
      %s512 = scalar_lea.vmem %s3, %s511
      // Predicated region
      $region33: #{block_forward.5} parent=31 // pred_check
        %p513 = pneg %p100
      $region34: #{block_forward.5} parent=31 // pred_check_branch
        %515 = sbr.rel (%p513) target = $region36
      $region35: #{block_forward.5} parent=31 // pred_region
        %s516 = smul.u32 32, %s14
      $region36: #{block_forward.5} parent=31 // pred_fallthru
        _
    $region32: #{block_forward.5} parent=5 // pred_fallthru
      _
    %p517 = scmp.le.s32.totalorder 2, %s9
    // Predicated region
    $region37: #{block_forward.5} parent=5 // pred_check
      %p518 = pneg %p517
    $region38: #{block_forward.5} parent=5 // pred_check_branch
      %520 = sbr.rel (%p518) target = $region40
    $region39: #{block_forward.5} parent=5 // pred_region
      %s521 = ssub.s32 %s9, 2
      // Predicated region
      $region41: #{block_forward.5} parent=39 // pred_check
        %p522 = pneg %p106
      $region42: #{block_forward.5} parent=39 // pred_check_branch
        %524 = sbr.rel (%p522) target = $region44
      $region43: #{block_forward.5} parent=39 // pred_region
        %s525 = smul.u32 32, %s15
        %p526 = scmp.lt.s32.totalorder %s525, 63
        %s527 = scalar_select %p526, %s525, 63
        %s528 = smul.addr %s527, 4
        %s529 = scalar_lea.vmem %s3, %s528
      $region44: #{block_forward.5} parent=39 // pred_fallthru
        _
    $region40: #{block_forward.5} parent=5 // pred_fallthru
      _
  $region6: #{block_forward.5} parent=0 // loop_footer
    %s13 = sadd.s32 1, %s9
  $region7: #{block_forward.5} parent=0 // loop_footer_branch
    %8 = sbr.rel target = $region3
  $region8: #{block_forward.5} parent=0 // loop_exit
    _

// kernel: block_forward.7
$region0: #{block_forward.7}
  #allocation0 [shape = 'u32[]', space=smem, size = 0x4, offset = 0x4, fixed_abs, tag = 'smem constant byte address 0x4 - core index']
  #allocation1 [shape = 'u32[144,128]{1,0:T(1,128)}', space=vmem, size = 0x12000, scoped, tag = 'internal scratch']
  %s0 = inlined_call_operand.vmem [shape: bf16[512,128], index: 0, kind: input, shape index: {}]
  %s1 = inlined_call_operand.vmem [shape: f32[1,128], index: 1, kind: input, shape index: {}]
  %s2 = inlined_call_operand.vmem [shape: f32[1,128], index: 2, kind: input, shape index: {}]
  %s3 = inlined_call_operand.vmem [shape: bf16[512,128], index: 3, kind: input, shape index: {}]
  %s4 = inlined_call_operand.vmem [shape: f32[512,128], index: 4, kind: output, shape index: {}]
  %s5 = sld [smem:[#allocation0]]
  $region49: #{block_forward.7} parent=0
    _
  %s7 = ssub.s32 1, %s5
  %s8 = scalar_select 0, %s7, %s5
  loop: start=0, step=1, limit=4
  $region2: #{block_forward.7} parent=0 // loop_pre_header
    _
  $region3: #{block_forward.7} parent=0 // loop_header
    %s10 = sphi 0, %s14
    %p11 = scmp.ge.s32.totalorder %s10, 4
    %s20 = sphi 0, %s22
    %s23 = sphi 0, %s20
    %s24 = sphi 0, %s23
    %s40 = sphi 0, %s24
    %s44 = sphi 0, %s44
    %s46 = sphi 0, %s44
    %s47 = sphi 0, %s46
    %s61 = sphi 0, %s47
    %s65 = sphi 0, %s65
    %s67 = sphi 0, %s65
    %s68 = sphi 0, %s67
    %s82 = sphi 0, %s68
    %s88 = sphi 0, %s90
    %s91 = sphi 0, %s88
    %s92 = sphi 0, %s91
    %s108 = sphi 0, %s92
    %s114 = sphi 0, %s116
    %s117 = sphi 0, %s114
    %s118 = sphi 0, %s117
    %s134 = sphi 0, %s118
  $region4: #{block_forward.7} parent=0 // loop_header_branch
    %13 = sbr.rel (%p11) target = $region8
  $region5: #{block_forward.7} parent=0 // loop_body
    %s15 = ssub.s32 %s10, 1
    %s16 = ssub.s32 %s10, 2
    %s17 = sadd.s32 %s10, 1
    %s18 = ssub.s32 %s10, %s17
    %p19 = scmp.eq.s32.totalorder %s18, 0
    %s21 = sadd.s32 %s20, 1
    %s22 = scalar_select %p19, %s20, %s21
    %p25 = pneg %p19
    %p26 = scmp.eq.s32.totalorder %s10, 1
    %p27 = por %p25, %p26
    %p28 = scmp.ne.s32.totalorder %s20, %s23
    %p29 = scmp.eq.s32.totalorder %s10, 0
    %p30 = por %p28, %p29
    %p31 = scmp.ne.s32.totalorder %s20, %s23
    %p32 = scmp.eq.s32.totalorder %s15, 1
    %p33 = por %p31, %p32
    %p34 = scmp.ne.s32.totalorder %s23, %s24
    %p35 = scmp.eq.s32.totalorder %s15, 0
    %p36 = por %p34, %p35
    %p37 = scmp.ne.s32.totalorder %s23, %s24
    %p38 = scmp.eq.s32.totalorder %s16, 1
    %p39 = por %p37, %p38
    %p41 = scmp.ne.s32.totalorder %s24, %s40
    %p42 = scmp.eq.s32.totalorder %s16, 0
    %p43 = por %p41, %p42
    %s45 = sadd.s32 %s44, 1
    %p48 = scmp.eq.s32.totalorder %s10, 1
    %p49 = scmp.ne.s32.totalorder %s44, %s46
    %p50 = scmp.eq.s32.totalorder %s10, 0
    %p51 = por %p49, %p50
    %p52 = scmp.ne.s32.totalorder %s44, %s46
    %p53 = scmp.eq.s32.totalorder %s15, 1
    %p54 = por %p52, %p53
    %p55 = scmp.ne.s32.totalorder %s46, %s47
    %p56 = scmp.eq.s32.totalorder %s15, 0
    %p57 = por %p55, %p56
    %p58 = scmp.ne.s32.totalorder %s46, %s47
    %p59 = scmp.eq.s32.totalorder %s16, 1
    %p60 = por %p58, %p59
    %p62 = scmp.ne.s32.totalorder %s47, %s61
    %p63 = scmp.eq.s32.totalorder %s16, 0
    %p64 = por %p62, %p63
    %s66 = sadd.s32 %s65, 1
    %p69 = scmp.eq.s32.totalorder %s10, 1
    %p70 = scmp.ne.s32.totalorder %s65, %s67
    %p71 = scmp.eq.s32.totalorder %s10, 0
    %p72 = por %p70, %p71
    %p73 = scmp.ne.s32.totalorder %s65, %s67
    %p74 = scmp.eq.s32.totalorder %s15, 1
    %p75 = por %p73, %p74
    %p76 = scmp.ne.s32.totalorder %s67, %s68
    %p77 = scmp.eq.s32.totalorder %s15, 0
    %p78 = por %p76, %p77
    %p79 = scmp.ne.s32.totalorder %s67, %s68
    %p80 = scmp.eq.s32.totalorder %s16, 1
    %p81 = por %p79, %p80
    %p83 = scmp.ne.s32.totalorder %s68, %s82
    %p84 = scmp.eq.s32.totalorder %s16, 0
    %p85 = por %p83, %p84
    %s86 = ssub.s32 %s10, %s17
    %p87 = scmp.eq.s32.totalorder %s86, 0
    %s89 = sadd.s32 %s88, 1
    %s90 = scalar_select %p87, %s88, %s89
    %p93 = pneg %p87
    %p94 = scmp.eq.s32.totalorder %s10, 1
    %p95 = por %p93, %p94
    %p96 = scmp.ne.s32.totalorder %s88, %s91
    %p97 = scmp.eq.s32.totalorder %s10, 0
    %p98 = por %p96, %p97
    %p99 = scmp.ne.s32.totalorder %s88, %s91
    %p100 = scmp.eq.s32.totalorder %s15, 1
    %p101 = por %p99, %p100
    %p102 = scmp.ne.s32.totalorder %s91, %s92
    %p103 = scmp.eq.s32.totalorder %s15, 0
    %p104 = por %p102, %p103
    %p105 = scmp.ne.s32.totalorder %s91, %s92
    %p106 = scmp.eq.s32.totalorder %s16, 1
    %p107 = por %p105, %p106
    %p109 = scmp.ne.s32.totalorder %s92, %s108
    %p110 = scmp.eq.s32.totalorder %s16, 0
    %p111 = por %p109, %p110
    %s112 = ssub.s32 %s10, %s17
    %p113 = scmp.eq.s32.totalorder %s112, 0
    %s115 = sadd.s32 %s114, 1
    %s116 = scalar_select %p113, %s114, %s115
    %p119 = pneg %p113
    %p120 = scmp.eq.s32.totalorder %s10, 1
    %p121 = por %p119, %p120
    %p122 = scmp.ne.s32.totalorder %s114, %s117
    %p123 = scmp.eq.s32.totalorder %s10, 0
    %p124 = por %p122, %p123
    %p125 = scmp.ne.s32.totalorder %s114, %s117
    %p126 = scmp.eq.s32.totalorder %s15, 1
    %p127 = por %p125, %p126
    %p128 = scmp.ne.s32.totalorder %s117, %s118
    %p129 = scmp.eq.s32.totalorder %s15, 0
    %p130 = por %p128, %p129
    %p131 = scmp.ne.s32.totalorder %s117, %s118
    %p132 = scmp.eq.s32.totalorder %s16, 1
    %p133 = por %p131, %p132
    %p135 = scmp.ne.s32.totalorder %s118, %s134
    %p136 = scmp.eq.s32.totalorder %s16, 0
    %p137 = por %p135, %p136
    %p138 = scmp.le.s32.totalorder 1, %s10
    %p139 = scmp.lt.s32.totalorder %s10, 3
    %p140 = pnand %p138, %p139
    %p141 = pneg %p140
    // Predicated region
    $region9: #{block_forward.7} parent=5 // pred_check
      _
    $region10: #{block_forward.7} parent=5 // pred_check_branch
      %143 = sbr.rel (%p140) target = $region12
    $region11: #{block_forward.7} parent=5 // pred_region
      %s144 = ssub.s32 %s10, 1
      // Predicated region
      $region13: #{block_forward.7} parent=11 // pred_check
        %p145 = pneg %p57
      $region14: #{block_forward.7} parent=11 // pred_check_branch
        %147 = sbr.rel (%p145) target = $region16
      $region15: #{block_forward.7} parent=11 // pred_region
        _
      $region16: #{block_forward.7} parent=11 // pred_fallthru
        _
      // Predicated region
      $region17: #{block_forward.7} parent=11 // pred_check
        %p148 = pneg %p78
      $region18: #{block_forward.7} parent=11 // pred_check_branch
        %150 = sbr.rel (%p148) target = $region20
      $region19: #{block_forward.7} parent=11 // pred_region
        _
      $region20: #{block_forward.7} parent=11 // pred_fallthru
        _
    $region12: #{block_forward.7} parent=5 // pred_fallthru
      _
    %p151 = scmp.lt.s32.totalorder %s10, 2
    // Predicated region
    $region21: #{block_forward.7} parent=5 // pred_check
      %p152 = pneg %p151
    $region22: #{block_forward.7} parent=5 // pred_check_branch
      %154 = sbr.rel (%p152) target = $region24
    $region23: #{block_forward.7} parent=5 // pred_region
      // Predicated region
      $region25: #{block_forward.7} parent=23 // pred_check
        %p155 = pneg %p30
      $region26: #{block_forward.7} parent=23 // pred_check_branch
        %157 = sbr.rel (%p155) target = $region28
      $region27: #{block_forward.7} parent=23 // pred_region
        %s158 = smul.u32 32, %s10
        %p159 = scmp.lt.s32.totalorder %s158, 63
        %s160 = scalar_select %p159, %s158, 63
        %s161 = smul.addr %s160, 4
        %s162 = scalar_lea.vmem %s0, %s161
        %s163 = smul.u32 32, %s10
      $region28: #{block_forward.7} parent=23 // pred_fallthru
        _
      // Predicated region
      $region29: #{block_forward.7} parent=23 // pred_check
        %p164 = pneg %p98
      $region30: #{block_forward.7} parent=23 // pred_check_branch
        %166 = sbr.rel (%p164) target = $region32
      $region31: #{block_forward.7} parent=23 // pred_region
        %s167 = smul.u32 32, %s10
        %p168 = scmp.lt.s32.totalorder %s167, 63
        %s169 = scalar_select %p168, %s167, 63
        %s170 = smul.addr %s169, 4
        %s171 = scalar_lea.vmem %s3, %s170
        %s172 = smul.u32 32, %s10
      $region32: #{block_forward.7} parent=23 // pred_fallthru
        _
    $region24: #{block_forward.7} parent=5 // pred_fallthru
      _
    %p173 = scmp.le.s32.totalorder 1, %s10
    %p174 = scmp.lt.s32.totalorder %s10, 3
    %p175 = pnand %p173, %p174
    %p176 = pneg %p175
    // Predicated region
    $region33: #{block_forward.7} parent=5 // pred_check
      _
    $region34: #{block_forward.7} parent=5 // pred_check_branch
      %178 = sbr.rel (%p175) target = $region36
    $region35: #{block_forward.7} parent=5 // pred_region
      %s179 = ssub.s32 %s10, 1
      %s180 = smul.u32 32, %s15
      %p181 = scmp.lt.s32.totalorder %s180, 63
      %s182 = scalar_select %p181, %s180, 63
      %s183 = smul.addr %s182, 4
      %s184 = scalar_lea.vmem %s0, %s183
      %p185 = pneg %p36
      %p186 = pneg %p33
      %p187 = pneg %p57
      %p188 = pneg %p54
      %p189 = pneg %p78
      %p190 = pneg %p75
      %s191 = smul.u32 32, %s15
      %p192 = scmp.lt.s32.totalorder %s191, 63
      %s193 = scalar_select %p192, %s191, 63
      %s194 = smul.addr %s193, 4
      %s195 = scalar_lea.vmem %s3, %s194
      %p196 = pneg %p104
      %p197 = pneg %p101
      %p198 = pneg %p130
      %p199 = pneg %p127
      %s200 = smul.u32 32, %s15
      %p201 = scmp.lt.s32.totalorder %s200, 63
      %s202 = scalar_select %p201, %s200, 63
      %s203 = smul.addr %s202, 8
      %s204 = scalar_lea.vmem %s4, %s203
      %s205 = smul.u32 32, %s15
      %p206 = scmp.lt.s32.totalorder %s205, 63
      %s207 = scalar_select %p206, %s205, 63
      %s208 = smul.addr %s207, 4
      %s209 = scalar_lea.vmem %s0, %s208
      %s210 = smul.u32 32, %s15
      %s211 = smul.u32 32, %s15
      %p212 = scmp.lt.s32.totalorder %s211, 63
      %s213 = scalar_select %p212, %s211, 63
      %s214 = smul.addr %s213, 4
      %s215 = scalar_lea.vmem %s3, %s214
      %s216 = smul.u32 32, %s15
      %s217 = smul.u32 32, %s15
      %p218 = scmp.lt.s32.totalorder %s217, 63
      %s219 = scalar_select %p218, %s217, 63
      %s220 = smul.addr %s219, 8
      %s221 = scalar_lea.vmem %s4, %s220
      %s222 = smul.u32 32, %s15
      %v223 = vld [vmem:[%s209] sm:$0xf]
      %v224 = vld [vmem:[%s209 + $0x4] sm:$0xf]
      %v225 = vld [vmem:[%s209 + $0x8] sm:$0xf]
      %v226 = vld [vmem:[%s209 + $0xc] sm:$0xf]
      %v227 = vld [vmem:[%s209 + $0x10] sm:$0xf]
      %v228 = vld [vmem:[%s209 + $0x14] sm:$0xf]
      %v229 = vld [vmem:[%s209 + $0x18] sm:$0xf]
      %v230 = vld [vmem:[%s209 + $0x1c] sm:$0xf]
      %v231 = vld [vmem:[%s209 + $0x20] sm:$0xf]
      %v232 = vld [vmem:[%s209 + $0x24] sm:$0xf]
      %v233 = vld [vmem:[%s209 + $0x28] sm:$0xf]
      %v234 = vld [vmem:[%s209 + $0x2c] sm:$0xf]
      %v235 = vld [vmem:[%s209 + $0x30] sm:$0xf]
      %v236 = vld [vmem:[%s209 + $0x34] sm:$0xf]
      %v237 = vld [vmem:[%s209 + $0x38] sm:$0xf]
      %v238 = vld [vmem:[%s209 + $0x3c] sm:$0xf]
      %v239 = vld [vmem:[%s209 + $0x40] sm:$0xf]
      %v240 = vld [vmem:[%s209 + $0x44] sm:$0xf]
      %v241 = vld [vmem:[%s209 + $0x48] sm:$0xf]
      %v242 = vld [vmem:[%s209 + $0x4c] sm:$0xf]
      %v243 = vld [vmem:[%s209 + $0x50] sm:$0xf]
      %v244 = vld [vmem:[%s209 + $0x54] sm:$0xf]
      %v245 = vld [vmem:[%s209 + $0x58] sm:$0xf]
      %v246 = vld [vmem:[%s209 + $0x5c] sm:$0xf]
      %v247 = vld [vmem:[%s209 + $0x60] sm:$0xf]
      %v248 = vld [vmem:[%s209 + $0x64] sm:$0xf]
      %v249 = vld [vmem:[%s209 + $0x68] sm:$0xf]
      %v250 = vld [vmem:[%s209 + $0x6c] sm:$0xf]
      %v251 = vld [vmem:[%s209 + $0x70] sm:$0xf]
      %v252 = vld [vmem:[%s209 + $0x74] sm:$0xf]
      %v253 = vld [vmem:[%s209 + $0x78] sm:$0xf]
      %v254 = vld [vmem:[%s209 + $0x7c] sm:$0xf]
      %v255 = vunpack.c.l.bf16 %v223
      %v256 = vunpack.c.l.bf16 %v224
      %v257 = vunpack.c.l.bf16 %v225
      %v258 = vunpack.c.l.bf16 %v226
      %v259 = vunpack.c.l.bf16 %v227
      %v260 = vunpack.c.l.bf16 %v228
      %v261 = vunpack.c.l.bf16 %v229
      %v262 = vunpack.c.l.bf16 %v230
      %v263 = vunpack.c.l.bf16 %v231
      %v264 = vunpack.c.l.bf16 %v232
      %v265 = vunpack.c.l.bf16 %v233
      %v266 = vunpack.c.l.bf16 %v234
      %v267 = vunpack.c.l.bf16 %v235
      %v268 = vunpack.c.l.bf16 %v236
      %v269 = vunpack.c.l.bf16 %v237
      %v270 = vunpack.c.l.bf16 %v238
      %v271 = vunpack.c.l.bf16 %v239
      %v272 = vunpack.c.l.bf16 %v240
      %v273 = vunpack.c.l.bf16 %v241
      %v274 = vunpack.c.l.bf16 %v242
      %v275 = vunpack.c.l.bf16 %v243
      %v276 = vunpack.c.l.bf16 %v244
      %v277 = vunpack.c.l.bf16 %v245
      %v278 = vunpack.c.l.bf16 %v246
      %v279 = vunpack.c.l.bf16 %v247
      %v280 = vunpack.c.l.bf16 %v248
      %v281 = vunpack.c.l.bf16 %v249
      %v282 = vunpack.c.l.bf16 %v250
      %v283 = vunpack.c.l.bf16 %v251
      %v284 = vunpack.c.l.bf16 %v252
      %v285 = vunpack.c.l.bf16 %v253
      %v286 = vunpack.c.l.bf16 %v254
      %v287 = vld [vmem:[%s1] sm:$0x1]
      %v289 = vlaneseq
      %v290 = vshrl.u32 %v289, 7
      %v291 = vsub.s32 0, %v290
      %v292 = vrot.slane %v287, %v291
      %v294 = vmul.f32 %v255, %v292
      %v295 = vmul.f32 %v256, %v292
      %v296 = vmul.f32 %v257, %v292
      %v297 = vmul.f32 %v258, %v292
      %v298 = vmul.f32 %v259, %v292
      %v299 = vmul.f32 %v260, %v292
      %v300 = vmul.f32 %v261, %v292
      %v301 = vmul.f32 %v262, %v292
      %v302 = vmul.f32 %v263, %v292
      %v303 = vmul.f32 %v264, %v292
      %v304 = vmul.f32 %v265, %v292
      %v305 = vmul.f32 %v266, %v292
      %v306 = vmul.f32 %v267, %v292
      %v307 = vmul.f32 %v268, %v292
      %v308 = vmul.f32 %v269, %v292
      %v309 = vmul.f32 %v270, %v292
      %v310 = vmul.f32 %v271, %v292
      %v311 = vmul.f32 %v272, %v292
      %v312 = vmul.f32 %v273, %v292
      %v313 = vmul.f32 %v274, %v292
      %v314 = vmul.f32 %v275, %v292
      %v315 = vmul.f32 %v276, %v292
      %v316 = vmul.f32 %v277, %v292
      %v317 = vmul.f32 %v278, %v292
      %v318 = vmul.f32 %v279, %v292
      %v319 = vmul.f32 %v280, %v292
      %v320 = vmul.f32 %v281, %v292
      %v321 = vmul.f32 %v282, %v292
      %v322 = vmul.f32 %v283, %v292
      %v323 = vmul.f32 %v284, %v292
      %v324 = vmul.f32 %v285, %v292
      %v325 = vmul.f32 %v286, %v292
      %v326 = vld [vmem:[%s2] sm:$0x1]
      %v328 = vlaneseq
      %v329 = vshrl.u32 %v328, 7
      %v330 = vsub.s32 0, %v329
      %v331 = vrot.slane %v326, %v330
      %v333 = vadd.f32 %v294, %v331
      %v334 = vadd.f32 %v295, %v331
      %v335 = vadd.f32 %v296, %v331
      %v336 = vadd.f32 %v297, %v331
      %v337 = vadd.f32 %v298, %v331
      %v338 = vadd.f32 %v299, %v331
      %v339 = vadd.f32 %v300, %v331
      %v340 = vadd.f32 %v301, %v331
      %v341 = vadd.f32 %v302, %v331
      %v342 = vadd.f32 %v303, %v331
      %v343 = vadd.f32 %v304, %v331
      %v344 = vadd.f32 %v305, %v331
      %v345 = vadd.f32 %v306, %v331
      %v346 = vadd.f32 %v307, %v331
      %v347 = vadd.f32 %v308, %v331
      %v348 = vadd.f32 %v309, %v331
      %v349 = vadd.f32 %v310, %v331
      %v350 = vadd.f32 %v311, %v331
      %v351 = vadd.f32 %v312, %v331
      %v352 = vadd.f32 %v313, %v331
      %v353 = vadd.f32 %v314, %v331
      %v354 = vadd.f32 %v315, %v331
      %v355 = vadd.f32 %v316, %v331
      %v356 = vadd.f32 %v317, %v331
      %v357 = vadd.f32 %v318, %v331
      %v358 = vadd.f32 %v319, %v331
      %v359 = vadd.f32 %v320, %v331
      %v360 = vadd.f32 %v321, %v331
      %v361 = vadd.f32 %v322, %v331
      %v362 = vadd.f32 %v323, %v331
      %v363 = vadd.f32 %v324, %v331
      %v364 = vadd.f32 %v325, %v331
      %v365 = vld [vmem:[%s215] sm:$0xf]
      %v366 = vld [vmem:[%s215 + $0x4] sm:$0xf]
      %v367 = vld [vmem:[%s215 + $0x8] sm:$0xf]
      %v368 = vld [vmem:[%s215 + $0xc] sm:$0xf]
      %v369 = vld [vmem:[%s215 + $0x10] sm:$0xf]
      %v370 = vld [vmem:[%s215 + $0x14] sm:$0xf]
      %v371 = vld [vmem:[%s215 + $0x18] sm:$0xf]
      %v372 = vld [vmem:[%s215 + $0x1c] sm:$0xf]
      %v373 = vld [vmem:[%s215 + $0x20] sm:$0xf]
      %v374 = vld [vmem:[%s215 + $0x24] sm:$0xf]
      %v375 = vld [vmem:[%s215 + $0x28] sm:$0xf]
      %v376 = vld [vmem:[%s215 + $0x2c] sm:$0xf]
      %v377 = vld [vmem:[%s215 + $0x30] sm:$0xf]
      %v378 = vld [vmem:[%s215 + $0x34] sm:$0xf]
      %v379 = vld [vmem:[%s215 + $0x38] sm:$0xf]
      %v380 = vld [vmem:[%s215 + $0x3c] sm:$0xf]
      %v381 = vld [vmem:[%s215 + $0x40] sm:$0xf]
      %v382 = vld [vmem:[%s215 + $0x44] sm:$0xf]
      %v383 = vld [vmem:[%s215 + $0x48] sm:$0xf]
      %v384 = vld [vmem:[%s215 + $0x4c] sm:$0xf]
      %v385 = vld [vmem:[%s215 + $0x50] sm:$0xf]
      %v386 = vld [vmem:[%s215 + $0x54] sm:$0xf]
      %v387 = vld [vmem:[%s215 + $0x58] sm:$0xf]
      %v388 = vld [vmem:[%s215 + $0x5c] sm:$0xf]
      %v389 = vld [vmem:[%s215 + $0x60] sm:$0xf]
      %v390 = vld [vmem:[%s215 + $0x64] sm:$0xf]
      %v391 = vld [vmem:[%s215 + $0x68] sm:$0xf]
      %v392 = vld [vmem:[%s215 + $0x6c] sm:$0xf]
      %v393 = vld [vmem:[%s215 + $0x70] sm:$0xf]
      %v394 = vld [vmem:[%s215 + $0x74] sm:$0xf]
      %v395 = vld [vmem:[%s215 + $0x78] sm:$0xf]
      %v396 = vld [vmem:[%s215 + $0x7c] sm:$0xf]
      %v397 = vunpack.c.l.bf16 %v365
      %v398 = vunpack.c.l.bf16 %v366
      %v399 = vunpack.c.l.bf16 %v367
      %v400 = vunpack.c.l.bf16 %v368
      %v401 = vunpack.c.l.bf16 %v369
      %v402 = vunpack.c.l.bf16 %v370
      %v403 = vunpack.c.l.bf16 %v371
      %v404 = vunpack.c.l.bf16 %v372
      %v405 = vunpack.c.l.bf16 %v373
      %v406 = vunpack.c.l.bf16 %v374
      %v407 = vunpack.c.l.bf16 %v375
      %v408 = vunpack.c.l.bf16 %v376
      %v409 = vunpack.c.l.bf16 %v377
      %v410 = vunpack.c.l.bf16 %v378
      %v411 = vunpack.c.l.bf16 %v379
      %v412 = vunpack.c.l.bf16 %v380
      %v413 = vunpack.c.l.bf16 %v381
      %v414 = vunpack.c.l.bf16 %v382
      %v415 = vunpack.c.l.bf16 %v383
      %v416 = vunpack.c.l.bf16 %v384
      %v417 = vunpack.c.l.bf16 %v385
      %v418 = vunpack.c.l.bf16 %v386
      %v419 = vunpack.c.l.bf16 %v387
      %v420 = vunpack.c.l.bf16 %v388
      %v421 = vunpack.c.l.bf16 %v389
      %v422 = vunpack.c.l.bf16 %v390
      %v423 = vunpack.c.l.bf16 %v391
      %v424 = vunpack.c.l.bf16 %v392
      %v425 = vunpack.c.l.bf16 %v393
      %v426 = vunpack.c.l.bf16 %v394
      %v427 = vunpack.c.l.bf16 %v395
      %v428 = vunpack.c.l.bf16 %v396
      %v429 = vadd.f32 %v333, %v397
      %v430 = vadd.f32 %v334, %v398
      %v431 = vadd.f32 %v335, %v399
      %v432 = vadd.f32 %v336, %v400
      %v433 = vadd.f32 %v337, %v401
      %v434 = vadd.f32 %v338, %v402
      %v435 = vadd.f32 %v339, %v403
      %v436 = vadd.f32 %v340, %v404
      %v437 = vadd.f32 %v341, %v405
      %v438 = vadd.f32 %v342, %v406
      %v439 = vadd.f32 %v343, %v407
      %v440 = vadd.f32 %v344, %v408
      %v441 = vadd.f32 %v345, %v409
      %v442 = vadd.f32 %v346, %v410
      %v443 = vadd.f32 %v347, %v411
      %v444 = vadd.f32 %v348, %v412
      %v445 = vadd.f32 %v349, %v413
      %v446 = vadd.f32 %v350, %v414
      %v447 = vadd.f32 %v351, %v415
      %v448 = vadd.f32 %v352, %v416
      %v449 = vadd.f32 %v353, %v417
      %v450 = vadd.f32 %v354, %v418
      %v451 = vadd.f32 %v355, %v419
      %v452 = vadd.f32 %v356, %v420
      %v453 = vadd.f32 %v357, %v421
      %v454 = vadd.f32 %v358, %v422
      %v455 = vadd.f32 %v359, %v423
      %v456 = vadd.f32 %v360, %v424
      %v457 = vadd.f32 %v361, %v425
      %v458 = vadd.f32 %v362, %v426
      %v459 = vadd.f32 %v363, %v427
      %v460 = vadd.f32 %v364, %v428
      %v461 = vmax.f32 %v429, 0.0
      %v462 = vmax.f32 %v430, 0.0
      %v463 = vmax.f32 %v431, 0.0
      %v464 = vmax.f32 %v432, 0.0
      %v465 = vmax.f32 %v433, 0.0
      %v466 = vmax.f32 %v434, 0.0
      %v467 = vmax.f32 %v435, 0.0
      %v468 = vmax.f32 %v436, 0.0
      %v469 = vmax.f32 %v437, 0.0
      %v470 = vmax.f32 %v438, 0.0
      %v471 = vmax.f32 %v439, 0.0
      %v472 = vmax.f32 %v440, 0.0
      %v473 = vmax.f32 %v441, 0.0
      %v474 = vmax.f32 %v442, 0.0
      %v475 = vmax.f32 %v443, 0.0
      %v476 = vmax.f32 %v444, 0.0
      %v477 = vmax.f32 %v445, 0.0
      %v478 = vmax.f32 %v446, 0.0
      %v479 = vmax.f32 %v447, 0.0
      %v480 = vmax.f32 %v448, 0.0
      %v481 = vmax.f32 %v449, 0.0
      %v482 = vmax.f32 %v450, 0.0
      %v483 = vmax.f32 %v451, 0.0
      %v484 = vmax.f32 %v452, 0.0
      %v485 = vmax.f32 %v453, 0.0
      %v486 = vmax.f32 %v454, 0.0
      %v487 = vmax.f32 %v455, 0.0
      %v488 = vmax.f32 %v456, 0.0
      %v489 = vmax.f32 %v457, 0.0
      %v490 = vmax.f32 %v458, 0.0
      %v491 = vmax.f32 %v459, 0.0
      %v492 = vmax.f32 %v460, 0.0
      %493 = vst [vmem:[%s221] sm:$0xff] %v461
      %494 = vst [vmem:[%s221 + $0x8] sm:$0xff] %v462
      %495 = vst [vmem:[%s221 + $0x10] sm:$0xff] %v463
      %496 = vst [vmem:[%s221 + $0x18] sm:$0xff] %v464
      %497 = vst [vmem:[%s221 + $0x20] sm:$0xff] %v465
      %498 = vst [vmem:[%s221 + $0x28] sm:$0xff] %v466
      %499 = vst [vmem:[%s221 + $0x30] sm:$0xff] %v467
      %500 = vst [vmem:[%s221 + $0x38] sm:$0xff] %v468
      %501 = vst [vmem:[%s221 + $0x40] sm:$0xff] %v469
      %502 = vst [vmem:[%s221 + $0x48] sm:$0xff] %v470
      %503 = vst [vmem:[%s221 + $0x50] sm:$0xff] %v471
      %504 = vst [vmem:[%s221 + $0x58] sm:$0xff] %v472
      %505 = vst [vmem:[%s221 + $0x60] sm:$0xff] %v473
      %506 = vst [vmem:[%s221 + $0x68] sm:$0xff] %v474
      %507 = vst [vmem:[%s221 + $0x70] sm:$0xff] %v475
      %508 = vst [vmem:[%s221 + $0x78] sm:$0xff] %v476
      %509 = vst [vmem:[%s221 + $0x80] sm:$0xff] %v477
      %510 = vst [vmem:[%s221 + $0x88] sm:$0xff] %v478
      %511 = vst [vmem:[%s221 + $0x90] sm:$0xff] %v479
      %512 = vst [vmem:[%s221 + $0x98] sm:$0xff] %v480
      %513 = vst [vmem:[%s221 + $0xa0] sm:$0xff] %v481
      %514 = vst [vmem:[%s221 + $0xa8] sm:$0xff] %v482
      %515 = vst [vmem:[%s221 + $0xb0] sm:$0xff] %v483
      %516 = vst [vmem:[%s221 + $0xb8] sm:$0xff] %v484
      %517 = vst [vmem:[%s221 + $0xc0] sm:$0xff] %v485
      %518 = vst [vmem:[%s221 + $0xc8] sm:$0xff] %v486
      %519 = vst [vmem:[%s221 + $0xd0] sm:$0xff] %v487
      %520 = vst [vmem:[%s221 + $0xd8] sm:$0xff] %v488
      %521 = vst [vmem:[%s221 + $0xe0] sm:$0xff] %v489
      %522 = vst [vmem:[%s221 + $0xe8] sm:$0xff] %v490
      %523 = vst [vmem:[%s221 + $0xf0] sm:$0xff] %v491
      %524 = vst [vmem:[%s221 + $0xf8] sm:$0xff] %v492
      %s525 = smul.u32 32, %s15
      %p526 = scmp.lt.s32.totalorder %s525, 63
      %s527 = scalar_select %p526, %s525, 63
      %s528 = smul.addr %s527, 8
      %s529 = scalar_lea.vmem %s4, %s528
      // Predicated region
      $region37: #{block_forward.7} parent=35 // pred_check
        %p530 = pneg %p127
      $region38: #{block_forward.7} parent=35 // pred_check_branch
        %532 = sbr.rel (%p530) target = $region40
      $region39: #{block_forward.7} parent=35 // pred_region
        %s533 = smul.u32 32, %s15
      $region40: #{block_forward.7} parent=35 // pred_fallthru
        _
    $region36: #{block_forward.7} parent=5 // pred_fallthru
      _
    %p534 = scmp.le.s32.totalorder 2, %s10
    // Predicated region
    $region41: #{block_forward.7} parent=5 // pred_check
      %p535 = pneg %p534
    $region42: #{block_forward.7} parent=5 // pred_check_branch
      %537 = sbr.rel (%p535) target = $region44
    $region43: #{block_forward.7} parent=5 // pred_region
      %s538 = ssub.s32 %s10, 2
      // Predicated region
      $region45: #{block_forward.7} parent=43 // pred_check
        %p539 = pneg %p133
      $region46: #{block_forward.7} parent=43 // pred_check_branch
        %541 = sbr.rel (%p539) target = $region48
      $region47: #{block_forward.7} parent=43 // pred_region
        %s542 = smul.u32 32, %s16
        %p543 = scmp.lt.s32.totalorder %s542, 63
        %s544 = scalar_select %p543, %s542, 63
        %s545 = smul.addr %s544, 8
        %s546 = scalar_lea.vmem %s4, %s545
      $region48: #{block_forward.7} parent=43 // pred_fallthru
        _
    $region44: #{block_forward.7} parent=5 // pred_fallthru
      _
  $region6: #{block_forward.7} parent=0 // loop_footer
    %s14 = sadd.s32 1, %s10
  $region7: #{block_forward.7} parent=0 // loop_footer_branch
    %9 = sbr.rel target = $region3
  $region8: #{block_forward.7} parent=0 // loop_exit
    _

// kernel: block_forward.4
$region0: #{block_forward.4}
  #allocation0 [shape = 'u32[]', space=smem, size = 0x4, offset = 0x4, fixed_abs, tag = 'smem constant byte address 0x4 - core index']
  #allocation1 [shape = 'u32[144,128]{1,0:T(1,128)}', space=vmem, size = 0x12000, scoped, tag = 'internal scratch']
  %s0 = inlined_call_operand.vmem [shape: bf16[2,18,18,4], index: 0, kind: input, shape index: {}]
  %s1 = inlined_call_operand.vmem [shape: bf16[36,128], index: 1, kind: input, shape index: {}]
  %s2 = inlined_call_operand.vmem [shape: bf16[2,16,16,128], index: 2, kind: output, shape index: {0}]
  %s3 = inlined_call_operand.vmem [shape: f32[2,1,2,128], index: 3, kind: output, shape index: {1}]
  %4 = xla_tuple %s2, %s3
  %s5 = sld [smem:[#allocation0]]
  $region49: #{block_forward.4} parent=0
    _
  %s7 = ssub.s32 1, %s5
  %s8 = scalar_select 0, %s7, %s5
  loop: start=0, step=1, limit=4
  $region2: #{block_forward.4} parent=0 // loop_pre_header
    _
  $region3: #{block_forward.4} parent=0 // loop_header
    %s10 = sphi 0, %s14
    %p11 = scmp.ge.s32.totalorder %s10, 4
    %s17 = sphi 0, %s29
    %s18 = sphi 0, %s25
    %s19 = sphi 0, %s17
    %s20 = sphi 0, %s18
    %s21 = sphi 0, %s19
    %s22 = sphi 0, %s20
    %s32 = sphi 0, %s34
    %s35 = sphi 0, %s32
    %s36 = sphi 0, %s35
    %s52 = sphi 0, %s36
    %s56 = sphi 0, %s56
    %s58 = sphi 0, %s56
    %s59 = sphi 0, %s58
    %s73 = sphi 0, %s59
    %s81 = sphi 0, %s83
    %s84 = sphi 0, %s81
    %s85 = sphi 0, %s84
    %s101 = sphi 0, %s85
    %s109 = sphi 0, %s111
    %s112 = sphi 0, %s109
    %s113 = sphi 0, %s112
    %s129 = sphi 0, %s113
  $region4: #{block_forward.4} parent=0 // loop_header_branch
    %13 = sbr.rel (%p11) target = $region8
  $region5: #{block_forward.4} parent=0 // loop_body
    %s15 = ssub.s32 %s10, 1
    %s16 = ssub.s32 %s10, 2
    %s23 = sadd.s32 1, %s18
    %p24 = scmp.ge.s32.totalorder %s23, 1
    %s25 = scalar_select %p24, 0, %s23
    %s26 = sadd.s32 1, %s17
    %s27 = scalar_select %p24, %s26, %s17
    %p28 = scmp.ge.s32.totalorder %s27, 2
    %s29 = scalar_select %p28, 0, %s27
    %s30 = ssub.s32 %s17, %s29
    %p31 = scmp.eq.s32.totalorder %s30, 0
    %s33 = sadd.s32 %s32, 1
    %s34 = scalar_select %p31, %s32, %s33
    %p37 = pneg %p31
    %p38 = scmp.eq.s32.totalorder %s10, 1
    %p39 = por %p37, %p38
    %p40 = scmp.ne.s32.totalorder %s32, %s35
    %p41 = scmp.eq.s32.totalorder %s10, 0
    %p42 = por %p40, %p41
    %p43 = scmp.ne.s32.totalorder %s32, %s35
    %p44 = scmp.eq.s32.totalorder %s15, 1
    %p45 = por %p43, %p44
    %p46 = scmp.ne.s32.totalorder %s35, %s36
    %p47 = scmp.eq.s32.totalorder %s15, 0
    %p48 = por %p46, %p47
    %p49 = scmp.ne.s32.totalorder %s35, %s36
    %p50 = scmp.eq.s32.totalorder %s16, 1
    %p51 = por %p49, %p50
    %p53 = scmp.ne.s32.totalorder %s36, %s52
    %p54 = scmp.eq.s32.totalorder %s16, 0
    %p55 = por %p53, %p54
    %s57 = sadd.s32 %s56, 1
    %p60 = scmp.eq.s32.totalorder %s10, 1
    %p61 = scmp.ne.s32.totalorder %s56, %s58
    %p62 = scmp.eq.s32.totalorder %s10, 0
    %p63 = por %p61, %p62
    %p64 = scmp.ne.s32.totalorder %s56, %s58
    %p65 = scmp.eq.s32.totalorder %s15, 1
    %p66 = por %p64, %p65
    %p67 = scmp.ne.s32.totalorder %s58, %s59
    %p68 = scmp.eq.s32.totalorder %s15, 0
    %p69 = por %p67, %p68
    %p70 = scmp.ne.s32.totalorder %s58, %s59
    %p71 = scmp.eq.s32.totalorder %s16, 1
    %p72 = por %p70, %p71
    %p74 = scmp.ne.s32.totalorder %s59, %s73
    %p75 = scmp.eq.s32.totalorder %s16, 0
    %p76 = por %p74, %p75
    %s77 = ssub.s32 %s17, %s29
    %s78 = ssub.s32 %s18, %s25
    %s79 = sor.u32 %s77, %s78
    %p80 = scmp.eq.s32.totalorder %s79, 0
    %s82 = sadd.s32 %s81, 1
    %s83 = scalar_select %p80, %s81, %s82
    %p86 = pneg %p80
    %p87 = scmp.eq.s32.totalorder %s10, 1
    %p88 = por %p86, %p87
    %p89 = scmp.ne.s32.totalorder %s81, %s84
    %p90 = scmp.eq.s32.totalorder %s10, 0
    %p91 = por %p89, %p90
    %p92 = scmp.ne.s32.totalorder %s81, %s84
    %p93 = scmp.eq.s32.totalorder %s15, 1
    %p94 = por %p92, %p93
    %p95 = scmp.ne.s32.totalorder %s84, %s85
    %p96 = scmp.eq.s32.totalorder %s15, 0
    %p97 = por %p95, %p96
    %p98 = scmp.ne.s32.totalorder %s84, %s85
    %p99 = scmp.eq.s32.totalorder %s16, 1
    %p100 = por %p98, %p99
    %p102 = scmp.ne.s32.totalorder %s85, %s101
    %p103 = scmp.eq.s32.totalorder %s16, 0
    %p104 = por %p102, %p103
    %s105 = ssub.s32 %s17, %s29
    %s106 = ssub.s32 %s18, %s25
    %s107 = sor.u32 %s105, %s106
    %p108 = scmp.eq.s32.totalorder %s107, 0
    %s110 = sadd.s32 %s109, 1
    %s111 = scalar_select %p108, %s109, %s110
    %p114 = pneg %p108
    %p115 = scmp.eq.s32.totalorder %s10, 1
    %p116 = por %p114, %p115
    %p117 = scmp.ne.s32.totalorder %s109, %s112
    %p118 = scmp.eq.s32.totalorder %s10, 0
    %p119 = por %p117, %p118
    %p120 = scmp.ne.s32.totalorder %s109, %s112
    %p121 = scmp.eq.s32.totalorder %s15, 1
    %p122 = por %p120, %p121
    %p123 = scmp.ne.s32.totalorder %s112, %s113
    %p124 = scmp.eq.s32.totalorder %s15, 0
    %p125 = por %p123, %p124
    %p126 = scmp.ne.s32.totalorder %s112, %s113
    %p127 = scmp.eq.s32.totalorder %s16, 1
    %p128 = por %p126, %p127
    %p130 = scmp.ne.s32.totalorder %s113, %s129
    %p131 = scmp.eq.s32.totalorder %s16, 0
    %p132 = por %p130, %p131
    %p133 = scmp.le.s32.totalorder 1, %s10
    %p134 = scmp.lt.s32.totalorder %s10, 3
    %p135 = pnand %p133, %p134
    %p136 = pneg %p135
    // Predicated region
    $region9: #{block_forward.4} parent=5 // pred_check
      _
    $region10: #{block_forward.4} parent=5 // pred_check_branch
      %138 = sbr.rel (%p135) target = $region12
    $region11: #{block_forward.4} parent=5 // pred_region
      %s139 = ssub.s32 %s10, 1
      // Predicated region
      $region13: #{block_forward.4} parent=11 // pred_check
        %p140 = pneg %p69
      $region14: #{block_forward.4} parent=11 // pred_check_branch
        %142 = sbr.rel (%p140) target = $region16
      $region15: #{block_forward.4} parent=11 // pred_region
        _
      $region16: #{block_forward.4} parent=11 // pred_fallthru
        _
    $region12: #{block_forward.4} parent=5 // pred_fallthru
      _
    %p143 = scmp.lt.s32.totalorder %s10, 2
    // Predicated region
    $region17: #{block_forward.4} parent=5 // pred_check
      %p144 = pneg %p143
    $region18: #{block_forward.4} parent=5 // pred_check_branch
      %146 = sbr.rel (%p144) target = $region20
    $region19: #{block_forward.4} parent=5 // pred_region
      // Predicated region
      $region21: #{block_forward.4} parent=19 // pred_check
        %p147 = pneg %p42
      $region22: #{block_forward.4} parent=19 // pred_check_branch
        %149 = sbr.rel (%p147) target = $region24
      $region23: #{block_forward.4} parent=19 // pred_region
        %p150 = scmp.lt.s32.totalorder %s17, 1
        %s151 = scalar_select %p150, %s17, 1
        %s152 = smul.addr %s151, 54
        %s153 = smul.addr %s152, 4
        %s154 = scalar_lea.vmem %s0, %s153
      $region24: #{block_forward.4} parent=19 // pred_fallthru
        _
    $region20: #{block_forward.4} parent=5 // pred_fallthru
      _
    %p155 = scmp.le.s32.totalorder 1, %s10
    %p156 = scmp.lt.s32.totalorder %s10, 3
    %p157 = pnand %p155, %p156
    %p158 = pneg %p157
    // Predicated region
    $region25: #{block_forward.4} parent=5 // pred_check
      _
    $region26: #{block_forward.4} parent=5 // pred_check_branch
      %160 = sbr.rel (%p157) target = $region28
    $region27: #{block_forward.4} parent=5 // pred_region
      %s161 = ssub.s32 %s10, 1
      %p162 = scmp.lt.s32.totalorder %s19, 1
      %s163 = scalar_select %p162, %s19, 1
      %s164 = smul.addr %s163, 54
      %s165 = smul.addr %s164, 4
      %s166 = scalar_lea.vmem %s0, %s165
      %p167 = pneg %p48
      %p168 = pneg %p45
      %p169 = pneg %p69
      %p170 = pneg %p66
      %p171 = pneg %p97
      %p172 = pneg %p94
      %s173 = smul.u32 16, %s20
      %p174 = scmp.lt.s32.totalorder %s19, 1
      %s175 = scalar_select %p174, %s19, 1
      %p176 = scmp.lt.s32.totalorder %s173, 15
      %s177 = scalar_select %p176, %s173, 15
      %s178 = smul.addr %s177, 2
      %s179 = smul.addr %s175, 32
      %s180 = sadd.s32 %s178, %s179
      %s181 = smul.addr %s180, 4
      %s182 = scalar_lea.vmem %s2, %s181
      %p183 = pneg %p125
      %p184 = pneg %p122
      %p185 = scmp.lt.s32.totalorder %s19, 1
      %s186 = scalar_select %p185, %s19, 1
      %p187 = scmp.lt.s32.totalorder %s20, 0
      %s188 = scalar_select %p187, %s20, 0
      %s189 = sadd.s32 %s188, %s186
      %s190 = smul.addr %s189, 2
      %s191 = scalar_lea.vmem %s3, %s190
      %p192 = scmp.lt.s32.totalorder %s19, 1
      %s193 = scalar_select %p192, %s19, 1
      %s194 = smul.addr %s193, 54
      %s195 = smul.addr %s194, 4
      %s196 = scalar_lea.vmem %s0, %s195
      %s197 = smul.u32 16, %s20
      %p198 = scmp.lt.s32.totalorder %s19, 1
      %s199 = scalar_select %p198, %s19, 1
      %p200 = scmp.lt.s32.totalorder %s197, 15
      %s201 = scalar_select %p200, %s197, 15
      %s202 = smul.addr %s201, 2
      %s203 = smul.addr %s199, 32
      %s204 = sadd.s32 %s202, %s203
      %s205 = smul.addr %s204, 4
      %s206 = scalar_lea.vmem %s2, %s205
      %s207 = smul.u32 16, %s20
      %p208 = scmp.lt.s32.totalorder %s19, 1
      %s209 = scalar_select %p208, %s19, 1
      %p210 = scmp.lt.s32.totalorder %s20, 0
      %s211 = scalar_select %p210, %s20, 0
      %s212 = sadd.s32 %s211, %s209
      %s213 = smul.addr %s212, 2
      %s214 = scalar_lea.vmem %s3, %s213
      %s216 = smul.u32 %s20, 16
      %s217 = smul.u32 %s216, 3
      %s218 = smul.addr %s217, 4
      %s219 = scalar_lea.vmem %s196, %s218
      %v220 = vld [vmem:[%s219] sm:$0xf]
      %v221 = vld [vmem:[%s219 + $0x4] sm:$0xf]
      %v222 = vld [vmem:[%s219 + $0xc] sm:$0xf]
      %v223 = vld [vmem:[%s219 + $0x10] sm:$0xf]
      %v224 = vld [vmem:[%s219 + $0x18] sm:$0xf]
      %v225 = vld [vmem:[%s219 + $0x1c] sm:$0xf]
      %v226 = vld [vmem:[%s219 + $0x24] sm:$0xf]
      %v227 = vld [vmem:[%s219 + $0x28] sm:$0xf]
      %v228 = vld [vmem:[%s219 + $0x30] sm:$0xf]
      %v229 = vld [vmem:[%s219 + $0x34] sm:$0xf]
      %v230 = vld [vmem:[%s219 + $0x3c] sm:$0xf]
      %v231 = vld [vmem:[%s219 + $0x40] sm:$0xf]
      %v232 = vld [vmem:[%s219 + $0x48] sm:$0xf]
      %v233 = vld [vmem:[%s219 + $0x4c] sm:$0xf]
      %v234 = vld [vmem:[%s219 + $0x54] sm:$0xf]
      %v235 = vld [vmem:[%s219 + $0x58] sm:$0xf]
      %v236 = vld [vmem:[%s219 + $0x60] sm:$0xf]
      %v237 = vld [vmem:[%s219 + $0x64] sm:$0xf]
      %v238 = vld [vmem:[%s219 + $0x6c] sm:$0xf]
      %v239 = vld [vmem:[%s219 + $0x70] sm:$0xf]
      %v240 = vld [vmem:[%s219 + $0x78] sm:$0xf]
      %v241 = vld [vmem:[%s219 + $0x7c] sm:$0xf]
      %v242 = vld [vmem:[%s219 + $0x84] sm:$0xf]
      %v243 = vld [vmem:[%s219 + $0x88] sm:$0xf]
      %v244 = vld [vmem:[%s219 + $0x90] sm:$0xf]
      %v245 = vld [vmem:[%s219 + $0x94] sm:$0xf]
      %v246 = vld [vmem:[%s219 + $0x9c] sm:$0xf]
      %v247 = vld [vmem:[%s219 + $0xa0] sm:$0xf]
      %v248 = vld [vmem:[%s219 + $0xa8] sm:$0xf]
      %v249 = vld [vmem:[%s219 + $0xac] sm:$0xf]
      %v250 = vld [vmem:[%s219 + $0xb4] sm:$0xf]
      %v251 = vld [vmem:[%s219 + $0xb8] sm:$0xf]
      %v252 = vld [vmem:[%s1] sm:$0x3]
      %v253 = vld [vmem:[%s219 + $0x8] sm:$0x1]
      %v254 = vld [vmem:[%s219 + $0x14] sm:$0x1]
      %v255 = vld [vmem:[%s219 + $0x20] sm:$0x1]
      %v256 = vld [vmem:[%s219 + $0x2c] sm:$0x1]
      %v257 = vld [vmem:[%s219 + $0x38] sm:$0x1]
      %v258 = vld [vmem:[%s219 + $0x44] sm:$0x1]
      %v259 = vld [vmem:[%s219 + $0x50] sm:$0x1]
      %v260 = vld [vmem:[%s219 + $0x5c] sm:$0x1]
      %v261 = vld [vmem:[%s219 + $0x68] sm:$0x1]
      %v262 = vld [vmem:[%s219 + $0x74] sm:$0x1]
      %v263 = vld [vmem:[%s219 + $0x80] sm:$0x1]
      %v264 = vld [vmem:[%s219 + $0x8c] sm:$0x1]
      %v265 = vld [vmem:[%s219 + $0x98] sm:$0x1]
      %v266 = vld [vmem:[%s219 + $0xa4] sm:$0x1]
      %v267 = vld [vmem:[%s219 + $0xb0] sm:$0x1]
      %v268 = vld [vmem:[%s219 + $0xbc] sm:$0x1]
      %vm269 = vsmask.f32 3328
      %vm270 = vsmask.f32 7440
      %vm271 = vmor %vm269, %vm270
      %v273 = vshrl.u32 %v220, 16
      %v275 = vrot.slane %v273, 4
      %v276 = vshll.u32 %v220, 16
      %v278 = vrot.slane %v276, 5
      %v279 = vor.u32 %v275, %v278
      %v280 = vrot.slane %v279, 4
      %v282 = vshll.u32 %v221, 16
      %v284 = vrot.slane %v282, 5
      %v285 = vsel %vm271, %v280, %v284
      %v286 = vshrl.u32 %v221, 16
      %v288 = vrot.slane %v286, 4
      %v289 = vor.u32 %v288, %v284
      %v290 = vrot.slane %v289, 4
      %v292 = vshll.u32 %v253, 16
      %v294 = vrot.slane %v292, 5
      %v295 = vsel %vm271, %v290, %v294
      %v297 = vshrl.u32 %v222, 16
      %v299 = vrot.slane %v297, 4
      %v300 = vshll.u32 %v222, 16
      %v302 = vrot.slane %v300, 5
      %v303 = vor.u32 %v299, %v302
      %v304 = vrot.slane %v303, 4
      %v306 = vshll.u32 %v223, 16
      %v308 = vrot.slane %v306, 5
      %v309 = vsel %vm271, %v304, %v308
      %v310 = vshrl.u32 %v223, 16
      %v312 = vrot.slane %v310, 4
      %v313 = vor.u32 %v312, %v308
      %v314 = vrot.slane %v313, 4
      %v316 = vshll.u32 %v254, 16
      %v318 = vrot.slane %v316, 5
      %v319 = vsel %vm271, %v314, %v318
      %v321 = vshrl.u32 %v224, 16
      %v323 = vrot.slane %v321, 4
      %v324 = vshll.u32 %v224, 16
      %v326 = vrot.slane %v324, 5
      %v327 = vor.u32 %v323, %v326
      %v328 = vrot.slane %v327, 4
      %v330 = vshll.u32 %v225, 16
      %v332 = vrot.slane %v330, 5
      %v333 = vsel %vm271, %v328, %v332
      %v334 = vshrl.u32 %v225, 16
      %v336 = vrot.slane %v334, 4
      %v337 = vor.u32 %v336, %v332
      %v338 = vrot.slane %v337, 4
      %v340 = vshll.u32 %v255, 16
      %v342 = vrot.slane %v340, 5
      %v343 = vsel %vm271, %v338, %v342
      %v345 = vshrl.u32 %v226, 16
      %v347 = vrot.slane %v345, 4
      %v348 = vshll.u32 %v226, 16
      %v350 = vrot.slane %v348, 5
      %v351 = vor.u32 %v347, %v350
      %v352 = vrot.slane %v351, 4
      %v354 = vshll.u32 %v227, 16
      %v356 = vrot.slane %v354, 5
      %v357 = vsel %vm271, %v352, %v356
      %v358 = vshrl.u32 %v227, 16
      %v360 = vrot.slane %v358, 4
      %v361 = vor.u32 %v360, %v356
      %v362 = vrot.slane %v361, 4
      %v364 = vshll.u32 %v256, 16
      %v366 = vrot.slane %v364, 5
      %v367 = vsel %vm271, %v362, %v366
      %v369 = vshrl.u32 %v228, 16
      %v371 = vrot.slane %v369, 4
      %v372 = vshll.u32 %v228, 16
      %v374 = vrot.slane %v372, 5
      %v375 = vor.u32 %v371, %v374
      %v376 = vrot.slane %v375, 4
      %v378 = vshll.u32 %v229, 16
      %v380 = vrot.slane %v378, 5
      %v381 = vsel %vm271, %v376, %v380
      %v382 = vshrl.u32 %v229, 16
      %v384 = vrot.slane %v382, 4
      %v385 = vor.u32 %v384, %v380
      %v386 = vrot.slane %v385, 4
      %v388 = vshll.u32 %v257, 16
      %v390 = vrot.slane %v388, 5
      %v391 = vsel %vm271, %v386, %v390
      %v393 = vshrl.u32 %v230, 16
      %v395 = vrot.slane %v393, 4
      %v396 = vshll.u32 %v230, 16
      %v398 = vrot.slane %v396, 5
      %v399 = vor.u32 %v395, %v398
      %v400 = vrot.slane %v399, 4
      %v402 = vshll.u32 %v231, 16
      %v404 = vrot.slane %v402, 5
      %v405 = vsel %vm271, %v400, %v404
      %v406 = vshrl.u32 %v231, 16
      %v408 = vrot.slane %v406, 4
      %v409 = vor.u32 %v408, %v404
      %v410 = vrot.slane %v409, 4
      %v412 = vshll.u32 %v258, 16
      %v414 = vrot.slane %v412, 5
      %v415 = vsel %vm271, %v410, %v414
      %v417 = vshrl.u32 %v232, 16
      %v419 = vrot.slane %v417, 4
      %v420 = vshll.u32 %v232, 16
      %v422 = vrot.slane %v420, 5
      %v423 = vor.u32 %v419, %v422
      %v424 = vrot.slane %v423, 4
      %v426 = vshll.u32 %v233, 16
      %v428 = vrot.slane %v426, 5
      %v429 = vsel %vm271, %v424, %v428
      %v430 = vshrl.u32 %v233, 16
      %v432 = vrot.slane %v430, 4
      %v433 = vor.u32 %v432, %v428
      %v434 = vrot.slane %v433, 4
      %v436 = vshll.u32 %v259, 16
      %v438 = vrot.slane %v436, 5
      %v439 = vsel %vm271, %v434, %v438
      %v441 = vshrl.u32 %v234, 16
      %v443 = vrot.slane %v441, 4
      %v444 = vshll.u32 %v234, 16
      %v446 = vrot.slane %v444, 5
      %v447 = vor.u32 %v443, %v446
      %v448 = vrot.slane %v447, 4
      %v450 = vshll.u32 %v235, 16
      %v452 = vrot.slane %v450, 5
      %v453 = vsel %vm271, %v448, %v452
      %v454 = vshrl.u32 %v235, 16
      %v456 = vrot.slane %v454, 4
      %v457 = vor.u32 %v456, %v452
      %v458 = vrot.slane %v457, 4
      %v460 = vshll.u32 %v260, 16
      %v462 = vrot.slane %v460, 5
      %v463 = vsel %vm271, %v458, %v462
      %v465 = vshrl.u32 %v236, 16
      %v467 = vrot.slane %v465, 4
      %v468 = vshll.u32 %v236, 16
      %v470 = vrot.slane %v468, 5
      %v471 = vor.u32 %v467, %v470
      %v472 = vrot.slane %v471, 4
      %v474 = vshll.u32 %v237, 16
      %v476 = vrot.slane %v474, 5
      %v477 = vsel %vm271, %v472, %v476
      %v478 = vshrl.u32 %v237, 16
      %v480 = vrot.slane %v478, 4
      %v481 = vor.u32 %v480, %v476
      %v482 = vrot.slane %v481, 4
      %v484 = vshll.u32 %v261, 16
      %v486 = vrot.slane %v484, 5
      %v487 = vsel %vm271, %v482, %v486
      %v489 = vshrl.u32 %v238, 16
      %v491 = vrot.slane %v489, 4
      %v492 = vshll.u32 %v238, 16
      %v494 = vrot.slane %v492, 5
      %v495 = vor.u32 %v491, %v494
      %v496 = vrot.slane %v495, 4
      %v498 = vshll.u32 %v239, 16
      %v500 = vrot.slane %v498, 5
      %v501 = vsel %vm271, %v496, %v500
      %v502 = vshrl.u32 %v239, 16
      %v504 = vrot.slane %v502, 4
      %v505 = vor.u32 %v504, %v500
      %v506 = vrot.slane %v505, 4
      %v508 = vshll.u32 %v262, 16
      %v510 = vrot.slane %v508, 5
      %v511 = vsel %vm271, %v506, %v510
      %v513 = vshrl.u32 %v240, 16
      %v515 = vrot.slane %v513, 4
      %v516 = vshll.u32 %v240, 16
      %v518 = vrot.slane %v516, 5
      %v519 = vor.u32 %v515, %v518
      %v520 = vrot.slane %v519, 4
      %v522 = vshll.u32 %v241, 16
      %v524 = vrot.slane %v522, 5
      %v525 = vsel %vm271, %v520, %v524
      %v526 = vshrl.u32 %v241, 16
      %v528 = vrot.slane %v526, 4
      %v529 = vor.u32 %v528, %v524
      %v530 = vrot.slane %v529, 4
      %v532 = vshll.u32 %v263, 16
      %v534 = vrot.slane %v532, 5
      %v535 = vsel %vm271, %v530, %v534
      %v537 = vshrl.u32 %v242, 16
      %v539 = vrot.slane %v537, 4
      %v540 = vshll.u32 %v242, 16
      %v542 = vrot.slane %v540, 5
      %v543 = vor.u32 %v539, %v542
      %v544 = vrot.slane %v543, 4
      %v546 = vshll.u32 %v243, 16
      %v548 = vrot.slane %v546, 5
      %v549 = vsel %vm271, %v544, %v548
      %v550 = vshrl.u32 %v243, 16
      %v552 = vrot.slane %v550, 4
      %v553 = vor.u32 %v552, %v548
      %v554 = vrot.slane %v553, 4
      %v556 = vshll.u32 %v264, 16
      %v558 = vrot.slane %v556, 5
      %v559 = vsel %vm271, %v554, %v558
      %v561 = vshrl.u32 %v244, 16
      %v563 = vrot.slane %v561, 4
      %v564 = vshll.u32 %v244, 16
      %v566 = vrot.slane %v564, 5
      %v567 = vor.u32 %v563, %v566
      %v568 = vrot.slane %v567, 4
      %v570 = vshll.u32 %v245, 16
      %v572 = vrot.slane %v570, 5
      %v573 = vsel %vm271, %v568, %v572
      %v574 = vshrl.u32 %v245, 16
      %v576 = vrot.slane %v574, 4
      %v577 = vor.u32 %v576, %v572
      %v578 = vrot.slane %v577, 4
      %v580 = vshll.u32 %v265, 16
      %v582 = vrot.slane %v580, 5
      %v583 = vsel %vm271, %v578, %v582
      %v585 = vshrl.u32 %v246, 16
      %v587 = vrot.slane %v585, 4
      %v588 = vshll.u32 %v246, 16
      %v590 = vrot.slane %v588, 5
      %v591 = vor.u32 %v587, %v590
      %v592 = vrot.slane %v591, 4
      %v594 = vshll.u32 %v247, 16
      %v596 = vrot.slane %v594, 5
      %v597 = vsel %vm271, %v592, %v596
      %v598 = vshrl.u32 %v247, 16
      %v600 = vrot.slane %v598, 4
      %v601 = vor.u32 %v600, %v596
      %v602 = vrot.slane %v601, 4
      %v604 = vshll.u32 %v266, 16
      %v606 = vrot.slane %v604, 5
      %v607 = vsel %vm271, %v602, %v606
      %v609 = vshrl.u32 %v248, 16
      %v611 = vrot.slane %v609, 4
      %v612 = vshll.u32 %v248, 16
      %v614 = vrot.slane %v612, 5
      %v615 = vor.u32 %v611, %v614
      %v616 = vrot.slane %v615, 4
      %v618 = vshll.u32 %v249, 16
      %v620 = vrot.slane %v618, 5
      %v621 = vsel %vm271, %v616, %v620
      %v622 = vshrl.u32 %v249, 16
      %v624 = vrot.slane %v622, 4
      %v625 = vor.u32 %v624, %v620
      %v626 = vrot.slane %v625, 4
      %v628 = vshll.u32 %v267, 16
      %v630 = vrot.slane %v628, 5
      %v631 = vsel %vm271, %v626, %v630
      %v633 = vshrl.u32 %v250, 16
      %v635 = vrot.slane %v633, 4
      %v636 = vshll.u32 %v250, 16
      %v638 = vrot.slane %v636, 5
      %v639 = vor.u32 %v635, %v638
      %v640 = vrot.slane %v639, 4
      %v642 = vshll.u32 %v251, 16
      %v644 = vrot.slane %v642, 5
      %v645 = vsel %vm271, %v640, %v644
      %v646 = vshrl.u32 %v251, 16
      %v648 = vrot.slane %v646, 4
      %v649 = vor.u32 %v648, %v644
      %v650 = vrot.slane %v649, 4
      %v652 = vshll.u32 %v268, 16
      %v654 = vrot.slane %v652, 5
      %v655 = vsel %vm271, %v650, %v654
      %v656 = vld [vmem:[%s1] sm:$0xc]
      %v657 = vunpack.c.l.b16 %v285
      %v658 = vunpack.c.l.b16 %v295
      %v659 = vunpack.c.l.b16 %v309
      %v660 = vunpack.c.l.b16 %v319
      %v661 = vunpack.c.l.b16 %v333
      %v662 = vunpack.c.l.b16 %v343
      %v663 = vunpack.c.l.b16 %v357
      %v664 = vunpack.c.l.b16 %v367
      %v665 = vunpack.c.l.b16 %v381
      %v666 = vunpack.c.l.b16 %v391
      %v667 = vunpack.c.l.b16 %v405
      %v668 = vunpack.c.l.b16 %v415
      %v669 = vunpack.c.l.b16 %v429
      %v670 = vunpack.c.l.b16 %v439
      %v671 = vunpack.c.l.b16 %v453
      %v672 = vunpack.c.l.b16 %v463
      %v673 = vunpack.c.l.b16 %v477
      %v674 = vunpack.c.l.b16 %v487
      %v675 = vunpack.c.l.b16 %v501
      %v676 = vunpack.c.l.b16 %v511
      %v677 = vunpack.c.l.b16 %v525
      %v678 = vunpack.c.l.b16 %v535
      %v679 = vunpack.c.l.b16 %v549
      %v680 = vunpack.c.l.b16 %v559
      %v681 = vunpack.c.l.b16 %v573
      %v682 = vunpack.c.l.b16 %v583
      %v683 = vunpack.c.l.b16 %v597
      %v684 = vunpack.c.l.b16 %v607
      %v685 = vunpack.c.l.b16 %v621
      %v686 = vunpack.c.l.b16 %v631
      %v687 = vunpack.c.l.b16 %v645
      %v688 = vunpack.c.l.b16 %v655
      %v689 = vpack.c.b16 %v658, %v657
      %v690 = vpack.c.b16 %v660, %v659
      %v691 = vpack.c.b16 %v662, %v661
      %v692 = vpack.c.b16 %v664, %v663
      %v693 = vpack.c.b16 %v666, %v665
      %v694 = vpack.c.b16 %v668, %v667
      %v695 = vpack.c.b16 %v670, %v669
      %v696 = vpack.c.b16 %v672, %v671
      %v697 = vpack.c.b16 %v674, %v673
      %v698 = vpack.c.b16 %v676, %v675
      %v699 = vpack.c.b16 %v678, %v677
      %v700 = vpack.c.b16 %v680, %v679
      %v701 = vpack.c.b16 %v682, %v681
      %v702 = vpack.c.b16 %v684, %v683
      %v703 = vpack.c.b16 %v686, %v685
      %v704 = vpack.c.b16 %v688, %v687
      %v706 = vunpack.c.l.b16 %v656
      %v707 = vpack.c.b16 %v706, %v706
      %v708 = vrot.slane %v707, 2
      %vm709 = vcmask 31744
      %v711 = vsel %vm709, %v689, 0
      %v714 = vsel %vm709, %v690, 0
      %v717 = vsel %vm709, %v691, 0
      %v720 = vsel %vm709, %v692, 0
      %v723 = vsel %vm709, %v693, 0
      %v726 = vsel %vm709, %v694, 0
      %v729 = vsel %vm709, %v695, 0
      %v732 = vsel %vm709, %v696, 0
      %v735 = vsel %vm709, %v697, 0
      %v738 = vsel %vm709, %v698, 0
      %v741 = vsel %vm709, %v699, 0
      %v744 = vsel %vm709, %v700, 0
      %v747 = vsel %vm709, %v701, 0
      %v750 = vsel %vm709, %v702, 0
      %v753 = vsel %vm709, %v703, 0
      %v756 = vsel %vm709, %v704, 0
      %vm758 = vcmask 1041408
      %v760 = vsel %vm758, %v708, 0
      %762 = vmatprep.subr.bf16.mxu0 0
      %763 = vmatpush1.bf16.msra.mxu0 %v760
      %764 = vmatprep.subr.bf16.mxu0 0
      %765 = vmatpush1.bf16.msra.mxu0 0
      %766 = vmatprep.subr.bf16.mxu0 0
      %767 = vmatpush1.bf16.msra.mxu0 0
      %768 = vmatprep.subr.bf16.mxu0 0
      %769 = vmatpush1.bf16.msra.mxu0 0
      %770 = vmatprep.subr.bf16.mxu0 0
      %771 = vmatpush1.bf16.msra.mxu0 0
      %772 = vmatprep.subr.bf16.mxu0 0
      %773 = vmatpush1.bf16.msra.mxu0 0
      %774 = vmatprep.subr.bf16.mxu0 0
      %775 = vmatpush1.bf16.msra.mxu0 0
      %776 = vmatprep.subr.bf16.mxu0 0
      %777 = vmatpush1.bf16.msra.mxu0 0
      %778 = vmatprep.subr.bf16.mxu0 0
      %779 = vmatpush1.bf16.msra.mxu0 0
      %780 = vmatprep.subr.bf16.mxu0 0
      %781 = vmatpush1.bf16.msra.mxu0 0
      %782 = vmatprep.subr.bf16.mxu0 0
      %783 = vmatpush1.bf16.msra.mxu0 0
      %784 = vmatprep.subr.bf16.mxu0 0
      %785 = vmatpush1.bf16.msra.mxu0 0
      %786 = vmatprep.subr.bf16.mxu0 0
      %787 = vmatpush1.bf16.msra.mxu0 0
      %788 = vmatprep.subr.bf16.mxu0 0
      %789 = vmatpush1.bf16.msra.mxu0 0
      %790 = vmatprep.subr.bf16.mxu0 0
      %791 = vmatpush1.bf16.msra.mxu0 0
      %792 = vmatprep.subr.bf16.mxu0 0
      %793 = vmatpush1.bf16.msra.mxu0 0
      %794 = vmatprep.mubr.bf16.mxu0 0
      %795 = vmatmul.mubr.bf16.gmra.mrb[0].mxu0 %v711
      %v796 = vpop.f32.mrb[0].mxu0
      %v797 = vadd.f32 0.0, %v796
      %v798 = vpop.f32.mrb[0].mxu0
      %v799 = vpop.f32.mrb[0].mxu0
      %v800 = vadd.f32 0.0, %v799
      %v801 = vpop.f32.mrb[0].mxu0
      %802 = vmatprep.mubr.bf16.mxu0 0
      %803 = vmatmul.mubr.bf16.gmra.mrb[0].mxu0 %v714
      %v804 = vpop.f32.mrb[0].mxu0
      %v805 = vadd.f32 0.0, %v804
      %v806 = vpop.f32.mrb[0].mxu0
      %v807 = vpop.f32.mrb[0].mxu0
      %v808 = vadd.f32 0.0, %v807
      %v809 = vpop.f32.mrb[0].mxu0
      %810 = vmatprep.mubr.bf16.mxu0 0
      %811 = vmatmul.mubr.bf16.gmra.mrb[0].mxu0 %v717
      %v812 = vpop.f32.mrb[0].mxu0
      %v813 = vadd.f32 0.0, %v812
      %v814 = vpop.f32.mrb[0].mxu0
      %v815 = vpop.f32.mrb[0].mxu0
      %v816 = vadd.f32 0.0, %v815
      %v817 = vpop.f32.mrb[0].mxu0
      %818 = vmatprep.mubr.bf16.mxu0 0
      %819 = vmatmul.mubr.bf16.gmra.mrb[0].mxu0 %v720
      %v820 = vpop.f32.mrb[0].mxu0
      %v821 = vadd.f32 0.0, %v820
      %v822 = vpop.f32.mrb[0].mxu0
      %v823 = vpop.f32.mrb[0].mxu0
      %v824 = vadd.f32 0.0, %v823
      %v825 = vpop.f32.mrb[0].mxu0
      %826 = vmatprep.mubr.bf16.mxu0 0
      %827 = vmatmul.mubr.bf16.gmra.mrb[0].mxu0 %v723
      %v828 = vpop.f32.mrb[0].mxu0
      %v829 = vadd.f32 0.0, %v828
      %v830 = vpop.f32.mrb[0].mxu0
      %v831 = vpop.f32.mrb[0].mxu0
      %v832 = vadd.f32 0.0, %v831
      %v833 = vpop.f32.mrb[0].mxu0
      %834 = vmatprep.mubr.bf16.mxu0 0
      %835 = vmatmul.mubr.bf16.gmra.mrb[0].mxu0 %v726
      %v836 = vpop.f32.mrb[0].mxu0
      %v837 = vadd.f32 0.0, %v836
      %v838 = vpop.f32.mrb[0].mxu0
      %v839 = vpop.f32.mrb[0].mxu0
      %v840 = vadd.f32 0.0, %v839
      %v841 = vpop.f32.mrb[0].mxu0
      %842 = vmatprep.mubr.bf16.mxu0 0
      %843 = vmatmul.mubr.bf16.gmra.mrb[0].mxu0 %v729
      %v844 = vpop.f32.mrb[0].mxu0
      %v845 = vadd.f32 0.0, %v844
      %v846 = vpop.f32.mrb[0].mxu0
      %v847 = vpop.f32.mrb[0].mxu0
      %v848 = vadd.f32 0.0, %v847
      %v849 = vpop.f32.mrb[0].mxu0
      %850 = vmatprep.mubr.bf16.mxu0 0
      %851 = vmatmul.mubr.bf16.gmra.mrb[0].mxu0 %v732
      %v852 = vpop.f32.mrb[0].mxu0
      %v853 = vadd.f32 0.0, %v852
      %v854 = vpop.f32.mrb[0].mxu0
      %v855 = vpop.f32.mrb[0].mxu0
      %v856 = vadd.f32 0.0, %v855
      %v857 = vpop.f32.mrb[0].mxu0
      %858 = vmatprep.mubr.bf16.mxu0 0
      %859 = vmatmul.mubr.bf16.gmra.mrb[0].mxu0 %v735
      %v860 = vpop.f32.mrb[0].mxu0
      %v861 = vadd.f32 0.0, %v860
      %v862 = vpop.f32.mrb[0].mxu0
      %v863 = vpop.f32.mrb[0].mxu0
      %v864 = vadd.f32 0.0, %v863
      %v865 = vpop.f32.mrb[0].mxu0
      %866 = vmatprep.mubr.bf16.mxu0 0
      %867 = vmatmul.mubr.bf16.gmra.mrb[0].mxu0 %v738
      %v868 = vpop.f32.mrb[0].mxu0
      %v869 = vadd.f32 0.0, %v868
      %v870 = vpop.f32.mrb[0].mxu0
      %v871 = vpop.f32.mrb[0].mxu0
      %v872 = vadd.f32 0.0, %v871
      %v873 = vpop.f32.mrb[0].mxu0
      %874 = vmatprep.mubr.bf16.mxu0 0
      %875 = vmatmul.mubr.bf16.gmra.mrb[0].mxu0 %v741
      %v876 = vpop.f32.mrb[0].mxu0
      %v877 = vadd.f32 0.0, %v876
      %v878 = vpop.f32.mrb[0].mxu0
      %v879 = vpop.f32.mrb[0].mxu0
      %v880 = vadd.f32 0.0, %v879
      %v881 = vpop.f32.mrb[0].mxu0
      %882 = vmatprep.mubr.bf16.mxu0 0
      %883 = vmatmul.mubr.bf16.gmra.mrb[0].mxu0 %v744
      %v884 = vpop.f32.mrb[0].mxu0
      %v885 = vadd.f32 0.0, %v884
      %v886 = vpop.f32.mrb[0].mxu0
      %v887 = vpop.f32.mrb[0].mxu0
      %v888 = vadd.f32 0.0, %v887
      %v889 = vpop.f32.mrb[0].mxu0
      %890 = vmatprep.mubr.bf16.mxu0 0
      %891 = vmatmul.mubr.bf16.gmra.mrb[0].mxu0 %v747
      %v892 = vpop.f32.mrb[0].mxu0
      %v893 = vadd.f32 0.0, %v892
      %v894 = vpop.f32.mrb[0].mxu0
      %v895 = vpop.f32.mrb[0].mxu0
      %v896 = vadd.f32 0.0, %v895
      %v897 = vpop.f32.mrb[0].mxu0
      %898 = vmatprep.mubr.bf16.mxu0 0
      %899 = vmatmul.mubr.bf16.gmra.mrb[0].mxu0 %v750
      %v900 = vpop.f32.mrb[0].mxu0
      %v901 = vadd.f32 0.0, %v900
      %v902 = vpop.f32.mrb[0].mxu0
      %v903 = vpop.f32.mrb[0].mxu0
      %v904 = vadd.f32 0.0, %v903
      %v905 = vpop.f32.mrb[0].mxu0
      %906 = vmatprep.mubr.bf16.mxu0 0
      %907 = vmatmul.mubr.bf16.gmra.mrb[0].mxu0 %v753
      %v908 = vpop.f32.mrb[0].mxu0
      %v909 = vadd.f32 0.0, %v908
      %v910 = vpop.f32.mrb[0].mxu0
      %v911 = vpop.f32.mrb[0].mxu0
      %v912 = vadd.f32 0.0, %v911
      %v913 = vpop.f32.mrb[0].mxu0
      %914 = vmatprep.mubr.bf16.mxu0 0
      %915 = vmatmul.mubr.bf16.gmra.mrb[0].mxu0 %v756
      %v916 = vpop.f32.mrb[0].mxu0
      %v917 = vadd.f32 0.0, %v916
      %v918 = vpop.f32.mrb[0].mxu0
      %v919 = vpop.f32.mrb[0].mxu0
      %v920 = vadd.f32 0.0, %v919
      %v921 = vpop.f32.mrb[0].mxu0
      %922 = vdwg.mxu0
      %v955 = vunpack.c.l.b16 %v220
      %v956 = vunpack.c.l.b16 %v221
      %v957 = vunpack.c.l.b16 %v222
      %v958 = vunpack.c.l.b16 %v223
      %v959 = vunpack.c.l.b16 %v224
      %v960 = vunpack.c.l.b16 %v225
      %v961 = vunpack.c.l.b16 %v226
      %v962 = vunpack.c.l.b16 %v227
      %v963 = vunpack.c.l.b16 %v228
      %v964 = vunpack.c.l.b16 %v229
      %v965 = vunpack.c.l.b16 %v230
      %v966 = vunpack.c.l.b16 %v231
      %v967 = vunpack.c.l.b16 %v232
      %v968 = vunpack.c.l.b16 %v233
      %v969 = vunpack.c.l.b16 %v234
      %v970 = vunpack.c.l.b16 %v235
      %v971 = vunpack.c.l.b16 %v236
      %v972 = vunpack.c.l.b16 %v237
      %v973 = vunpack.c.l.b16 %v238
      %v974 = vunpack.c.l.b16 %v239
      %v975 = vunpack.c.l.b16 %v240
      %v976 = vunpack.c.l.b16 %v241
      %v977 = vunpack.c.l.b16 %v242
      %v978 = vunpack.c.l.b16 %v243
      %v979 = vunpack.c.l.b16 %v244
      %v980 = vunpack.c.l.b16 %v245
      %v981 = vunpack.c.l.b16 %v246
      %v982 = vunpack.c.l.b16 %v247
      %v983 = vunpack.c.l.b16 %v248
      %v984 = vunpack.c.l.b16 %v249
      %v985 = vunpack.c.l.b16 %v250
      %v986 = vunpack.c.l.b16 %v251
      %v987 = vpack.c.b16 %v956, %v955
      %v988 = vpack.c.b16 %v958, %v957
      %v989 = vpack.c.b16 %v960, %v959
      %v990 = vpack.c.b16 %v962, %v961
      %v991 = vpack.c.b16 %v964, %v963
      %v992 = vpack.c.b16 %v966, %v965
      %v993 = vpack.c.b16 %v968, %v967
      %v994 = vpack.c.b16 %v970, %v969
      %v995 = vpack.c.b16 %v972, %v971
      %v996 = vpack.c.b16 %v974, %v973
      %v997 = vpack.c.b16 %v976, %v975
      %v998 = vpack.c.b16 %v978, %v977
      %v999 = vpack.c.b16 %v980, %v979
      %v1000 = vpack.c.b16 %v982, %v981
      %v1001 = vpack.c.b16 %v984, %v983
      %v1002 = vpack.c.b16 %v986, %v985
      %v1004 = vsel %vm709, %v987, 0
      %v1007 = vsel %vm709, %v988, 0
      %v1010 = vsel %vm709, %v989, 0
      %v1013 = vsel %vm709, %v990, 0
      %v1016 = vsel %vm709, %v991, 0
      %v1019 = vsel %vm709, %v992, 0
      %v1022 = vsel %vm709, %v993, 0
      %v1025 = vsel %vm709, %v994, 0
      %v1028 = vsel %vm709, %v995, 0
      %v1031 = vsel %vm709, %v996, 0
      %v1034 = vsel %vm709, %v997, 0
      %v1037 = vsel %vm709, %v998, 0
      %v1040 = vsel %vm709, %v999, 0
      %v1043 = vsel %vm709, %v1000, 0
      %v1046 = vsel %vm709, %v1001, 0
      %v1049 = vsel %vm709, %v1002, 0
      %v1052 = vsel %vm758, %v252, 0
      %1054 = vmatprep.subr.bf16.mxu0 0
      %1055 = vmatpush1.bf16.msra.mxu0 %v1052
      %1056 = vmatprep.subr.bf16.mxu0 0
      %1057 = vmatpush1.bf16.msra.mxu0 0
      %1058 = vmatprep.subr.bf16.mxu0 0
      %1059 = vmatpush1.bf16.msra.mxu0 0
      %1060 = vmatprep.subr.bf16.mxu0 0
      %1061 = vmatpush1.bf16.msra.mxu0 0
      %1062 = vmatprep.subr.bf16.mxu0 0
      %1063 = vmatpush1.bf16.msra.mxu0 0
      %1064 = vmatprep.subr.bf16.mxu0 0
      %1065 = vmatpush1.bf16.msra.mxu0 0
      %1066 = vmatprep.subr.bf16.mxu0 0
      %1067 = vmatpush1.bf16.msra.mxu0 0
      %1068 = vmatprep.subr.bf16.mxu0 0
      %1069 = vmatpush1.bf16.msra.mxu0 0
      %1070 = vmatprep.subr.bf16.mxu0 0
      %1071 = vmatpush1.bf16.msra.mxu0 0
      %1072 = vmatprep.subr.bf16.mxu0 0
      %1073 = vmatpush1.bf16.msra.mxu0 0
      %1074 = vmatprep.subr.bf16.mxu0 0
      %1075 = vmatpush1.bf16.msra.mxu0 0
      %1076 = vmatprep.subr.bf16.mxu0 0
      %1077 = vmatpush1.bf16.msra.mxu0 0
      %1078 = vmatprep.subr.bf16.mxu0 0
      %1079 = vmatpush1.bf16.msra.mxu0 0
      %1080 = vmatprep.subr.bf16.mxu0 0
      %1081 = vmatpush1.bf16.msra.mxu0 0
      %1082 = vmatprep.subr.bf16.mxu0 0
      %1083 = vmatpush1.bf16.msra.mxu0 0
      %1084 = vmatprep.subr.bf16.mxu0 0
      %1085 = vmatpush1.bf16.msra.mxu0 0
      %1086 = vmatprep.mubr.bf16.mxu0 0
      %1087 = vmatmul.mubr.bf16.gmra.mrb[0].mxu0 %v1004
      %v1088 = vpop.f32.mrb[0].mxu0
      %v1089 = vadd.f32 %v797, %v1088
      %v1090 = vpop.f32.mrb[0].mxu0
      %v1091 = vpop.f32.mrb[0].mxu0
      %v1092 = vadd.f32 %v800, %v1091
      %v1093 = vpop.f32.mrb[0].mxu0
      %1094 = vmatprep.mubr.bf16.mxu0 0
      %1095 = vmatmul.mubr.bf16.gmra.mrb[0].mxu0 %v1007
      %v1096 = vpop.f32.mrb[0].mxu0
      %v1097 = vadd.f32 %v805, %v1096
      %v1098 = vpop.f32.mrb[0].mxu0
      %v1099 = vpop.f32.mrb[0].mxu0
      %v1100 = vadd.f32 %v808, %v1099
      %v1101 = vpop.f32.mrb[0].mxu0
      %1102 = vmatprep.mubr.bf16.mxu0 0
      %1103 = vmatmul.mubr.bf16.gmra.mrb[0].mxu0 %v1010
      %v1104 = vpop.f32.mrb[0].mxu0
      %v1105 = vadd.f32 %v813, %v1104
      %v1106 = vpop.f32.mrb[0].mxu0
      %v1107 = vpop.f32.mrb[0].mxu0
      %v1108 = vadd.f32 %v816, %v1107
      %v1109 = vpop.f32.mrb[0].mxu0
      %1110 = vmatprep.mubr.bf16.mxu0 0
      %1111 = vmatmul.mubr.bf16.gmra.mrb[0].mxu0 %v1013
      %v1112 = vpop.f32.mrb[0].mxu0
      %v1113 = vadd.f32 %v821, %v1112
      %v1114 = vpop.f32.mrb[0].mxu0
      %v1115 = vpop.f32.mrb[0].mxu0
      %v1116 = vadd.f32 %v824, %v1115
      %v1117 = vpop.f32.mrb[0].mxu0
      %1118 = vmatprep.mubr.bf16.mxu0 0
      %1119 = vmatmul.mubr.bf16.gmra.mrb[0].mxu0 %v1016
      %v1120 = vpop.f32.mrb[0].mxu0
      %v1121 = vadd.f32 %v829, %v1120
      %v1122 = vpop.f32.mrb[0].mxu0
      %v1123 = vpop.f32.mrb[0].mxu0
      %v1124 = vadd.f32 %v832, %v1123
      %v1125 = vpop.f32.mrb[0].mxu0
      %1126 = vmatprep.mubr.bf16.mxu0 0
      %1127 = vmatmul.mubr.bf16.gmra.mrb[0].mxu0 %v1019
      %v1128 = vpop.f32.mrb[0].mxu0
      %v1129 = vadd.f32 %v837, %v1128
      %v1130 = vpop.f32.mrb[0].mxu0
      %v1131 = vpop.f32.mrb[0].mxu0
      %v1132 = vadd.f32 %v840, %v1131
      %v1133 = vpop.f32.mrb[0].mxu0
      %1134 = vmatprep.mubr.bf16.mxu0 0
      %1135 = vmatmul.mubr.bf16.gmra.mrb[0].mxu0 %v1022
      %v1136 = vpop.f32.mrb[0].mxu0
      %v1137 = vadd.f32 %v845, %v1136
      %v1138 = vpop.f32.mrb[0].mxu0
      %v1139 = vpop.f32.mrb[0].mxu0
      %v1140 = vadd.f32 %v848, %v1139
      %v1141 = vpop.f32.mrb[0].mxu0
      %1142 = vmatprep.mubr.bf16.mxu0 0
      %1143 = vmatmul.mubr.bf16.gmra.mrb[0].mxu0 %v1025
      %v1144 = vpop.f32.mrb[0].mxu0
      %v1145 = vadd.f32 %v853, %v1144
      %v1146 = vpop.f32.mrb[0].mxu0
      %v1147 = vpop.f32.mrb[0].mxu0
      %v1148 = vadd.f32 %v856, %v1147
      %v1149 = vpop.f32.mrb[0].mxu0
      %1150 = vmatprep.mubr.bf16.mxu0 0
      %1151 = vmatmul.mubr.bf16.gmra.mrb[0].mxu0 %v1028
      %v1152 = vpop.f32.mrb[0].mxu0
      %v1153 = vadd.f32 %v861, %v1152
      %v1154 = vpop.f32.mrb[0].mxu0
      %v1155 = vpop.f32.mrb[0].mxu0
      %v1156 = vadd.f32 %v864, %v1155
      %v1157 = vpop.f32.mrb[0].mxu0
      %1158 = vmatprep.mubr.bf16.mxu0 0
      %1159 = vmatmul.mubr.bf16.gmra.mrb[0].mxu0 %v1031
      %v1160 = vpop.f32.mrb[0].mxu0
      %v1161 = vadd.f32 %v869, %v1160
      %v1162 = vpop.f32.mrb[0].mxu0
      %v1163 = vpop.f32.mrb[0].mxu0
      %v1164 = vadd.f32 %v872, %v1163
      %v1165 = vpop.f32.mrb[0].mxu0
      %1166 = vmatprep.mubr.bf16.mxu0 0
      %1167 = vmatmul.mubr.bf16.gmra.mrb[0].mxu0 %v1034
      %v1168 = vpop.f32.mrb[0].mxu0
      %v1169 = vadd.f32 %v877, %v1168
      %v1170 = vpop.f32.mrb[0].mxu0
      %v1171 = vpop.f32.mrb[0].mxu0
      %v1172 = vadd.f32 %v880, %v1171
      %v1173 = vpop.f32.mrb[0].mxu0
      %1174 = vmatprep.mubr.bf16.mxu0 0
      %1175 = vmatmul.mubr.bf16.gmra.mrb[0].mxu0 %v1037
      %v1176 = vpop.f32.mrb[0].mxu0
      %v1177 = vadd.f32 %v885, %v1176
      %v1178 = vpop.f32.mrb[0].mxu0
      %v1179 = vpop.f32.mrb[0].mxu0
      %v1180 = vadd.f32 %v888, %v1179
      %v1181 = vpop.f32.mrb[0].mxu0
      %1182 = vmatprep.mubr.bf16.mxu0 0
      %1183 = vmatmul.mubr.bf16.gmra.mrb[0].mxu0 %v1040
      %v1184 = vpop.f32.mrb[0].mxu0
      %v1185 = vadd.f32 %v893, %v1184
      %v1186 = vpop.f32.mrb[0].mxu0
      %v1187 = vpop.f32.mrb[0].mxu0
      %v1188 = vadd.f32 %v896, %v1187
      %v1189 = vpop.f32.mrb[0].mxu0
      %1190 = vmatprep.mubr.bf16.mxu0 0
      %1191 = vmatmul.mubr.bf16.gmra.mrb[0].mxu0 %v1043
      %v1192 = vpop.f32.mrb[0].mxu0
      %v1193 = vadd.f32 %v901, %v1192
      %v1194 = vpop.f32.mrb[0].mxu0
      %v1195 = vpop.f32.mrb[0].mxu0
      %v1196 = vadd.f32 %v904, %v1195
      %v1197 = vpop.f32.mrb[0].mxu0
      %1198 = vmatprep.mubr.bf16.mxu0 0
      %1199 = vmatmul.mubr.bf16.gmra.mrb[0].mxu0 %v1046
      %v1200 = vpop.f32.mrb[0].mxu0
      %v1201 = vadd.f32 %v909, %v1200
      %v1202 = vpop.f32.mrb[0].mxu0
      %v1203 = vpop.f32.mrb[0].mxu0
      %v1204 = vadd.f32 %v912, %v1203
      %v1205 = vpop.f32.mrb[0].mxu0
      %1206 = vmatprep.mubr.bf16.mxu0 0
      %1207 = vmatmul.mubr.bf16.gmra.mrb[0].mxu0 %v1049
      %v1208 = vpop.f32.mrb[0].mxu0
      %v1209 = vadd.f32 %v917, %v1208
      %v1210 = vpop.f32.mrb[0].mxu0
      %v1211 = vpop.f32.mrb[0].mxu0
      %v1212 = vadd.f32 %v920, %v1211
      %v1213 = vpop.f32.mrb[0].mxu0
      %1214 = vdwg.mxu0
      %v1215 = vld [vmem:[%s219] sm:$0xe]
      %v1216 = vld [vmem:[%s219 + $0xc] sm:$0xe]
      %v1217 = vld [vmem:[%s219 + $0x18] sm:$0xe]
      %v1218 = vld [vmem:[%s219 + $0x24] sm:$0xe]
      %v1219 = vld [vmem:[%s219 + $0x30] sm:$0xe]
      %v1220 = vld [vmem:[%s219 + $0x3c] sm:$0xe]
      %v1221 = vld [vmem:[%s219 + $0x48] sm:$0xe]
      %v1222 = vld [vmem:[%s219 + $0x54] sm:$0xe]
      %v1223 = vld [vmem:[%s219 + $0x60] sm:$0xe]
      %v1224 = vld [vmem:[%s219 + $0x6c] sm:$0xe]
      %v1225 = vld [vmem:[%s219 + $0x78] sm:$0xe]
      %v1226 = vld [vmem:[%s219 + $0x84] sm:$0xe]
      %v1227 = vld [vmem:[%s219 + $0x90] sm:$0xe]
      %v1228 = vld [vmem:[%s219 + $0x9c] sm:$0xe]
      %v1229 = vld [vmem:[%s219 + $0xa8] sm:$0xe]
      %v1230 = vld [vmem:[%s219 + $0xb4] sm:$0xe]
      %vm1263 = vcmask 1042432
      %vm1264 = vcmask 1046532
      %vm1265 = vmor %vm1263, %vm1264
      %v1266 = vrot.slane %v1215, 5
      %v1267 = vrot.slane %v1266, 4
      %v1268 = vrot.slane %v221, 5
      %v1269 = vsel %vm1265, %v1267, %v1268
      %v1270 = vrot.slane %v1268, 4
      %v1271 = vrot.slane %v253, 5
      %v1272 = vsel %vm1265, %v1270, %v1271
      %v1273 = vrot.slane %v1216, 5
      %v1274 = vrot.slane %v1273, 4
      %v1275 = vrot.slane %v223, 5
      %v1276 = vsel %vm1265, %v1274, %v1275
      %v1277 = vrot.slane %v1275, 4
      %v1278 = vrot.slane %v254, 5
      %v1279 = vsel %vm1265, %v1277, %v1278
      %v1280 = vrot.slane %v1217, 5
      %v1281 = vrot.slane %v1280, 4
      %v1282 = vrot.slane %v225, 5
      %v1283 = vsel %vm1265, %v1281, %v1282
      %v1284 = vrot.slane %v1282, 4
      %v1285 = vrot.slane %v255, 5
      %v1286 = vsel %vm1265, %v1284, %v1285
      %v1287 = vrot.slane %v1218, 5
      %v1288 = vrot.slane %v1287, 4
      %v1289 = vrot.slane %v227, 5
      %v1290 = vsel %vm1265, %v1288, %v1289
      %v1291 = vrot.slane %v1289, 4
      %v1292 = vrot.slane %v256, 5
      %v1293 = vsel %vm1265, %v1291, %v1292
      %v1294 = vrot.slane %v1219, 5
      %v1295 = vrot.slane %v1294, 4
      %v1296 = vrot.slane %v229, 5
      %v1297 = vsel %vm1265, %v1295, %v1296
      %v1298 = vrot.slane %v1296, 4
      %v1299 = vrot.slane %v257, 5
      %v1300 = vsel %vm1265, %v1298, %v1299
      %v1301 = vrot.slane %v1220, 5
      %v1302 = vrot.slane %v1301, 4
      %v1303 = vrot.slane %v231, 5
      %v1304 = vsel %vm1265, %v1302, %v1303
      %v1305 = vrot.slane %v1303, 4
      %v1306 = vrot.slane %v258, 5
      %v1307 = vsel %vm1265, %v1305, %v1306
      %v1308 = vrot.slane %v1221, 5
      %v1309 = vrot.slane %v1308, 4
      %v1310 = vrot.slane %v233, 5
      %v1311 = vsel %vm1265, %v1309, %v1310
      %v1312 = vrot.slane %v1310, 4
      %v1313 = vrot.slane %v259, 5
      %v1314 = vsel %vm1265, %v1312, %v1313
      %v1315 = vrot.slane %v1222, 5
      %v1316 = vrot.slane %v1315, 4
      %v1317 = vrot.slane %v235, 5
      %v1318 = vsel %vm1265, %v1316, %v1317
      %v1319 = vrot.slane %v1317, 4
      %v1320 = vrot.slane %v260, 5
      %v1321 = vsel %vm1265, %v1319, %v1320
      %v1322 = vrot.slane %v1223, 5
      %v1323 = vrot.slane %v1322, 4
      %v1324 = vrot.slane %v237, 5
      %v1325 = vsel %vm1265, %v1323, %v1324
      %v1326 = vrot.slane %v1324, 4
      %v1327 = vrot.slane %v261, 5
      %v1328 = vsel %vm1265, %v1326, %v1327
      %v1329 = vrot.slane %v1224, 5
      %v1330 = vrot.slane %v1329, 4
      %v1331 = vrot.slane %v239, 5
      %v1332 = vsel %vm1265, %v1330, %v1331
      %v1333 = vrot.slane %v1331, 4
      %v1334 = vrot.slane %v262, 5
      %v1335 = vsel %vm1265, %v1333, %v1334
      %v1336 = vrot.slane %v1225, 5
      %v1337 = vrot.slane %v1336, 4
      %v1338 = vrot.slane %v241, 5
      %v1339 = vsel %vm1265, %v1337, %v1338
      %v1340 = vrot.slane %v1338, 4
      %v1341 = vrot.slane %v263, 5
      %v1342 = vsel %vm1265, %v1340, %v1341
      %v1343 = vrot.slane %v1226, 5
      %v1344 = vrot.slane %v1343, 4
      %v1345 = vrot.slane %v243, 5
      %v1346 = vsel %vm1265, %v1344, %v1345
      %v1347 = vrot.slane %v1345, 4
      %v1348 = vrot.slane %v264, 5
      %v1349 = vsel %vm1265, %v1347, %v1348
      %v1350 = vrot.slane %v1227, 5
      %v1351 = vrot.slane %v1350, 4
      %v1352 = vrot.slane %v245, 5
      %v1353 = vsel %vm1265, %v1351, %v1352
      %v1354 = vrot.slane %v1352, 4
      %v1355 = vrot.slane %v265, 5
      %v1356 = vsel %vm1265, %v1354, %v1355
      %v1357 = vrot.slane %v1228, 5
      %v1358 = vrot.slane %v1357, 4
      %v1359 = vrot.slane %v247, 5
      %v1360 = vsel %vm1265, %v1358, %v1359
      %v1361 = vrot.slane %v1359, 4
      %v1362 = vrot.slane %v266, 5
      %v1363 = vsel %vm1265, %v1361, %v1362
      %v1364 = vrot.slane %v1229, 5
      %v1365 = vrot.slane %v1364, 4
      %v1366 = vrot.slane %v249, 5
      %v1367 = vsel %vm1265, %v1365, %v1366
      %v1368 = vrot.slane %v1366, 4
      %v1369 = vrot.slane %v267, 5
      %v1370 = vsel %vm1265, %v1368, %v1369
      %v1371 = vrot.slane %v1230, 5
      %v1372 = vrot.slane %v1371, 4
      %v1373 = vrot.slane %v251, 5
      %v1374 = vsel %vm1265, %v1372, %v1373
      %v1375 = vrot.slane %v1373, 4
      %v1376 = vrot.slane %v268, 5
      %v1377 = vsel %vm1265, %v1375, %v1376
      %v1378 = vld [vmem:[%s1 + $0x4] sm:$0x3]
      %v1379 = vunpack.c.l.b16 %v1269
      %v1380 = vunpack.c.l.b16 %v1272
      %v1381 = vunpack.c.l.b16 %v1276
      %v1382 = vunpack.c.l.b16 %v1279
      %v1383 = vunpack.c.l.b16 %v1283
      %v1384 = vunpack.c.l.b16 %v1286
      %v1385 = vunpack.c.l.b16 %v1290
      %v1386 = vunpack.c.l.b16 %v1293
      %v1387 = vunpack.c.l.b16 %v1297
      %v1388 = vunpack.c.l.b16 %v1300
      %v1389 = vunpack.c.l.b16 %v1304
      %v1390 = vunpack.c.l.b16 %v1307
      %v1391 = vunpack.c.l.b16 %v1311
      %v1392 = vunpack.c.l.b16 %v1314
      %v1393 = vunpack.c.l.b16 %v1318
      %v1394 = vunpack.c.l.b16 %v1321
      %v1395 = vunpack.c.l.b16 %v1325
      %v1396 = vunpack.c.l.b16 %v1328
      %v1397 = vunpack.c.l.b16 %v1332
      %v1398 = vunpack.c.l.b16 %v1335
      %v1399 = vunpack.c.l.b16 %v1339
      %v1400 = vunpack.c.l.b16 %v1342
      %v1401 = vunpack.c.l.b16 %v1346
      %v1402 = vunpack.c.l.b16 %v1349
      %v1403 = vunpack.c.l.b16 %v1353
      %v1404 = vunpack.c.l.b16 %v1356
      %v1405 = vunpack.c.l.b16 %v1360
      %v1406 = vunpack.c.l.b16 %v1363
      %v1407 = vunpack.c.l.b16 %v1367
      %v1408 = vunpack.c.l.b16 %v1370
      %v1409 = vunpack.c.l.b16 %v1374
      %v1410 = vunpack.c.l.b16 %v1377
      %v1411 = vpack.c.b16 %v1380, %v1379
      %v1412 = vpack.c.b16 %v1382, %v1381
      %v1413 = vpack.c.b16 %v1384, %v1383
      %v1414 = vpack.c.b16 %v1386, %v1385
      %v1415 = vpack.c.b16 %v1388, %v1387
      %v1416 = vpack.c.b16 %v1390, %v1389
      %v1417 = vpack.c.b16 %v1392, %v1391
      %v1418 = vpack.c.b16 %v1394, %v1393
      %v1419 = vpack.c.b16 %v1396, %v1395
      %v1420 = vpack.c.b16 %v1398, %v1397
      %v1421 = vpack.c.b16 %v1400, %v1399
      %v1422 = vpack.c.b16 %v1402, %v1401
      %v1423 = vpack.c.b16 %v1404, %v1403
      %v1424 = vpack.c.b16 %v1406, %v1405
      %v1425 = vpack.c.b16 %v1408, %v1407
      %v1426 = vpack.c.b16 %v1410, %v1409
      %v1428 = vsel %vm709, %v1411, 0
      %v1431 = vsel %vm709, %v1412, 0
      %v1434 = vsel %vm709, %v1413, 0
      %v1437 = vsel %vm709, %v1414, 0
      %v1440 = vsel %vm709, %v1415, 0
      %v1443 = vsel %vm709, %v1416, 0
      %v1446 = vsel %vm709, %v1417, 0
      %v1449 = vsel %vm709, %v1418, 0
      %v1452 = vsel %vm709, %v1419, 0
      %v1455 = vsel %vm709, %v1420, 0
      %v1458 = vsel %vm709, %v1421, 0
      %v1461 = vsel %vm709, %v1422, 0
      %v1464 = vsel %vm709, %v1423, 0
      %v1467 = vsel %vm709, %v1424, 0
      %v1470 = vsel %vm709, %v1425, 0
      %v1473 = vsel %vm709, %v1426, 0
      %v1476 = vsel %vm758, %v1378, 0
      %1478 = vmatprep.subr.bf16.mxu0 0
      %1479 = vmatpush1.bf16.msra.mxu0 %v1476
      %1480 = vmatprep.subr.bf16.mxu0 0
      %1481 = vmatpush1.bf16.msra.mxu0 0
      %1482 = vmatprep.subr.bf16.mxu0 0
      %1483 = vmatpush1.bf16.msra.mxu0 0
      %1484 = vmatprep.subr.bf16.mxu0 0
      %1485 = vmatpush1.bf16.msra.mxu0 0
      %1486 = vmatprep.subr.bf16.mxu0 0
      %1487 = vmatpush1.bf16.msra.mxu0 0
      %1488 = vmatprep.subr.bf16.mxu0 0
      %1489 = vmatpush1.bf16.msra.mxu0 0
      %1490 = vmatprep.subr.bf16.mxu0 0
      %1491 = vmatpush1.bf16.msra.mxu0 0
      %1492 = vmatprep.subr.bf16.mxu0 0
      %1493 = vmatpush1.bf16.msra.mxu0 0
      %1494 = vmatprep.subr.bf16.mxu0 0
      %1495 = vmatpush1.bf16.msra.mxu0 0
      %1496 = vmatprep.subr.bf16.mxu0 0
      %1497 = vmatpush1.bf16.msra.mxu0 0
      %1498 = vmatprep.subr.bf16.mxu0 0
      %1499 = vmatpush1.bf16.msra.mxu0 0
      %1500 = vmatprep.subr.bf16.mxu0 0
      %1501 = vmatpush1.bf16.msra.mxu0 0
      %1502 = vmatprep.subr.bf16.mxu0 0
      %1503 = vmatpush1.bf16.msra.mxu0 0
      %1504 = vmatprep.subr.bf16.mxu0 0
      %1505 = vmatpush1.bf16.msra.mxu0 0
      %1506 = vmatprep.subr.bf16.mxu0 0
      %1507 = vmatpush1.bf16.msra.mxu0 0
      %1508 = vmatprep.subr.bf16.mxu0 0
      %1509 = vmatpush1.bf16.msra.mxu0 0
      %1510 = vmatprep.mubr.bf16.mxu0 0
      %1511 = vmatmul.mubr.bf16.gmra.mrb[0].mxu0 %v1428
      %v1512 = vpop.f32.mrb[0].mxu0
      %v1513 = vadd.f32 0.0, %v1512
      %v1514 = vpop.f32.mrb[0].mxu0
      %v1515 = vpop.f32.mrb[0].mxu0
      %v1516 = vadd.f32 0.0, %v1515
      %v1517 = vpop.f32.mrb[0].mxu0
      %1518 = vmatprep.mubr.bf16.mxu0 0
      %1519 = vmatmul.mubr.bf16.gmra.mrb[0].mxu0 %v1431
      %v1520 = vpop.f32.mrb[0].mxu0
      %v1521 = vadd.f32 0.0, %v1520
      %v1522 = vpop.f32.mrb[0].mxu0
      %v1523 = vpop.f32.mrb[0].mxu0
      %v1524 = vadd.f32 0.0, %v1523
      %v1525 = vpop.f32.mrb[0].mxu0
      %1526 = vmatprep.mubr.bf16.mxu0 0
      %1527 = vmatmul.mubr.bf16.gmra.mrb[0].mxu0 %v1434
      %v1528 = vpop.f32.mrb[0].mxu0
      %v1529 = vadd.f32 0.0, %v1528
      %v1530 = vpop.f32.mrb[0].mxu0
      %v1531 = vpop.f32.mrb[0].mxu0
      %v1532 = vadd.f32 0.0, %v1531
      %v1533 = vpop.f32.mrb[0].mxu0
      %1534 = vmatprep.mubr.bf16.mxu0 0
      %1535 = vmatmul.mubr.bf16.gmra.mrb[0].mxu0 %v1437
      %v1536 = vpop.f32.mrb[0].mxu0
      %v1537 = vadd.f32 0.0, %v1536
      %v1538 = vpop.f32.mrb[0].mxu0
      %v1539 = vpop.f32.mrb[0].mxu0
      %v1540 = vadd.f32 0.0, %v1539
      %v1541 = vpop.f32.mrb[0].mxu0
      %1542 = vmatprep.mubr.bf16.mxu0 0
      %1543 = vmatmul.mubr.bf16.gmra.mrb[0].mxu0 %v1440
      %v1544 = vpop.f32.mrb[0].mxu0
      %v1545 = vadd.f32 0.0, %v1544
      %v1546 = vpop.f32.mrb[0].mxu0
      %v1547 = vpop.f32.mrb[0].mxu0
      %v1548 = vadd.f32 0.0, %v1547
      %v1549 = vpop.f32.mrb[0].mxu0
      %1550 = vmatprep.mubr.bf16.mxu0 0
      %1551 = vmatmul.mubr.bf16.gmra.mrb[0].mxu0 %v1443
      %v1552 = vpop.f32.mrb[0].mxu0
      %v1553 = vadd.f32 0.0, %v1552
      %v1554 = vpop.f32.mrb[0].mxu0
      %v1555 = vpop.f32.mrb[0].mxu0
      %v1556 = vadd.f32 0.0, %v1555
      %v1557 = vpop.f32.mrb[0].mxu0
      %1558 = vmatprep.mubr.bf16.mxu0 0
      %1559 = vmatmul.mubr.bf16.gmra.mrb[0].mxu0 %v1446
      %v1560 = vpop.f32.mrb[0].mxu0
      %v1561 = vadd.f32 0.0, %v1560
      %v1562 = vpop.f32.mrb[0].mxu0
      %v1563 = vpop.f32.mrb[0].mxu0
      %v1564 = vadd.f32 0.0, %v1563
      %v1565 = vpop.f32.mrb[0].mxu0
      %1566 = vmatprep.mubr.bf16.mxu0 0
      %1567 = vmatmul.mubr.bf16.gmra.mrb[0].mxu0 %v1449
      %v1568 = vpop.f32.mrb[0].mxu0
      %v1569 = vadd.f32 0.0, %v1568
      %v1570 = vpop.f32.mrb[0].mxu0
      %v1571 = vpop.f32.mrb[0].mxu0
      %v1572 = vadd.f32 0.0, %v1571
      %v1573 = vpop.f32.mrb[0].mxu0
      %1574 = vmatprep.mubr.bf16.mxu0 0
      %1575 = vmatmul.mubr.bf16.gmra.mrb[0].mxu0 %v1452
      %v1576 = vpop.f32.mrb[0].mxu0
      %v1577 = vadd.f32 0.0, %v1576
      %v1578 = vpop.f32.mrb[0].mxu0
      %v1579 = vpop.f32.mrb[0].mxu0
      %v1580 = vadd.f32 0.0, %v1579
      %v1581 = vpop.f32.mrb[0].mxu0
      %1582 = vmatprep.mubr.bf16.mxu0 0
      %1583 = vmatmul.mubr.bf16.gmra.mrb[0].mxu0 %v1455
      %v1584 = vpop.f32.mrb[0].mxu0
      %v1585 = vadd.f32 0.0, %v1584
      %v1586 = vpop.f32.mrb[0].mxu0
      %v1587 = vpop.f32.mrb[0].mxu0
      %v1588 = vadd.f32 0.0, %v1587
      %v1589 = vpop.f32.mrb[0].mxu0
      %1590 = vmatprep.mubr.bf16.mxu0 0
      %1591 = vmatmul.mubr.bf16.gmra.mrb[0].mxu0 %v1458
      %v1592 = vpop.f32.mrb[0].mxu0
      %v1593 = vadd.f32 0.0, %v1592
      %v1594 = vpop.f32.mrb[0].mxu0
      %v1595 = vpop.f32.mrb[0].mxu0
      %v1596 = vadd.f32 0.0, %v1595
      %v1597 = vpop.f32.mrb[0].mxu0
      %1598 = vmatprep.mubr.bf16.mxu0 0
      %1599 = vmatmul.mubr.bf16.gmra.mrb[0].mxu0 %v1461
      %v1600 = vpop.f32.mrb[0].mxu0
      %v1601 = vadd.f32 0.0, %v1600
      %v1602 = vpop.f32.mrb[0].mxu0
      %v1603 = vpop.f32.mrb[0].mxu0
      %v1604 = vadd.f32 0.0, %v1603
      %v1605 = vpop.f32.mrb[0].mxu0
      %1606 = vmatprep.mubr.bf16.mxu0 0
      %1607 = vmatmul.mubr.bf16.gmra.mrb[0].mxu0 %v1464
      %v1608 = vpop.f32.mrb[0].mxu0
      %v1609 = vadd.f32 0.0, %v1608
      %v1610 = vpop.f32.mrb[0].mxu0
      %v1611 = vpop.f32.mrb[0].mxu0
      %v1612 = vadd.f32 0.0, %v1611
      %v1613 = vpop.f32.mrb[0].mxu0
      %1614 = vmatprep.mubr.bf16.mxu0 0
      %1615 = vmatmul.mubr.bf16.gmra.mrb[0].mxu0 %v1467
      %v1616 = vpop.f32.mrb[0].mxu0
      %v1617 = vadd.f32 0.0, %v1616
      %v1618 = vpop.f32.mrb[0].mxu0
      %v1619 = vpop.f32.mrb[0].mxu0
      %v1620 = vadd.f32 0.0, %v1619
      %v1621 = vpop.f32.mrb[0].mxu0
      %1622 = vmatprep.mubr.bf16.mxu0 0
      %1623 = vmatmul.mubr.bf16.gmra.mrb[0].mxu0 %v1470
      %v1624 = vpop.f32.mrb[0].mxu0
      %v1625 = vadd.f32 0.0, %v1624
      %v1626 = vpop.f32.mrb[0].mxu0
      %v1627 = vpop.f32.mrb[0].mxu0
      %v1628 = vadd.f32 0.0, %v1627
      %v1629 = vpop.f32.mrb[0].mxu0
      %1630 = vmatprep.mubr.bf16.mxu0 0
      %1631 = vmatmul.mubr.bf16.gmra.mrb[0].mxu0 %v1473
      %v1632 = vpop.f32.mrb[0].mxu0
      %v1633 = vadd.f32 0.0, %v1632
      %v1634 = vpop.f32.mrb[0].mxu0
      %v1635 = vpop.f32.mrb[0].mxu0
      %v1636 = vadd.f32 0.0, %v1635
      %v1637 = vpop.f32.mrb[0].mxu0
      %1638 = vdwg.mxu0
      %v1639 = vadd.f32 %v1089, %v1513
      %v1640 = vadd.f32 %v1092, %v1516
      %v1641 = vadd.f32 %v1097, %v1521
      %v1642 = vadd.f32 %v1100, %v1524
      %v1643 = vadd.f32 %v1105, %v1529
      %v1644 = vadd.f32 %v1108, %v1532
      %v1645 = vadd.f32 %v1113, %v1537
      %v1646 = vadd.f32 %v1116, %v1540
      %v1647 = vadd.f32 %v1121, %v1545
      %v1648 = vadd.f32 %v1124, %v1548
      %v1649 = vadd.f32 %v1129, %v1553
      %v1650 = vadd.f32 %v1132, %v1556
      %v1651 = vadd.f32 %v1137, %v1561
      %v1652 = vadd.f32 %v1140, %v1564
      %v1653 = vadd.f32 %v1145, %v1569
      %v1654 = vadd.f32 %v1148, %v1572
      %v1655 = vadd.f32 %v1153, %v1577
      %v1656 = vadd.f32 %v1156, %v1580
      %v1657 = vadd.f32 %v1161, %v1585
      %v1658 = vadd.f32 %v1164, %v1588
      %v1659 = vadd.f32 %v1169, %v1593
      %v1660 = vadd.f32 %v1172, %v1596
      %v1661 = vadd.f32 %v1177, %v1601
      %v1662 = vadd.f32 %v1180, %v1604
      %v1663 = vadd.f32 %v1185, %v1609
      %v1664 = vadd.f32 %v1188, %v1612
      %v1665 = vadd.f32 %v1193, %v1617
      %v1666 = vadd.f32 %v1196, %v1620
      %v1667 = vadd.f32 %v1201, %v1625
      %v1668 = vadd.f32 %v1204, %v1628
      %v1669 = vadd.f32 %v1209, %v1633
      %v1670 = vadd.f32 %v1212, %v1636
      %s1671 = sadd.s32 %s216, 1
      %s1672 = smul.u32 %s1671, 3
      %s1673 = smul.addr %s1672, 4
      %s1674 = scalar_lea.vmem %s196, %s1673
      %v1675 = vld [vmem:[%s1674] sm:$0xf]
      %v1676 = vld [vmem:[%s1674 + $0x4] sm:$0xf]
      %v1677 = vld [vmem:[%s1674 + $0xc] sm:$0xf]
      %v1678 = vld [vmem:[%s1674 + $0x10] sm:$0xf]
      %v1679 = vld [vmem:[%s1674 + $0x18] sm:$0xf]
      %v1680 = vld [vmem:[%s1674 + $0x1c] sm:$0xf]
      %v1681 = vld [vmem:[%s1674 + $0x24] sm:$0xf]
      %v1682 = vld [vmem:[%s1674 + $0x28] sm:$0xf]
      %v1683 = vld [vmem:[%s1674 + $0x30] sm:$0xf]
      %v1684 = vld [vmem:[%s1674 + $0x34] sm:$0xf]
      %v1685 = vld [vmem:[%s1674 + $0x3c] sm:$0xf]
      %v1686 = vld [vmem:[%s1674 + $0x40] sm:$0xf]
      %v1687 = vld [vmem:[%s1674 + $0x48] sm:$0xf]
      %v1688 = vld [vmem:[%s1674 + $0x4c] sm:$0xf]
      %v1689 = vld [vmem:[%s1674 + $0x54] sm:$0xf]
      %v1690 = vld [vmem:[%s1674 + $0x58] sm:$0xf]
      %v1691 = vld [vmem:[%s1674 + $0x60] sm:$0xf]
      %v1692 = vld [vmem:[%s1674 + $0x64] sm:$0xf]
      %v1693 = vld [vmem:[%s1674 + $0x6c] sm:$0xf]
      %v1694 = vld [vmem:[%s1674 + $0x70] sm:$0xf]
      %v1695 = vld [vmem:[%s1674 + $0x78] sm:$0xf]
      %v1696 = vld [vmem:[%s1674 + $0x7c] sm:$0xf]
      %v1697 = vld [vmem:[%s1674 + $0x84] sm:$0xf]
      %v1698 = vld [vmem:[%s1674 + $0x88] sm:$0xf]
      %v1699 = vld [vmem:[%s1674 + $0x90] sm:$0xf]
      %v1700 = vld [vmem:[%s1674 + $0x94] sm:$0xf]
      %v1701 = vld [vmem:[%s1674 + $0x9c] sm:$0xf]
      %v1702 = vld [vmem:[%s1674 + $0xa0] sm:$0xf]
      %v1703 = vld [vmem:[%s1674 + $0xa8] sm:$0xf]
      %v1704 = vld [vmem:[%s1674 + $0xac] sm:$0xf]
      %v1705 = vld [vmem:[%s1674 + $0xb4] sm:$0xf]
      %v1706 = vld [vmem:[%s1674 + $0xb8] sm:$0xf]
      %v1707 = vld [vmem:[%s1 + $0x4] sm:$0xc]
      %v1740 = vunpack.c.l.b16 %v1675
      %v1741 = vunpack.c.l.b16 %v1676
      %v1742 = vunpack.c.l.b16 %v1677
      %v1743 = vunpack.c.l.b16 %v1678
      %v1744 = vunpack.c.l.b16 %v1679
      %v1745 = vunpack.c.l.b16 %v1680
      %v1746 = vunpack.c.l.b16 %v1681
      %v1747 = vunpack.c.l.b16 %v1682
      %v1748 = vunpack.c.l.b16 %v1683
      %v1749 = vunpack.c.l.b16 %v1684
      %v1750 = vunpack.c.l.b16 %v1685
      %v1751 = vunpack.c.l.b16 %v1686
      %v1752 = vunpack.c.l.b16 %v1687
      %v1753 = vunpack.c.l.b16 %v1688
      %v1754 = vunpack.c.l.b16 %v1689
      %v1755 = vunpack.c.l.b16 %v1690
      %v1756 = vunpack.c.l.b16 %v1691
      %v1757 = vunpack.c.l.b16 %v1692
      %v1758 = vunpack.c.l.b16 %v1693
      %v1759 = vunpack.c.l.b16 %v1694
      %v1760 = vunpack.c.l.b16 %v1695
      %v1761 = vunpack.c.l.b16 %v1696
      %v1762 = vunpack.c.l.b16 %v1697
      %v1763 = vunpack.c.l.b16 %v1698
      %v1764 = vunpack.c.l.b16 %v1699
      %v1765 = vunpack.c.l.b16 %v1700
      %v1766 = vunpack.c.l.b16 %v1701
      %v1767 = vunpack.c.l.b16 %v1702
      %v1768 = vunpack.c.l.b16 %v1703
      %v1769 = vunpack.c.l.b16 %v1704
      %v1770 = vunpack.c.l.b16 %v1705
      %v1771 = vunpack.c.l.b16 %v1706
      %v1772 = vpack.c.b16 %v1741, %v1740
      %v1773 = vpack.c.b16 %v1743, %v1742
      %v1774 = vpack.c.b16 %v1745, %v1744
      %v1775 = vpack.c.b16 %v1747, %v1746
      %v1776 = vpack.c.b16 %v1749, %v1748
      %v1777 = vpack.c.b16 %v1751, %v1750
      %v1778 = vpack.c.b16 %v1753, %v1752
      %v1779 = vpack.c.b16 %v1755, %v1754
      %v1780 = vpack.c.b16 %v1757, %v1756
      %v1781 = vpack.c.b16 %v1759, %v1758
      %v1782 = vpack.c.b16 %v1761, %v1760
      %v1783 = vpack.c.b16 %v1763, %v1762
      %v1784 = vpack.c.b16 %v1765, %v1764
      %v1785 = vpack.c.b16 %v1767, %v1766
      %v1786 = vpack.c.b16 %v1769, %v1768
      %v1787 = vpack.c.b16 %v1771, %v1770
      %v1789 = vunpack.c.l.b16 %v1707
      %v1790 = vpack.c.b16 %v1789, %v1789
      %v1791 = vrot.slane %v1790, 2
      %v1793 = vsel %vm709, %v1772, 0
      %v1796 = vsel %vm709, %v1773, 0
      %v1799 = vsel %vm709, %v1774, 0
      %v1802 = vsel %vm709, %v1775, 0
      %v1805 = vsel %vm709, %v1776, 0
      %v1808 = vsel %vm709, %v1777, 0
      %v1811 = vsel %vm709, %v1778, 0
      %v1814 = vsel %vm709, %v1779, 0
      %v1817 = vsel %vm709, %v1780, 0
      %v1820 = vsel %vm709, %v1781, 0
      %v1823 = vsel %vm709, %v1782, 0
      %v1826 = vsel %vm709, %v1783, 0
      %v1829 = vsel %vm709, %v1784, 0
      %v1832 = vsel %vm709, %v1785, 0
      %v1835 = vsel %vm709, %v1786, 0
      %v1838 = vsel %vm709, %v1787, 0
      %v1841 = vsel %vm758, %v1791, 0
      %1843 = vmatprep.subr.bf16.mxu0 0
      %1844 = vmatpush1.bf16.msra.mxu0 %v1841
      %1845 = vmatprep.subr.bf16.mxu0 0
      %1846 = vmatpush1.bf16.msra.mxu0 0
      %1847 = vmatprep.subr.bf16.mxu0 0
      %1848 = vmatpush1.bf16.msra.mxu0 0
      %1849 = vmatprep.subr.bf16.mxu0 0
      %1850 = vmatpush1.bf16.msra.mxu0 0
      %1851 = vmatprep.subr.bf16.mxu0 0
      %1852 = vmatpush1.bf16.msra.mxu0 0
      %1853 = vmatprep.subr.bf16.mxu0 0
      %1854 = vmatpush1.bf16.msra.mxu0 0
      %1855 = vmatprep.subr.bf16.mxu0 0
      %1856 = vmatpush1.bf16.msra.mxu0 0
      %1857 = vmatprep.subr.bf16.mxu0 0
      %1858 = vmatpush1.bf16.msra.mxu0 0
      %1859 = vmatprep.subr.bf16.mxu0 0
      %1860 = vmatpush1.bf16.msra.mxu0 0
      %1861 = vmatprep.subr.bf16.mxu0 0
      %1862 = vmatpush1.bf16.msra.mxu0 0
      %1863 = vmatprep.subr.bf16.mxu0 0
      %1864 = vmatpush1.bf16.msra.mxu0 0
      %1865 = vmatprep.subr.bf16.mxu0 0
      %1866 = vmatpush1.bf16.msra.mxu0 0
      %1867 = vmatprep.subr.bf16.mxu0 0
      %1868 = vmatpush1.bf16.msra.mxu0 0
      %1869 = vmatprep.subr.bf16.mxu0 0
      %1870 = vmatpush1.bf16.msra.mxu0 0
      %1871 = vmatprep.subr.bf16.mxu0 0
      %1872 = vmatpush1.bf16.msra.mxu0 0
      %1873 = vmatprep.subr.bf16.mxu0 0
      %1874 = vmatpush1.bf16.msra.mxu0 0
      %1875 = vmatprep.mubr.bf16.mxu0 0
      %1876 = vmatmul.mubr.bf16.gmra.mrb[0].mxu0 %v1793
      %v1877 = vpop.f32.mrb[0].mxu0
      %v1878 = vadd.f32 0.0, %v1877
      %v1879 = vpop.f32.mrb[0].mxu0
      %v1880 = vpop.f32.mrb[0].mxu0
      %v1881 = vadd.f32 0.0, %v1880
      %v1882 = vpop.f32.mrb[0].mxu0
      %1883 = vmatprep.mubr.bf16.mxu0 0
      %1884 = vmatmul.mubr.bf16.gmra.mrb[0].mxu0 %v1796
      %v1885 = vpop.f32.mrb[0].mxu0
      %v1886 = vadd.f32 0.0, %v1885
      %v1887 = vpop.f32.mrb[0].mxu0
      %v1888 = vpop.f32.mrb[0].mxu0
      %v1889 = vadd.f32 0.0, %v1888
      %v1890 = vpop.f32.mrb[0].mxu0
      %1891 = vmatprep.mubr.bf16.mxu0 0
      %1892 = vmatmul.mubr.bf16.gmra.mrb[0].mxu0 %v1799
      %v1893 = vpop.f32.mrb[0].mxu0
      %v1894 = vadd.f32 0.0, %v1893
      %v1895 = vpop.f32.mrb[0].mxu0
      %v1896 = vpop.f32.mrb[0].mxu0
      %v1897 = vadd.f32 0.0, %v1896
      %v1898 = vpop.f32.mrb[0].mxu0
      %1899 = vmatprep.mubr.bf16.mxu0 0
      %1900 = vmatmul.mubr.bf16.gmra.mrb[0].mxu0 %v1802
      %v1901 = vpop.f32.mrb[0].mxu0
      %v1902 = vadd.f32 0.0, %v1901
      %v1903 = vpop.f32.mrb[0].mxu0
      %v1904 = vpop.f32.mrb[0].mxu0
      %v1905 = vadd.f32 0.0, %v1904
      %v1906 = vpop.f32.mrb[0].mxu0
      %1907 = vmatprep.mubr.bf16.mxu0 0
      %1908 = vmatmul.mubr.bf16.gmra.mrb[0].mxu0 %v1805
      %v1909 = vpop.f32.mrb[0].mxu0
      %v1910 = vadd.f32 0.0, %v1909
      %v1911 = vpop.f32.mrb[0].mxu0
      %v1912 = vpop.f32.mrb[0].mxu0
      %v1913 = vadd.f32 0.0, %v1912
      %v1914 = vpop.f32.mrb[0].mxu0
      %1915 = vmatprep.mubr.bf16.mxu0 0
      %1916 = vmatmul.mubr.bf16.gmra.mrb[0].mxu0 %v1808
      %v1917 = vpop.f32.mrb[0].mxu0
      %v1918 = vadd.f32 0.0, %v1917
      %v1919 = vpop.f32.mrb[0].mxu0
      %v1920 = vpop.f32.mrb[0].mxu0
      %v1921 = vadd.f32 0.0, %v1920
      %v1922 = vpop.f32.mrb[0].mxu0
      %1923 = vmatprep.mubr.bf16.mxu0 0
      %1924 = vmatmul.mubr.bf16.gmra.mrb[0].mxu0 %v1811
      %v1925 = vpop.f32.mrb[0].mxu0
      %v1926 = vadd.f32 0.0, %v1925
      %v1927 = vpop.f32.mrb[0].mxu0
      %v1928 = vpop.f32.mrb[0].mxu0
      %v1929 = vadd.f32 0.0, %v1928
      %v1930 = vpop.f32.mrb[0].mxu0
      %1931 = vmatprep.mubr.bf16.mxu0 0
      %1932 = vmatmul.mubr.bf16.gmra.mrb[0].mxu0 %v1814
      %v1933 = vpop.f32.mrb[0].mxu0
      %v1934 = vadd.f32 0.0, %v1933
      %v1935 = vpop.f32.mrb[0].mxu0
      %v1936 = vpop.f32.mrb[0].mxu0
      %v1937 = vadd.f32 0.0, %v1936
      %v1938 = vpop.f32.mrb[0].mxu0
      %1939 = vmatprep.mubr.bf16.mxu0 0
      %1940 = vmatmul.mubr.bf16.gmra.mrb[0].mxu0 %v1817
      %v1941 = vpop.f32.mrb[0].mxu0
      %v1942 = vadd.f32 0.0, %v1941
      %v1943 = vpop.f32.mrb[0].mxu0
      %v1944 = vpop.f32.mrb[0].mxu0
      %v1945 = vadd.f32 0.0, %v1944
      %v1946 = vpop.f32.mrb[0].mxu0
      %1947 = vmatprep.mubr.bf16.mxu0 0
      %1948 = vmatmul.mubr.bf16.gmra.mrb[0].mxu0 %v1820
      %v1949 = vpop.f32.mrb[0].mxu0
      %v1950 = vadd.f32 0.0, %v1949
      %v1951 = vpop.f32.mrb[0].mxu0
      %v1952 = vpop.f32.mrb[0].mxu0
      %v1953 = vadd.f32 0.0, %v1952
      %v1954 = vpop.f32.mrb[0].mxu0
      %1955 = vmatprep.mubr.bf16.mxu0 0
      %1956 = vmatmul.mubr.bf16.gmra.mrb[0].mxu0 %v1823
      %v1957 = vpop.f32.mrb[0].mxu0
      %v1958 = vadd.f32 0.0, %v1957
      %v1959 = vpop.f32.mrb[0].mxu0
      %v1960 = vpop.f32.mrb[0].mxu0
      %v1961 = vadd.f32 0.0, %v1960
      %v1962 = vpop.f32.mrb[0].mxu0
      %1963 = vmatprep.mubr.bf16.mxu0 0
      %1964 = vmatmul.mubr.bf16.gmra.mrb[0].mxu0 %v1826
      %v1965 = vpop.f32.mrb[0].mxu0
      %v1966 = vadd.f32 0.0, %v1965
      %v1967 = vpop.f32.mrb[0].mxu0
      %v1968 = vpop.f32.mrb[0].mxu0
      %v1969 = vadd.f32 0.0, %v1968
      %v1970 = vpop.f32.mrb[0].mxu0
      %1971 = vmatprep.mubr.bf16.mxu0 0
      %1972 = vmatmul.mubr.bf16.gmra.mrb[0].mxu0 %v1829
      %v1973 = vpop.f32.mrb[0].mxu0
      %v1974 = vadd.f32 0.0, %v1973
      %v1975 = vpop.f32.mrb[0].mxu0
      %v1976 = vpop.f32.mrb[0].mxu0
      %v1977 = vadd.f32 0.0, %v1976
      %v1978 = vpop.f32.mrb[0].mxu0
      %1979 = vmatprep.mubr.bf16.mxu0 0
      %1980 = vmatmul.mubr.bf16.gmra.mrb[0].mxu0 %v1832
      %v1981 = vpop.f32.mrb[0].mxu0
      %v1982 = vadd.f32 0.0, %v1981
      %v1983 = vpop.f32.mrb[0].mxu0
      %v1984 = vpop.f32.mrb[0].mxu0
      %v1985 = vadd.f32 0.0, %v1984
      %v1986 = vpop.f32.mrb[0].mxu0
      %1987 = vmatprep.mubr.bf16.mxu0 0
      %1988 = vmatmul.mubr.bf16.gmra.mrb[0].mxu0 %v1835
      %v1989 = vpop.f32.mrb[0].mxu0
      %v1990 = vadd.f32 0.0, %v1989
      %v1991 = vpop.f32.mrb[0].mxu0
      %v1992 = vpop.f32.mrb[0].mxu0
      %v1993 = vadd.f32 0.0, %v1992
      %v1994 = vpop.f32.mrb[0].mxu0
      %1995 = vmatprep.mubr.bf16.mxu0 0
      %1996 = vmatmul.mubr.bf16.gmra.mrb[0].mxu0 %v1838
      %v1997 = vpop.f32.mrb[0].mxu0
      %v1998 = vadd.f32 0.0, %v1997
      %v1999 = vpop.f32.mrb[0].mxu0
      %v2000 = vpop.f32.mrb[0].mxu0
      %v2001 = vadd.f32 0.0, %v2000
      %v2002 = vpop.f32.mrb[0].mxu0
      %2003 = vdwg.mxu0
      %v2004 = vadd.f32 %v1639, %v1878
      %v2005 = vadd.f32 %v1640, %v1881
      %v2006 = vadd.f32 %v1641, %v1886
      %v2007 = vadd.f32 %v1642, %v1889
      %v2008 = vadd.f32 %v1643, %v1894
      %v2009 = vadd.f32 %v1644, %v1897
      %v2010 = vadd.f32 %v1645, %v1902
      %v2011 = vadd.f32 %v1646, %v1905
      %v2012 = vadd.f32 %v1647, %v1910
      %v2013 = vadd.f32 %v1648, %v1913
      %v2014 = vadd.f32 %v1649, %v1918
      %v2015 = vadd.f32 %v1650, %v1921
      %v2016 = vadd.f32 %v1651, %v1926
      %v2017 = vadd.f32 %v1652, %v1929
      %v2018 = vadd.f32 %v1653, %v1934
      %v2019 = vadd.f32 %v1654, %v1937
      %v2020 = vadd.f32 %v1655, %v1942
      %v2021 = vadd.f32 %v1656, %v1945
      %v2022 = vadd.f32 %v1657, %v1950
      %v2023 = vadd.f32 %v1658, %v1953
      %v2024 = vadd.f32 %v1659, %v1958
      %v2025 = vadd.f32 %v1660, %v1961
      %v2026 = vadd.f32 %v1661, %v1966
      %v2027 = vadd.f32 %v1662, %v1969
      %v2028 = vadd.f32 %v1663, %v1974
      %v2029 = vadd.f32 %v1664, %v1977
      %v2030 = vadd.f32 %v1665, %v1982
      %v2031 = vadd.f32 %v1666, %v1985
      %v2032 = vadd.f32 %v1667, %v1990
      %v2033 = vadd.f32 %v1668, %v1993
      %v2034 = vadd.f32 %v1669, %v1998
      %v2035 = vadd.f32 %v1670, %v2001
      %v2036 = vld [vmem:[%s1674] sm:$0xf]
      %v2037 = vld [vmem:[%s1674 + $0x4] sm:$0xf]
      %v2038 = vld [vmem:[%s1674 + $0x8] sm:$0x1]
      %v2039 = vld [vmem:[%s1674 + $0xc] sm:$0xf]
      %v2040 = vld [vmem:[%s1674 + $0x10] sm:$0xf]
      %v2041 = vld [vmem:[%s1674 + $0x14] sm:$0x1]
      %v2042 = vld [vmem:[%s1674 + $0x18] sm:$0xf]
      %v2043 = vld [vmem:[%s1674 + $0x1c] sm:$0xf]
      %v2044 = vld [vmem:[%s1674 + $0x20] sm:$0x1]
      %v2045 = vld [vmem:[%s1674 + $0x24] sm:$0xf]
      %v2046 = vld [vmem:[%s1674 + $0x28] sm:$0xf]
      %v2047 = vld [vmem:[%s1674 + $0x2c] sm:$0x1]
      %v2048 = vld [vmem:[%s1674 + $0x30] sm:$0xf]
      %v2049 = vld [vmem:[%s1674 + $0x34] sm:$0xf]
      %v2050 = vld [vmem:[%s1674 + $0x38] sm:$0x1]
      %v2051 = vld [vmem:[%s1674 + $0x3c] sm:$0xf]
      %v2052 = vld [vmem:[%s1674 + $0x40] sm:$0xf]
      %v2053 = vld [vmem:[%s1674 + $0x44] sm:$0x1]
      %v2054 = vld [vmem:[%s1674 + $0x48] sm:$0xf]
      %v2055 = vld [vmem:[%s1674 + $0x4c] sm:$0xf]
      %v2056 = vld [vmem:[%s1674 + $0x50] sm:$0x1]
      %v2057 = vld [vmem:[%s1674 + $0x54] sm:$0xf]
      %v2058 = vld [vmem:[%s1674 + $0x58] sm:$0xf]
      %v2059 = vld [vmem:[%s1674 + $0x5c] sm:$0x1]
      %v2060 = vld [vmem:[%s1674 + $0x60] sm:$0xf]
      %v2061 = vld [vmem:[%s1674 + $0x64] sm:$0xf]
      %v2062 = vld [vmem:[%s1674 + $0x68] sm:$0x1]
      %v2063 = vld [vmem:[%s1674 + $0x6c] sm:$0xf]
      %v2064 = vld [vmem:[%s1674 + $0x70] sm:$0xf]
      %v2065 = vld [vmem:[%s1674 + $0x74] sm:$0x1]
      %v2066 = vld [vmem:[%s1674 + $0x78] sm:$0xf]
      %v2067 = vld [vmem:[%s1674 + $0x7c] sm:$0xf]
      %v2068 = vld [vmem:[%s1674 + $0x80] sm:$0x1]
      %v2069 = vld [vmem:[%s1674 + $0x84] sm:$0xf]
      %v2070 = vld [vmem:[%s1674 + $0x88] sm:$0xf]
      %v2071 = vld [vmem:[%s1674 + $0x8c] sm:$0x1]
      %v2072 = vld [vmem:[%s1674 + $0x90] sm:$0xf]
      %v2073 = vld [vmem:[%s1674 + $0x94] sm:$0xf]
      %v2074 = vld [vmem:[%s1674 + $0x98] sm:$0x1]
      %v2075 = vld [vmem:[%s1674 + $0x9c] sm:$0xf]
      %v2076 = vld [vmem:[%s1674 + $0xa0] sm:$0xf]
      %v2077 = vld [vmem:[%s1674 + $0xa4] sm:$0x1]
      %v2078 = vld [vmem:[%s1674 + $0xa8] sm:$0xf]
      %v2079 = vld [vmem:[%s1674 + $0xac] sm:$0xf]
      %v2080 = vld [vmem:[%s1674 + $0xb0] sm:$0x1]
      %v2081 = vld [vmem:[%s1674 + $0xb4] sm:$0xf]
      %v2082 = vld [vmem:[%s1674 + $0xb8] sm:$0xf]
      %v2083 = vld [vmem:[%s1674 + $0xbc] sm:$0x1]
      %v2085 = vshrl.u32 %v2036, 16
      %v2087 = vrot.slane %v2085, 4
      %v2088 = vshll.u32 %v2036, 16
      %v2090 = vrot.slane %v2088, 5
      %v2091 = vor.u32 %v2087, %v2090
      %v2092 = vrot.slane %v2091, 4
      %v2094 = vshll.u32 %v2037, 16
      %v2096 = vrot.slane %v2094, 5
      %v2097 = vsel %vm271, %v2092, %v2096
      %v2098 = vshrl.u32 %v2037, 16
      %v2100 = vrot.slane %v2098, 4
      %v2101 = vor.u32 %v2100, %v2096
      %v2102 = vrot.slane %v2101, 4
      %v2104 = vshll.u32 %v2038, 16
      %v2106 = vrot.slane %v2104, 5
      %v2107 = vsel %vm271, %v2102, %v2106
      %v2109 = vshrl.u32 %v2039, 16
      %v2111 = vrot.slane %v2109, 4
      %v2112 = vshll.u32 %v2039, 16
      %v2114 = vrot.slane %v2112, 5
      %v2115 = vor.u32 %v2111, %v2114
      %v2116 = vrot.slane %v2115, 4
      %v2118 = vshll.u32 %v2040, 16
      %v2120 = vrot.slane %v2118, 5
      %v2121 = vsel %vm271, %v2116, %v2120
      %v2122 = vshrl.u32 %v2040, 16
      %v2124 = vrot.slane %v2122, 4
      %v2125 = vor.u32 %v2124, %v2120
      %v2126 = vrot.slane %v2125, 4
      %v2128 = vshll.u32 %v2041, 16
      %v2130 = vrot.slane %v2128, 5
      %v2131 = vsel %vm271, %v2126, %v2130
      %v2133 = vshrl.u32 %v2042, 16
      %v2135 = vrot.slane %v2133, 4
      %v2136 = vshll.u32 %v2042, 16
      %v2138 = vrot.slane %v2136, 5
      %v2139 = vor.u32 %v2135, %v2138
      %v2140 = vrot.slane %v2139, 4
      %v2142 = vshll.u32 %v2043, 16
      %v2144 = vrot.slane %v2142, 5
      %v2145 = vsel %vm271, %v2140, %v2144
      %v2146 = vshrl.u32 %v2043, 16
      %v2148 = vrot.slane %v2146, 4
      %v2149 = vor.u32 %v2148, %v2144
      %v2150 = vrot.slane %v2149, 4
      %v2152 = vshll.u32 %v2044, 16
      %v2154 = vrot.slane %v2152, 5
      %v2155 = vsel %vm271, %v2150, %v2154
      %v2157 = vshrl.u32 %v2045, 16
      %v2159 = vrot.slane %v2157, 4
      %v2160 = vshll.u32 %v2045, 16
      %v2162 = vrot.slane %v2160, 5
      %v2163 = vor.u32 %v2159, %v2162
      %v2164 = vrot.slane %v2163, 4
      %v2166 = vshll.u32 %v2046, 16
      %v2168 = vrot.slane %v2166, 5
      %v2169 = vsel %vm271, %v2164, %v2168
      %v2170 = vshrl.u32 %v2046, 16
      %v2172 = vrot.slane %v2170, 4
      %v2173 = vor.u32 %v2172, %v2168
      %v2174 = vrot.slane %v2173, 4
      %v2176 = vshll.u32 %v2047, 16
      %v2178 = vrot.slane %v2176, 5
      %v2179 = vsel %vm271, %v2174, %v2178
      %v2181 = vshrl.u32 %v2048, 16
      %v2183 = vrot.slane %v2181, 4
      %v2184 = vshll.u32 %v2048, 16
      %v2186 = vrot.slane %v2184, 5
      %v2187 = vor.u32 %v2183, %v2186
      %v2188 = vrot.slane %v2187, 4
      %v2190 = vshll.u32 %v2049, 16
      %v2192 = vrot.slane %v2190, 5
      %v2193 = vsel %vm271, %v2188, %v2192
      %v2194 = vshrl.u32 %v2049, 16
      %v2196 = vrot.slane %v2194, 4
      %v2197 = vor.u32 %v2196, %v2192
      %v2198 = vrot.slane %v2197, 4
      %v2200 = vshll.u32 %v2050, 16
      %v2202 = vrot.slane %v2200, 5
      %v2203 = vsel %vm271, %v2198, %v2202
      %v2205 = vshrl.u32 %v2051, 16
      %v2207 = vrot.slane %v2205, 4
      %v2208 = vshll.u32 %v2051, 16
      %v2210 = vrot.slane %v2208, 5
      %v2211 = vor.u32 %v2207, %v2210
      %v2212 = vrot.slane %v2211, 4
      %v2214 = vshll.u32 %v2052, 16
      %v2216 = vrot.slane %v2214, 5
      %v2217 = vsel %vm271, %v2212, %v2216
      %v2218 = vshrl.u32 %v2052, 16
      %v2220 = vrot.slane %v2218, 4
      %v2221 = vor.u32 %v2220, %v2216
      %v2222 = vrot.slane %v2221, 4
      %v2224 = vshll.u32 %v2053, 16
      %v2226 = vrot.slane %v2224, 5
      %v2227 = vsel %vm271, %v2222, %v2226
      %v2229 = vshrl.u32 %v2054, 16
      %v2231 = vrot.slane %v2229, 4
      %v2232 = vshll.u32 %v2054, 16
      %v2234 = vrot.slane %v2232, 5
      %v2235 = vor.u32 %v2231, %v2234
      %v2236 = vrot.slane %v2235, 4
      %v2238 = vshll.u32 %v2055, 16
      %v2240 = vrot.slane %v2238, 5
      %v2241 = vsel %vm271, %v2236, %v2240
      %v2242 = vshrl.u32 %v2055, 16
      %v2244 = vrot.slane %v2242, 4
      %v2245 = vor.u32 %v2244, %v2240
      %v2246 = vrot.slane %v2245, 4
      %v2248 = vshll.u32 %v2056, 16
      %v2250 = vrot.slane %v2248, 5
      %v2251 = vsel %vm271, %v2246, %v2250
      %v2253 = vshrl.u32 %v2057, 16
      %v2255 = vrot.slane %v2253, 4
      %v2256 = vshll.u32 %v2057, 16
      %v2258 = vrot.slane %v2256, 5
      %v2259 = vor.u32 %v2255, %v2258
      %v2260 = vrot.slane %v2259, 4
      %v2262 = vshll.u32 %v2058, 16
      %v2264 = vrot.slane %v2262, 5
      %v2265 = vsel %vm271, %v2260, %v2264
      %v2266 = vshrl.u32 %v2058, 16
      %v2268 = vrot.slane %v2266, 4
      %v2269 = vor.u32 %v2268, %v2264
      %v2270 = vrot.slane %v2269, 4
      %v2272 = vshll.u32 %v2059, 16
      %v2274 = vrot.slane %v2272, 5
      %v2275 = vsel %vm271, %v2270, %v2274
      %v2277 = vshrl.u32 %v2060, 16
      %v2279 = vrot.slane %v2277, 4
      %v2280 = vshll.u32 %v2060, 16
      %v2282 = vrot.slane %v2280, 5
      %v2283 = vor.u32 %v2279, %v2282
      %v2284 = vrot.slane %v2283, 4
      %v2286 = vshll.u32 %v2061, 16
      %v2288 = vrot.slane %v2286, 5
      %v2289 = vsel %vm271, %v2284, %v2288
      %v2290 = vshrl.u32 %v2061, 16
      %v2292 = vrot.slane %v2290, 4
      %v2293 = vor.u32 %v2292, %v2288
      %v2294 = vrot.slane %v2293, 4
      %v2296 = vshll.u32 %v2062, 16
      %v2298 = vrot.slane %v2296, 5
      %v2299 = vsel %vm271, %v2294, %v2298
      %v2301 = vshrl.u32 %v2063, 16
      %v2303 = vrot.slane %v2301, 4
      %v2304 = vshll.u32 %v2063, 16
      %v2306 = vrot.slane %v2304, 5
      %v2307 = vor.u32 %v2303, %v2306
      %v2308 = vrot.slane %v2307, 4
      %v2310 = vshll.u32 %v2064, 16
      %v2312 = vrot.slane %v2310, 5
      %v2313 = vsel %vm271, %v2308, %v2312
      %v2314 = vshrl.u32 %v2064, 16
      %v2316 = vrot.slane %v2314, 4
      %v2317 = vor.u32 %v2316, %v2312
      %v2318 = vrot.slane %v2317, 4
      %v2320 = vshll.u32 %v2065, 16
      %v2322 = vrot.slane %v2320, 5
      %v2323 = vsel %vm271, %v2318, %v2322
      %v2325 = vshrl.u32 %v2066, 16
      %v2327 = vrot.slane %v2325, 4
      %v2328 = vshll.u32 %v2066, 16
      %v2330 = vrot.slane %v2328, 5
      %v2331 = vor.u32 %v2327, %v2330
      %v2332 = vrot.slane %v2331, 4
      %v2334 = vshll.u32 %v2067, 16
      %v2336 = vrot.slane %v2334, 5
      %v2337 = vsel %vm271, %v2332, %v2336
      %v2338 = vshrl.u32 %v2067, 16
      %v2340 = vrot.slane %v2338, 4
      %v2341 = vor.u32 %v2340, %v2336
      %v2342 = vrot.slane %v2341, 4
      %v2344 = vshll.u32 %v2068, 16
      %v2346 = vrot.slane %v2344, 5
      %v2347 = vsel %vm271, %v2342, %v2346
      %v2349 = vshrl.u32 %v2069, 16
      %v2351 = vrot.slane %v2349, 4
      %v2352 = vshll.u32 %v2069, 16
      %v2354 = vrot.slane %v2352, 5
      %v2355 = vor.u32 %v2351, %v2354
      %v2356 = vrot.slane %v2355, 4
      %v2358 = vshll.u32 %v2070, 16
      %v2360 = vrot.slane %v2358, 5
      %v2361 = vsel %vm271, %v2356, %v2360
      %v2362 = vshrl.u32 %v2070, 16
      %v2364 = vrot.slane %v2362, 4
      %v2365 = vor.u32 %v2364, %v2360
      %v2366 = vrot.slane %v2365, 4
      %v2368 = vshll.u32 %v2071, 16
      %v2370 = vrot.slane %v2368, 5
      %v2371 = vsel %vm271, %v2366, %v2370
      %v2373 = vshrl.u32 %v2072, 16
      %v2375 = vrot.slane %v2373, 4
      %v2376 = vshll.u32 %v2072, 16
      %v2378 = vrot.slane %v2376, 5
      %v2379 = vor.u32 %v2375, %v2378
      %v2380 = vrot.slane %v2379, 4
      %v2382 = vshll.u32 %v2073, 16
      %v2384 = vrot.slane %v2382, 5
      %v2385 = vsel %vm271, %v2380, %v2384
      %v2386 = vshrl.u32 %v2073, 16
      %v2388 = vrot.slane %v2386, 4
      %v2389 = vor.u32 %v2388, %v2384
      %v2390 = vrot.slane %v2389, 4
      %v2392 = vshll.u32 %v2074, 16
      %v2394 = vrot.slane %v2392, 5
      %v2395 = vsel %vm271, %v2390, %v2394
      %v2397 = vshrl.u32 %v2075, 16
      %v2399 = vrot.slane %v2397, 4
      %v2400 = vshll.u32 %v2075, 16
      %v2402 = vrot.slane %v2400, 5
      %v2403 = vor.u32 %v2399, %v2402
      %v2404 = vrot.slane %v2403, 4
      %v2406 = vshll.u32 %v2076, 16
      %v2408 = vrot.slane %v2406, 5
      %v2409 = vsel %vm271, %v2404, %v2408
      %v2410 = vshrl.u32 %v2076, 16
      %v2412 = vrot.slane %v2410, 4
      %v2413 = vor.u32 %v2412, %v2408
      %v2414 = vrot.slane %v2413, 4
      %v2416 = vshll.u32 %v2077, 16
      %v2418 = vrot.slane %v2416, 5
      %v2419 = vsel %vm271, %v2414, %v2418
      %v2421 = vshrl.u32 %v2078, 16
      %v2423 = vrot.slane %v2421, 4
      %v2424 = vshll.u32 %v2078, 16
      %v2426 = vrot.slane %v2424, 5
      %v2427 = vor.u32 %v2423, %v2426
      %v2428 = vrot.slane %v2427, 4
      %v2430 = vshll.u32 %v2079, 16
      %v2432 = vrot.slane %v2430, 5
      %v2433 = vsel %vm271, %v2428, %v2432
      %v2434 = vshrl.u32 %v2079, 16
      %v2436 = vrot.slane %v2434, 4
      %v2437 = vor.u32 %v2436, %v2432
      %v2438 = vrot.slane %v2437, 4
      %v2440 = vshll.u32 %v2080, 16
      %v2442 = vrot.slane %v2440, 5
      %v2443 = vsel %vm271, %v2438, %v2442
      %v2445 = vshrl.u32 %v2081, 16
      %v2447 = vrot.slane %v2445, 4
      %v2448 = vshll.u32 %v2081, 16
      %v2450 = vrot.slane %v2448, 5
      %v2451 = vor.u32 %v2447, %v2450
      %v2452 = vrot.slane %v2451, 4
      %v2454 = vshll.u32 %v2082, 16
      %v2456 = vrot.slane %v2454, 5
      %v2457 = vsel %vm271, %v2452, %v2456
      %v2458 = vshrl.u32 %v2082, 16
      %v2460 = vrot.slane %v2458, 4
      %v2461 = vor.u32 %v2460, %v2456
      %v2462 = vrot.slane %v2461, 4
      %v2464 = vshll.u32 %v2083, 16
      %v2466 = vrot.slane %v2464, 5
      %v2467 = vsel %vm271, %v2462, %v2466
      %v2468 = vld [vmem:[%s1 + $0x8] sm:$0x3]
      %v2469 = vunpack.c.l.b16 %v2097
      %v2470 = vunpack.c.l.b16 %v2107
      %v2471 = vunpack.c.l.b16 %v2121
      %v2472 = vunpack.c.l.b16 %v2131
      %v2473 = vunpack.c.l.b16 %v2145
      %v2474 = vunpack.c.l.b16 %v2155
      %v2475 = vunpack.c.l.b16 %v2169
      %v2476 = vunpack.c.l.b16 %v2179
      %v2477 = vunpack.c.l.b16 %v2193
      %v2478 = vunpack.c.l.b16 %v2203
      %v2479 = vunpack.c.l.b16 %v2217
      %v2480 = vunpack.c.l.b16 %v2227
      %v2481 = vunpack.c.l.b16 %v2241
      %v2482 = vunpack.c.l.b16 %v2251
      %v2483 = vunpack.c.l.b16 %v2265
      %v2484 = vunpack.c.l.b16 %v2275
      %v2485 = vunpack.c.l.b16 %v2289
      %v2486 = vunpack.c.l.b16 %v2299
      %v2487 = vunpack.c.l.b16 %v2313
      %v2488 = vunpack.c.l.b16 %v2323
      %v2489 = vunpack.c.l.b16 %v2337
      %v2490 = vunpack.c.l.b16 %v2347
      %v2491 = vunpack.c.l.b16 %v2361
      %v2492 = vunpack.c.l.b16 %v2371
      %v2493 = vunpack.c.l.b16 %v2385
      %v2494 = vunpack.c.l.b16 %v2395
      %v2495 = vunpack.c.l.b16 %v2409
      %v2496 = vunpack.c.l.b16 %v2419
      %v2497 = vunpack.c.l.b16 %v2433
      %v2498 = vunpack.c.l.b16 %v2443
      %v2499 = vunpack.c.l.b16 %v2457
      %v2500 = vunpack.c.l.b16 %v2467
      %v2501 = vpack.c.b16 %v2470, %v2469
      %v2502 = vpack.c.b16 %v2472, %v2471
      %v2503 = vpack.c.b16 %v2474, %v2473
      %v2504 = vpack.c.b16 %v2476, %v2475
      %v2505 = vpack.c.b16 %v2478, %v2477
      %v2506 = vpack.c.b16 %v2480, %v2479
      %v2507 = vpack.c.b16 %v2482, %v2481
      %v2508 = vpack.c.b16 %v2484, %v2483
      %v2509 = vpack.c.b16 %v2486, %v2485
      %v2510 = vpack.c.b16 %v2488, %v2487
      %v2511 = vpack.c.b16 %v2490, %v2489
      %v2512 = vpack.c.b16 %v2492, %v2491
      %v2513 = vpack.c.b16 %v2494, %v2493
      %v2514 = vpack.c.b16 %v2496, %v2495
      %v2515 = vpack.c.b16 %v2498, %v2497
      %v2516 = vpack.c.b16 %v2500, %v2499
      %v2518 = vsel %vm709, %v2501, 0
      %v2521 = vsel %vm709, %v2502, 0
      %v2524 = vsel %vm709, %v2503, 0
      %v2527 = vsel %vm709, %v2504, 0
      %v2530 = vsel %vm709, %v2505, 0
      %v2533 = vsel %vm709, %v2506, 0
      %v2536 = vsel %vm709, %v2507, 0
      %v2539 = vsel %vm709, %v2508, 0
      %v2542 = vsel %vm709, %v2509, 0
      %v2545 = vsel %vm709, %v2510, 0
      %v2548 = vsel %vm709, %v2511, 0
      %v2551 = vsel %vm709, %v2512, 0
      %v2554 = vsel %vm709, %v2513, 0
      %v2557 = vsel %vm709, %v2514, 0
      %v2560 = vsel %vm709, %v2515, 0
      %v2563 = vsel %vm709, %v2516, 0
      %v2566 = vsel %vm758, %v2468, 0
      %2568 = vmatprep.subr.bf16.mxu0 0
      %2569 = vmatpush1.bf16.msra.mxu0 %v2566
      %2570 = vmatprep.subr.bf16.mxu0 0
      %2571 = vmatpush1.bf16.msra.mxu0 0
      %2572 = vmatprep.subr.bf16.mxu0 0
      %2573 = vmatpush1.bf16.msra.mxu0 0
      %2574 = vmatprep.subr.bf16.mxu0 0
      %2575 = vmatpush1.bf16.msra.mxu0 0
      %2576 = vmatprep.subr.bf16.mxu0 0
      %2577 = vmatpush1.bf16.msra.mxu0 0
      %2578 = vmatprep.subr.bf16.mxu0 0
      %2579 = vmatpush1.bf16.msra.mxu0 0
      %2580 = vmatprep.subr.bf16.mxu0 0
      %2581 = vmatpush1.bf16.msra.mxu0 0
      %2582 = vmatprep.subr.bf16.mxu0 0
      %2583 = vmatpush1.bf16.msra.mxu0 0
      %2584 = vmatprep.subr.bf16.mxu0 0
      %2585 = vmatpush1.bf16.msra.mxu0 0
      %2586 = vmatprep.subr.bf16.mxu0 0
      %2587 = vmatpush1.bf16.msra.mxu0 0
      %2588 = vmatprep.subr.bf16.mxu0 0
      %2589 = vmatpush1.bf16.msra.mxu0 0
      %2590 = vmatprep.subr.bf16.mxu0 0
      %2591 = vmatpush1.bf16.msra.mxu0 0
      %2592 = vmatprep.subr.bf16.mxu0 0
      %2593 = vmatpush1.bf16.msra.mxu0 0
      %2594 = vmatprep.subr.bf16.mxu0 0
      %2595 = vmatpush1.bf16.msra.mxu0 0
      %2596 = vmatprep.subr.bf16.mxu0 0
      %2597 = vmatpush1.bf16.msra.mxu0 0
      %2598 = vmatprep.subr.bf16.mxu0 0
      %2599 = vmatpush1.bf16.msra.mxu0 0
      %2600 = vmatprep.mubr.bf16.mxu0 0
      %2601 = vmatmul.mubr.bf16.gmra.mrb[0].mxu0 %v2518
      %v2602 = vpop.f32.mrb[0].mxu0
      %v2603 = vadd.f32 0.0, %v2602
      %v2604 = vpop.f32.mrb[0].mxu0
      %v2605 = vpop.f32.mrb[0].mxu0
      %v2606 = vadd.f32 0.0, %v2605
      %v2607 = vpop.f32.mrb[0].mxu0
      %2608 = vmatprep.mubr.bf16.mxu0 0
      %2609 = vmatmul.mubr.bf16.gmra.mrb[0].mxu0 %v2521
      %v2610 = vpop.f32.mrb[0].mxu0
      %v2611 = vadd.f32 0.0, %v2610
      %v2612 = vpop.f32.mrb[0].mxu0
      %v2613 = vpop.f32.mrb[0].mxu0
      %v2614 = vadd.f32 0.0, %v2613
      %v2615 = vpop.f32.mrb[0].mxu0
      %2616 = vmatprep.mubr.bf16.mxu0 0
      %2617 = vmatmul.mubr.bf16.gmra.mrb[0].mxu0 %v2524
      %v2618 = vpop.f32.mrb[0].mxu0
      %v2619 = vadd.f32 0.0, %v2618
      %v2620 = vpop.f32.mrb[0].mxu0
      %v2621 = vpop.f32.mrb[0].mxu0
      %v2622 = vadd.f32 0.0, %v2621
      %v2623 = vpop.f32.mrb[0].mxu0
      %2624 = vmatprep.mubr.bf16.mxu0 0
      %2625 = vmatmul.mubr.bf16.gmra.mrb[0].mxu0 %v2527
      %v2626 = vpop.f32.mrb[0].mxu0
      %v2627 = vadd.f32 0.0, %v2626
      %v2628 = vpop.f32.mrb[0].mxu0
      %v2629 = vpop.f32.mrb[0].mxu0
      %v2630 = vadd.f32 0.0, %v2629
      %v2631 = vpop.f32.mrb[0].mxu0
      %2632 = vmatprep.mubr.bf16.mxu0 0
      %2633 = vmatmul.mubr.bf16.gmra.mrb[0].mxu0 %v2530
      %v2634 = vpop.f32.mrb[0].mxu0
      %v2635 = vadd.f32 0.0, %v2634
      %v2636 = vpop.f32.mrb[0].mxu0
      %v2637 = vpop.f32.mrb[0].mxu0
      %v2638 = vadd.f32 0.0, %v2637
      %v2639 = vpop.f32.mrb[0].mxu0
      %2640 = vmatprep.mubr.bf16.mxu0 0
      %2641 = vmatmul.mubr.bf16.gmra.mrb[0].mxu0 %v2533
      %v2642 = vpop.f32.mrb[0].mxu0
      %v2643 = vadd.f32 0.0, %v2642
      %v2644 = vpop.f32.mrb[0].mxu0
      %v2645 = vpop.f32.mrb[0].mxu0
      %v2646 = vadd.f32 0.0, %v2645
      %v2647 = vpop.f32.mrb[0].mxu0
      %2648 = vmatprep.mubr.bf16.mxu0 0
      %2649 = vmatmul.mubr.bf16.gmra.mrb[0].mxu0 %v2536
      %v2650 = vpop.f32.mrb[0].mxu0
      %v2651 = vadd.f32 0.0, %v2650
      %v2652 = vpop.f32.mrb[0].mxu0
      %v2653 = vpop.f32.mrb[0].mxu0
      %v2654 = vadd.f32 0.0, %v2653
      %v2655 = vpop.f32.mrb[0].mxu0
      %2656 = vmatprep.mubr.bf16.mxu0 0
      %2657 = vmatmul.mubr.bf16.gmra.mrb[0].mxu0 %v2539
      %v2658 = vpop.f32.mrb[0].mxu0
      %v2659 = vadd.f32 0.0, %v2658
      %v2660 = vpop.f32.mrb[0].mxu0
      %v2661 = vpop.f32.mrb[0].mxu0
      %v2662 = vadd.f32 0.0, %v2661
      %v2663 = vpop.f32.mrb[0].mxu0
      %2664 = vmatprep.mubr.bf16.mxu0 0
      %2665 = vmatmul.mubr.bf16.gmra.mrb[0].mxu0 %v2542
      %v2666 = vpop.f32.mrb[0].mxu0
      %v2667 = vadd.f32 0.0, %v2666
      %v2668 = vpop.f32.mrb[0].mxu0
      %v2669 = vpop.f32.mrb[0].mxu0
      %v2670 = vadd.f32 0.0, %v2669
      %v2671 = vpop.f32.mrb[0].mxu0
      %2672 = vmatprep.mubr.bf16.mxu0 0
      %2673 = vmatmul.mubr.bf16.gmra.mrb[0].mxu0 %v2545
      %v2674 = vpop.f32.mrb[0].mxu0
      %v2675 = vadd.f32 0.0, %v2674
      %v2676 = vpop.f32.mrb[0].mxu0
      %v2677 = vpop.f32.mrb[0].mxu0
      %v2678 = vadd.f32 0.0, %v2677
      %v2679 = vpop.f32.mrb[0].mxu0
      %2680 = vmatprep.mubr.bf16.mxu0 0
      %2681 = vmatmul.mubr.bf16.gmra.mrb[0].mxu0 %v2548
      %v2682 = vpop.f32.mrb[0].mxu0
      %v2683 = vadd.f32 0.0, %v2682
      %v2684 = vpop.f32.mrb[0].mxu0
      %v2685 = vpop.f32.mrb[0].mxu0
      %v2686 = vadd.f32 0.0, %v2685
      %v2687 = vpop.f32.mrb[0].mxu0
      %2688 = vmatprep.mubr.bf16.mxu0 0
      %2689 = vmatmul.mubr.bf16.gmra.mrb[0].mxu0 %v2551
      %v2690 = vpop.f32.mrb[0].mxu0
      %v2691 = vadd.f32 0.0, %v2690
      %v2692 = vpop.f32.mrb[0].mxu0
      %v2693 = vpop.f32.mrb[0].mxu0
      %v2694 = vadd.f32 0.0, %v2693
      %v2695 = vpop.f32.mrb[0].mxu0
      %2696 = vmatprep.mubr.bf16.mxu0 0
      %2697 = vmatmul.mubr.bf16.gmra.mrb[0].mxu0 %v2554
      %v2698 = vpop.f32.mrb[0].mxu0
      %v2699 = vadd.f32 0.0, %v2698
      %v2700 = vpop.f32.mrb[0].mxu0
      %v2701 = vpop.f32.mrb[0].mxu0
      %v2702 = vadd.f32 0.0, %v2701
      %v2703 = vpop.f32.mrb[0].mxu0
      %2704 = vmatprep.mubr.bf16.mxu0 0
      %2705 = vmatmul.mubr.bf16.gmra.mrb[0].mxu0 %v2557
      %v2706 = vpop.f32.mrb[0].mxu0
      %v2707 = vadd.f32 0.0, %v2706
      %v2708 = vpop.f32.mrb[0].mxu0
      %v2709 = vpop.f32.mrb[0].mxu0
      %v2710 = vadd.f32 0.0, %v2709
      %v2711 = vpop.f32.mrb[0].mxu0
      %2712 = vmatprep.mubr.bf16.mxu0 0
      %2713 = vmatmul.mubr.bf16.gmra.mrb[0].mxu0 %v2560
      %v2714 = vpop.f32.mrb[0].mxu0
      %v2715 = vadd.f32 0.0, %v2714
      %v2716 = vpop.f32.mrb[0].mxu0
      %v2717 = vpop.f32.mrb[0].mxu0
      %v2718 = vadd.f32 0.0, %v2717
      %v2719 = vpop.f32.mrb[0].mxu0
      %2720 = vmatprep.mubr.bf16.mxu0 0
      %2721 = vmatmul.mubr.bf16.gmra.mrb[0].mxu0 %v2563
      %v2722 = vpop.f32.mrb[0].mxu0
      %v2723 = vadd.f32 0.0, %v2722
      %v2724 = vpop.f32.mrb[0].mxu0
      %v2725 = vpop.f32.mrb[0].mxu0
      %v2726 = vadd.f32 0.0, %v2725
      %v2727 = vpop.f32.mrb[0].mxu0
      %2728 = vdwg.mxu0
      %v2729 = vadd.f32 %v2004, %v2603
      %v2730 = vadd.f32 %v2005, %v2606
      %v2731 = vadd.f32 %v2006, %v2611
      %v2732 = vadd.f32 %v2007, %v2614
      %v2733 = vadd.f32 %v2008, %v2619
      %v2734 = vadd.f32 %v2009, %v2622
      %v2735 = vadd.f32 %v2010, %v2627
      %v2736 = vadd.f32 %v2011, %v2630
      %v2737 = vadd.f32 %v2012, %v2635
      %v2738 = vadd.f32 %v2013, %v2638
      %v2739 = vadd.f32 %v2014, %v2643
      %v2740 = vadd.f32 %v2015, %v2646
      %v2741 = vadd.f32 %v2016, %v2651
      %v2742 = vadd.f32 %v2017, %v2654
      %v2743 = vadd.f32 %v2018, %v2659
      %v2744 = vadd.f32 %v2019, %v2662
      %v2745 = vadd.f32 %v2020, %v2667
      %v2746 = vadd.f32 %v2021, %v2670
      %v2747 = vadd.f32 %v2022, %v2675
      %v2748 = vadd.f32 %v2023, %v2678
      %v2749 = vadd.f32 %v2024, %v2683
      %v2750 = vadd.f32 %v2025, %v2686
      %v2751 = vadd.f32 %v2026, %v2691
      %v2752 = vadd.f32 %v2027, %v2694
      %v2753 = vadd.f32 %v2028, %v2699
      %v2754 = vadd.f32 %v2029, %v2702
      %v2755 = vadd.f32 %v2030, %v2707
      %v2756 = vadd.f32 %v2031, %v2710
      %v2757 = vadd.f32 %v2032, %v2715
      %v2758 = vadd.f32 %v2033, %v2718
      %v2759 = vadd.f32 %v2034, %v2723
      %v2760 = vadd.f32 %v2035, %v2726
      %v2761 = vld [vmem:[%s1674] sm:$0xe]
      %v2762 = vld [vmem:[%s1674 + $0xc] sm:$0xe]
      %v2763 = vld [vmem:[%s1674 + $0x18] sm:$0xe]
      %v2764 = vld [vmem:[%s1674 + $0x24] sm:$0xe]
      %v2765 = vld [vmem:[%s1674 + $0x30] sm:$0xe]
      %v2766 = vld [vmem:[%s1674 + $0x3c] sm:$0xe]
      %v2767 = vld [vmem:[%s1674 + $0x48] sm:$0xe]
      %v2768 = vld [vmem:[%s1674 + $0x54] sm:$0xe]
      %v2769 = vld [vmem:[%s1674 + $0x60] sm:$0xe]
      %v2770 = vld [vmem:[%s1674 + $0x6c] sm:$0xe]
      %v2771 = vld [vmem:[%s1674 + $0x78] sm:$0xe]
      %v2772 = vld [vmem:[%s1674 + $0x84] sm:$0xe]
      %v2773 = vld [vmem:[%s1674 + $0x90] sm:$0xe]
      %v2774 = vld [vmem:[%s1674 + $0x9c] sm:$0xe]
      %v2775 = vld [vmem:[%s1674 + $0xa8] sm:$0xe]
      %v2776 = vld [vmem:[%s1674 + $0xb4] sm:$0xe]
      %v2825 = vrot.slane %v2761, 5
      %v2826 = vrot.slane %v2825, 4
      %v2827 = vrot.slane %v2037, 5
      %v2828 = vsel %vm1265, %v2826, %v2827
      %v2829 = vrot.slane %v2827, 4
      %v2830 = vrot.slane %v2038, 5
      %v2831 = vsel %vm1265, %v2829, %v2830
      %v2832 = vrot.slane %v2762, 5
      %v2833 = vrot.slane %v2832, 4
      %v2834 = vrot.slane %v2040, 5
      %v2835 = vsel %vm1265, %v2833, %v2834
      %v2836 = vrot.slane %v2834, 4
      %v2837 = vrot.slane %v2041, 5
      %v2838 = vsel %vm1265, %v2836, %v2837
      %v2839 = vrot.slane %v2763, 5
      %v2840 = vrot.slane %v2839, 4
      %v2841 = vrot.slane %v2043, 5
      %v2842 = vsel %vm1265, %v2840, %v2841
      %v2843 = vrot.slane %v2841, 4
      %v2844 = vrot.slane %v2044, 5
      %v2845 = vsel %vm1265, %v2843, %v2844
      %v2846 = vrot.slane %v2764, 5
      %v2847 = vrot.slane %v2846, 4
      %v2848 = vrot.slane %v2046, 5
      %v2849 = vsel %vm1265, %v2847, %v2848
      %v2850 = vrot.slane %v2848, 4
      %v2851 = vrot.slane %v2047, 5
      %v2852 = vsel %vm1265, %v2850, %v2851
      %v2853 = vrot.slane %v2765, 5
      %v2854 = vrot.slane %v2853, 4
      %v2855 = vrot.slane %v2049, 5
      %v2856 = vsel %vm1265, %v2854, %v2855
      %v2857 = vrot.slane %v2855, 4
      %v2858 = vrot.slane %v2050, 5
      %v2859 = vsel %vm1265, %v2857, %v2858
      %v2860 = vrot.slane %v2766, 5
      %v2861 = vrot.slane %v2860, 4
      %v2862 = vrot.slane %v2052, 5
      %v2863 = vsel %vm1265, %v2861, %v2862
      %v2864 = vrot.slane %v2862, 4
      %v2865 = vrot.slane %v2053, 5
      %v2866 = vsel %vm1265, %v2864, %v2865
      %v2867 = vrot.slane %v2767, 5
      %v2868 = vrot.slane %v2867, 4
      %v2869 = vrot.slane %v2055, 5
      %v2870 = vsel %vm1265, %v2868, %v2869
      %v2871 = vrot.slane %v2869, 4
      %v2872 = vrot.slane %v2056, 5
      %v2873 = vsel %vm1265, %v2871, %v2872
      %v2874 = vrot.slane %v2768, 5
      %v2875 = vrot.slane %v2874, 4
      %v2876 = vrot.slane %v2058, 5
      %v2877 = vsel %vm1265, %v2875, %v2876
      %v2878 = vrot.slane %v2876, 4
      %v2879 = vrot.slane %v2059, 5
      %v2880 = vsel %vm1265, %v2878, %v2879
      %v2881 = vrot.slane %v2769, 5
      %v2882 = vrot.slane %v2881, 4
      %v2883 = vrot.slane %v2061, 5
      %v2884 = vsel %vm1265, %v2882, %v2883
      %v2885 = vrot.slane %v2883, 4
      %v2886 = vrot.slane %v2062, 5
      %v2887 = vsel %vm1265, %v2885, %v2886
      %v2888 = vrot.slane %v2770, 5
      %v2889 = vrot.slane %v2888, 4
      %v2890 = vrot.slane %v2064, 5
      %v2891 = vsel %vm1265, %v2889, %v2890
      %v2892 = vrot.slane %v2890, 4
      %v2893 = vrot.slane %v2065, 5
      %v2894 = vsel %vm1265, %v2892, %v2893
      %v2895 = vrot.slane %v2771, 5
      %v2896 = vrot.slane %v2895, 4
      %v2897 = vrot.slane %v2067, 5
      %v2898 = vsel %vm1265, %v2896, %v2897
      %v2899 = vrot.slane %v2897, 4
      %v2900 = vrot.slane %v2068, 5
      %v2901 = vsel %vm1265, %v2899, %v2900
      %v2902 = vrot.slane %v2772, 5
      %v2903 = vrot.slane %v2902, 4
      %v2904 = vrot.slane %v2070, 5
      %v2905 = vsel %vm1265, %v2903, %v2904
      %v2906 = vrot.slane %v2904, 4
      %v2907 = vrot.slane %v2071, 5
      %v2908 = vsel %vm1265, %v2906, %v2907
      %v2909 = vrot.slane %v2773, 5
      %v2910 = vrot.slane %v2909, 4
      %v2911 = vrot.slane %v2073, 5
      %v2912 = vsel %vm1265, %v2910, %v2911
      %v2913 = vrot.slane %v2911, 4
      %v2914 = vrot.slane %v2074, 5
      %v2915 = vsel %vm1265, %v2913, %v2914
      %v2916 = vrot.slane %v2774, 5
      %v2917 = vrot.slane %v2916, 4
      %v2918 = vrot.slane %v2076, 5
      %v2919 = vsel %vm1265, %v2917, %v2918
      %v2920 = vrot.slane %v2918, 4
      %v2921 = vrot.slane %v2077, 5
      %v2922 = vsel %vm1265, %v2920, %v2921
      %v2923 = vrot.slane %v2775, 5
      %v2924 = vrot.slane %v2923, 4
      %v2925 = vrot.slane %v2079, 5
      %v2926 = vsel %vm1265, %v2924, %v2925
      %v2927 = vrot.slane %v2925, 4
      %v2928 = vrot.slane %v2080, 5
      %v2929 = vsel %vm1265, %v2927, %v2928
      %v2930 = vrot.slane %v2776, 5
      %v2931 = vrot.slane %v2930, 4
      %v2932 = vrot.slane %v2082, 5
      %v2933 = vsel %vm1265, %v2931, %v2932
      %v2934 = vrot.slane %v2932, 4
      %v2935 = vrot.slane %v2083, 5
      %v2936 = vsel %vm1265, %v2934, %v2935
      %v2937 = vld [vmem:[%s1 + $0x8] sm:$0xc]
      %v2938 = vunpack.c.l.b16 %v2828
      %v2939 = vunpack.c.l.b16 %v2831
      %v2940 = vunpack.c.l.b16 %v2835
      %v2941 = vunpack.c.l.b16 %v2838
      %v2942 = vunpack.c.l.b16 %v2842
      %v2943 = vunpack.c.l.b16 %v2845
      %v2944 = vunpack.c.l.b16 %v2849
      %v2945 = vunpack.c.l.b16 %v2852
      %v2946 = vunpack.c.l.b16 %v2856
      %v2947 = vunpack.c.l.b16 %v2859
      %v2948 = vunpack.c.l.b16 %v2863
      %v2949 = vunpack.c.l.b16 %v2866
      %v2950 = vunpack.c.l.b16 %v2870
      %v2951 = vunpack.c.l.b16 %v2873
      %v2952 = vunpack.c.l.b16 %v2877
      %v2953 = vunpack.c.l.b16 %v2880
      %v2954 = vunpack.c.l.b16 %v2884
      %v2955 = vunpack.c.l.b16 %v2887
      %v2956 = vunpack.c.l.b16 %v2891
      %v2957 = vunpack.c.l.b16 %v2894
      %v2958 = vunpack.c.l.b16 %v2898
      %v2959 = vunpack.c.l.b16 %v2901
      %v2960 = vunpack.c.l.b16 %v2905
      %v2961 = vunpack.c.l.b16 %v2908
      %v2962 = vunpack.c.l.b16 %v2912
      %v2963 = vunpack.c.l.b16 %v2915
      %v2964 = vunpack.c.l.b16 %v2919
      %v2965 = vunpack.c.l.b16 %v2922
      %v2966 = vunpack.c.l.b16 %v2926
      %v2967 = vunpack.c.l.b16 %v2929
      %v2968 = vunpack.c.l.b16 %v2933
      %v2969 = vunpack.c.l.b16 %v2936
      %v2970 = vpack.c.b16 %v2939, %v2938
      %v2971 = vpack.c.b16 %v2941, %v2940
      %v2972 = vpack.c.b16 %v2943, %v2942
      %v2973 = vpack.c.b16 %v2945, %v2944
      %v2974 = vpack.c.b16 %v2947, %v2946
      %v2975 = vpack.c.b16 %v2949, %v2948
      %v2976 = vpack.c.b16 %v2951, %v2950
      %v2977 = vpack.c.b16 %v2953, %v2952
      %v2978 = vpack.c.b16 %v2955, %v2954
      %v2979 = vpack.c.b16 %v2957, %v2956
      %v2980 = vpack.c.b16 %v2959, %v2958
      %v2981 = vpack.c.b16 %v2961, %v2960
      %v2982 = vpack.c.b16 %v2963, %v2962
      %v2983 = vpack.c.b16 %v2965, %v2964
      %v2984 = vpack.c.b16 %v2967, %v2966
      %v2985 = vpack.c.b16 %v2969, %v2968
      %v2987 = vunpack.c.l.b16 %v2937
      %v2988 = vpack.c.b16 %v2987, %v2987
      %v2989 = vrot.slane %v2988, 2
      %v2991 = vsel %vm709, %v2970, 0
      %v2994 = vsel %vm709, %v2971, 0
      %v2997 = vsel %vm709, %v2972, 0
      %v3000 = vsel %vm709, %v2973, 0
      %v3003 = vsel %vm709, %v2974, 0
      %v3006 = vsel %vm709, %v2975, 0
      %v3009 = vsel %vm709, %v2976, 0
      %v3012 = vsel %vm709, %v2977, 0
      %v3015 = vsel %vm709, %v2978, 0
      %v3018 = vsel %vm709, %v2979, 0
      %v3021 = vsel %vm709, %v2980, 0
      %v3024 = vsel %vm709, %v2981, 0
      %v3027 = vsel %vm709, %v2982, 0
      %v3030 = vsel %vm709, %v2983, 0
      %v3033 = vsel %vm709, %v2984, 0
      %v3036 = vsel %vm709, %v2985, 0
      %v3039 = vsel %vm758, %v2989, 0
      %3041 = vmatprep.subr.bf16.mxu0 0
      %3042 = vmatpush1.bf16.msra.mxu0 %v3039
      %3043 = vmatprep.subr.bf16.mxu0 0
      %3044 = vmatpush1.bf16.msra.mxu0 0
      %3045 = vmatprep.subr.bf16.mxu0 0
      %3046 = vmatpush1.bf16.msra.mxu0 0
      %3047 = vmatprep.subr.bf16.mxu0 0
      %3048 = vmatpush1.bf16.msra.mxu0 0
      %3049 = vmatprep.subr.bf16.mxu0 0
      %3050 = vmatpush1.bf16.msra.mxu0 0
      %3051 = vmatprep.subr.bf16.mxu0 0
      %3052 = vmatpush1.bf16.msra.mxu0 0
      %3053 = vmatprep.subr.bf16.mxu0 0
      %3054 = vmatpush1.bf16.msra.mxu0 0
      %3055 = vmatprep.subr.bf16.mxu0 0
      %3056 = vmatpush1.bf16.msra.mxu0 0
      %3057 = vmatprep.subr.bf16.mxu0 0
      %3058 = vmatpush1.bf16.msra.mxu0 0
      %3059 = vmatprep.subr.bf16.mxu0 0
      %3060 = vmatpush1.bf16.msra.mxu0 0
      %3061 = vmatprep.subr.bf16.mxu0 0
      %3062 = vmatpush1.bf16.msra.mxu0 0
      %3063 = vmatprep.subr.bf16.mxu0 0
      %3064 = vmatpush1.bf16.msra.mxu0 0
      %3065 = vmatprep.subr.bf16.mxu0 0
      %3066 = vmatpush1.bf16.msra.mxu0 0
      %3067 = vmatprep.subr.bf16.mxu0 0
      %3068 = vmatpush1.bf16.msra.mxu0 0
      %3069 = vmatprep.subr.bf16.mxu0 0
      %3070 = vmatpush1.bf16.msra.mxu0 0
      %3071 = vmatprep.subr.bf16.mxu0 0
      %3072 = vmatpush1.bf16.msra.mxu0 0
      %3073 = vmatprep.mubr.bf16.mxu0 0
      %3074 = vmatmul.mubr.bf16.gmra.mrb[0].mxu0 %v2991
      %v3075 = vpop.f32.mrb[0].mxu0
      %v3076 = vadd.f32 0.0, %v3075
      %v3077 = vpop.f32.mrb[0].mxu0
      %v3078 = vpop.f32.mrb[0].mxu0
      %v3079 = vadd.f32 0.0, %v3078
      %v3080 = vpop.f32.mrb[0].mxu0
      %3081 = vmatprep.mubr.bf16.mxu0 0
      %3082 = vmatmul.mubr.bf16.gmra.mrb[0].mxu0 %v2994
      %v3083 = vpop.f32.mrb[0].mxu0
      %v3084 = vadd.f32 0.0, %v3083
      %v3085 = vpop.f32.mrb[0].mxu0
      %v3086 = vpop.f32.mrb[0].mxu0
      %v3087 = vadd.f32 0.0, %v3086
      %v3088 = vpop.f32.mrb[0].mxu0
      %3089 = vmatprep.mubr.bf16.mxu0 0
      %3090 = vmatmul.mubr.bf16.gmra.mrb[0].mxu0 %v2997
      %v3091 = vpop.f32.mrb[0].mxu0
      %v3092 = vadd.f32 0.0, %v3091
      %v3093 = vpop.f32.mrb[0].mxu0
      %v3094 = vpop.f32.mrb[0].mxu0
      %v3095 = vadd.f32 0.0, %v3094
      %v3096 = vpop.f32.mrb[0].mxu0
      %3097 = vmatprep.mubr.bf16.mxu0 0
      %3098 = vmatmul.mubr.bf16.gmra.mrb[0].mxu0 %v3000
      %v3099 = vpop.f32.mrb[0].mxu0
      %v3100 = vadd.f32 0.0, %v3099
      %v3101 = vpop.f32.mrb[0].mxu0
      %v3102 = vpop.f32.mrb[0].mxu0
      %v3103 = vadd.f32 0.0, %v3102
      %v3104 = vpop.f32.mrb[0].mxu0
      %3105 = vmatprep.mubr.bf16.mxu0 0
      %3106 = vmatmul.mubr.bf16.gmra.mrb[0].mxu0 %v3003
      %v3107 = vpop.f32.mrb[0].mxu0
      %v3108 = vadd.f32 0.0, %v3107
      %v3109 = vpop.f32.mrb[0].mxu0
      %v3110 = vpop.f32.mrb[0].mxu0
      %v3111 = vadd.f32 0.0, %v3110
      %v3112 = vpop.f32.mrb[0].mxu0
      %3113 = vmatprep.mubr.bf16.mxu0 0
      %3114 = vmatmul.mubr.bf16.gmra.mrb[0].mxu0 %v3006
      %v3115 = vpop.f32.mrb[0].mxu0
      %v3116 = vadd.f32 0.0, %v3115
      %v3117 = vpop.f32.mrb[0].mxu0
      %v3118 = vpop.f32.mrb[0].mxu0
      %v3119 = vadd.f32 0.0, %v3118
      %v3120 = vpop.f32.mrb[0].mxu0
      %3121 = vmatprep.mubr.bf16.mxu0 0
      %3122 = vmatmul.mubr.bf16.gmra.mrb[0].mxu0 %v3009
      %v3123 = vpop.f32.mrb[0].mxu0
      %v3124 = vadd.f32 0.0, %v3123
      %v3125 = vpop.f32.mrb[0].mxu0
      %v3126 = vpop.f32.mrb[0].mxu0
      %v3127 = vadd.f32 0.0, %v3126
      %v3128 = vpop.f32.mrb[0].mxu0
      %3129 = vmatprep.mubr.bf16.mxu0 0
      %3130 = vmatmul.mubr.bf16.gmra.mrb[0].mxu0 %v3012
      %v3131 = vpop.f32.mrb[0].mxu0
      %v3132 = vadd.f32 0.0, %v3131
      %v3133 = vpop.f32.mrb[0].mxu0
      %v3134 = vpop.f32.mrb[0].mxu0
      %v3135 = vadd.f32 0.0, %v3134
      %v3136 = vpop.f32.mrb[0].mxu0
      %3137 = vmatprep.mubr.bf16.mxu0 0
      %3138 = vmatmul.mubr.bf16.gmra.mrb[0].mxu0 %v3015
      %v3139 = vpop.f32.mrb[0].mxu0
      %v3140 = vadd.f32 0.0, %v3139
      %v3141 = vpop.f32.mrb[0].mxu0
      %v3142 = vpop.f32.mrb[0].mxu0
      %v3143 = vadd.f32 0.0, %v3142
      %v3144 = vpop.f32.mrb[0].mxu0
      %3145 = vmatprep.mubr.bf16.mxu0 0
      %3146 = vmatmul.mubr.bf16.gmra.mrb[0].mxu0 %v3018
      %v3147 = vpop.f32.mrb[0].mxu0
      %v3148 = vadd.f32 0.0, %v3147
      %v3149 = vpop.f32.mrb[0].mxu0
      %v3150 = vpop.f32.mrb[0].mxu0
      %v3151 = vadd.f32 0.0, %v3150
      %v3152 = vpop.f32.mrb[0].mxu0
      %3153 = vmatprep.mubr.bf16.mxu0 0
      %3154 = vmatmul.mubr.bf16.gmra.mrb[0].mxu0 %v3021
      %v3155 = vpop.f32.mrb[0].mxu0
      %v3156 = vadd.f32 0.0, %v3155
      %v3157 = vpop.f32.mrb[0].mxu0
      %v3158 = vpop.f32.mrb[0].mxu0
      %v3159 = vadd.f32 0.0, %v3158
      %v3160 = vpop.f32.mrb[0].mxu0
      %3161 = vmatprep.mubr.bf16.mxu0 0
      %3162 = vmatmul.mubr.bf16.gmra.mrb[0].mxu0 %v3024
      %v3163 = vpop.f32.mrb[0].mxu0
      %v3164 = vadd.f32 0.0, %v3163
      %v3165 = vpop.f32.mrb[0].mxu0
      %v3166 = vpop.f32.mrb[0].mxu0
      %v3167 = vadd.f32 0.0, %v3166
      %v3168 = vpop.f32.mrb[0].mxu0
      %3169 = vmatprep.mubr.bf16.mxu0 0
      %3170 = vmatmul.mubr.bf16.gmra.mrb[0].mxu0 %v3027
      %v3171 = vpop.f32.mrb[0].mxu0
      %v3172 = vadd.f32 0.0, %v3171
      %v3173 = vpop.f32.mrb[0].mxu0
      %v3174 = vpop.f32.mrb[0].mxu0
      %v3175 = vadd.f32 0.0, %v3174
      %v3176 = vpop.f32.mrb[0].mxu0
      %3177 = vmatprep.mubr.bf16.mxu0 0
      %3178 = vmatmul.mubr.bf16.gmra.mrb[0].mxu0 %v3030
      %v3179 = vpop.f32.mrb[0].mxu0
      %v3180 = vadd.f32 0.0, %v3179
      %v3181 = vpop.f32.mrb[0].mxu0
      %v3182 = vpop.f32.mrb[0].mxu0
      %v3183 = vadd.f32 0.0, %v3182
      %v3184 = vpop.f32.mrb[0].mxu0
      %3185 = vmatprep.mubr.bf16.mxu0 0
      %3186 = vmatmul.mubr.bf16.gmra.mrb[0].mxu0 %v3033
      %v3187 = vpop.f32.mrb[0].mxu0
      %v3188 = vadd.f32 0.0, %v3187
      %v3189 = vpop.f32.mrb[0].mxu0
      %v3190 = vpop.f32.mrb[0].mxu0
      %v3191 = vadd.f32 0.0, %v3190
      %v3192 = vpop.f32.mrb[0].mxu0
      %3193 = vmatprep.mubr.bf16.mxu0 0
      %3194 = vmatmul.mubr.bf16.gmra.mrb[0].mxu0 %v3036
      %v3195 = vpop.f32.mrb[0].mxu0
      %v3196 = vadd.f32 0.0, %v3195
      %v3197 = vpop.f32.mrb[0].mxu0
      %v3198 = vpop.f32.mrb[0].mxu0
      %v3199 = vadd.f32 0.0, %v3198
      %v3200 = vpop.f32.mrb[0].mxu0
      %3201 = vdwg.mxu0
      %v3202 = vadd.f32 %v2729, %v3076
      %v3203 = vadd.f32 %v2730, %v3079
      %v3204 = vadd.f32 %v2731, %v3084
      %v3205 = vadd.f32 %v2732, %v3087
      %v3206 = vadd.f32 %v2733, %v3092
      %v3207 = vadd.f32 %v2734, %v3095
      %v3208 = vadd.f32 %v2735, %v3100
      %v3209 = vadd.f32 %v2736, %v3103
      %v3210 = vadd.f32 %v2737, %v3108
      %v3211 = vadd.f32 %v2738, %v3111
      %v3212 = vadd.f32 %v2739, %v3116
      %v3213 = vadd.f32 %v2740, %v3119
      %v3214 = vadd.f32 %v2741, %v3124
      %v3215 = vadd.f32 %v2742, %v3127
      %v3216 = vadd.f32 %v2743, %v3132
      %v3217 = vadd.f32 %v2744, %v3135
      %v3218 = vadd.f32 %v2745, %v3140
      %v3219 = vadd.f32 %v2746, %v3143
      %v3220 = vadd.f32 %v2747, %v3148
      %v3221 = vadd.f32 %v2748, %v3151
      %v3222 = vadd.f32 %v2749, %v3156
      %v3223 = vadd.f32 %v2750, %v3159
      %v3224 = vadd.f32 %v2751, %v3164
      %v3225 = vadd.f32 %v2752, %v3167
      %v3226 = vadd.f32 %v2753, %v3172
      %v3227 = vadd.f32 %v2754, %v3175
      %v3228 = vadd.f32 %v2755, %v3180
      %v3229 = vadd.f32 %v2756, %v3183
      %v3230 = vadd.f32 %v2757, %v3188
      %v3231 = vadd.f32 %v2758, %v3191
      %v3232 = vadd.f32 %v2759, %v3196
      %v3233 = vadd.f32 %v2760, %v3199
      %s3234 = sadd.s32 %s216, 2
      %s3235 = smul.u32 %s3234, 3
      %s3236 = smul.addr %s3235, 4
      %s3237 = scalar_lea.vmem %s196, %s3236
      %v3238 = vld [vmem:[%s3237] sm:$0xf]
      %v3239 = vld [vmem:[%s3237 + $0x4] sm:$0xf]
      %v3240 = vld [vmem:[%s3237 + $0xc] sm:$0xf]
      %v3241 = vld [vmem:[%s3237 + $0x10] sm:$0xf]
      %v3242 = vld [vmem:[%s3237 + $0x18] sm:$0xf]
      %v3243 = vld [vmem:[%s3237 + $0x1c] sm:$0xf]
      %v3244 = vld [vmem:[%s3237 + $0x24] sm:$0xf]
      %v3245 = vld [vmem:[%s3237 + $0x28] sm:$0xf]
      %v3246 = vld [vmem:[%s3237 + $0x30] sm:$0xf]
      %v3247 = vld [vmem:[%s3237 + $0x34] sm:$0xf]
      %v3248 = vld [vmem:[%s3237 + $0x3c] sm:$0xf]
      %v3249 = vld [vmem:[%s3237 + $0x40] sm:$0xf]
      %v3250 = vld [vmem:[%s3237 + $0x48] sm:$0xf]
      %v3251 = vld [vmem:[%s3237 + $0x4c] sm:$0xf]
      %v3252 = vld [vmem:[%s3237 + $0x54] sm:$0xf]
      %v3253 = vld [vmem:[%s3237 + $0x58] sm:$0xf]
      %v3254 = vld [vmem:[%s3237 + $0x60] sm:$0xf]
      %v3255 = vld [vmem:[%s3237 + $0x64] sm:$0xf]
      %v3256 = vld [vmem:[%s3237 + $0x6c] sm:$0xf]
      %v3257 = vld [vmem:[%s3237 + $0x70] sm:$0xf]
      %v3258 = vld [vmem:[%s3237 + $0x78] sm:$0xf]
      %v3259 = vld [vmem:[%s3237 + $0x7c] sm:$0xf]
      %v3260 = vld [vmem:[%s3237 + $0x84] sm:$0xf]
      %v3261 = vld [vmem:[%s3237 + $0x88] sm:$0xf]
      %v3262 = vld [vmem:[%s3237 + $0x90] sm:$0xf]
      %v3263 = vld [vmem:[%s3237 + $0x94] sm:$0xf]
      %v3264 = vld [vmem:[%s3237 + $0x9c] sm:$0xf]
      %v3265 = vld [vmem:[%s3237 + $0xa0] sm:$0xf]
      %v3266 = vld [vmem:[%s3237 + $0xa8] sm:$0xf]
      %v3267 = vld [vmem:[%s3237 + $0xac] sm:$0xf]
      %v3268 = vld [vmem:[%s3237 + $0xb4] sm:$0xf]
      %v3269 = vld [vmem:[%s3237 + $0xb8] sm:$0xf]
      %v3270 = vld [vmem:[%s1 + $0xc] sm:$0x3]
      %v3303 = vunpack.c.l.b16 %v3238
      %v3304 = vunpack.c.l.b16 %v3239
      %v3305 = vunpack.c.l.b16 %v3240
      %v3306 = vunpack.c.l.b16 %v3241
      %v3307 = vunpack.c.l.b16 %v3242
      %v3308 = vunpack.c.l.b16 %v3243
      %v3309 = vunpack.c.l.b16 %v3244
      %v3310 = vunpack.c.l.b16 %v3245
      %v3311 = vunpack.c.l.b16 %v3246
      %v3312 = vunpack.c.l.b16 %v3247
      %v3313 = vunpack.c.l.b16 %v3248
      %v3314 = vunpack.c.l.b16 %v3249
      %v3315 = vunpack.c.l.b16 %v3250
      %v3316 = vunpack.c.l.b16 %v3251
      %v3317 = vunpack.c.l.b16 %v3252
      %v3318 = vunpack.c.l.b16 %v3253
      %v3319 = vunpack.c.l.b16 %v3254
      %v3320 = vunpack.c.l.b16 %v3255
      %v3321 = vunpack.c.l.b16 %v3256
      %v3322 = vunpack.c.l.b16 %v3257
      %v3323 = vunpack.c.l.b16 %v3258
      %v3324 = vunpack.c.l.b16 %v3259
      %v3325 = vunpack.c.l.b16 %v3260
      %v3326 = vunpack.c.l.b16 %v3261
      %v3327 = vunpack.c.l.b16 %v3262
      %v3328 = vunpack.c.l.b16 %v3263
      %v3329 = vunpack.c.l.b16 %v3264
      %v3330 = vunpack.c.l.b16 %v3265
      %v3331 = vunpack.c.l.b16 %v3266
      %v3332 = vunpack.c.l.b16 %v3267
      %v3333 = vunpack.c.l.b16 %v3268
      %v3334 = vunpack.c.l.b16 %v3269
      %v3335 = vpack.c.b16 %v3304, %v3303
      %v3336 = vpack.c.b16 %v3306, %v3305
      %v3337 = vpack.c.b16 %v3308, %v3307
      %v3338 = vpack.c.b16 %v3310, %v3309
      %v3339 = vpack.c.b16 %v3312, %v3311
      %v3340 = vpack.c.b16 %v3314, %v3313
      %v3341 = vpack.c.b16 %v3316, %v3315
      %v3342 = vpack.c.b16 %v3318, %v3317
      %v3343 = vpack.c.b16 %v3320, %v3319
      %v3344 = vpack.c.b16 %v3322, %v3321
      %v3345 = vpack.c.b16 %v3324, %v3323
      %v3346 = vpack.c.b16 %v3326, %v3325
      %v3347 = vpack.c.b16 %v3328, %v3327
      %v3348 = vpack.c.b16 %v3330, %v3329
      %v3349 = vpack.c.b16 %v3332, %v3331
      %v3350 = vpack.c.b16 %v3334, %v3333
      %v3352 = vsel %vm709, %v3335, 0
      %v3355 = vsel %vm709, %v3336, 0
      %v3358 = vsel %vm709, %v3337, 0
      %v3361 = vsel %vm709, %v3338, 0
      %v3364 = vsel %vm709, %v3339, 0
      %v3367 = vsel %vm709, %v3340, 0
      %v3370 = vsel %vm709, %v3341, 0
      %v3373 = vsel %vm709, %v3342, 0
      %v3376 = vsel %vm709, %v3343, 0
      %v3379 = vsel %vm709, %v3344, 0
      %v3382 = vsel %vm709, %v3345, 0
      %v3385 = vsel %vm709, %v3346, 0
      %v3388 = vsel %vm709, %v3347, 0
      %v3391 = vsel %vm709, %v3348, 0
      %v3394 = vsel %vm709, %v3349, 0
      %v3397 = vsel %vm709, %v3350, 0
      %v3400 = vsel %vm758, %v3270, 0
      %3402 = vmatprep.subr.bf16.mxu0 0
      %3403 = vmatpush1.bf16.msra.mxu0 %v3400
      %3404 = vmatprep.subr.bf16.mxu0 0
      %3405 = vmatpush1.bf16.msra.mxu0 0
      %3406 = vmatprep.subr.bf16.mxu0 0
      %3407 = vmatpush1.bf16.msra.mxu0 0
      %3408 = vmatprep.subr.bf16.mxu0 0
      %3409 = vmatpush1.bf16.msra.mxu0 0
      %3410 = vmatprep.subr.bf16.mxu0 0
      %3411 = vmatpush1.bf16.msra.mxu0 0
      %3412 = vmatprep.subr.bf16.mxu0 0
      %3413 = vmatpush1.bf16.msra.mxu0 0
      %3414 = vmatprep.subr.bf16.mxu0 0
      %3415 = vmatpush1.bf16.msra.mxu0 0
      %3416 = vmatprep.subr.bf16.mxu0 0
      %3417 = vmatpush1.bf16.msra.mxu0 0
      %3418 = vmatprep.subr.bf16.mxu0 0
      %3419 = vmatpush1.bf16.msra.mxu0 0
      %3420 = vmatprep.subr.bf16.mxu0 0
      %3421 = vmatpush1.bf16.msra.mxu0 0
      %3422 = vmatprep.subr.bf16.mxu0 0
      %3423 = vmatpush1.bf16.msra.mxu0 0
      %3424 = vmatprep.subr.bf16.mxu0 0
      %3425 = vmatpush1.bf16.msra.mxu0 0
      %3426 = vmatprep.subr.bf16.mxu0 0
      %3427 = vmatpush1.bf16.msra.mxu0 0
      %3428 = vmatprep.subr.bf16.mxu0 0
      %3429 = vmatpush1.bf16.msra.mxu0 0
      %3430 = vmatprep.subr.bf16.mxu0 0
      %3431 = vmatpush1.bf16.msra.mxu0 0
      %3432 = vmatprep.subr.bf16.mxu0 0
      %3433 = vmatpush1.bf16.msra.mxu0 0
      %3434 = vmatprep.mubr.bf16.mxu0 0
      %3435 = vmatmul.mubr.bf16.gmra.mrb[0].mxu0 %v3352
      %v3436 = vpop.f32.mrb[0].mxu0
      %v3437 = vadd.f32 0.0, %v3436
      %v3438 = vpop.f32.mrb[0].mxu0
      %v3439 = vpop.f32.mrb[0].mxu0
      %v3440 = vadd.f32 0.0, %v3439
      %v3441 = vpop.f32.mrb[0].mxu0
      %3442 = vmatprep.mubr.bf16.mxu0 0
      %3443 = vmatmul.mubr.bf16.gmra.mrb[0].mxu0 %v3355
      %v3444 = vpop.f32.mrb[0].mxu0
      %v3445 = vadd.f32 0.0, %v3444
      %v3446 = vpop.f32.mrb[0].mxu0
      %v3447 = vpop.f32.mrb[0].mxu0
      %v3448 = vadd.f32 0.0, %v3447
      %v3449 = vpop.f32.mrb[0].mxu0
      %3450 = vmatprep.mubr.bf16.mxu0 0
      %3451 = vmatmul.mubr.bf16.gmra.mrb[0].mxu0 %v3358
      %v3452 = vpop.f32.mrb[0].mxu0
      %v3453 = vadd.f32 0.0, %v3452
      %v3454 = vpop.f32.mrb[0].mxu0
      %v3455 = vpop.f32.mrb[0].mxu0
      %v3456 = vadd.f32 0.0, %v3455
      %v3457 = vpop.f32.mrb[0].mxu0
      %3458 = vmatprep.mubr.bf16.mxu0 0
      %3459 = vmatmul.mubr.bf16.gmra.mrb[0].mxu0 %v3361
      %v3460 = vpop.f32.mrb[0].mxu0
      %v3461 = vadd.f32 0.0, %v3460
      %v3462 = vpop.f32.mrb[0].mxu0
      %v3463 = vpop.f32.mrb[0].mxu0
      %v3464 = vadd.f32 0.0, %v3463
      %v3465 = vpop.f32.mrb[0].mxu0
      %3466 = vmatprep.mubr.bf16.mxu0 0
      %3467 = vmatmul.mubr.bf16.gmra.mrb[0].mxu0 %v3364
      %v3468 = vpop.f32.mrb[0].mxu0
      %v3469 = vadd.f32 0.0, %v3468
      %v3470 = vpop.f32.mrb[0].mxu0
      %v3471 = vpop.f32.mrb[0].mxu0
      %v3472 = vadd.f32 0.0, %v3471
      %v3473 = vpop.f32.mrb[0].mxu0
      %3474 = vmatprep.mubr.bf16.mxu0 0
      %3475 = vmatmul.mubr.bf16.gmra.mrb[0].mxu0 %v3367
      %v3476 = vpop.f32.mrb[0].mxu0
      %v3477 = vadd.f32 0.0, %v3476
      %v3478 = vpop.f32.mrb[0].mxu0
      %v3479 = vpop.f32.mrb[0].mxu0
      %v3480 = vadd.f32 0.0, %v3479
      %v3481 = vpop.f32.mrb[0].mxu0
      %3482 = vmatprep.mubr.bf16.mxu0 0
      %3483 = vmatmul.mubr.bf16.gmra.mrb[0].mxu0 %v3370
      %v3484 = vpop.f32.mrb[0].mxu0
      %v3485 = vadd.f32 0.0, %v3484
      %v3486 = vpop.f32.mrb[0].mxu0
      %v3487 = vpop.f32.mrb[0].mxu0
      %v3488 = vadd.f32 0.0, %v3487
      %v3489 = vpop.f32.mrb[0].mxu0
      %3490 = vmatprep.mubr.bf16.mxu0 0
      %3491 = vmatmul.mubr.bf16.gmra.mrb[0].mxu0 %v3373
      %v3492 = vpop.f32.mrb[0].mxu0
      %v3493 = vadd.f32 0.0, %v3492
      %v3494 = vpop.f32.mrb[0].mxu0
      %v3495 = vpop.f32.mrb[0].mxu0
      %v3496 = vadd.f32 0.0, %v3495
      %v3497 = vpop.f32.mrb[0].mxu0
      %3498 = vmatprep.mubr.bf16.mxu0 0
      %3499 = vmatmul.mubr.bf16.gmra.mrb[0].mxu0 %v3376
      %v3500 = vpop.f32.mrb[0].mxu0
      %v3501 = vadd.f32 0.0, %v3500
      %v3502 = vpop.f32.mrb[0].mxu0
      %v3503 = vpop.f32.mrb[0].mxu0
      %v3504 = vadd.f32 0.0, %v3503
      %v3505 = vpop.f32.mrb[0].mxu0
      %3506 = vmatprep.mubr.bf16.mxu0 0
      %3507 = vmatmul.mubr.bf16.gmra.mrb[0].mxu0 %v3379
      %v3508 = vpop.f32.mrb[0].mxu0
      %v3509 = vadd.f32 0.0, %v3508
      %v3510 = vpop.f32.mrb[0].mxu0
      %v3511 = vpop.f32.mrb[0].mxu0
      %v3512 = vadd.f32 0.0, %v3511
      %v3513 = vpop.f32.mrb[0].mxu0
      %3514 = vmatprep.mubr.bf16.mxu0 0
      %3515 = vmatmul.mubr.bf16.gmra.mrb[0].mxu0 %v3382
      %v3516 = vpop.f32.mrb[0].mxu0
      %v3517 = vadd.f32 0.0, %v3516
      %v3518 = vpop.f32.mrb[0].mxu0
      %v3519 = vpop.f32.mrb[0].mxu0
      %v3520 = vadd.f32 0.0, %v3519
      %v3521 = vpop.f32.mrb[0].mxu0
      %3522 = vmatprep.mubr.bf16.mxu0 0
      %3523 = vmatmul.mubr.bf16.gmra.mrb[0].mxu0 %v3385
      %v3524 = vpop.f32.mrb[0].mxu0
      %v3525 = vadd.f32 0.0, %v3524
      %v3526 = vpop.f32.mrb[0].mxu0
      %v3527 = vpop.f32.mrb[0].mxu0
      %v3528 = vadd.f32 0.0, %v3527
      %v3529 = vpop.f32.mrb[0].mxu0
      %3530 = vmatprep.mubr.bf16.mxu0 0
      %3531 = vmatmul.mubr.bf16.gmra.mrb[0].mxu0 %v3388
      %v3532 = vpop.f32.mrb[0].mxu0
      %v3533 = vadd.f32 0.0, %v3532
      %v3534 = vpop.f32.mrb[0].mxu0
      %v3535 = vpop.f32.mrb[0].mxu0
      %v3536 = vadd.f32 0.0, %v3535
      %v3537 = vpop.f32.mrb[0].mxu0
      %3538 = vmatprep.mubr.bf16.mxu0 0
      %3539 = vmatmul.mubr.bf16.gmra.mrb[0].mxu0 %v3391
      %v3540 = vpop.f32.mrb[0].mxu0
      %v3541 = vadd.f32 0.0, %v3540
      %v3542 = vpop.f32.mrb[0].mxu0
      %v3543 = vpop.f32.mrb[0].mxu0
      %v3544 = vadd.f32 0.0, %v3543
      %v3545 = vpop.f32.mrb[0].mxu0
      %3546 = vmatprep.mubr.bf16.mxu0 0
      %3547 = vmatmul.mubr.bf16.gmra.mrb[0].mxu0 %v3394
      %v3548 = vpop.f32.mrb[0].mxu0
      %v3549 = vadd.f32 0.0, %v3548
      %v3550 = vpop.f32.mrb[0].mxu0
      %v3551 = vpop.f32.mrb[0].mxu0
      %v3552 = vadd.f32 0.0, %v3551
      %v3553 = vpop.f32.mrb[0].mxu0
      %3554 = vmatprep.mubr.bf16.mxu0 0
      %3555 = vmatmul.mubr.bf16.gmra.mrb[0].mxu0 %v3397
      %v3556 = vpop.f32.mrb[0].mxu0
      %v3557 = vadd.f32 0.0, %v3556
      %v3558 = vpop.f32.mrb[0].mxu0
      %v3559 = vpop.f32.mrb[0].mxu0
      %v3560 = vadd.f32 0.0, %v3559
      %v3561 = vpop.f32.mrb[0].mxu0
      %3562 = vdwg.mxu0
      %v3563 = vadd.f32 %v3202, %v3437
      %v3564 = vadd.f32 %v3203, %v3440
      %v3565 = vadd.f32 %v3204, %v3445
      %v3566 = vadd.f32 %v3205, %v3448
      %v3567 = vadd.f32 %v3206, %v3453
      %v3568 = vadd.f32 %v3207, %v3456
      %v3569 = vadd.f32 %v3208, %v3461
      %v3570 = vadd.f32 %v3209, %v3464
      %v3571 = vadd.f32 %v3210, %v3469
      %v3572 = vadd.f32 %v3211, %v3472
      %v3573 = vadd.f32 %v3212, %v3477
      %v3574 = vadd.f32 %v3213, %v3480
      %v3575 = vadd.f32 %v3214, %v3485
      %v3576 = vadd.f32 %v3215, %v3488
      %v3577 = vadd.f32 %v3216, %v3493
      %v3578 = vadd.f32 %v3217, %v3496
      %v3579 = vadd.f32 %v3218, %v3501
      %v3580 = vadd.f32 %v3219, %v3504
      %v3581 = vadd.f32 %v3220, %v3509
      %v3582 = vadd.f32 %v3221, %v3512
      %v3583 = vadd.f32 %v3222, %v3517
      %v3584 = vadd.f32 %v3223, %v3520
      %v3585 = vadd.f32 %v3224, %v3525
      %v3586 = vadd.f32 %v3225, %v3528
      %v3587 = vadd.f32 %v3226, %v3533
      %v3588 = vadd.f32 %v3227, %v3536
      %v3589 = vadd.f32 %v3228, %v3541
      %v3590 = vadd.f32 %v3229, %v3544
      %v3591 = vadd.f32 %v3230, %v3549
      %v3592 = vadd.f32 %v3231, %v3552
      %v3593 = vadd.f32 %v3232, %v3557
      %v3594 = vadd.f32 %v3233, %v3560
      %v3595 = vld [vmem:[%s3237] sm:$0xf]
      %v3596 = vld [vmem:[%s3237 + $0x4] sm:$0xf]
      %v3597 = vld [vmem:[%s3237 + $0x8] sm:$0x1]
      %v3598 = vld [vmem:[%s3237 + $0xc] sm:$0xf]
      %v3599 = vld [vmem:[%s3237 + $0x10] sm:$0xf]
      %v3600 = vld [vmem:[%s3237 + $0x14] sm:$0x1]
      %v3601 = vld [vmem:[%s3237 + $0x18] sm:$0xf]
      %v3602 = vld [vmem:[%s3237 + $0x1c] sm:$0xf]
      %v3603 = vld [vmem:[%s3237 + $0x20] sm:$0x1]
      %v3604 = vld [vmem:[%s3237 + $0x24] sm:$0xf]
      %v3605 = vld [vmem:[%s3237 + $0x28] sm:$0xf]
      %v3606 = vld [vmem:[%s3237 + $0x2c] sm:$0x1]
      %v3607 = vld [vmem:[%s3237 + $0x30] sm:$0xf]
      %v3608 = vld [vmem:[%s3237 + $0x34] sm:$0xf]
      %v3609 = vld [vmem:[%s3237 + $0x38] sm:$0x1]
      %v3610 = vld [vmem:[%s3237 + $0x3c] sm:$0xf]
      %v3611 = vld [vmem:[%s3237 + $0x40] sm:$0xf]
      %v3612 = vld [vmem:[%s3237 + $0x44] sm:$0x1]
      %v3613 = vld [vmem:[%s3237 + $0x48] sm:$0xf]
      %v3614 = vld [vmem:[%s3237 + $0x4c] sm:$0xf]
      %v3615 = vld [vmem:[%s3237 + $0x50] sm:$0x1]
      %v3616 = vld [vmem:[%s3237 + $0x54] sm:$0xf]
      %v3617 = vld [vmem:[%s3237 + $0x58] sm:$0xf]
      %v3618 = vld [vmem:[%s3237 + $0x5c] sm:$0x1]
      %v3619 = vld [vmem:[%s3237 + $0x60] sm:$0xf]
      %v3620 = vld [vmem:[%s3237 + $0x64] sm:$0xf]
      %v3621 = vld [vmem:[%s3237 + $0x68] sm:$0x1]
      %v3622 = vld [vmem:[%s3237 + $0x6c] sm:$0xf]
      %v3623 = vld [vmem:[%s3237 + $0x70] sm:$0xf]
      %v3624 = vld [vmem:[%s3237 + $0x74] sm:$0x1]
      %v3625 = vld [vmem:[%s3237 + $0x78] sm:$0xf]
      %v3626 = vld [vmem:[%s3237 + $0x7c] sm:$0xf]
      %v3627 = vld [vmem:[%s3237 + $0x80] sm:$0x1]
      %v3628 = vld [vmem:[%s3237 + $0x84] sm:$0xf]
      %v3629 = vld [vmem:[%s3237 + $0x88] sm:$0xf]
      %v3630 = vld [vmem:[%s3237 + $0x8c] sm:$0x1]
      %v3631 = vld [vmem:[%s3237 + $0x90] sm:$0xf]
      %v3632 = vld [vmem:[%s3237 + $0x94] sm:$0xf]
      %v3633 = vld [vmem:[%s3237 + $0x98] sm:$0x1]
      %v3634 = vld [vmem:[%s3237 + $0x9c] sm:$0xf]
      %v3635 = vld [vmem:[%s3237 + $0xa0] sm:$0xf]
      %v3636 = vld [vmem:[%s3237 + $0xa4] sm:$0x1]
      %v3637 = vld [vmem:[%s3237 + $0xa8] sm:$0xf]
      %v3638 = vld [vmem:[%s3237 + $0xac] sm:$0xf]
      %v3639 = vld [vmem:[%s3237 + $0xb0] sm:$0x1]
      %v3640 = vld [vmem:[%s3237 + $0xb4] sm:$0xf]
      %v3641 = vld [vmem:[%s3237 + $0xb8] sm:$0xf]
      %v3642 = vld [vmem:[%s3237 + $0xbc] sm:$0x1]
      %v3644 = vshrl.u32 %v3595, 16
      %v3646 = vrot.slane %v3644, 4
      %v3647 = vshll.u32 %v3595, 16
      %v3649 = vrot.slane %v3647, 5
      %v3650 = vor.u32 %v3646, %v3649
      %v3651 = vrot.slane %v3650, 4
      %v3653 = vshll.u32 %v3596, 16
      %v3655 = vrot.slane %v3653, 5
      %v3656 = vsel %vm271, %v3651, %v3655
      %v3657 = vshrl.u32 %v3596, 16
      %v3659 = vrot.slane %v3657, 4
      %v3660 = vor.u32 %v3659, %v3655
      %v3661 = vrot.slane %v3660, 4
      %v3663 = vshll.u32 %v3597, 16
      %v3665 = vrot.slane %v3663, 5
      %v3666 = vsel %vm271, %v3661, %v3665
      %v3668 = vshrl.u32 %v3598, 16
      %v3670 = vrot.slane %v3668, 4
      %v3671 = vshll.u32 %v3598, 16
      %v3673 = vrot.slane %v3671, 5
      %v3674 = vor.u32 %v3670, %v3673
      %v3675 = vrot.slane %v3674, 4
      %v3677 = vshll.u32 %v3599, 16
      %v3679 = vrot.slane %v3677, 5
      %v3680 = vsel %vm271, %v3675, %v3679
      %v3681 = vshrl.u32 %v3599, 16
      %v3683 = vrot.slane %v3681, 4
      %v3684 = vor.u32 %v3683, %v3679
      %v3685 = vrot.slane %v3684, 4
      %v3687 = vshll.u32 %v3600, 16
      %v3689 = vrot.slane %v3687, 5
      %v3690 = vsel %vm271, %v3685, %v3689
      %v3692 = vshrl.u32 %v3601, 16
      %v3694 = vrot.slane %v3692, 4
      %v3695 = vshll.u32 %v3601, 16
      %v3697 = vrot.slane %v3695, 5
      %v3698 = vor.u32 %v3694, %v3697
      %v3699 = vrot.slane %v3698, 4
      %v3701 = vshll.u32 %v3602, 16
      %v3703 = vrot.slane %v3701, 5
      %v3704 = vsel %vm271, %v3699, %v3703
      %v3705 = vshrl.u32 %v3602, 16
      %v3707 = vrot.slane %v3705, 4
      %v3708 = vor.u32 %v3707, %v3703
      %v3709 = vrot.slane %v3708, 4
      %v3711 = vshll.u32 %v3603, 16
      %v3713 = vrot.slane %v3711, 5
      %v3714 = vsel %vm271, %v3709, %v3713
      %v3716 = vshrl.u32 %v3604, 16
      %v3718 = vrot.slane %v3716, 4
      %v3719 = vshll.u32 %v3604, 16
      %v3721 = vrot.slane %v3719, 5
      %v3722 = vor.u32 %v3718, %v3721
      %v3723 = vrot.slane %v3722, 4
      %v3725 = vshll.u32 %v3605, 16
      %v3727 = vrot.slane %v3725, 5
      %v3728 = vsel %vm271, %v3723, %v3727
      %v3729 = vshrl.u32 %v3605, 16
      %v3731 = vrot.slane %v3729, 4
      %v3732 = vor.u32 %v3731, %v3727
      %v3733 = vrot.slane %v3732, 4
      %v3735 = vshll.u32 %v3606, 16
      %v3737 = vrot.slane %v3735, 5
      %v3738 = vsel %vm271, %v3733, %v3737
      %v3740 = vshrl.u32 %v3607, 16
      %v3742 = vrot.slane %v3740, 4
      %v3743 = vshll.u32 %v3607, 16
      %v3745 = vrot.slane %v3743, 5
      %v3746 = vor.u32 %v3742, %v3745
      %v3747 = vrot.slane %v3746, 4
      %v3749 = vshll.u32 %v3608, 16
      %v3751 = vrot.slane %v3749, 5
      %v3752 = vsel %vm271, %v3747, %v3751
      %v3753 = vshrl.u32 %v3608, 16
      %v3755 = vrot.slane %v3753, 4
      %v3756 = vor.u32 %v3755, %v3751
      %v3757 = vrot.slane %v3756, 4
      %v3759 = vshll.u32 %v3609, 16
      %v3761 = vrot.slane %v3759, 5
      %v3762 = vsel %vm271, %v3757, %v3761
      %v3764 = vshrl.u32 %v3610, 16
      %v3766 = vrot.slane %v3764, 4
      %v3767 = vshll.u32 %v3610, 16
      %v3769 = vrot.slane %v3767, 5
      %v3770 = vor.u32 %v3766, %v3769
      %v3771 = vrot.slane %v3770, 4
      %v3773 = vshll.u32 %v3611, 16
      %v3775 = vrot.slane %v3773, 5
      %v3776 = vsel %vm271, %v3771, %v3775
      %v3777 = vshrl.u32 %v3611, 16
      %v3779 = vrot.slane %v3777, 4
      %v3780 = vor.u32 %v3779, %v3775
      %v3781 = vrot.slane %v3780, 4
      %v3783 = vshll.u32 %v3612, 16
      %v3785 = vrot.slane %v3783, 5
      %v3786 = vsel %vm271, %v3781, %v3785
      %v3788 = vshrl.u32 %v3613, 16
      %v3790 = vrot.slane %v3788, 4
      %v3791 = vshll.u32 %v3613, 16
      %v3793 = vrot.slane %v3791, 5
      %v3794 = vor.u32 %v3790, %v3793
      %v3795 = vrot.slane %v3794, 4
      %v3797 = vshll.u32 %v3614, 16
      %v3799 = vrot.slane %v3797, 5
      %v3800 = vsel %vm271, %v3795, %v3799
      %v3801 = vshrl.u32 %v3614, 16
      %v3803 = vrot.slane %v3801, 4
      %v3804 = vor.u32 %v3803, %v3799
      %v3805 = vrot.slane %v3804, 4
      %v3807 = vshll.u32 %v3615, 16
      %v3809 = vrot.slane %v3807, 5
      %v3810 = vsel %vm271, %v3805, %v3809
      %v3812 = vshrl.u32 %v3616, 16
      %v3814 = vrot.slane %v3812, 4
      %v3815 = vshll.u32 %v3616, 16
      %v3817 = vrot.slane %v3815, 5
      %v3818 = vor.u32 %v3814, %v3817
      %v3819 = vrot.slane %v3818, 4
      %v3821 = vshll.u32 %v3617, 16
      %v3823 = vrot.slane %v3821, 5
      %v3824 = vsel %vm271, %v3819, %v3823
      %v3825 = vshrl.u32 %v3617, 16
      %v3827 = vrot.slane %v3825, 4
      %v3828 = vor.u32 %v3827, %v3823
      %v3829 = vrot.slane %v3828, 4
      %v3831 = vshll.u32 %v3618, 16
      %v3833 = vrot.slane %v3831, 5
      %v3834 = vsel %vm271, %v3829, %v3833
      %v3836 = vshrl.u32 %v3619, 16
      %v3838 = vrot.slane %v3836, 4
      %v3839 = vshll.u32 %v3619, 16
      %v3841 = vrot.slane %v3839, 5
      %v3842 = vor.u32 %v3838, %v3841
      %v3843 = vrot.slane %v3842, 4
      %v3845 = vshll.u32 %v3620, 16
      %v3847 = vrot.slane %v3845, 5
      %v3848 = vsel %vm271, %v3843, %v3847
      %v3849 = vshrl.u32 %v3620, 16
      %v3851 = vrot.slane %v3849, 4
      %v3852 = vor.u32 %v3851, %v3847
      %v3853 = vrot.slane %v3852, 4
      %v3855 = vshll.u32 %v3621, 16
      %v3857 = vrot.slane %v3855, 5
      %v3858 = vsel %vm271, %v3853, %v3857
      %v3860 = vshrl.u32 %v3622, 16
      %v3862 = vrot.slane %v3860, 4
      %v3863 = vshll.u32 %v3622, 16
      %v3865 = vrot.slane %v3863, 5
      %v3866 = vor.u32 %v3862, %v3865
      %v3867 = vrot.slane %v3866, 4
      %v3869 = vshll.u32 %v3623, 16
      %v3871 = vrot.slane %v3869, 5
      %v3872 = vsel %vm271, %v3867, %v3871
      %v3873 = vshrl.u32 %v3623, 16
      %v3875 = vrot.slane %v3873, 4
      %v3876 = vor.u32 %v3875, %v3871
      %v3877 = vrot.slane %v3876, 4
      %v3879 = vshll.u32 %v3624, 16
      %v3881 = vrot.slane %v3879, 5
      %v3882 = vsel %vm271, %v3877, %v3881
      %v3884 = vshrl.u32 %v3625, 16
      %v3886 = vrot.slane %v3884, 4
      %v3887 = vshll.u32 %v3625, 16
      %v3889 = vrot.slane %v3887, 5
      %v3890 = vor.u32 %v3886, %v3889
      %v3891 = vrot.slane %v3890, 4
      %v3893 = vshll.u32 %v3626, 16
      %v3895 = vrot.slane %v3893, 5
      %v3896 = vsel %vm271, %v3891, %v3895
      %v3897 = vshrl.u32 %v3626, 16
      %v3899 = vrot.slane %v3897, 4
      %v3900 = vor.u32 %v3899, %v3895
      %v3901 = vrot.slane %v3900, 4
      %v3903 = vshll.u32 %v3627, 16
      %v3905 = vrot.slane %v3903, 5
      %v3906 = vsel %vm271, %v3901, %v3905
      %v3908 = vshrl.u32 %v3628, 16
      %v3910 = vrot.slane %v3908, 4
      %v3911 = vshll.u32 %v3628, 16
      %v3913 = vrot.slane %v3911, 5
      %v3914 = vor.u32 %v3910, %v3913
      %v3915 = vrot.slane %v3914, 4
      %v3917 = vshll.u32 %v3629, 16
      %v3919 = vrot.slane %v3917, 5
      %v3920 = vsel %vm271, %v3915, %v3919
      %v3921 = vshrl.u32 %v3629, 16
      %v3923 = vrot.slane %v3921, 4
      %v3924 = vor.u32 %v3923, %v3919
      %v3925 = vrot.slane %v3924, 4
      %v3927 = vshll.u32 %v3630, 16
      %v3929 = vrot.slane %v3927, 5
      %v3930 = vsel %vm271, %v3925, %v3929
      %v3932 = vshrl.u32 %v3631, 16
      %v3934 = vrot.slane %v3932, 4
      %v3935 = vshll.u32 %v3631, 16
      %v3937 = vrot.slane %v3935, 5
      %v3938 = vor.u32 %v3934, %v3937
      %v3939 = vrot.slane %v3938, 4
      %v3941 = vshll.u32 %v3632, 16
      %v3943 = vrot.slane %v3941, 5
      %v3944 = vsel %vm271, %v3939, %v3943
      %v3945 = vshrl.u32 %v3632, 16
      %v3947 = vrot.slane %v3945, 4
      %v3948 = vor.u32 %v3947, %v3943
      %v3949 = vrot.slane %v3948, 4
      %v3951 = vshll.u32 %v3633, 16
      %v3953 = vrot.slane %v3951, 5
      %v3954 = vsel %vm271, %v3949, %v3953
      %v3956 = vshrl.u32 %v3634, 16
      %v3958 = vrot.slane %v3956, 4
      %v3959 = vshll.u32 %v3634, 16
      %v3961 = vrot.slane %v3959, 5
      %v3962 = vor.u32 %v3958, %v3961
      %v3963 = vrot.slane %v3962, 4
      %v3965 = vshll.u32 %v3635, 16
      %v3967 = vrot.slane %v3965, 5
      %v3968 = vsel %vm271, %v3963, %v3967
      %v3969 = vshrl.u32 %v3635, 16
      %v3971 = vrot.slane %v3969, 4
      %v3972 = vor.u32 %v3971, %v3967
      %v3973 = vrot.slane %v3972, 4
      %v3975 = vshll.u32 %v3636, 16
      %v3977 = vrot.slane %v3975, 5
      %v3978 = vsel %vm271, %v3973, %v3977
      %v3980 = vshrl.u32 %v3637, 16
      %v3982 = vrot.slane %v3980, 4
      %v3983 = vshll.u32 %v3637, 16
      %v3985 = vrot.slane %v3983, 5
      %v3986 = vor.u32 %v3982, %v3985
      %v3987 = vrot.slane %v3986, 4
      %v3989 = vshll.u32 %v3638, 16
      %v3991 = vrot.slane %v3989, 5
      %v3992 = vsel %vm271, %v3987, %v3991
      %v3993 = vshrl.u32 %v3638, 16
      %v3995 = vrot.slane %v3993, 4
      %v3996 = vor.u32 %v3995, %v3991
      %v3997 = vrot.slane %v3996, 4
      %v3999 = vshll.u32 %v3639, 16
      %v4001 = vrot.slane %v3999, 5
      %v4002 = vsel %vm271, %v3997, %v4001
      %v4004 = vshrl.u32 %v3640, 16
      %v4006 = vrot.slane %v4004, 4
      %v4007 = vshll.u32 %v3640, 16
      %v4009 = vrot.slane %v4007, 5
      %v4010 = vor.u32 %v4006, %v4009
      %v4011 = vrot.slane %v4010, 4
      %v4013 = vshll.u32 %v3641, 16
      %v4015 = vrot.slane %v4013, 5
      %v4016 = vsel %vm271, %v4011, %v4015
      %v4017 = vshrl.u32 %v3641, 16
      %v4019 = vrot.slane %v4017, 4
      %v4020 = vor.u32 %v4019, %v4015
      %v4021 = vrot.slane %v4020, 4
      %v4023 = vshll.u32 %v3642, 16
      %v4025 = vrot.slane %v4023, 5
      %v4026 = vsel %vm271, %v4021, %v4025
      %v4027 = vld [vmem:[%s1 + $0xc] sm:$0xc]
      %v4028 = vunpack.c.l.b16 %v3656
      %v4029 = vunpack.c.l.b16 %v3666
      %v4030 = vunpack.c.l.b16 %v3680
      %v4031 = vunpack.c.l.b16 %v3690
      %v4032 = vunpack.c.l.b16 %v3704
      %v4033 = vunpack.c.l.b16 %v3714
      %v4034 = vunpack.c.l.b16 %v3728
      %v4035 = vunpack.c.l.b16 %v3738
      %v4036 = vunpack.c.l.b16 %v3752
      %v4037 = vunpack.c.l.b16 %v3762
      %v4038 = vunpack.c.l.b16 %v3776
      %v4039 = vunpack.c.l.b16 %v3786
      %v4040 = vunpack.c.l.b16 %v3800
      %v4041 = vunpack.c.l.b16 %v3810
      %v4042 = vunpack.c.l.b16 %v3824
      %v4043 = vunpack.c.l.b16 %v3834
      %v4044 = vunpack.c.l.b16 %v3848
      %v4045 = vunpack.c.l.b16 %v3858
      %v4046 = vunpack.c.l.b16 %v3872
      %v4047 = vunpack.c.l.b16 %v3882
      %v4048 = vunpack.c.l.b16 %v3896
      %v4049 = vunpack.c.l.b16 %v3906
      %v4050 = vunpack.c.l.b16 %v3920
      %v4051 = vunpack.c.l.b16 %v3930
      %v4052 = vunpack.c.l.b16 %v3944
      %v4053 = vunpack.c.l.b16 %v3954
      %v4054 = vunpack.c.l.b16 %v3968
      %v4055 = vunpack.c.l.b16 %v3978
      %v4056 = vunpack.c.l.b16 %v3992
      %v4057 = vunpack.c.l.b16 %v4002
      %v4058 = vunpack.c.l.b16 %v4016
      %v4059 = vunpack.c.l.b16 %v4026
      %v4060 = vpack.c.b16 %v4029, %v4028
      %v4061 = vpack.c.b16 %v4031, %v4030
      %v4062 = vpack.c.b16 %v4033, %v4032
      %v4063 = vpack.c.b16 %v4035, %v4034
      %v4064 = vpack.c.b16 %v4037, %v4036
      %v4065 = vpack.c.b16 %v4039, %v4038
      %v4066 = vpack.c.b16 %v4041, %v4040
      %v4067 = vpack.c.b16 %v4043, %v4042
      %v4068 = vpack.c.b16 %v4045, %v4044
      %v4069 = vpack.c.b16 %v4047, %v4046
      %v4070 = vpack.c.b16 %v4049, %v4048
      %v4071 = vpack.c.b16 %v4051, %v4050
      %v4072 = vpack.c.b16 %v4053, %v4052
      %v4073 = vpack.c.b16 %v4055, %v4054
      %v4074 = vpack.c.b16 %v4057, %v4056
      %v4075 = vpack.c.b16 %v4059, %v4058
      %v4077 = vunpack.c.l.b16 %v4027
      %v4078 = vpack.c.b16 %v4077, %v4077
      %v4079 = vrot.slane %v4078, 2
      %v4081 = vsel %vm709, %v4060, 0
      %v4084 = vsel %vm709, %v4061, 0
      %v4087 = vsel %vm709, %v4062, 0
      %v4090 = vsel %vm709, %v4063, 0
      %v4093 = vsel %vm709, %v4064, 0
      %v4096 = vsel %vm709, %v4065, 0
      %v4099 = vsel %vm709, %v4066, 0
      %v4102 = vsel %vm709, %v4067, 0
      %v4105 = vsel %vm709, %v4068, 0
      %v4108 = vsel %vm709, %v4069, 0
      %v4111 = vsel %vm709, %v4070, 0
      %v4114 = vsel %vm709, %v4071, 0
      %v4117 = vsel %vm709, %v4072, 0
      %v4120 = vsel %vm709, %v4073, 0
      %v4123 = vsel %vm709, %v4074, 0
      %v4126 = vsel %vm709, %v4075, 0
      %v4129 = vsel %vm758, %v4079, 0
      %4131 = vmatprep.subr.bf16.mxu0 0
      %4132 = vmatpush1.bf16.msra.mxu0 %v4129
      %4133 = vmatprep.subr.bf16.mxu0 0
      %4134 = vmatpush1.bf16.msra.mxu0 0
      %4135 = vmatprep.subr.bf16.mxu0 0
      %4136 = vmatpush1.bf16.msra.mxu0 0
      %4137 = vmatprep.subr.bf16.mxu0 0
      %4138 = vmatpush1.bf16.msra.mxu0 0
      %4139 = vmatprep.subr.bf16.mxu0 0
      %4140 = vmatpush1.bf16.msra.mxu0 0
      %4141 = vmatprep.subr.bf16.mxu0 0
      %4142 = vmatpush1.bf16.msra.mxu0 0
      %4143 = vmatprep.subr.bf16.mxu0 0
      %4144 = vmatpush1.bf16.msra.mxu0 0
      %4145 = vmatprep.subr.bf16.mxu0 0
      %4146 = vmatpush1.bf16.msra.mxu0 0
      %4147 = vmatprep.subr.bf16.mxu0 0
      %4148 = vmatpush1.bf16.msra.mxu0 0
      %4149 = vmatprep.subr.bf16.mxu0 0
      %4150 = vmatpush1.bf16.msra.mxu0 0
      %4151 = vmatprep.subr.bf16.mxu0 0
      %4152 = vmatpush1.bf16.msra.mxu0 0
      %4153 = vmatprep.subr.bf16.mxu0 0
      %4154 = vmatpush1.bf16.msra.mxu0 0
      %4155 = vmatprep.subr.bf16.mxu0 0
      %4156 = vmatpush1.bf16.msra.mxu0 0
      %4157 = vmatprep.subr.bf16.mxu0 0
      %4158 = vmatpush1.bf16.msra.mxu0 0
      %4159 = vmatprep.subr.bf16.mxu0 0
      %4160 = vmatpush1.bf16.msra.mxu0 0
      %4161 = vmatprep.subr.bf16.mxu0 0
      %4162 = vmatpush1.bf16.msra.mxu0 0
      %4163 = vmatprep.mubr.bf16.mxu0 0
      %4164 = vmatmul.mubr.bf16.gmra.mrb[0].mxu0 %v4081
      %v4165 = vpop.f32.mrb[0].mxu0
      %v4166 = vadd.f32 0.0, %v4165
      %v4167 = vpop.f32.mrb[0].mxu0
      %v4168 = vpop.f32.mrb[0].mxu0
      %v4169 = vadd.f32 0.0, %v4168
      %v4170 = vpop.f32.mrb[0].mxu0
      %4171 = vmatprep.mubr.bf16.mxu0 0
      %4172 = vmatmul.mubr.bf16.gmra.mrb[0].mxu0 %v4084
      %v4173 = vpop.f32.mrb[0].mxu0
      %v4174 = vadd.f32 0.0, %v4173
      %v4175 = vpop.f32.mrb[0].mxu0
      %v4176 = vpop.f32.mrb[0].mxu0
      %v4177 = vadd.f32 0.0, %v4176
      %v4178 = vpop.f32.mrb[0].mxu0
      %4179 = vmatprep.mubr.bf16.mxu0 0
      %4180 = vmatmul.mubr.bf16.gmra.mrb[0].mxu0 %v4087
      %v4181 = vpop.f32.mrb[0].mxu0
      %v4182 = vadd.f32 0.0, %v4181
      %v4183 = vpop.f32.mrb[0].mxu0
      %v4184 = vpop.f32.mrb[0].mxu0
      %v4185 = vadd.f32 0.0, %v4184
      %v4186 = vpop.f32.mrb[0].mxu0
      %4187 = vmatprep.mubr.bf16.mxu0 0
      %4188 = vmatmul.mubr.bf16.gmra.mrb[0].mxu0 %v4090
      %v4189 = vpop.f32.mrb[0].mxu0
      %v4190 = vadd.f32 0.0, %v4189
      %v4191 = vpop.f32.mrb[0].mxu0
      %v4192 = vpop.f32.mrb[0].mxu0
      %v4193 = vadd.f32 0.0, %v4192
      %v4194 = vpop.f32.mrb[0].mxu0
      %4195 = vmatprep.mubr.bf16.mxu0 0
      %4196 = vmatmul.mubr.bf16.gmra.mrb[0].mxu0 %v4093
      %v4197 = vpop.f32.mrb[0].mxu0
      %v4198 = vadd.f32 0.0, %v4197
      %v4199 = vpop.f32.mrb[0].mxu0
      %v4200 = vpop.f32.mrb[0].mxu0
      %v4201 = vadd.f32 0.0, %v4200
      %v4202 = vpop.f32.mrb[0].mxu0
      %4203 = vmatprep.mubr.bf16.mxu0 0
      %4204 = vmatmul.mubr.bf16.gmra.mrb[0].mxu0 %v4096
      %v4205 = vpop.f32.mrb[0].mxu0
      %v4206 = vadd.f32 0.0, %v4205
      %v4207 = vpop.f32.mrb[0].mxu0
      %v4208 = vpop.f32.mrb[0].mxu0
      %v4209 = vadd.f32 0.0, %v4208
      %v4210 = vpop.f32.mrb[0].mxu0
      %4211 = vmatprep.mubr.bf16.mxu0 0
      %4212 = vmatmul.mubr.bf16.gmra.mrb[0].mxu0 %v4099
      %v4213 = vpop.f32.mrb[0].mxu0
      %v4214 = vadd.f32 0.0, %v4213
      %v4215 = vpop.f32.mrb[0].mxu0
      %v4216 = vpop.f32.mrb[0].mxu0
      %v4217 = vadd.f32 0.0, %v4216
      %v4218 = vpop.f32.mrb[0].mxu0
      %4219 = vmatprep.mubr.bf16.mxu0 0
      %4220 = vmatmul.mubr.bf16.gmra.mrb[0].mxu0 %v4102
      %v4221 = vpop.f32.mrb[0].mxu0
      %v4222 = vadd.f32 0.0, %v4221
      %v4223 = vpop.f32.mrb[0].mxu0
      %v4224 = vpop.f32.mrb[0].mxu0
      %v4225 = vadd.f32 0.0, %v4224
      %v4226 = vpop.f32.mrb[0].mxu0
      %4227 = vmatprep.mubr.bf16.mxu0 0
      %4228 = vmatmul.mubr.bf16.gmra.mrb[0].mxu0 %v4105
      %v4229 = vpop.f32.mrb[0].mxu0
      %v4230 = vadd.f32 0.0, %v4229
      %v4231 = vpop.f32.mrb[0].mxu0
      %v4232 = vpop.f32.mrb[0].mxu0
      %v4233 = vadd.f32 0.0, %v4232
      %v4234 = vpop.f32.mrb[0].mxu0
      %4235 = vmatprep.mubr.bf16.mxu0 0
      %4236 = vmatmul.mubr.bf16.gmra.mrb[0].mxu0 %v4108
      %v4237 = vpop.f32.mrb[0].mxu0
      %v4238 = vadd.f32 0.0, %v4237
      %v4239 = vpop.f32.mrb[0].mxu0
      %v4240 = vpop.f32.mrb[0].mxu0
      %v4241 = vadd.f32 0.0, %v4240
      %v4242 = vpop.f32.mrb[0].mxu0
      %4243 = vmatprep.mubr.bf16.mxu0 0
      %4244 = vmatmul.mubr.bf16.gmra.mrb[0].mxu0 %v4111
      %v4245 = vpop.f32.mrb[0].mxu0
      %v4246 = vadd.f32 0.0, %v4245
      %v4247 = vpop.f32.mrb[0].mxu0
      %v4248 = vpop.f32.mrb[0].mxu0
      %v4249 = vadd.f32 0.0, %v4248
      %v4250 = vpop.f32.mrb[0].mxu0
      %4251 = vmatprep.mubr.bf16.mxu0 0
      %4252 = vmatmul.mubr.bf16.gmra.mrb[0].mxu0 %v4114
      %v4253 = vpop.f32.mrb[0].mxu0
      %v4254 = vadd.f32 0.0, %v4253
      %v4255 = vpop.f32.mrb[0].mxu0
      %v4256 = vpop.f32.mrb[0].mxu0
      %v4257 = vadd.f32 0.0, %v4256
      %v4258 = vpop.f32.mrb[0].mxu0
      %4259 = vmatprep.mubr.bf16.mxu0 0
      %4260 = vmatmul.mubr.bf16.gmra.mrb[0].mxu0 %v4117
      %v4261 = vpop.f32.mrb[0].mxu0
      %v4262 = vadd.f32 0.0, %v4261
      %v4263 = vpop.f32.mrb[0].mxu0
      %v4264 = vpop.f32.mrb[0].mxu0
      %v4265 = vadd.f32 0.0, %v4264
      %v4266 = vpop.f32.mrb[0].mxu0
      %4267 = vmatprep.mubr.bf16.mxu0 0
      %4268 = vmatmul.mubr.bf16.gmra.mrb[0].mxu0 %v4120
      %v4269 = vpop.f32.mrb[0].mxu0
      %v4270 = vadd.f32 0.0, %v4269
      %v4271 = vpop.f32.mrb[0].mxu0
      %v4272 = vpop.f32.mrb[0].mxu0
      %v4273 = vadd.f32 0.0, %v4272
      %v4274 = vpop.f32.mrb[0].mxu0
      %4275 = vmatprep.mubr.bf16.mxu0 0
      %4276 = vmatmul.mubr.bf16.gmra.mrb[0].mxu0 %v4123
      %v4277 = vpop.f32.mrb[0].mxu0
      %v4278 = vadd.f32 0.0, %v4277
      %v4279 = vpop.f32.mrb[0].mxu0
      %v4280 = vpop.f32.mrb[0].mxu0
      %v4281 = vadd.f32 0.0, %v4280
      %v4282 = vpop.f32.mrb[0].mxu0
      %4283 = vmatprep.mubr.bf16.mxu0 0
      %4284 = vmatmul.mubr.bf16.gmra.mrb[0].mxu0 %v4126
      %v4285 = vpop.f32.mrb[0].mxu0
      %v4286 = vadd.f32 0.0, %v4285
      %v4287 = vpop.f32.mrb[0].mxu0
      %v4288 = vpop.f32.mrb[0].mxu0
      %v4289 = vadd.f32 0.0, %v4288
      %v4290 = vpop.f32.mrb[0].mxu0
      %4291 = vdwg.mxu0
      %v4292 = vadd.f32 %v3563, %v4166
      %v4293 = vadd.f32 %v3564, %v4169
      %v4294 = vadd.f32 %v3565, %v4174
      %v4295 = vadd.f32 %v3566, %v4177
      %v4296 = vadd.f32 %v3567, %v4182
      %v4297 = vadd.f32 %v3568, %v4185
      %v4298 = vadd.f32 %v3569, %v4190
      %v4299 = vadd.f32 %v3570, %v4193
      %v4300 = vadd.f32 %v3571, %v4198
      %v4301 = vadd.f32 %v3572, %v4201
      %v4302 = vadd.f32 %v3573, %v4206
      %v4303 = vadd.f32 %v3574, %v4209
      %v4304 = vadd.f32 %v3575, %v4214
      %v4305 = vadd.f32 %v3576, %v4217
      %v4306 = vadd.f32 %v3577, %v4222
      %v4307 = vadd.f32 %v3578, %v4225
      %v4308 = vadd.f32 %v3579, %v4230
      %v4309 = vadd.f32 %v3580, %v4233
      %v4310 = vadd.f32 %v3581, %v4238
      %v4311 = vadd.f32 %v3582, %v4241
      %v4312 = vadd.f32 %v3583, %v4246
      %v4313 = vadd.f32 %v3584, %v4249
      %v4314 = vadd.f32 %v3585, %v4254
      %v4315 = vadd.f32 %v3586, %v4257
      %v4316 = vadd.f32 %v3587, %v4262
      %v4317 = vadd.f32 %v3588, %v4265
      %v4318 = vadd.f32 %v3589, %v4270
      %v4319 = vadd.f32 %v3590, %v4273
      %v4320 = vadd.f32 %v3591, %v4278
      %v4321 = vadd.f32 %v3592, %v4281
      %v4322 = vadd.f32 %v3593, %v4286
      %v4323 = vadd.f32 %v3594, %v4289
      %v4324 = vld [vmem:[%s3237] sm:$0xe]
      %v4325 = vld [vmem:[%s3237 + $0xc] sm:$0xe]
      %v4326 = vld [vmem:[%s3237 + $0x18] sm:$0xe]
      %v4327 = vld [vmem:[%s3237 + $0x24] sm:$0xe]
      %v4328 = vld [vmem:[%s3237 + $0x30] sm:$0xe]
      %v4329 = vld [vmem:[%s3237 + $0x3c] sm:$0xe]
      %v4330 = vld [vmem:[%s3237 + $0x48] sm:$0xe]
      %v4331 = vld [vmem:[%s3237 + $0x54] sm:$0xe]
      %v4332 = vld [vmem:[%s3237 + $0x60] sm:$0xe]
      %v4333 = vld [vmem:[%s3237 + $0x6c] sm:$0xe]
      %v4334 = vld [vmem:[%s3237 + $0x78] sm:$0xe]
      %v4335 = vld [vmem:[%s3237 + $0x84] sm:$0xe]
      %v4336 = vld [vmem:[%s3237 + $0x90] sm:$0xe]
      %v4337 = vld [vmem:[%s3237 + $0x9c] sm:$0xe]
      %v4338 = vld [vmem:[%s3237 + $0xa8] sm:$0xe]
      %v4339 = vld [vmem:[%s3237 + $0xb4] sm:$0xe]
      %v4388 = vrot.slane %v4324, 5
      %v4389 = vrot.slane %v4388, 4
      %v4390 = vrot.slane %v3596, 5
      %v4391 = vsel %vm1265, %v4389, %v4390
      %v4392 = vrot.slane %v4390, 4
      %v4393 = vrot.slane %v3597, 5
      %v4394 = vsel %vm1265, %v4392, %v4393
      %v4395 = vrot.slane %v4325, 5
      %v4396 = vrot.slane %v4395, 4
      %v4397 = vrot.slane %v3599, 5
      %v4398 = vsel %vm1265, %v4396, %v4397
      %v4399 = vrot.slane %v4397, 4
      %v4400 = vrot.slane %v3600, 5
      %v4401 = vsel %vm1265, %v4399, %v4400
      %v4402 = vrot.slane %v4326, 5
      %v4403 = vrot.slane %v4402, 4
      %v4404 = vrot.slane %v3602, 5
      %v4405 = vsel %vm1265, %v4403, %v4404
      %v4406 = vrot.slane %v4404, 4
      %v4407 = vrot.slane %v3603, 5
      %v4408 = vsel %vm1265, %v4406, %v4407
      %v4409 = vrot.slane %v4327, 5
      %v4410 = vrot.slane %v4409, 4
      %v4411 = vrot.slane %v3605, 5
      %v4412 = vsel %vm1265, %v4410, %v4411
      %v4413 = vrot.slane %v4411, 4
      %v4414 = vrot.slane %v3606, 5
      %v4415 = vsel %vm1265, %v4413, %v4414
      %v4416 = vrot.slane %v4328, 5
      %v4417 = vrot.slane %v4416, 4
      %v4418 = vrot.slane %v3608, 5
      %v4419 = vsel %vm1265, %v4417, %v4418
      %v4420 = vrot.slane %v4418, 4
      %v4421 = vrot.slane %v3609, 5
      %v4422 = vsel %vm1265, %v4420, %v4421
      %v4423 = vrot.slane %v4329, 5
      %v4424 = vrot.slane %v4423, 4
      %v4425 = vrot.slane %v3611, 5
      %v4426 = vsel %vm1265, %v4424, %v4425
      %v4427 = vrot.slane %v4425, 4
      %v4428 = vrot.slane %v3612, 5
      %v4429 = vsel %vm1265, %v4427, %v4428
      %v4430 = vrot.slane %v4330, 5
      %v4431 = vrot.slane %v4430, 4
      %v4432 = vrot.slane %v3614, 5
      %v4433 = vsel %vm1265, %v4431, %v4432
      %v4434 = vrot.slane %v4432, 4
      %v4435 = vrot.slane %v3615, 5
      %v4436 = vsel %vm1265, %v4434, %v4435
      %v4437 = vrot.slane %v4331, 5
      %v4438 = vrot.slane %v4437, 4
      %v4439 = vrot.slane %v3617, 5
      %v4440 = vsel %vm1265, %v4438, %v4439
      %v4441 = vrot.slane %v4439, 4
      %v4442 = vrot.slane %v3618, 5
      %v4443 = vsel %vm1265, %v4441, %v4442
      %v4444 = vrot.slane %v4332, 5
      %v4445 = vrot.slane %v4444, 4
      %v4446 = vrot.slane %v3620, 5
      %v4447 = vsel %vm1265, %v4445, %v4446
      %v4448 = vrot.slane %v4446, 4
      %v4449 = vrot.slane %v3621, 5
      %v4450 = vsel %vm1265, %v4448, %v4449
      %v4451 = vrot.slane %v4333, 5
      %v4452 = vrot.slane %v4451, 4
      %v4453 = vrot.slane %v3623, 5
      %v4454 = vsel %vm1265, %v4452, %v4453
      %v4455 = vrot.slane %v4453, 4
      %v4456 = vrot.slane %v3624, 5
      %v4457 = vsel %vm1265, %v4455, %v4456
      %v4458 = vrot.slane %v4334, 5
      %v4459 = vrot.slane %v4458, 4
      %v4460 = vrot.slane %v3626, 5
      %v4461 = vsel %vm1265, %v4459, %v4460
      %v4462 = vrot.slane %v4460, 4
      %v4463 = vrot.slane %v3627, 5
      %v4464 = vsel %vm1265, %v4462, %v4463
      %v4465 = vrot.slane %v4335, 5
      %v4466 = vrot.slane %v4465, 4
      %v4467 = vrot.slane %v3629, 5
      %v4468 = vsel %vm1265, %v4466, %v4467
      %v4469 = vrot.slane %v4467, 4
      %v4470 = vrot.slane %v3630, 5
      %v4471 = vsel %vm1265, %v4469, %v4470
      %v4472 = vrot.slane %v4336, 5
      %v4473 = vrot.slane %v4472, 4
      %v4474 = vrot.slane %v3632, 5
      %v4475 = vsel %vm1265, %v4473, %v4474
      %v4476 = vrot.slane %v4474, 4
      %v4477 = vrot.slane %v3633, 5
      %v4478 = vsel %vm1265, %v4476, %v4477
      %v4479 = vrot.slane %v4337, 5
      %v4480 = vrot.slane %v4479, 4
      %v4481 = vrot.slane %v3635, 5
      %v4482 = vsel %vm1265, %v4480, %v4481
      %v4483 = vrot.slane %v4481, 4
      %v4484 = vrot.slane %v3636, 5
      %v4485 = vsel %vm1265, %v4483, %v4484
      %v4486 = vrot.slane %v4338, 5
      %v4487 = vrot.slane %v4486, 4
      %v4488 = vrot.slane %v3638, 5
      %v4489 = vsel %vm1265, %v4487, %v4488
      %v4490 = vrot.slane %v4488, 4
      %v4491 = vrot.slane %v3639, 5
      %v4492 = vsel %vm1265, %v4490, %v4491
      %v4493 = vrot.slane %v4339, 5
      %v4494 = vrot.slane %v4493, 4
      %v4495 = vrot.slane %v3641, 5
      %v4496 = vsel %vm1265, %v4494, %v4495
      %v4497 = vrot.slane %v4495, 4
      %v4498 = vrot.slane %v3642, 5
      %v4499 = vsel %vm1265, %v4497, %v4498
      %v4500 = vld [vmem:[%s1 + $0x10] sm:$0x3]
      %v4501 = vunpack.c.l.b16 %v4391
      %v4502 = vunpack.c.l.b16 %v4394
      %v4503 = vunpack.c.l.b16 %v4398
      %v4504 = vunpack.c.l.b16 %v4401
      %v4505 = vunpack.c.l.b16 %v4405
      %v4506 = vunpack.c.l.b16 %v4408
      %v4507 = vunpack.c.l.b16 %v4412
      %v4508 = vunpack.c.l.b16 %v4415
      %v4509 = vunpack.c.l.b16 %v4419
      %v4510 = vunpack.c.l.b16 %v4422
      %v4511 = vunpack.c.l.b16 %v4426
      %v4512 = vunpack.c.l.b16 %v4429
      %v4513 = vunpack.c.l.b16 %v4433
      %v4514 = vunpack.c.l.b16 %v4436
      %v4515 = vunpack.c.l.b16 %v4440
      %v4516 = vunpack.c.l.b16 %v4443
      %v4517 = vunpack.c.l.b16 %v4447
      %v4518 = vunpack.c.l.b16 %v4450
      %v4519 = vunpack.c.l.b16 %v4454
      %v4520 = vunpack.c.l.b16 %v4457
      %v4521 = vunpack.c.l.b16 %v4461
      %v4522 = vunpack.c.l.b16 %v4464
      %v4523 = vunpack.c.l.b16 %v4468
      %v4524 = vunpack.c.l.b16 %v4471
      %v4525 = vunpack.c.l.b16 %v4475
      %v4526 = vunpack.c.l.b16 %v4478
      %v4527 = vunpack.c.l.b16 %v4482
      %v4528 = vunpack.c.l.b16 %v4485
      %v4529 = vunpack.c.l.b16 %v4489
      %v4530 = vunpack.c.l.b16 %v4492
      %v4531 = vunpack.c.l.b16 %v4496
      %v4532 = vunpack.c.l.b16 %v4499
      %v4533 = vpack.c.b16 %v4502, %v4501
      %v4534 = vpack.c.b16 %v4504, %v4503
      %v4535 = vpack.c.b16 %v4506, %v4505
      %v4536 = vpack.c.b16 %v4508, %v4507
      %v4537 = vpack.c.b16 %v4510, %v4509
      %v4538 = vpack.c.b16 %v4512, %v4511
      %v4539 = vpack.c.b16 %v4514, %v4513
      %v4540 = vpack.c.b16 %v4516, %v4515
      %v4541 = vpack.c.b16 %v4518, %v4517
      %v4542 = vpack.c.b16 %v4520, %v4519
      %v4543 = vpack.c.b16 %v4522, %v4521
      %v4544 = vpack.c.b16 %v4524, %v4523
      %v4545 = vpack.c.b16 %v4526, %v4525
      %v4546 = vpack.c.b16 %v4528, %v4527
      %v4547 = vpack.c.b16 %v4530, %v4529
      %v4548 = vpack.c.b16 %v4532, %v4531
      %v4550 = vsel %vm709, %v4533, 0
      %v4553 = vsel %vm709, %v4534, 0
      %v4556 = vsel %vm709, %v4535, 0
      %v4559 = vsel %vm709, %v4536, 0
      %v4562 = vsel %vm709, %v4537, 0
      %v4565 = vsel %vm709, %v4538, 0
      %v4568 = vsel %vm709, %v4539, 0
      %v4571 = vsel %vm709, %v4540, 0
      %v4574 = vsel %vm709, %v4541, 0
      %v4577 = vsel %vm709, %v4542, 0
      %v4580 = vsel %vm709, %v4543, 0
      %v4583 = vsel %vm709, %v4544, 0
      %v4586 = vsel %vm709, %v4545, 0
      %v4589 = vsel %vm709, %v4546, 0
      %v4592 = vsel %vm709, %v4547, 0
      %v4595 = vsel %vm709, %v4548, 0
      %v4598 = vsel %vm758, %v4500, 0
      %4600 = vmatprep.subr.bf16.mxu0 0
      %4601 = vmatpush1.bf16.msra.mxu0 %v4598
      %4602 = vmatprep.subr.bf16.mxu0 0
      %4603 = vmatpush1.bf16.msra.mxu0 0
      %4604 = vmatprep.subr.bf16.mxu0 0
      %4605 = vmatpush1.bf16.msra.mxu0 0
      %4606 = vmatprep.subr.bf16.mxu0 0
      %4607 = vmatpush1.bf16.msra.mxu0 0
      %4608 = vmatprep.subr.bf16.mxu0 0
      %4609 = vmatpush1.bf16.msra.mxu0 0
      %4610 = vmatprep.subr.bf16.mxu0 0
      %4611 = vmatpush1.bf16.msra.mxu0 0
      %4612 = vmatprep.subr.bf16.mxu0 0
      %4613 = vmatpush1.bf16.msra.mxu0 0
      %4614 = vmatprep.subr.bf16.mxu0 0
      %4615 = vmatpush1.bf16.msra.mxu0 0
      %4616 = vmatprep.subr.bf16.mxu0 0
      %4617 = vmatpush1.bf16.msra.mxu0 0
      %4618 = vmatprep.subr.bf16.mxu0 0
      %4619 = vmatpush1.bf16.msra.mxu0 0
      %4620 = vmatprep.subr.bf16.mxu0 0
      %4621 = vmatpush1.bf16.msra.mxu0 0
      %4622 = vmatprep.subr.bf16.mxu0 0
      %4623 = vmatpush1.bf16.msra.mxu0 0
      %4624 = vmatprep.subr.bf16.mxu0 0
      %4625 = vmatpush1.bf16.msra.mxu0 0
      %4626 = vmatprep.subr.bf16.mxu0 0
      %4627 = vmatpush1.bf16.msra.mxu0 0
      %4628 = vmatprep.subr.bf16.mxu0 0
      %4629 = vmatpush1.bf16.msra.mxu0 0
      %4630 = vmatprep.subr.bf16.mxu0 0
      %4631 = vmatpush1.bf16.msra.mxu0 0
      %4632 = vmatprep.mubr.bf16.mxu0 0
      %4633 = vmatmul.mubr.bf16.gmra.mrb[0].mxu0 %v4550
      %v4634 = vpop.f32.mrb[0].mxu0
      %v4635 = vadd.f32 0.0, %v4634
      %v4636 = vpop.f32.mrb[0].mxu0
      %v4637 = vpop.f32.mrb[0].mxu0
      %v4638 = vadd.f32 0.0, %v4637
      %v4639 = vpop.f32.mrb[0].mxu0
      %4640 = vmatprep.mubr.bf16.mxu0 0
      %4641 = vmatmul.mubr.bf16.gmra.mrb[0].mxu0 %v4553
      %v4642 = vpop.f32.mrb[0].mxu0
      %v4643 = vadd.f32 0.0, %v4642
      %v4644 = vpop.f32.mrb[0].mxu0
      %v4645 = vpop.f32.mrb[0].mxu0
      %v4646 = vadd.f32 0.0, %v4645
      %v4647 = vpop.f32.mrb[0].mxu0
      %4648 = vmatprep.mubr.bf16.mxu0 0
      %4649 = vmatmul.mubr.bf16.gmra.mrb[0].mxu0 %v4556
      %v4650 = vpop.f32.mrb[0].mxu0
      %v4651 = vadd.f32 0.0, %v4650
      %v4652 = vpop.f32.mrb[0].mxu0
      %v4653 = vpop.f32.mrb[0].mxu0
      %v4654 = vadd.f32 0.0, %v4653
      %v4655 = vpop.f32.mrb[0].mxu0
      %4656 = vmatprep.mubr.bf16.mxu0 0
      %4657 = vmatmul.mubr.bf16.gmra.mrb[0].mxu0 %v4559
      %v4658 = vpop.f32.mrb[0].mxu0
      %v4659 = vadd.f32 0.0, %v4658
      %v4660 = vpop.f32.mrb[0].mxu0
      %v4661 = vpop.f32.mrb[0].mxu0
      %v4662 = vadd.f32 0.0, %v4661
      %v4663 = vpop.f32.mrb[0].mxu0
      %4664 = vmatprep.mubr.bf16.mxu0 0
      %4665 = vmatmul.mubr.bf16.gmra.mrb[0].mxu0 %v4562
      %v4666 = vpop.f32.mrb[0].mxu0
      %v4667 = vadd.f32 0.0, %v4666
      %v4668 = vpop.f32.mrb[0].mxu0
      %v4669 = vpop.f32.mrb[0].mxu0
      %v4670 = vadd.f32 0.0, %v4669
      %v4671 = vpop.f32.mrb[0].mxu0
      %4672 = vmatprep.mubr.bf16.mxu0 0
      %4673 = vmatmul.mubr.bf16.gmra.mrb[0].mxu0 %v4565
      %v4674 = vpop.f32.mrb[0].mxu0
      %v4675 = vadd.f32 0.0, %v4674
      %v4676 = vpop.f32.mrb[0].mxu0
      %v4677 = vpop.f32.mrb[0].mxu0
      %v4678 = vadd.f32 0.0, %v4677
      %v4679 = vpop.f32.mrb[0].mxu0
      %4680 = vmatprep.mubr.bf16.mxu0 0
      %4681 = vmatmul.mubr.bf16.gmra.mrb[0].mxu0 %v4568
      %v4682 = vpop.f32.mrb[0].mxu0
      %v4683 = vadd.f32 0.0, %v4682
      %v4684 = vpop.f32.mrb[0].mxu0
      %v4685 = vpop.f32.mrb[0].mxu0
      %v4686 = vadd.f32 0.0, %v4685
      %v4687 = vpop.f32.mrb[0].mxu0
      %4688 = vmatprep.mubr.bf16.mxu0 0
      %4689 = vmatmul.mubr.bf16.gmra.mrb[0].mxu0 %v4571
      %v4690 = vpop.f32.mrb[0].mxu0
      %v4691 = vadd.f32 0.0, %v4690
      %v4692 = vpop.f32.mrb[0].mxu0
      %v4693 = vpop.f32.mrb[0].mxu0
      %v4694 = vadd.f32 0.0, %v4693
      %v4695 = vpop.f32.mrb[0].mxu0
      %4696 = vmatprep.mubr.bf16.mxu0 0
      %4697 = vmatmul.mubr.bf16.gmra.mrb[0].mxu0 %v4574
      %v4698 = vpop.f32.mrb[0].mxu0
      %v4699 = vadd.f32 0.0, %v4698
      %v4700 = vpop.f32.mrb[0].mxu0
      %v4701 = vpop.f32.mrb[0].mxu0
      %v4702 = vadd.f32 0.0, %v4701
      %v4703 = vpop.f32.mrb[0].mxu0
      %4704 = vmatprep.mubr.bf16.mxu0 0
      %4705 = vmatmul.mubr.bf16.gmra.mrb[0].mxu0 %v4577
      %v4706 = vpop.f32.mrb[0].mxu0
      %v4707 = vadd.f32 0.0, %v4706
      %v4708 = vpop.f32.mrb[0].mxu0
      %v4709 = vpop.f32.mrb[0].mxu0
      %v4710 = vadd.f32 0.0, %v4709
      %v4711 = vpop.f32.mrb[0].mxu0
      %4712 = vmatprep.mubr.bf16.mxu0 0
      %4713 = vmatmul.mubr.bf16.gmra.mrb[0].mxu0 %v4580
      %v4714 = vpop.f32.mrb[0].mxu0
      %v4715 = vadd.f32 0.0, %v4714
      %v4716 = vpop.f32.mrb[0].mxu0
      %v4717 = vpop.f32.mrb[0].mxu0
      %v4718 = vadd.f32 0.0, %v4717
      %v4719 = vpop.f32.mrb[0].mxu0
      %4720 = vmatprep.mubr.bf16.mxu0 0
      %4721 = vmatmul.mubr.bf16.gmra.mrb[0].mxu0 %v4583
      %v4722 = vpop.f32.mrb[0].mxu0
      %v4723 = vadd.f32 0.0, %v4722
      %v4724 = vpop.f32.mrb[0].mxu0
      %v4725 = vpop.f32.mrb[0].mxu0
      %v4726 = vadd.f32 0.0, %v4725
      %v4727 = vpop.f32.mrb[0].mxu0
      %4728 = vmatprep.mubr.bf16.mxu0 0
      %4729 = vmatmul.mubr.bf16.gmra.mrb[0].mxu0 %v4586
      %v4730 = vpop.f32.mrb[0].mxu0
      %v4731 = vadd.f32 0.0, %v4730
      %v4732 = vpop.f32.mrb[0].mxu0
      %v4733 = vpop.f32.mrb[0].mxu0
      %v4734 = vadd.f32 0.0, %v4733
      %v4735 = vpop.f32.mrb[0].mxu0
      %4736 = vmatprep.mubr.bf16.mxu0 0
      %4737 = vmatmul.mubr.bf16.gmra.mrb[0].mxu0 %v4589
      %v4738 = vpop.f32.mrb[0].mxu0
      %v4739 = vadd.f32 0.0, %v4738
      %v4740 = vpop.f32.mrb[0].mxu0
      %v4741 = vpop.f32.mrb[0].mxu0
      %v4742 = vadd.f32 0.0, %v4741
      %v4743 = vpop.f32.mrb[0].mxu0
      %4744 = vmatprep.mubr.bf16.mxu0 0
      %4745 = vmatmul.mubr.bf16.gmra.mrb[0].mxu0 %v4592
      %v4746 = vpop.f32.mrb[0].mxu0
      %v4747 = vadd.f32 0.0, %v4746
      %v4748 = vpop.f32.mrb[0].mxu0
      %v4749 = vpop.f32.mrb[0].mxu0
      %v4750 = vadd.f32 0.0, %v4749
      %v4751 = vpop.f32.mrb[0].mxu0
      %4752 = vmatprep.mubr.bf16.mxu0 0
      %4753 = vmatmul.mubr.bf16.gmra.mrb[0].mxu0 %v4595
      %v4754 = vpop.f32.mrb[0].mxu0
      %v4755 = vadd.f32 0.0, %v4754
      %v4756 = vpop.f32.mrb[0].mxu0
      %v4757 = vpop.f32.mrb[0].mxu0
      %v4758 = vadd.f32 0.0, %v4757
      %v4759 = vpop.f32.mrb[0].mxu0
      %4760 = vdwg.mxu0
      %v4761 = vadd.f32 %v4292, %v4635
      %v4762 = vadd.f32 %v4293, %v4638
      %v4763 = vadd.f32 %v4294, %v4643
      %v4764 = vadd.f32 %v4295, %v4646
      %v4765 = vadd.f32 %v4296, %v4651
      %v4766 = vadd.f32 %v4297, %v4654
      %v4767 = vadd.f32 %v4298, %v4659
      %v4768 = vadd.f32 %v4299, %v4662
      %v4769 = vadd.f32 %v4300, %v4667
      %v4770 = vadd.f32 %v4301, %v4670
      %v4771 = vadd.f32 %v4302, %v4675
      %v4772 = vadd.f32 %v4303, %v4678
      %v4773 = vadd.f32 %v4304, %v4683
      %v4774 = vadd.f32 %v4305, %v4686
      %v4775 = vadd.f32 %v4306, %v4691
      %v4776 = vadd.f32 %v4307, %v4694
      %v4777 = vadd.f32 %v4308, %v4699
      %v4778 = vadd.f32 %v4309, %v4702
      %v4779 = vadd.f32 %v4310, %v4707
      %v4780 = vadd.f32 %v4311, %v4710
      %v4781 = vadd.f32 %v4312, %v4715
      %v4782 = vadd.f32 %v4313, %v4718
      %v4783 = vadd.f32 %v4314, %v4723
      %v4784 = vadd.f32 %v4315, %v4726
      %v4785 = vadd.f32 %v4316, %v4731
      %v4786 = vadd.f32 %v4317, %v4734
      %v4787 = vadd.f32 %v4318, %v4739
      %v4788 = vadd.f32 %v4319, %v4742
      %v4789 = vadd.f32 %v4320, %v4747
      %v4790 = vadd.f32 %v4321, %v4750
      %v4791 = vadd.f32 %v4322, %v4755
      %v4792 = vadd.f32 %v4323, %v4758
      %v4793 = vpack.c.bf16 %v4762, %v4761
      %v4794 = vpack.c.bf16 %v4764, %v4763
      %v4795 = vpack.c.bf16 %v4766, %v4765
      %v4796 = vpack.c.bf16 %v4768, %v4767
      %v4797 = vpack.c.bf16 %v4770, %v4769
      %v4798 = vpack.c.bf16 %v4772, %v4771
      %v4799 = vpack.c.bf16 %v4774, %v4773
      %v4800 = vpack.c.bf16 %v4776, %v4775
      %v4801 = vpack.c.bf16 %v4778, %v4777
      %v4802 = vpack.c.bf16 %v4780, %v4779
      %v4803 = vpack.c.bf16 %v4782, %v4781
      %v4804 = vpack.c.bf16 %v4784, %v4783
      %v4805 = vpack.c.bf16 %v4786, %v4785
      %v4806 = vpack.c.bf16 %v4788, %v4787
      %v4807 = vpack.c.bf16 %v4790, %v4789
      %v4808 = vpack.c.bf16 %v4792, %v4791
      %v4825 = vunpack.c.l.b16 %v4793
      %v4826 = vunpack.c.h.b16 %v4793
      %v4827 = vunpack.c.l.b16 %v4794
      %v4828 = vunpack.c.h.b16 %v4794
      %v4829 = vunpack.c.l.b16 %v4795
      %v4830 = vunpack.c.h.b16 %v4795
      %v4831 = vunpack.c.l.b16 %v4796
      %v4832 = vunpack.c.h.b16 %v4796
      %v4833 = vunpack.c.l.b16 %v4797
      %v4834 = vunpack.c.h.b16 %v4797
      %v4835 = vunpack.c.l.b16 %v4798
      %v4836 = vunpack.c.h.b16 %v4798
      %v4837 = vunpack.c.l.b16 %v4799
      %v4838 = vunpack.c.h.b16 %v4799
      %v4839 = vunpack.c.l.b16 %v4800
      %v4840 = vunpack.c.h.b16 %v4800
      %v4841 = vunpack.c.l.b16 %v4801
      %v4842 = vunpack.c.h.b16 %v4801
      %v4843 = vunpack.c.l.b16 %v4802
      %v4844 = vunpack.c.h.b16 %v4802
      %v4845 = vunpack.c.l.b16 %v4803
      %v4846 = vunpack.c.h.b16 %v4803
      %v4847 = vunpack.c.l.b16 %v4804
      %v4848 = vunpack.c.h.b16 %v4804
      %v4849 = vunpack.c.l.b16 %v4805
      %v4850 = vunpack.c.h.b16 %v4805
      %v4851 = vunpack.c.l.b16 %v4806
      %v4852 = vunpack.c.h.b16 %v4806
      %v4853 = vunpack.c.l.b16 %v4807
      %v4854 = vunpack.c.h.b16 %v4807
      %v4855 = vunpack.c.l.b16 %v4808
      %v4856 = vunpack.c.h.b16 %v4808
      %v4857 = vpack.c.b16 %v4825, %v4825
      %v4858 = vpack.c.b16 %v4826, %v4826
      %v4859 = vpack.c.b16 %v4827, %v4827
      %v4860 = vpack.c.b16 %v4828, %v4828
      %v4861 = vpack.c.b16 %v4829, %v4829
      %v4862 = vpack.c.b16 %v4830, %v4830
      %v4863 = vpack.c.b16 %v4831, %v4831
      %v4864 = vpack.c.b16 %v4832, %v4832
      %v4865 = vpack.c.b16 %v4833, %v4833
      %v4866 = vpack.c.b16 %v4834, %v4834
      %v4867 = vpack.c.b16 %v4835, %v4835
      %v4868 = vpack.c.b16 %v4836, %v4836
      %v4869 = vpack.c.b16 %v4837, %v4837
      %v4870 = vpack.c.b16 %v4838, %v4838
      %v4871 = vpack.c.b16 %v4839, %v4839
      %v4872 = vpack.c.b16 %v4840, %v4840
      %v4873 = vpack.c.b16 %v4841, %v4841
      %v4874 = vpack.c.b16 %v4842, %v4842
      %v4875 = vpack.c.b16 %v4843, %v4843
      %v4876 = vpack.c.b16 %v4844, %v4844
      %v4877 = vpack.c.b16 %v4845, %v4845
      %v4878 = vpack.c.b16 %v4846, %v4846
      %v4879 = vpack.c.b16 %v4847, %v4847
      %v4880 = vpack.c.b16 %v4848, %v4848
      %v4881 = vpack.c.b16 %v4849, %v4849
      %v4882 = vpack.c.b16 %v4850, %v4850
      %v4883 = vpack.c.b16 %v4851, %v4851
      %v4884 = vpack.c.b16 %v4852, %v4852
      %v4885 = vpack.c.b16 %v4853, %v4853
      %v4886 = vpack.c.b16 %v4854, %v4854
      %v4887 = vpack.c.b16 %v4855, %v4855
      %v4888 = vpack.c.b16 %v4856, %v4856
      %4921 = vst [vmem:[%s206] sm:$0xf] %v4857
      %4922 = vst [vmem:[%s206 + $0x4] sm:$0xf] %v4858
      %4923 = vst [vmem:[%s206 + $0x8] sm:$0xf] %v4859
      %4924 = vst [vmem:[%s206 + $0xc] sm:$0xf] %v4860
      %4925 = vst [vmem:[%s206 + $0x10] sm:$0xf] %v4861
      %4926 = vst [vmem:[%s206 + $0x14] sm:$0xf] %v4862
      %4927 = vst [vmem:[%s206 + $0x18] sm:$0xf] %v4863
      %4928 = vst [vmem:[%s206 + $0x1c] sm:$0xf] %v4864
      %4929 = vst [vmem:[%s206 + $0x20] sm:$0xf] %v4865
      %4930 = vst [vmem:[%s206 + $0x24] sm:$0xf] %v4866
      %4931 = vst [vmem:[%s206 + $0x28] sm:$0xf] %v4867
      %4932 = vst [vmem:[%s206 + $0x2c] sm:$0xf] %v4868
      %4933 = vst [vmem:[%s206 + $0x30] sm:$0xf] %v4869
      %4934 = vst [vmem:[%s206 + $0x34] sm:$0xf] %v4870
      %4935 = vst [vmem:[%s206 + $0x38] sm:$0xf] %v4871
      %4936 = vst [vmem:[%s206 + $0x3c] sm:$0xf] %v4872
      %4937 = vst [vmem:[%s206 + $0x40] sm:$0xf] %v4873
      %4938 = vst [vmem:[%s206 + $0x44] sm:$0xf] %v4874
      %4939 = vst [vmem:[%s206 + $0x48] sm:$0xf] %v4875
      %4940 = vst [vmem:[%s206 + $0x4c] sm:$0xf] %v4876
      %4941 = vst [vmem:[%s206 + $0x50] sm:$0xf] %v4877
      %4942 = vst [vmem:[%s206 + $0x54] sm:$0xf] %v4878
      %4943 = vst [vmem:[%s206 + $0x58] sm:$0xf] %v4879
      %4944 = vst [vmem:[%s206 + $0x5c] sm:$0xf] %v4880
      %4945 = vst [vmem:[%s206 + $0x60] sm:$0xf] %v4881
      %4946 = vst [vmem:[%s206 + $0x64] sm:$0xf] %v4882
      %4947 = vst [vmem:[%s206 + $0x68] sm:$0xf] %v4883
      %4948 = vst [vmem:[%s206 + $0x6c] sm:$0xf] %v4884
      %4949 = vst [vmem:[%s206 + $0x70] sm:$0xf] %v4885
      %4950 = vst [vmem:[%s206 + $0x74] sm:$0xf] %v4886
      %4951 = vst [vmem:[%s206 + $0x78] sm:$0xf] %v4887
      %4952 = vst [vmem:[%s206 + $0x7c] sm:$0xf] %v4888
      %v4953 = vadd.f32 %v4761, %v4762
      %v4954 = vadd.f32 %v4953, %v4763
      %v4955 = vadd.f32 %v4954, %v4764
      %v4956 = vadd.f32 %v4955, %v4765
      %v4957 = vadd.f32 %v4956, %v4766
      %v4958 = vadd.f32 %v4957, %v4767
      %v4959 = vadd.f32 %v4958, %v4768
      %v4960 = vadd.f32 %v4959, %v4769
      %v4961 = vadd.f32 %v4960, %v4770
      %v4962 = vadd.f32 %v4961, %v4771
      %v4963 = vadd.f32 %v4962, %v4772
      %v4964 = vadd.f32 %v4963, %v4773
      %v4965 = vadd.f32 %v4964, %v4774
      %v4966 = vadd.f32 %v4965, %v4775
      %v4967 = vadd.f32 %v4966, %v4776
      %v4968 = vadd.f32 %v4967, %v4777
      %v4969 = vadd.f32 %v4968, %v4778
      %v4970 = vadd.f32 %v4969, %v4779
      %v4971 = vadd.f32 %v4970, %v4780
      %v4972 = vadd.f32 %v4971, %v4781
      %v4973 = vadd.f32 %v4972, %v4782
      %v4974 = vadd.f32 %v4973, %v4783
      %v4975 = vadd.f32 %v4974, %v4784
      %v4976 = vadd.f32 %v4975, %v4785
      %v4977 = vadd.f32 %v4976, %v4786
      %v4978 = vadd.f32 %v4977, %v4787
      %v4979 = vadd.f32 %v4978, %v4788
      %v4980 = vadd.f32 %v4979, %v4789
      %v4981 = vadd.f32 %v4980, %v4790
      %v4982 = vadd.f32 %v4981, %v4791
      %v4983 = vadd.f32 %v4982, %v4792
      %v4984 = vrot.slane %v4983, 4
      %v4985 = vadd.f32 %v4983, %v4984
      %v4986 = vrot.slane %v4985, 2
      %v4987 = vadd.f32 %v4985, %v4986
      %v4988 = vrot.slane %v4987, 1
      %v4989 = vadd.f32 %v4987, %v4988
      %v4990 = vmul.f32 %v4989, 0.00390625
      %v4991 = vsub.f32 %v4761, %v4990
      %v4992 = vsub.f32 %v4762, %v4990
      %v4993 = vsub.f32 %v4763, %v4990
      %v4994 = vsub.f32 %v4764, %v4990
      %v4995 = vsub.f32 %v4765, %v4990
      %v4996 = vsub.f32 %v4766, %v4990
      %v4997 = vsub.f32 %v4767, %v4990
      %v4998 = vsub.f32 %v4768, %v4990
      %v4999 = vsub.f32 %v4769, %v4990
      %v5000 = vsub.f32 %v4770, %v4990
      %v5001 = vsub.f32 %v4771, %v4990
      %v5002 = vsub.f32 %v4772, %v4990
      %v5003 = vsub.f32 %v4773, %v4990
      %v5004 = vsub.f32 %v4774, %v4990
      %v5005 = vsub.f32 %v4775, %v4990
      %v5006 = vsub.f32 %v4776, %v4990
      %v5007 = vsub.f32 %v4777, %v4990
      %v5008 = vsub.f32 %v4778, %v4990
      %v5009 = vsub.f32 %v4779, %v4990
      %v5010 = vsub.f32 %v4780, %v4990
      %v5011 = vsub.f32 %v4781, %v4990
      %v5012 = vsub.f32 %v4782, %v4990
      %v5013 = vsub.f32 %v4783, %v4990
      %v5014 = vsub.f32 %v4784, %v4990
      %v5015 = vsub.f32 %v4785, %v4990
      %v5016 = vsub.f32 %v4786, %v4990
      %v5017 = vsub.f32 %v4787, %v4990
      %v5018 = vsub.f32 %v4788, %v4990
      %v5019 = vsub.f32 %v4789, %v4990
      %v5020 = vsub.f32 %v4790, %v4990
      %v5021 = vsub.f32 %v4791, %v4990
      %v5022 = vsub.f32 %v4792, %v4990
      %v5023 = vmul.f32 %v4991, %v4991
      %v5024 = vmul.f32 %v4992, %v4992
      %v5025 = vmul.f32 %v4993, %v4993
      %v5026 = vmul.f32 %v4994, %v4994
      %v5027 = vmul.f32 %v4995, %v4995
      %v5028 = vmul.f32 %v4996, %v4996
      %v5029 = vmul.f32 %v4997, %v4997
      %v5030 = vmul.f32 %v4998, %v4998
      %v5031 = vmul.f32 %v4999, %v4999
      %v5032 = vmul.f32 %v5000, %v5000
      %v5033 = vmul.f32 %v5001, %v5001
      %v5034 = vmul.f32 %v5002, %v5002
      %v5035 = vmul.f32 %v5003, %v5003
      %v5036 = vmul.f32 %v5004, %v5004
      %v5037 = vmul.f32 %v5005, %v5005
      %v5038 = vmul.f32 %v5006, %v5006
      %v5039 = vmul.f32 %v5007, %v5007
      %v5040 = vmul.f32 %v5008, %v5008
      %v5041 = vmul.f32 %v5009, %v5009
      %v5042 = vmul.f32 %v5010, %v5010
      %v5043 = vmul.f32 %v5011, %v5011
      %v5044 = vmul.f32 %v5012, %v5012
      %v5045 = vmul.f32 %v5013, %v5013
      %v5046 = vmul.f32 %v5014, %v5014
      %v5047 = vmul.f32 %v5015, %v5015
      %v5048 = vmul.f32 %v5016, %v5016
      %v5049 = vmul.f32 %v5017, %v5017
      %v5050 = vmul.f32 %v5018, %v5018
      %v5051 = vmul.f32 %v5019, %v5019
      %v5052 = vmul.f32 %v5020, %v5020
      %v5053 = vmul.f32 %v5021, %v5021
      %v5054 = vmul.f32 %v5022, %v5022
      %v5055 = vadd.f32 %v5023, %v5024
      %v5056 = vadd.f32 %v5055, %v5025
      %v5057 = vadd.f32 %v5056, %v5026
      %v5058 = vadd.f32 %v5057, %v5027
      %v5059 = vadd.f32 %v5058, %v5028
      %v5060 = vadd.f32 %v5059, %v5029
      %v5061 = vadd.f32 %v5060, %v5030
      %v5062 = vadd.f32 %v5061, %v5031
      %v5063 = vadd.f32 %v5062, %v5032
      %v5064 = vadd.f32 %v5063, %v5033
      %v5065 = vadd.f32 %v5064, %v5034
      %v5066 = vadd.f32 %v5065, %v5035
      %v5067 = vadd.f32 %v5066, %v5036
      %v5068 = vadd.f32 %v5067, %v5037
      %v5069 = vadd.f32 %v5068, %v5038
      %v5070 = vadd.f32 %v5069, %v5039
      %v5071 = vadd.f32 %v5070, %v5040
      %v5072 = vadd.f32 %v5071, %v5041
      %v5073 = vadd.f32 %v5072, %v5042
      %v5074 = vadd.f32 %v5073, %v5043
      %v5075 = vadd.f32 %v5074, %v5044
      %v5076 = vadd.f32 %v5075, %v5045
      %v5077 = vadd.f32 %v5076, %v5046
      %v5078 = vadd.f32 %v5077, %v5047
      %v5079 = vadd.f32 %v5078, %v5048
      %v5080 = vadd.f32 %v5079, %v5049
      %v5081 = vadd.f32 %v5080, %v5050
      %v5082 = vadd.f32 %v5081, %v5051
      %v5083 = vadd.f32 %v5082, %v5052
      %v5084 = vadd.f32 %v5083, %v5053
      %v5085 = vadd.f32 %v5084, %v5054
      %v5086 = vrot.slane %v5085, 4
      %v5087 = vadd.f32 %v5085, %v5086
      %v5088 = vrot.slane %v5087, 2
      %v5089 = vadd.f32 %v5087, %v5088
      %v5090 = vrot.slane %v5089, 1
      %v5091 = vadd.f32 %v5089, %v5090
      %5092 = vst [vmem:[%s214] sm:$0x1] %v4989
      %5093 = vst [vmem:[%s214 + $0x1] sm:$0x1] %v5091
      %s5094 = smul.u32 16, %s20
      %p5095 = scmp.lt.s32.totalorder %s19, 1
      %s5096 = scalar_select %p5095, %s19, 1
      %p5097 = scmp.lt.s32.totalorder %s5094, 15
      %s5098 = scalar_select %p5097, %s5094, 15
      %s5099 = smul.addr %s5098, 2
      %s5100 = smul.addr %s5096, 32
      %s5101 = sadd.s32 %s5099, %s5100
      %s5102 = smul.addr %s5101, 4
      %s5103 = scalar_lea.vmem %s2, %s5102
      %p5104 = scmp.lt.s32.totalorder %s19, 1
      %s5105 = scalar_select %p5104, %s19, 1
      %p5106 = scmp.lt.s32.totalorder %s20, 0
      %s5107 = scalar_select %p5106, %s20, 0
      %s5108 = sadd.s32 %s5107, %s5105
      %s5109 = smul.addr %s5108, 2
      %s5110 = scalar_lea.vmem %s3, %s5109
      // Predicated region
      $region29: #{block_forward.4} parent=27 // pred_check
        %p5111 = pneg %p94
      $region30: #{block_forward.4} parent=27 // pred_check_branch
        %5113 = sbr.rel (%p5111) target = $region32
      $region31: #{block_forward.4} parent=27 // pred_region
        %s5114 = smul.u32 16, %s20
      $region32: #{block_forward.4} parent=27 // pred_fallthru
        _
      // Predicated region
      $region33: #{block_forward.4} parent=27 // pred_check
        %p5115 = pneg %p122
      $region34: #{block_forward.4} parent=27 // pred_check_branch
        %5117 = sbr.rel (%p5115) target = $region36
      $region35: #{block_forward.4} parent=27 // pred_region
        _
      $region36: #{block_forward.4} parent=27 // pred_fallthru
        _
    $region28: #{block_forward.4} parent=5 // pred_fallthru
      _
    %p5118 = scmp.le.s32.totalorder 2, %s10
    // Predicated region
    $region37: #{block_forward.4} parent=5 // pred_check
      %p5119 = pneg %p5118
    $region38: #{block_forward.4} parent=5 // pred_check_branch
      %5121 = sbr.rel (%p5119) target = $region40
    $region39: #{block_forward.4} parent=5 // pred_region
      %s5122 = ssub.s32 %s10, 2
      // Predicated region
      $region41: #{block_forward.4} parent=39 // pred_check
        %p5123 = pneg %p100
      $region42: #{block_forward.4} parent=39 // pred_check_branch
        %5125 = sbr.rel (%p5123) target = $region44
      $region43: #{block_forward.4} parent=39 // pred_region
        %s5126 = smul.u32 16, %s22
        %p5127 = scmp.lt.s32.totalorder %s21, 1
        %s5128 = scalar_select %p5127, %s21, 1
        %p5129 = scmp.lt.s32.totalorder %s5126, 15
        %s5130 = scalar_select %p5129, %s5126, 15
        %s5131 = smul.addr %s5130, 2
        %s5132 = smul.addr %s5128, 32
        %s5133 = sadd.s32 %s5131, %s5132
        %s5134 = smul.addr %s5133, 4
        %s5135 = scalar_lea.vmem %s2, %s5134
      $region44: #{block_forward.4} parent=39 // pred_fallthru
        _
      // Predicated region
      $region45: #{block_forward.4} parent=39 // pred_check
        %p5136 = pneg %p128
      $region46: #{block_forward.4} parent=39 // pred_check_branch
        %5138 = sbr.rel (%p5136) target = $region48
      $region47: #{block_forward.4} parent=39 // pred_region
        %p5139 = scmp.lt.s32.totalorder %s21, 1
        %s5140 = scalar_select %p5139, %s21, 1
        %p5141 = scmp.lt.s32.totalorder %s22, 0
        %s5142 = scalar_select %p5141, %s22, 0
        %s5143 = sadd.s32 %s5142, %s5140
        %s5144 = smul.addr %s5143, 2
        %s5145 = scalar_lea.vmem %s3, %s5144
      $region48: #{block_forward.4} parent=39 // pred_fallthru
        _
    $region40: #{block_forward.4} parent=5 // pred_fallthru
      _
  $region6: #{block_forward.4} parent=0 // loop_footer
    %s14 = sadd.s32 1, %s10
  $region7: #{block_forward.4} parent=0 // loop_footer_branch
    %9 = sbr.rel target = $region3
  $region8: #{block_forward.4} parent=0 // loop_exit
    _

// kernel: block_forward.6
$region0: #{block_forward.6}
  #allocation0 [shape = 'u32[]', space=smem, size = 0x4, offset = 0x4, fixed_abs, tag = 'smem constant byte address 0x4 - core index']
  #allocation1 [shape = 'u32[144,128]{1,0:T(1,128)}', space=vmem, size = 0x12000, scoped, tag = 'internal scratch']
  %s0 = inlined_call_operand.vmem [shape: bf16[2,18,18,128], index: 0, kind: input, shape index: {}]
  %s1 = inlined_call_operand.vmem [shape: bf16[1152,128], index: 1, kind: input, shape index: {}]
  %s2 = inlined_call_operand.vmem [shape: bf16[2,16,16,128], index: 2, kind: output, shape index: {0}]
  %s3 = inlined_call_operand.vmem [shape: f32[2,1,2,128], index: 3, kind: output, shape index: {1}]
  %4 = xla_tuple %s2, %s3
  %s5 = sld [smem:[#allocation0]]
  $region49: #{block_forward.6} parent=0
    _
  %s7 = ssub.s32 1, %s5
  %s8 = scalar_select 0, %s7, %s5
  loop: start=0, step=1, limit=4
  $region2: #{block_forward.6} parent=0 // loop_pre_header
    _
  $region3: #{block_forward.6} parent=0 // loop_header
    %s10 = sphi 0, %s14
    %p11 = scmp.ge.s32.totalorder %s10, 4
    %s17 = sphi 0, %s29
    %s18 = sphi 0, %s25
    %s19 = sphi 0, %s17
    %s20 = sphi 0, %s18
    %s21 = sphi 0, %s19
    %s22 = sphi 0, %s20
    %s32 = sphi 0, %s34
    %s35 = sphi 0, %s32
    %s36 = sphi 0, %s35
    %s52 = sphi 0, %s36
    %s56 = sphi 0, %s56
    %s58 = sphi 0, %s56
    %s59 = sphi 0, %s58
    %s73 = sphi 0, %s59
    %s81 = sphi 0, %s83
    %s84 = sphi 0, %s81
    %s85 = sphi 0, %s84
    %s101 = sphi 0, %s85
    %s109 = sphi 0, %s111
    %s112 = sphi 0, %s109
    %s113 = sphi 0, %s112
    %s129 = sphi 0, %s113
  $region4: #{block_forward.6} parent=0 // loop_header_branch
    %13 = sbr.rel (%p11) target = $region8
  $region5: #{block_forward.6} parent=0 // loop_body
    %s15 = ssub.s32 %s10, 1
    %s16 = ssub.s32 %s10, 2
    %s23 = sadd.s32 1, %s18
    %p24 = scmp.ge.s32.totalorder %s23, 1
    %s25 = scalar_select %p24, 0, %s23
    %s26 = sadd.s32 1, %s17
    %s27 = scalar_select %p24, %s26, %s17
    %p28 = scmp.ge.s32.totalorder %s27, 2
    %s29 = scalar_select %p28, 0, %s27
    %s30 = ssub.s32 %s17, %s29
    %p31 = scmp.eq.s32.totalorder %s30, 0
    %s33 = sadd.s32 %s32, 1
    %s34 = scalar_select %p31, %s32, %s33
    %p37 = pneg %p31
    %p38 = scmp.eq.s32.totalorder %s10, 1
    %p39 = por %p37, %p38
    %p40 = scmp.ne.s32.totalorder %s32, %s35
    %p41 = scmp.eq.s32.totalorder %s10, 0
    %p42 = por %p40, %p41
    %p43 = scmp.ne.s32.totalorder %s32, %s35
    %p44 = scmp.eq.s32.totalorder %s15, 1
    %p45 = por %p43, %p44
    %p46 = scmp.ne.s32.totalorder %s35, %s36
    %p47 = scmp.eq.s32.totalorder %s15, 0
    %p48 = por %p46, %p47
    %p49 = scmp.ne.s32.totalorder %s35, %s36
    %p50 = scmp.eq.s32.totalorder %s16, 1
    %p51 = por %p49, %p50
    %p53 = scmp.ne.s32.totalorder %s36, %s52
    %p54 = scmp.eq.s32.totalorder %s16, 0
    %p55 = por %p53, %p54
    %s57 = sadd.s32 %s56, 1
    %p60 = scmp.eq.s32.totalorder %s10, 1
    %p61 = scmp.ne.s32.totalorder %s56, %s58
    %p62 = scmp.eq.s32.totalorder %s10, 0
    %p63 = por %p61, %p62
    %p64 = scmp.ne.s32.totalorder %s56, %s58
    %p65 = scmp.eq.s32.totalorder %s15, 1
    %p66 = por %p64, %p65
    %p67 = scmp.ne.s32.totalorder %s58, %s59
    %p68 = scmp.eq.s32.totalorder %s15, 0
    %p69 = por %p67, %p68
    %p70 = scmp.ne.s32.totalorder %s58, %s59
    %p71 = scmp.eq.s32.totalorder %s16, 1
    %p72 = por %p70, %p71
    %p74 = scmp.ne.s32.totalorder %s59, %s73
    %p75 = scmp.eq.s32.totalorder %s16, 0
    %p76 = por %p74, %p75
    %s77 = ssub.s32 %s17, %s29
    %s78 = ssub.s32 %s18, %s25
    %s79 = sor.u32 %s77, %s78
    %p80 = scmp.eq.s32.totalorder %s79, 0
    %s82 = sadd.s32 %s81, 1
    %s83 = scalar_select %p80, %s81, %s82
    %p86 = pneg %p80
    %p87 = scmp.eq.s32.totalorder %s10, 1
    %p88 = por %p86, %p87
    %p89 = scmp.ne.s32.totalorder %s81, %s84
    %p90 = scmp.eq.s32.totalorder %s10, 0
    %p91 = por %p89, %p90
    %p92 = scmp.ne.s32.totalorder %s81, %s84
    %p93 = scmp.eq.s32.totalorder %s15, 1
    %p94 = por %p92, %p93
    %p95 = scmp.ne.s32.totalorder %s84, %s85
    %p96 = scmp.eq.s32.totalorder %s15, 0
    %p97 = por %p95, %p96
    %p98 = scmp.ne.s32.totalorder %s84, %s85
    %p99 = scmp.eq.s32.totalorder %s16, 1
    %p100 = por %p98, %p99
    %p102 = scmp.ne.s32.totalorder %s85, %s101
    %p103 = scmp.eq.s32.totalorder %s16, 0
    %p104 = por %p102, %p103
    %s105 = ssub.s32 %s17, %s29
    %s106 = ssub.s32 %s18, %s25
    %s107 = sor.u32 %s105, %s106
    %p108 = scmp.eq.s32.totalorder %s107, 0
    %s110 = sadd.s32 %s109, 1
    %s111 = scalar_select %p108, %s109, %s110
    %p114 = pneg %p108
    %p115 = scmp.eq.s32.totalorder %s10, 1
    %p116 = por %p114, %p115
    %p117 = scmp.ne.s32.totalorder %s109, %s112
    %p118 = scmp.eq.s32.totalorder %s10, 0
    %p119 = por %p117, %p118
    %p120 = scmp.ne.s32.totalorder %s109, %s112
    %p121 = scmp.eq.s32.totalorder %s15, 1
    %p122 = por %p120, %p121
    %p123 = scmp.ne.s32.totalorder %s112, %s113
    %p124 = scmp.eq.s32.totalorder %s15, 0
    %p125 = por %p123, %p124
    %p126 = scmp.ne.s32.totalorder %s112, %s113
    %p127 = scmp.eq.s32.totalorder %s16, 1
    %p128 = por %p126, %p127
    %p130 = scmp.ne.s32.totalorder %s113, %s129
    %p131 = scmp.eq.s32.totalorder %s16, 0
    %p132 = por %p130, %p131
    %p133 = scmp.le.s32.totalorder 1, %s10
    %p134 = scmp.lt.s32.totalorder %s10, 3
    %p135 = pnand %p133, %p134
    %p136 = pneg %p135
    // Predicated region
    $region9: #{block_forward.6} parent=5 // pred_check
      _
    $region10: #{block_forward.6} parent=5 // pred_check_branch
      %138 = sbr.rel (%p135) target = $region12
    $region11: #{block_forward.6} parent=5 // pred_region
      %s139 = ssub.s32 %s10, 1
      // Predicated region
      $region13: #{block_forward.6} parent=11 // pred_check
        %p140 = pneg %p69
      $region14: #{block_forward.6} parent=11 // pred_check_branch
        %142 = sbr.rel (%p140) target = $region16
      $region15: #{block_forward.6} parent=11 // pred_region
        _
      $region16: #{block_forward.6} parent=11 // pred_fallthru
        _
    $region12: #{block_forward.6} parent=5 // pred_fallthru
      _
    %p143 = scmp.lt.s32.totalorder %s10, 2
    // Predicated region
    $region17: #{block_forward.6} parent=5 // pred_check
      %p144 = pneg %p143
    $region18: #{block_forward.6} parent=5 // pred_check_branch
      %146 = sbr.rel (%p144) target = $region20
    $region19: #{block_forward.6} parent=5 // pred_region
      // Predicated region
      $region21: #{block_forward.6} parent=19 // pred_check
        %p147 = pneg %p42
      $region22: #{block_forward.6} parent=19 // pred_check_branch
        %149 = sbr.rel (%p147) target = $region24
      $region23: #{block_forward.6} parent=19 // pred_region
        %p150 = scmp.lt.s32.totalorder %s17, 1
        %s151 = scalar_select %p150, %s17, 1
        %s152 = smul.addr %s151, 54
        %s153 = smul.addr %s152, 4
        %s154 = scalar_lea.vmem %s0, %s153
      $region24: #{block_forward.6} parent=19 // pred_fallthru
        _
    $region20: #{block_forward.6} parent=5 // pred_fallthru
      _
    %p155 = scmp.le.s32.totalorder 1, %s10
    %p156 = scmp.lt.s32.totalorder %s10, 3
    %p157 = pnand %p155, %p156
    %p158 = pneg %p157
    // Predicated region
    $region25: #{block_forward.6} parent=5 // pred_check
      _
    $region26: #{block_forward.6} parent=5 // pred_check_branch
      %160 = sbr.rel (%p157) target = $region28
    $region27: #{block_forward.6} parent=5 // pred_region
      %s161 = ssub.s32 %s10, 1
      %p162 = scmp.lt.s32.totalorder %s19, 1
      %s163 = scalar_select %p162, %s19, 1
      %s164 = smul.addr %s163, 54
      %s165 = smul.addr %s164, 4
      %s166 = scalar_lea.vmem %s0, %s165
      %p167 = pneg %p48
      %p168 = pneg %p45
      %p169 = pneg %p69
      %p170 = pneg %p66
      %p171 = pneg %p97
      %p172 = pneg %p94
      %s173 = smul.u32 16, %s20
      %p174 = scmp.lt.s32.totalorder %s19, 1
      %s175 = scalar_select %p174, %s19, 1
      %p176 = scmp.lt.s32.totalorder %s173, 15
      %s177 = scalar_select %p176, %s173, 15
      %s178 = smul.addr %s177, 2
      %s179 = smul.addr %s175, 32
      %s180 = sadd.s32 %s178, %s179
      %s181 = smul.addr %s180, 4
      %s182 = scalar_lea.vmem %s2, %s181
      %p183 = pneg %p125
      %p184 = pneg %p122
      %p185 = scmp.lt.s32.totalorder %s19, 1
      %s186 = scalar_select %p185, %s19, 1
      %p187 = scmp.lt.s32.totalorder %s20, 0
      %s188 = scalar_select %p187, %s20, 0
      %s189 = sadd.s32 %s188, %s186
      %s190 = smul.addr %s189, 2
      %s191 = scalar_lea.vmem %s3, %s190
      %p192 = scmp.lt.s32.totalorder %s19, 1
      %s193 = scalar_select %p192, %s19, 1
      %s194 = smul.addr %s193, 54
      %s195 = smul.addr %s194, 4
      %s196 = scalar_lea.vmem %s0, %s195
      %s197 = smul.u32 16, %s20
      %p198 = scmp.lt.s32.totalorder %s19, 1
      %s199 = scalar_select %p198, %s19, 1
      %p200 = scmp.lt.s32.totalorder %s197, 15
      %s201 = scalar_select %p200, %s197, 15
      %s202 = smul.addr %s201, 2
      %s203 = smul.addr %s199, 32
      %s204 = sadd.s32 %s202, %s203
      %s205 = smul.addr %s204, 4
      %s206 = scalar_lea.vmem %s2, %s205
      %s207 = smul.u32 16, %s20
      %p208 = scmp.lt.s32.totalorder %s19, 1
      %s209 = scalar_select %p208, %s19, 1
      %p210 = scmp.lt.s32.totalorder %s20, 0
      %s211 = scalar_select %p210, %s20, 0
      %s212 = sadd.s32 %s211, %s209
      %s213 = smul.addr %s212, 2
      %s214 = scalar_lea.vmem %s3, %s213
      %s216 = smul.u32 %s20, 16
      %s217 = smul.u32 %s216, 3
      %s218 = smul.addr %s217, 4
      %s219 = scalar_lea.vmem %s196, %s218
      %v220 = vld [vmem:[%s219] sm:$0xf]
      %v221 = vld [vmem:[%s219 + $0x4] sm:$0xf]
      %v222 = vld [vmem:[%s219 + $0xc] sm:$0xf]
      %v223 = vld [vmem:[%s219 + $0x10] sm:$0xf]
      %v224 = vld [vmem:[%s219 + $0x18] sm:$0xf]
      %v225 = vld [vmem:[%s219 + $0x1c] sm:$0xf]
      %v226 = vld [vmem:[%s219 + $0x24] sm:$0xf]
      %v227 = vld [vmem:[%s219 + $0x28] sm:$0xf]
      %v228 = vld [vmem:[%s219 + $0x30] sm:$0xf]
      %v229 = vld [vmem:[%s219 + $0x34] sm:$0xf]
      %v230 = vld [vmem:[%s219 + $0x3c] sm:$0xf]
      %v231 = vld [vmem:[%s219 + $0x40] sm:$0xf]
      %v232 = vld [vmem:[%s219 + $0x48] sm:$0xf]
      %v233 = vld [vmem:[%s219 + $0x4c] sm:$0xf]
      %v234 = vld [vmem:[%s219 + $0x54] sm:$0xf]
      %v235 = vld [vmem:[%s219 + $0x58] sm:$0xf]
      %v236 = vld [vmem:[%s219 + $0x60] sm:$0xf]
      %v237 = vld [vmem:[%s219 + $0x64] sm:$0xf]
      %v238 = vld [vmem:[%s219 + $0x6c] sm:$0xf]
      %v239 = vld [vmem:[%s219 + $0x70] sm:$0xf]
      %v240 = vld [vmem:[%s219 + $0x78] sm:$0xf]
      %v241 = vld [vmem:[%s219 + $0x7c] sm:$0xf]
      %v242 = vld [vmem:[%s219 + $0x84] sm:$0xf]
      %v243 = vld [vmem:[%s219 + $0x88] sm:$0xf]
      %v244 = vld [vmem:[%s219 + $0x90] sm:$0xf]
      %v245 = vld [vmem:[%s219 + $0x94] sm:$0xf]
      %v246 = vld [vmem:[%s219 + $0x9c] sm:$0xf]
      %v247 = vld [vmem:[%s219 + $0xa0] sm:$0xf]
      %v248 = vld [vmem:[%s219 + $0xa8] sm:$0xf]
      %v249 = vld [vmem:[%s219 + $0xac] sm:$0xf]
      %v250 = vld [vmem:[%s219 + $0xb4] sm:$0xf]
      %v251 = vld [vmem:[%s219 + $0xb8] sm:$0xf]
      %v252 = vld [vmem:[%s1] sm:$0xf]
      %v253 = vld [vmem:[%s1 + $0x4] sm:$0xf]
      %v254 = vld [vmem:[%s1 + $0x8] sm:$0xf]
      %v255 = vld [vmem:[%s1 + $0xc] sm:$0xf]
      %v256 = vld [vmem:[%s1 + $0x10] sm:$0xf]
      %v257 = vld [vmem:[%s1 + $0x14] sm:$0xf]
      %v258 = vld [vmem:[%s1 + $0x18] sm:$0xf]
      %v259 = vld [vmem:[%s1 + $0x1c] sm:$0xf]
      %v260 = vld [vmem:[%s1 + $0x20] sm:$0xf]
      %v261 = vld [vmem:[%s1 + $0x24] sm:$0xf]
      %v262 = vld [vmem:[%s1 + $0x28] sm:$0xf]
      %v263 = vld [vmem:[%s1 + $0x2c] sm:$0xf]
      %v264 = vld [vmem:[%s1 + $0x30] sm:$0xf]
      %v265 = vld [vmem:[%s1 + $0x34] sm:$0xf]
      %v266 = vld [vmem:[%s1 + $0x38] sm:$0xf]
      %v267 = vld [vmem:[%s1 + $0x3c] sm:$0xf]
      %v268 = vld [vmem:[%s219 + $0x8] sm:$0x1]
      %v269 = vld [vmem:[%s219 + $0x14] sm:$0x1]
      %v270 = vld [vmem:[%s219 + $0x20] sm:$0x1]
      %v271 = vld [vmem:[%s219 + $0x2c] sm:$0x1]
      %v272 = vld [vmem:[%s219 + $0x38] sm:$0x1]
      %v273 = vld [vmem:[%s219 + $0x44] sm:$0x1]
      %v274 = vld [vmem:[%s219 + $0x50] sm:$0x1]
      %v275 = vld [vmem:[%s219 + $0x5c] sm:$0x1]
      %v276 = vld [vmem:[%s219 + $0x68] sm:$0x1]
      %v277 = vld [vmem:[%s219 + $0x74] sm:$0x1]
      %v278 = vld [vmem:[%s219 + $0x80] sm:$0x1]
      %v279 = vld [vmem:[%s219 + $0x8c] sm:$0x1]
      %v280 = vld [vmem:[%s219 + $0x98] sm:$0x1]
      %v281 = vld [vmem:[%s219 + $0xa4] sm:$0x1]
      %v282 = vld [vmem:[%s219 + $0xb0] sm:$0x1]
      %v283 = vld [vmem:[%s219 + $0xbc] sm:$0x1]
      %vm284 = vsmask.f32 3328
      %vm285 = vsmask.f32 7440
      %vm286 = vmor %vm284, %vm285
      %v288 = vshrl.u32 %v220, 16
      %v290 = vrot.slane %v288, 4
      %v291 = vshll.u32 %v220, 16
      %v293 = vrot.slane %v291, 5
      %v294 = vor.u32 %v290, %v293
      %v295 = vrot.slane %v294, 4
      %v297 = vshll.u32 %v221, 16
      %v299 = vrot.slane %v297, 5
      %v300 = vsel %vm286, %v295, %v299
      %v301 = vshrl.u32 %v221, 16
      %v303 = vrot.slane %v301, 4
      %v304 = vor.u32 %v303, %v299
      %v305 = vrot.slane %v304, 4
      %v307 = vshll.u32 %v268, 16
      %v309 = vrot.slane %v307, 5
      %v310 = vsel %vm286, %v305, %v309
      %v312 = vshrl.u32 %v222, 16
      %v314 = vrot.slane %v312, 4
      %v315 = vshll.u32 %v222, 16
      %v317 = vrot.slane %v315, 5
      %v318 = vor.u32 %v314, %v317
      %v319 = vrot.slane %v318, 4
      %v321 = vshll.u32 %v223, 16
      %v323 = vrot.slane %v321, 5
      %v324 = vsel %vm286, %v319, %v323
      %v325 = vshrl.u32 %v223, 16
      %v327 = vrot.slane %v325, 4
      %v328 = vor.u32 %v327, %v323
      %v329 = vrot.slane %v328, 4
      %v331 = vshll.u32 %v269, 16
      %v333 = vrot.slane %v331, 5
      %v334 = vsel %vm286, %v329, %v333
      %v336 = vshrl.u32 %v224, 16
      %v338 = vrot.slane %v336, 4
      %v339 = vshll.u32 %v224, 16
      %v341 = vrot.slane %v339, 5
      %v342 = vor.u32 %v338, %v341
      %v343 = vrot.slane %v342, 4
      %v345 = vshll.u32 %v225, 16
      %v347 = vrot.slane %v345, 5
      %v348 = vsel %vm286, %v343, %v347
      %v349 = vshrl.u32 %v225, 16
      %v351 = vrot.slane %v349, 4
      %v352 = vor.u32 %v351, %v347
      %v353 = vrot.slane %v352, 4
      %v355 = vshll.u32 %v270, 16
      %v357 = vrot.slane %v355, 5
      %v358 = vsel %vm286, %v353, %v357
      %v360 = vshrl.u32 %v226, 16
      %v362 = vrot.slane %v360, 4
      %v363 = vshll.u32 %v226, 16
      %v365 = vrot.slane %v363, 5
      %v366 = vor.u32 %v362, %v365
      %v367 = vrot.slane %v366, 4
      %v369 = vshll.u32 %v227, 16
      %v371 = vrot.slane %v369, 5
      %v372 = vsel %vm286, %v367, %v371
      %v373 = vshrl.u32 %v227, 16
      %v375 = vrot.slane %v373, 4
      %v376 = vor.u32 %v375, %v371
      %v377 = vrot.slane %v376, 4
      %v379 = vshll.u32 %v271, 16
      %v381 = vrot.slane %v379, 5
      %v382 = vsel %vm286, %v377, %v381
      %v384 = vshrl.u32 %v228, 16
      %v386 = vrot.slane %v384, 4
      %v387 = vshll.u32 %v228, 16
      %v389 = vrot.slane %v387, 5
      %v390 = vor.u32 %v386, %v389
      %v391 = vrot.slane %v390, 4
      %v393 = vshll.u32 %v229, 16
      %v395 = vrot.slane %v393, 5
      %v396 = vsel %vm286, %v391, %v395
      %v397 = vshrl.u32 %v229, 16
      %v399 = vrot.slane %v397, 4
      %v400 = vor.u32 %v399, %v395
      %v401 = vrot.slane %v400, 4
      %v403 = vshll.u32 %v272, 16
      %v405 = vrot.slane %v403, 5
      %v406 = vsel %vm286, %v401, %v405
      %v408 = vshrl.u32 %v230, 16
      %v410 = vrot.slane %v408, 4
      %v411 = vshll.u32 %v230, 16
      %v413 = vrot.slane %v411, 5
      %v414 = vor.u32 %v410, %v413
      %v415 = vrot.slane %v414, 4
      %v417 = vshll.u32 %v231, 16
      %v419 = vrot.slane %v417, 5
      %v420 = vsel %vm286, %v415, %v419
      %v421 = vshrl.u32 %v231, 16
      %v423 = vrot.slane %v421, 4
      %v424 = vor.u32 %v423, %v419
      %v425 = vrot.slane %v424, 4
      %v427 = vshll.u32 %v273, 16
      %v429 = vrot.slane %v427, 5
      %v430 = vsel %vm286, %v425, %v429
      %v432 = vshrl.u32 %v232, 16
      %v434 = vrot.slane %v432, 4
      %v435 = vshll.u32 %v232, 16
      %v437 = vrot.slane %v435, 5
      %v438 = vor.u32 %v434, %v437
      %v439 = vrot.slane %v438, 4
      %v441 = vshll.u32 %v233, 16
      %v443 = vrot.slane %v441, 5
      %v444 = vsel %vm286, %v439, %v443
      %v445 = vshrl.u32 %v233, 16
      %v447 = vrot.slane %v445, 4
      %v448 = vor.u32 %v447, %v443
      %v449 = vrot.slane %v448, 4
      %v451 = vshll.u32 %v274, 16
      %v453 = vrot.slane %v451, 5
      %v454 = vsel %vm286, %v449, %v453
      %v456 = vshrl.u32 %v234, 16
      %v458 = vrot.slane %v456, 4
      %v459 = vshll.u32 %v234, 16
      %v461 = vrot.slane %v459, 5
      %v462 = vor.u32 %v458, %v461
      %v463 = vrot.slane %v462, 4
      %v465 = vshll.u32 %v235, 16
      %v467 = vrot.slane %v465, 5
      %v468 = vsel %vm286, %v463, %v467
      %v469 = vshrl.u32 %v235, 16
      %v471 = vrot.slane %v469, 4
      %v472 = vor.u32 %v471, %v467
      %v473 = vrot.slane %v472, 4
      %v475 = vshll.u32 %v275, 16
      %v477 = vrot.slane %v475, 5
      %v478 = vsel %vm286, %v473, %v477
      %v480 = vshrl.u32 %v236, 16
      %v482 = vrot.slane %v480, 4
      %v483 = vshll.u32 %v236, 16
      %v485 = vrot.slane %v483, 5
      %v486 = vor.u32 %v482, %v485
      %v487 = vrot.slane %v486, 4
      %v489 = vshll.u32 %v237, 16
      %v491 = vrot.slane %v489, 5
      %v492 = vsel %vm286, %v487, %v491
      %v493 = vshrl.u32 %v237, 16
      %v495 = vrot.slane %v493, 4
      %v496 = vor.u32 %v495, %v491
      %v497 = vrot.slane %v496, 4
      %v499 = vshll.u32 %v276, 16
      %v501 = vrot.slane %v499, 5
      %v502 = vsel %vm286, %v497, %v501
      %v504 = vshrl.u32 %v238, 16
      %v506 = vrot.slane %v504, 4
      %v507 = vshll.u32 %v238, 16
      %v509 = vrot.slane %v507, 5
      %v510 = vor.u32 %v506, %v509
      %v511 = vrot.slane %v510, 4
      %v513 = vshll.u32 %v239, 16
      %v515 = vrot.slane %v513, 5
      %v516 = vsel %vm286, %v511, %v515
      %v517 = vshrl.u32 %v239, 16
      %v519 = vrot.slane %v517, 4
      %v520 = vor.u32 %v519, %v515
      %v521 = vrot.slane %v520, 4
      %v523 = vshll.u32 %v277, 16
      %v525 = vrot.slane %v523, 5
      %v526 = vsel %vm286, %v521, %v525
      %v528 = vshrl.u32 %v240, 16
      %v530 = vrot.slane %v528, 4
      %v531 = vshll.u32 %v240, 16
      %v533 = vrot.slane %v531, 5
      %v534 = vor.u32 %v530, %v533
      %v535 = vrot.slane %v534, 4
      %v537 = vshll.u32 %v241, 16
      %v539 = vrot.slane %v537, 5
      %v540 = vsel %vm286, %v535, %v539
      %v541 = vshrl.u32 %v241, 16
      %v543 = vrot.slane %v541, 4
      %v544 = vor.u32 %v543, %v539
      %v545 = vrot.slane %v544, 4
      %v547 = vshll.u32 %v278, 16
      %v549 = vrot.slane %v547, 5
      %v550 = vsel %vm286, %v545, %v549
      %v552 = vshrl.u32 %v242, 16
      %v554 = vrot.slane %v552, 4
      %v555 = vshll.u32 %v242, 16
      %v557 = vrot.slane %v555, 5
      %v558 = vor.u32 %v554, %v557
      %v559 = vrot.slane %v558, 4
      %v561 = vshll.u32 %v243, 16
      %v563 = vrot.slane %v561, 5
      %v564 = vsel %vm286, %v559, %v563
      %v565 = vshrl.u32 %v243, 16
      %v567 = vrot.slane %v565, 4
      %v568 = vor.u32 %v567, %v563
      %v569 = vrot.slane %v568, 4
      %v571 = vshll.u32 %v279, 16
      %v573 = vrot.slane %v571, 5
      %v574 = vsel %vm286, %v569, %v573
      %v576 = vshrl.u32 %v244, 16
      %v578 = vrot.slane %v576, 4
      %v579 = vshll.u32 %v244, 16
      %v581 = vrot.slane %v579, 5
      %v582 = vor.u32 %v578, %v581
      %v583 = vrot.slane %v582, 4
      %v585 = vshll.u32 %v245, 16
      %v587 = vrot.slane %v585, 5
      %v588 = vsel %vm286, %v583, %v587
      %v589 = vshrl.u32 %v245, 16
      %v591 = vrot.slane %v589, 4
      %v592 = vor.u32 %v591, %v587
      %v593 = vrot.slane %v592, 4
      %v595 = vshll.u32 %v280, 16
      %v597 = vrot.slane %v595, 5
      %v598 = vsel %vm286, %v593, %v597
      %v600 = vshrl.u32 %v246, 16
      %v602 = vrot.slane %v600, 4
      %v603 = vshll.u32 %v246, 16
      %v605 = vrot.slane %v603, 5
      %v606 = vor.u32 %v602, %v605
      %v607 = vrot.slane %v606, 4
      %v609 = vshll.u32 %v247, 16
      %v611 = vrot.slane %v609, 5
      %v612 = vsel %vm286, %v607, %v611
      %v613 = vshrl.u32 %v247, 16
      %v615 = vrot.slane %v613, 4
      %v616 = vor.u32 %v615, %v611
      %v617 = vrot.slane %v616, 4
      %v619 = vshll.u32 %v281, 16
      %v621 = vrot.slane %v619, 5
      %v622 = vsel %vm286, %v617, %v621
      %v624 = vshrl.u32 %v248, 16
      %v626 = vrot.slane %v624, 4
      %v627 = vshll.u32 %v248, 16
      %v629 = vrot.slane %v627, 5
      %v630 = vor.u32 %v626, %v629
      %v631 = vrot.slane %v630, 4
      %v633 = vshll.u32 %v249, 16
      %v635 = vrot.slane %v633, 5
      %v636 = vsel %vm286, %v631, %v635
      %v637 = vshrl.u32 %v249, 16
      %v639 = vrot.slane %v637, 4
      %v640 = vor.u32 %v639, %v635
      %v641 = vrot.slane %v640, 4
      %v643 = vshll.u32 %v282, 16
      %v645 = vrot.slane %v643, 5
      %v646 = vsel %vm286, %v641, %v645
      %v648 = vshrl.u32 %v250, 16
      %v650 = vrot.slane %v648, 4
      %v651 = vshll.u32 %v250, 16
      %v653 = vrot.slane %v651, 5
      %v654 = vor.u32 %v650, %v653
      %v655 = vrot.slane %v654, 4
      %v657 = vshll.u32 %v251, 16
      %v659 = vrot.slane %v657, 5
      %v660 = vsel %vm286, %v655, %v659
      %v661 = vshrl.u32 %v251, 16
      %v663 = vrot.slane %v661, 4
      %v664 = vor.u32 %v663, %v659
      %v665 = vrot.slane %v664, 4
      %v667 = vshll.u32 %v283, 16
      %v669 = vrot.slane %v667, 5
      %v670 = vsel %vm286, %v665, %v669
      %v671 = vld [vmem:[%s1 + $0x40] sm:$0xf]
      %v672 = vld [vmem:[%s1 + $0x44] sm:$0xf]
      %v673 = vld [vmem:[%s1 + $0x48] sm:$0xf]
      %v674 = vld [vmem:[%s1 + $0x4c] sm:$0xf]
      %v675 = vld [vmem:[%s1 + $0x50] sm:$0xf]
      %v676 = vld [vmem:[%s1 + $0x54] sm:$0xf]
      %v677 = vld [vmem:[%s1 + $0x58] sm:$0xf]
      %v678 = vld [vmem:[%s1 + $0x5c] sm:$0xf]
      %v679 = vld [vmem:[%s1 + $0x60] sm:$0xf]
      %v680 = vld [vmem:[%s1 + $0x64] sm:$0xf]
      %v681 = vld [vmem:[%s1 + $0x68] sm:$0xf]
      %v682 = vld [vmem:[%s1 + $0x6c] sm:$0xf]
      %v683 = vld [vmem:[%s1 + $0x70] sm:$0xf]
      %v684 = vld [vmem:[%s1 + $0x74] sm:$0xf]
      %v685 = vld [vmem:[%s1 + $0x78] sm:$0xf]
      %v686 = vld [vmem:[%s1 + $0x7c] sm:$0xf]
      %v687 = vunpack.c.l.b16 %v300
      %v688 = vunpack.c.l.b16 %v310
      %v689 = vunpack.c.l.b16 %v324
      %v690 = vunpack.c.l.b16 %v334
      %v691 = vunpack.c.l.b16 %v348
      %v692 = vunpack.c.l.b16 %v358
      %v693 = vunpack.c.l.b16 %v372
      %v694 = vunpack.c.l.b16 %v382
      %v695 = vunpack.c.l.b16 %v396
      %v696 = vunpack.c.l.b16 %v406
      %v697 = vunpack.c.l.b16 %v420
      %v698 = vunpack.c.l.b16 %v430
      %v699 = vunpack.c.l.b16 %v444
      %v700 = vunpack.c.l.b16 %v454
      %v701 = vunpack.c.l.b16 %v468
      %v702 = vunpack.c.l.b16 %v478
      %v703 = vunpack.c.l.b16 %v492
      %v704 = vunpack.c.l.b16 %v502
      %v705 = vunpack.c.l.b16 %v516
      %v706 = vunpack.c.l.b16 %v526
      %v707 = vunpack.c.l.b16 %v540
      %v708 = vunpack.c.l.b16 %v550
      %v709 = vunpack.c.l.b16 %v564
      %v710 = vunpack.c.l.b16 %v574
      %v711 = vunpack.c.l.b16 %v588
      %v712 = vunpack.c.l.b16 %v598
      %v713 = vunpack.c.l.b16 %v612
      %v714 = vunpack.c.l.b16 %v622
      %v715 = vunpack.c.l.b16 %v636
      %v716 = vunpack.c.l.b16 %v646
      %v717 = vunpack.c.l.b16 %v660
      %v718 = vunpack.c.l.b16 %v670
      %v719 = vpack.c.b16 %v688, %v687
      %v720 = vpack.c.b16 %v690, %v689
      %v721 = vpack.c.b16 %v692, %v691
      %v722 = vpack.c.b16 %v694, %v693
      %v723 = vpack.c.b16 %v696, %v695
      %v724 = vpack.c.b16 %v698, %v697
      %v725 = vpack.c.b16 %v700, %v699
      %v726 = vpack.c.b16 %v702, %v701
      %v727 = vpack.c.b16 %v704, %v703
      %v728 = vpack.c.b16 %v706, %v705
      %v729 = vpack.c.b16 %v708, %v707
      %v730 = vpack.c.b16 %v710, %v709
      %v731 = vpack.c.b16 %v712, %v711
      %v732 = vpack.c.b16 %v714, %v713
      %v733 = vpack.c.b16 %v716, %v715
      %v734 = vpack.c.b16 %v718, %v717
      %v767 = vunpack.c.l.b16 %v671
      %v768 = vunpack.c.l.b16 %v672
      %v769 = vunpack.c.l.b16 %v673
      %v770 = vunpack.c.l.b16 %v674
      %v771 = vunpack.c.l.b16 %v675
      %v772 = vunpack.c.l.b16 %v676
      %v773 = vunpack.c.l.b16 %v677
      %v774 = vunpack.c.l.b16 %v678
      %v775 = vunpack.c.l.b16 %v679
      %v776 = vunpack.c.l.b16 %v680
      %v777 = vunpack.c.l.b16 %v681
      %v778 = vunpack.c.l.b16 %v682
      %v779 = vunpack.c.l.b16 %v683
      %v780 = vunpack.c.l.b16 %v684
      %v781 = vunpack.c.l.b16 %v685
      %v782 = vunpack.c.l.b16 %v686
      %v783 = vpack.c.b16 %v768, %v767
      %v784 = vpack.c.b16 %v770, %v769
      %v785 = vpack.c.b16 %v772, %v771
      %v786 = vpack.c.b16 %v774, %v773
      %v787 = vpack.c.b16 %v776, %v775
      %v788 = vpack.c.b16 %v778, %v777
      %v789 = vpack.c.b16 %v780, %v779
      %v790 = vpack.c.b16 %v782, %v781
      %799 = vmatprep.subr.bf16.mxu0 0
      %800 = vmatpush1.bf16.msra.mxu0 %v783
      %801 = vmatprep.subr.bf16.mxu0 0
      %802 = vmatpush1.bf16.msra.mxu0 %v784
      %803 = vmatprep.subr.bf16.mxu0 0
      %804 = vmatpush1.bf16.msra.mxu0 %v785
      %805 = vmatprep.subr.bf16.mxu0 0
      %806 = vmatpush1.bf16.msra.mxu0 %v786
      %807 = vmatprep.subr.bf16.mxu0 0
      %808 = vmatpush1.bf16.msra.mxu0 %v787
      %809 = vmatprep.subr.bf16.mxu0 0
      %810 = vmatpush1.bf16.msra.mxu0 %v788
      %811 = vmatprep.subr.bf16.mxu0 0
      %812 = vmatpush1.bf16.msra.mxu0 %v789
      %813 = vmatprep.subr.bf16.mxu0 0
      %814 = vmatpush1.bf16.msra.mxu0 %v790
      %815 = vmatprep.subr.bf16.mxu0 0
      %816 = vmatpush1.bf16.msra.mxu0 0
      %817 = vmatprep.subr.bf16.mxu0 0
      %818 = vmatpush1.bf16.msra.mxu0 0
      %819 = vmatprep.subr.bf16.mxu0 0
      %820 = vmatpush1.bf16.msra.mxu0 0
      %821 = vmatprep.subr.bf16.mxu0 0
      %822 = vmatpush1.bf16.msra.mxu0 0
      %823 = vmatprep.subr.bf16.mxu0 0
      %824 = vmatpush1.bf16.msra.mxu0 0
      %825 = vmatprep.subr.bf16.mxu0 0
      %826 = vmatpush1.bf16.msra.mxu0 0
      %827 = vmatprep.subr.bf16.mxu0 0
      %828 = vmatpush1.bf16.msra.mxu0 0
      %829 = vmatprep.subr.bf16.mxu0 0
      %830 = vmatpush1.bf16.msra.mxu0 0
      %831 = vmatprep.mubr.bf16.mxu0 0
      %832 = vmatmul.mubr.bf16.gmra.mrb[0].mxu0 %v719
      %v833 = vpop.f32.mrb[0].mxu0
      %v834 = vadd.f32 0.0, %v833
      %v835 = vpop.f32.mrb[0].mxu0
      %v836 = vpop.f32.mrb[0].mxu0
      %v837 = vadd.f32 0.0, %v836
      %v838 = vpop.f32.mrb[0].mxu0
      %839 = vmatprep.mubr.bf16.mxu0 0
      %840 = vmatmul.mubr.bf16.gmra.mrb[0].mxu0 %v720
      %v841 = vpop.f32.mrb[0].mxu0
      %v842 = vadd.f32 0.0, %v841
      %v843 = vpop.f32.mrb[0].mxu0
      %v844 = vpop.f32.mrb[0].mxu0
      %v845 = vadd.f32 0.0, %v844
      %v846 = vpop.f32.mrb[0].mxu0
      %847 = vmatprep.mubr.bf16.mxu0 0
      %848 = vmatmul.mubr.bf16.gmra.mrb[0].mxu0 %v721
      %v849 = vpop.f32.mrb[0].mxu0
      %v850 = vadd.f32 0.0, %v849
      %v851 = vpop.f32.mrb[0].mxu0
      %v852 = vpop.f32.mrb[0].mxu0
      %v853 = vadd.f32 0.0, %v852
      %v854 = vpop.f32.mrb[0].mxu0
      %855 = vmatprep.mubr.bf16.mxu0 0
      %856 = vmatmul.mubr.bf16.gmra.mrb[0].mxu0 %v722
      %v857 = vpop.f32.mrb[0].mxu0
      %v858 = vadd.f32 0.0, %v857
      %v859 = vpop.f32.mrb[0].mxu0
      %v860 = vpop.f32.mrb[0].mxu0
      %v861 = vadd.f32 0.0, %v860
      %v862 = vpop.f32.mrb[0].mxu0
      %863 = vmatprep.mubr.bf16.mxu0 0
      %864 = vmatmul.mubr.bf16.gmra.mrb[0].mxu0 %v723
      %v865 = vpop.f32.mrb[0].mxu0
      %v866 = vadd.f32 0.0, %v865
      %v867 = vpop.f32.mrb[0].mxu0
      %v868 = vpop.f32.mrb[0].mxu0
      %v869 = vadd.f32 0.0, %v868
      %v870 = vpop.f32.mrb[0].mxu0
      %871 = vmatprep.mubr.bf16.mxu0 0
      %872 = vmatmul.mubr.bf16.gmra.mrb[0].mxu0 %v724
      %v873 = vpop.f32.mrb[0].mxu0
      %v874 = vadd.f32 0.0, %v873
      %v875 = vpop.f32.mrb[0].mxu0
      %v876 = vpop.f32.mrb[0].mxu0
      %v877 = vadd.f32 0.0, %v876
      %v878 = vpop.f32.mrb[0].mxu0
      %879 = vmatprep.mubr.bf16.mxu0 0
      %880 = vmatmul.mubr.bf16.gmra.mrb[0].mxu0 %v725
      %v881 = vpop.f32.mrb[0].mxu0
      %v882 = vadd.f32 0.0, %v881
      %v883 = vpop.f32.mrb[0].mxu0
      %v884 = vpop.f32.mrb[0].mxu0
      %v885 = vadd.f32 0.0, %v884
      %v886 = vpop.f32.mrb[0].mxu0
      %887 = vmatprep.mubr.bf16.mxu0 0
      %888 = vmatmul.mubr.bf16.gmra.mrb[0].mxu0 %v726
      %v889 = vpop.f32.mrb[0].mxu0
      %v890 = vadd.f32 0.0, %v889
      %v891 = vpop.f32.mrb[0].mxu0
      %v892 = vpop.f32.mrb[0].mxu0
      %v893 = vadd.f32 0.0, %v892
      %v894 = vpop.f32.mrb[0].mxu0
      %895 = vmatprep.mubr.bf16.mxu0 0
      %896 = vmatmul.mubr.bf16.gmra.mrb[0].mxu0 %v727
      %v897 = vpop.f32.mrb[0].mxu0
      %v898 = vadd.f32 0.0, %v897
      %v899 = vpop.f32.mrb[0].mxu0
      %v900 = vpop.f32.mrb[0].mxu0
      %v901 = vadd.f32 0.0, %v900
      %v902 = vpop.f32.mrb[0].mxu0
      %903 = vmatprep.mubr.bf16.mxu0 0
      %904 = vmatmul.mubr.bf16.gmra.mrb[0].mxu0 %v728
      %v905 = vpop.f32.mrb[0].mxu0
      %v906 = vadd.f32 0.0, %v905
      %v907 = vpop.f32.mrb[0].mxu0
      %v908 = vpop.f32.mrb[0].mxu0
      %v909 = vadd.f32 0.0, %v908
      %v910 = vpop.f32.mrb[0].mxu0
      %911 = vmatprep.mubr.bf16.mxu0 0
      %912 = vmatmul.mubr.bf16.gmra.mrb[0].mxu0 %v729
      %v913 = vpop.f32.mrb[0].mxu0
      %v914 = vadd.f32 0.0, %v913
      %v915 = vpop.f32.mrb[0].mxu0
      %v916 = vpop.f32.mrb[0].mxu0
      %v917 = vadd.f32 0.0, %v916
      %v918 = vpop.f32.mrb[0].mxu0
      %919 = vmatprep.mubr.bf16.mxu0 0
      %920 = vmatmul.mubr.bf16.gmra.mrb[0].mxu0 %v730
      %v921 = vpop.f32.mrb[0].mxu0
      %v922 = vadd.f32 0.0, %v921
      %v923 = vpop.f32.mrb[0].mxu0
      %v924 = vpop.f32.mrb[0].mxu0
      %v925 = vadd.f32 0.0, %v924
      %v926 = vpop.f32.mrb[0].mxu0
      %927 = vmatprep.mubr.bf16.mxu0 0
      %928 = vmatmul.mubr.bf16.gmra.mrb[0].mxu0 %v731
      %v929 = vpop.f32.mrb[0].mxu0
      %v930 = vadd.f32 0.0, %v929
      %v931 = vpop.f32.mrb[0].mxu0
      %v932 = vpop.f32.mrb[0].mxu0
      %v933 = vadd.f32 0.0, %v932
      %v934 = vpop.f32.mrb[0].mxu0
      %935 = vmatprep.mubr.bf16.mxu0 0
      %936 = vmatmul.mubr.bf16.gmra.mrb[0].mxu0 %v732
      %v937 = vpop.f32.mrb[0].mxu0
      %v938 = vadd.f32 0.0, %v937
      %v939 = vpop.f32.mrb[0].mxu0
      %v940 = vpop.f32.mrb[0].mxu0
      %v941 = vadd.f32 0.0, %v940
      %v942 = vpop.f32.mrb[0].mxu0
      %943 = vmatprep.mubr.bf16.mxu0 0
      %944 = vmatmul.mubr.bf16.gmra.mrb[0].mxu0 %v733
      %v945 = vpop.f32.mrb[0].mxu0
      %v946 = vadd.f32 0.0, %v945
      %v947 = vpop.f32.mrb[0].mxu0
      %v948 = vpop.f32.mrb[0].mxu0
      %v949 = vadd.f32 0.0, %v948
      %v950 = vpop.f32.mrb[0].mxu0
      %951 = vmatprep.mubr.bf16.mxu0 0
      %952 = vmatmul.mubr.bf16.gmra.mrb[0].mxu0 %v734
      %v953 = vpop.f32.mrb[0].mxu0
      %v954 = vadd.f32 0.0, %v953
      %v955 = vpop.f32.mrb[0].mxu0
      %v956 = vpop.f32.mrb[0].mxu0
      %v957 = vadd.f32 0.0, %v956
      %v958 = vpop.f32.mrb[0].mxu0
      %959 = vdwg.mxu0
      %v992 = vunpack.c.l.b16 %v220
      %v993 = vunpack.c.l.b16 %v221
      %v994 = vunpack.c.l.b16 %v222
      %v995 = vunpack.c.l.b16 %v223
      %v996 = vunpack.c.l.b16 %v224
      %v997 = vunpack.c.l.b16 %v225
      %v998 = vunpack.c.l.b16 %v226
      %v999 = vunpack.c.l.b16 %v227
      %v1000 = vunpack.c.l.b16 %v228
      %v1001 = vunpack.c.l.b16 %v229
      %v1002 = vunpack.c.l.b16 %v230
      %v1003 = vunpack.c.l.b16 %v231
      %v1004 = vunpack.c.l.b16 %v232
      %v1005 = vunpack.c.l.b16 %v233
      %v1006 = vunpack.c.l.b16 %v234
      %v1007 = vunpack.c.l.b16 %v235
      %v1008 = vunpack.c.l.b16 %v236
      %v1009 = vunpack.c.l.b16 %v237
      %v1010 = vunpack.c.l.b16 %v238
      %v1011 = vunpack.c.l.b16 %v239
      %v1012 = vunpack.c.l.b16 %v240
      %v1013 = vunpack.c.l.b16 %v241
      %v1014 = vunpack.c.l.b16 %v242
      %v1015 = vunpack.c.l.b16 %v243
      %v1016 = vunpack.c.l.b16 %v244
      %v1017 = vunpack.c.l.b16 %v245
      %v1018 = vunpack.c.l.b16 %v246
      %v1019 = vunpack.c.l.b16 %v247
      %v1020 = vunpack.c.l.b16 %v248
      %v1021 = vunpack.c.l.b16 %v249
      %v1022 = vunpack.c.l.b16 %v250
      %v1023 = vunpack.c.l.b16 %v251
      %v1024 = vpack.c.b16 %v993, %v992
      %v1025 = vpack.c.b16 %v995, %v994
      %v1026 = vpack.c.b16 %v997, %v996
      %v1027 = vpack.c.b16 %v999, %v998
      %v1028 = vpack.c.b16 %v1001, %v1000
      %v1029 = vpack.c.b16 %v1003, %v1002
      %v1030 = vpack.c.b16 %v1005, %v1004
      %v1031 = vpack.c.b16 %v1007, %v1006
      %v1032 = vpack.c.b16 %v1009, %v1008
      %v1033 = vpack.c.b16 %v1011, %v1010
      %v1034 = vpack.c.b16 %v1013, %v1012
      %v1035 = vpack.c.b16 %v1015, %v1014
      %v1036 = vpack.c.b16 %v1017, %v1016
      %v1037 = vpack.c.b16 %v1019, %v1018
      %v1038 = vpack.c.b16 %v1021, %v1020
      %v1039 = vpack.c.b16 %v1023, %v1022
      %v1072 = vunpack.c.l.b16 %v252
      %v1073 = vunpack.c.l.b16 %v253
      %v1074 = vunpack.c.l.b16 %v254
      %v1075 = vunpack.c.l.b16 %v255
      %v1076 = vunpack.c.l.b16 %v256
      %v1077 = vunpack.c.l.b16 %v257
      %v1078 = vunpack.c.l.b16 %v258
      %v1079 = vunpack.c.l.b16 %v259
      %v1080 = vunpack.c.l.b16 %v260
      %v1081 = vunpack.c.l.b16 %v261
      %v1082 = vunpack.c.l.b16 %v262
      %v1083 = vunpack.c.l.b16 %v263
      %v1084 = vunpack.c.l.b16 %v264
      %v1085 = vunpack.c.l.b16 %v265
      %v1086 = vunpack.c.l.b16 %v266
      %v1087 = vunpack.c.l.b16 %v267
      %v1088 = vpack.c.b16 %v1073, %v1072
      %v1089 = vpack.c.b16 %v1075, %v1074
      %v1090 = vpack.c.b16 %v1077, %v1076
      %v1091 = vpack.c.b16 %v1079, %v1078
      %v1092 = vpack.c.b16 %v1081, %v1080
      %v1093 = vpack.c.b16 %v1083, %v1082
      %v1094 = vpack.c.b16 %v1085, %v1084
      %v1095 = vpack.c.b16 %v1087, %v1086
      %1104 = vmatprep.subr.bf16.mxu0 0
      %1105 = vmatpush1.bf16.msra.mxu0 %v1088
      %1106 = vmatprep.subr.bf16.mxu0 0
      %1107 = vmatpush1.bf16.msra.mxu0 %v1089
      %1108 = vmatprep.subr.bf16.mxu0 0
      %1109 = vmatpush1.bf16.msra.mxu0 %v1090
      %1110 = vmatprep.subr.bf16.mxu0 0
      %1111 = vmatpush1.bf16.msra.mxu0 %v1091
      %1112 = vmatprep.subr.bf16.mxu0 0
      %1113 = vmatpush1.bf16.msra.mxu0 %v1092
      %1114 = vmatprep.subr.bf16.mxu0 0
      %1115 = vmatpush1.bf16.msra.mxu0 %v1093
      %1116 = vmatprep.subr.bf16.mxu0 0
      %1117 = vmatpush1.bf16.msra.mxu0 %v1094
      %1118 = vmatprep.subr.bf16.mxu0 0
      %1119 = vmatpush1.bf16.msra.mxu0 %v1095
      %1120 = vmatprep.subr.bf16.mxu0 0
      %1121 = vmatpush1.bf16.msra.mxu0 0
      %1122 = vmatprep.subr.bf16.mxu0 0
      %1123 = vmatpush1.bf16.msra.mxu0 0
      %1124 = vmatprep.subr.bf16.mxu0 0
      %1125 = vmatpush1.bf16.msra.mxu0 0
      %1126 = vmatprep.subr.bf16.mxu0 0
      %1127 = vmatpush1.bf16.msra.mxu0 0
      %1128 = vmatprep.subr.bf16.mxu0 0
      %1129 = vmatpush1.bf16.msra.mxu0 0
      %1130 = vmatprep.subr.bf16.mxu0 0
      %1131 = vmatpush1.bf16.msra.mxu0 0
      %1132 = vmatprep.subr.bf16.mxu0 0
      %1133 = vmatpush1.bf16.msra.mxu0 0
      %1134 = vmatprep.subr.bf16.mxu0 0
      %1135 = vmatpush1.bf16.msra.mxu0 0
      %1136 = vmatprep.mubr.bf16.mxu0 0
      %1137 = vmatmul.mubr.bf16.gmra.mrb[0].mxu0 %v1024
      %v1138 = vpop.f32.mrb[0].mxu0
      %v1139 = vadd.f32 %v834, %v1138
      %v1140 = vpop.f32.mrb[0].mxu0
      %v1141 = vpop.f32.mrb[0].mxu0
      %v1142 = vadd.f32 %v837, %v1141
      %v1143 = vpop.f32.mrb[0].mxu0
      %1144 = vmatprep.mubr.bf16.mxu0 0
      %1145 = vmatmul.mubr.bf16.gmra.mrb[0].mxu0 %v1025
      %v1146 = vpop.f32.mrb[0].mxu0
      %v1147 = vadd.f32 %v842, %v1146
      %v1148 = vpop.f32.mrb[0].mxu0
      %v1149 = vpop.f32.mrb[0].mxu0
      %v1150 = vadd.f32 %v845, %v1149
      %v1151 = vpop.f32.mrb[0].mxu0
      %1152 = vmatprep.mubr.bf16.mxu0 0
      %1153 = vmatmul.mubr.bf16.gmra.mrb[0].mxu0 %v1026
      %v1154 = vpop.f32.mrb[0].mxu0
      %v1155 = vadd.f32 %v850, %v1154
      %v1156 = vpop.f32.mrb[0].mxu0
      %v1157 = vpop.f32.mrb[0].mxu0
      %v1158 = vadd.f32 %v853, %v1157
      %v1159 = vpop.f32.mrb[0].mxu0
      %1160 = vmatprep.mubr.bf16.mxu0 0
      %1161 = vmatmul.mubr.bf16.gmra.mrb[0].mxu0 %v1027
      %v1162 = vpop.f32.mrb[0].mxu0
      %v1163 = vadd.f32 %v858, %v1162
      %v1164 = vpop.f32.mrb[0].mxu0
      %v1165 = vpop.f32.mrb[0].mxu0
      %v1166 = vadd.f32 %v861, %v1165
      %v1167 = vpop.f32.mrb[0].mxu0
      %1168 = vmatprep.mubr.bf16.mxu0 0
      %1169 = vmatmul.mubr.bf16.gmra.mrb[0].mxu0 %v1028
      %v1170 = vpop.f32.mrb[0].mxu0
      %v1171 = vadd.f32 %v866, %v1170
      %v1172 = vpop.f32.mrb[0].mxu0
      %v1173 = vpop.f32.mrb[0].mxu0
      %v1174 = vadd.f32 %v869, %v1173
      %v1175 = vpop.f32.mrb[0].mxu0
      %1176 = vmatprep.mubr.bf16.mxu0 0
      %1177 = vmatmul.mubr.bf16.gmra.mrb[0].mxu0 %v1029
      %v1178 = vpop.f32.mrb[0].mxu0
      %v1179 = vadd.f32 %v874, %v1178
      %v1180 = vpop.f32.mrb[0].mxu0
      %v1181 = vpop.f32.mrb[0].mxu0
      %v1182 = vadd.f32 %v877, %v1181
      %v1183 = vpop.f32.mrb[0].mxu0
      %1184 = vmatprep.mubr.bf16.mxu0 0
      %1185 = vmatmul.mubr.bf16.gmra.mrb[0].mxu0 %v1030
      %v1186 = vpop.f32.mrb[0].mxu0
      %v1187 = vadd.f32 %v882, %v1186
      %v1188 = vpop.f32.mrb[0].mxu0
      %v1189 = vpop.f32.mrb[0].mxu0
      %v1190 = vadd.f32 %v885, %v1189
      %v1191 = vpop.f32.mrb[0].mxu0
      %1192 = vmatprep.mubr.bf16.mxu0 0
      %1193 = vmatmul.mubr.bf16.gmra.mrb[0].mxu0 %v1031
      %v1194 = vpop.f32.mrb[0].mxu0
      %v1195 = vadd.f32 %v890, %v1194
      %v1196 = vpop.f32.mrb[0].mxu0
      %v1197 = vpop.f32.mrb[0].mxu0
      %v1198 = vadd.f32 %v893, %v1197
      %v1199 = vpop.f32.mrb[0].mxu0
      %1200 = vmatprep.mubr.bf16.mxu0 0
      %1201 = vmatmul.mubr.bf16.gmra.mrb[0].mxu0 %v1032
      %v1202 = vpop.f32.mrb[0].mxu0
      %v1203 = vadd.f32 %v898, %v1202
      %v1204 = vpop.f32.mrb[0].mxu0
      %v1205 = vpop.f32.mrb[0].mxu0
      %v1206 = vadd.f32 %v901, %v1205
      %v1207 = vpop.f32.mrb[0].mxu0
      %1208 = vmatprep.mubr.bf16.mxu0 0
      %1209 = vmatmul.mubr.bf16.gmra.mrb[0].mxu0 %v1033
      %v1210 = vpop.f32.mrb[0].mxu0
      %v1211 = vadd.f32 %v906, %v1210
      %v1212 = vpop.f32.mrb[0].mxu0
      %v1213 = vpop.f32.mrb[0].mxu0
      %v1214 = vadd.f32 %v909, %v1213
      %v1215 = vpop.f32.mrb[0].mxu0
      %1216 = vmatprep.mubr.bf16.mxu0 0
      %1217 = vmatmul.mubr.bf16.gmra.mrb[0].mxu0 %v1034
      %v1218 = vpop.f32.mrb[0].mxu0
      %v1219 = vadd.f32 %v914, %v1218
      %v1220 = vpop.f32.mrb[0].mxu0
      %v1221 = vpop.f32.mrb[0].mxu0
      %v1222 = vadd.f32 %v917, %v1221
      %v1223 = vpop.f32.mrb[0].mxu0
      %1224 = vmatprep.mubr.bf16.mxu0 0
      %1225 = vmatmul.mubr.bf16.gmra.mrb[0].mxu0 %v1035
      %v1226 = vpop.f32.mrb[0].mxu0
      %v1227 = vadd.f32 %v922, %v1226
      %v1228 = vpop.f32.mrb[0].mxu0
      %v1229 = vpop.f32.mrb[0].mxu0
      %v1230 = vadd.f32 %v925, %v1229
      %v1231 = vpop.f32.mrb[0].mxu0
      %1232 = vmatprep.mubr.bf16.mxu0 0
      %1233 = vmatmul.mubr.bf16.gmra.mrb[0].mxu0 %v1036
      %v1234 = vpop.f32.mrb[0].mxu0
      %v1235 = vadd.f32 %v930, %v1234
      %v1236 = vpop.f32.mrb[0].mxu0
      %v1237 = vpop.f32.mrb[0].mxu0
      %v1238 = vadd.f32 %v933, %v1237
      %v1239 = vpop.f32.mrb[0].mxu0
      %1240 = vmatprep.mubr.bf16.mxu0 0
      %1241 = vmatmul.mubr.bf16.gmra.mrb[0].mxu0 %v1037
      %v1242 = vpop.f32.mrb[0].mxu0
      %v1243 = vadd.f32 %v938, %v1242
      %v1244 = vpop.f32.mrb[0].mxu0
      %v1245 = vpop.f32.mrb[0].mxu0
      %v1246 = vadd.f32 %v941, %v1245
      %v1247 = vpop.f32.mrb[0].mxu0
      %1248 = vmatprep.mubr.bf16.mxu0 0
      %1249 = vmatmul.mubr.bf16.gmra.mrb[0].mxu0 %v1038
      %v1250 = vpop.f32.mrb[0].mxu0
      %v1251 = vadd.f32 %v946, %v1250
      %v1252 = vpop.f32.mrb[0].mxu0
      %v1253 = vpop.f32.mrb[0].mxu0
      %v1254 = vadd.f32 %v949, %v1253
      %v1255 = vpop.f32.mrb[0].mxu0
      %1256 = vmatprep.mubr.bf16.mxu0 0
      %1257 = vmatmul.mubr.bf16.gmra.mrb[0].mxu0 %v1039
      %v1258 = vpop.f32.mrb[0].mxu0
      %v1259 = vadd.f32 %v954, %v1258
      %v1260 = vpop.f32.mrb[0].mxu0
      %v1261 = vpop.f32.mrb[0].mxu0
      %v1262 = vadd.f32 %v957, %v1261
      %v1263 = vpop.f32.mrb[0].mxu0
      %1264 = vdwg.mxu0
      %v1265 = vld [vmem:[%s219] sm:$0xe]
      %v1266 = vld [vmem:[%s219 + $0xc] sm:$0xe]
      %v1267 = vld [vmem:[%s219 + $0x18] sm:$0xe]
      %v1268 = vld [vmem:[%s219 + $0x24] sm:$0xe]
      %v1269 = vld [vmem:[%s219 + $0x30] sm:$0xe]
      %v1270 = vld [vmem:[%s219 + $0x3c] sm:$0xe]
      %v1271 = vld [vmem:[%s219 + $0x48] sm:$0xe]
      %v1272 = vld [vmem:[%s219 + $0x54] sm:$0xe]
      %v1273 = vld [vmem:[%s219 + $0x60] sm:$0xe]
      %v1274 = vld [vmem:[%s219 + $0x6c] sm:$0xe]
      %v1275 = vld [vmem:[%s219 + $0x78] sm:$0xe]
      %v1276 = vld [vmem:[%s219 + $0x84] sm:$0xe]
      %v1277 = vld [vmem:[%s219 + $0x90] sm:$0xe]
      %v1278 = vld [vmem:[%s219 + $0x9c] sm:$0xe]
      %v1279 = vld [vmem:[%s219 + $0xa8] sm:$0xe]
      %v1280 = vld [vmem:[%s219 + $0xb4] sm:$0xe]
      %vm1313 = vcmask 1042432
      %vm1314 = vcmask 1046532
      %vm1315 = vmor %vm1313, %vm1314
      %v1316 = vrot.slane %v1265, 5
      %v1317 = vrot.slane %v1316, 4
      %v1318 = vrot.slane %v221, 5
      %v1319 = vsel %vm1315, %v1317, %v1318
      %v1320 = vrot.slane %v1318, 4
      %v1321 = vrot.slane %v268, 5
      %v1322 = vsel %vm1315, %v1320, %v1321
      %v1323 = vrot.slane %v1266, 5
      %v1324 = vrot.slane %v1323, 4
      %v1325 = vrot.slane %v223, 5
      %v1326 = vsel %vm1315, %v1324, %v1325
      %v1327 = vrot.slane %v1325, 4
      %v1328 = vrot.slane %v269, 5
      %v1329 = vsel %vm1315, %v1327, %v1328
      %v1330 = vrot.slane %v1267, 5
      %v1331 = vrot.slane %v1330, 4
      %v1332 = vrot.slane %v225, 5
      %v1333 = vsel %vm1315, %v1331, %v1332
      %v1334 = vrot.slane %v1332, 4
      %v1335 = vrot.slane %v270, 5
      %v1336 = vsel %vm1315, %v1334, %v1335
      %v1337 = vrot.slane %v1268, 5
      %v1338 = vrot.slane %v1337, 4
      %v1339 = vrot.slane %v227, 5
      %v1340 = vsel %vm1315, %v1338, %v1339
      %v1341 = vrot.slane %v1339, 4
      %v1342 = vrot.slane %v271, 5
      %v1343 = vsel %vm1315, %v1341, %v1342
      %v1344 = vrot.slane %v1269, 5
      %v1345 = vrot.slane %v1344, 4
      %v1346 = vrot.slane %v229, 5
      %v1347 = vsel %vm1315, %v1345, %v1346
      %v1348 = vrot.slane %v1346, 4
      %v1349 = vrot.slane %v272, 5
      %v1350 = vsel %vm1315, %v1348, %v1349
      %v1351 = vrot.slane %v1270, 5
      %v1352 = vrot.slane %v1351, 4
      %v1353 = vrot.slane %v231, 5
      %v1354 = vsel %vm1315, %v1352, %v1353
      %v1355 = vrot.slane %v1353, 4
      %v1356 = vrot.slane %v273, 5
      %v1357 = vsel %vm1315, %v1355, %v1356
      %v1358 = vrot.slane %v1271, 5
      %v1359 = vrot.slane %v1358, 4
      %v1360 = vrot.slane %v233, 5
      %v1361 = vsel %vm1315, %v1359, %v1360
      %v1362 = vrot.slane %v1360, 4
      %v1363 = vrot.slane %v274, 5
      %v1364 = vsel %vm1315, %v1362, %v1363
      %v1365 = vrot.slane %v1272, 5
      %v1366 = vrot.slane %v1365, 4
      %v1367 = vrot.slane %v235, 5
      %v1368 = vsel %vm1315, %v1366, %v1367
      %v1369 = vrot.slane %v1367, 4
      %v1370 = vrot.slane %v275, 5
      %v1371 = vsel %vm1315, %v1369, %v1370
      %v1372 = vrot.slane %v1273, 5
      %v1373 = vrot.slane %v1372, 4
      %v1374 = vrot.slane %v237, 5
      %v1375 = vsel %vm1315, %v1373, %v1374
      %v1376 = vrot.slane %v1374, 4
      %v1377 = vrot.slane %v276, 5
      %v1378 = vsel %vm1315, %v1376, %v1377
      %v1379 = vrot.slane %v1274, 5
      %v1380 = vrot.slane %v1379, 4
      %v1381 = vrot.slane %v239, 5
      %v1382 = vsel %vm1315, %v1380, %v1381
      %v1383 = vrot.slane %v1381, 4
      %v1384 = vrot.slane %v277, 5
      %v1385 = vsel %vm1315, %v1383, %v1384
      %v1386 = vrot.slane %v1275, 5
      %v1387 = vrot.slane %v1386, 4
      %v1388 = vrot.slane %v241, 5
      %v1389 = vsel %vm1315, %v1387, %v1388
      %v1390 = vrot.slane %v1388, 4
      %v1391 = vrot.slane %v278, 5
      %v1392 = vsel %vm1315, %v1390, %v1391
      %v1393 = vrot.slane %v1276, 5
      %v1394 = vrot.slane %v1393, 4
      %v1395 = vrot.slane %v243, 5
      %v1396 = vsel %vm1315, %v1394, %v1395
      %v1397 = vrot.slane %v1395, 4
      %v1398 = vrot.slane %v279, 5
      %v1399 = vsel %vm1315, %v1397, %v1398
      %v1400 = vrot.slane %v1277, 5
      %v1401 = vrot.slane %v1400, 4
      %v1402 = vrot.slane %v245, 5
      %v1403 = vsel %vm1315, %v1401, %v1402
      %v1404 = vrot.slane %v1402, 4
      %v1405 = vrot.slane %v280, 5
      %v1406 = vsel %vm1315, %v1404, %v1405
      %v1407 = vrot.slane %v1278, 5
      %v1408 = vrot.slane %v1407, 4
      %v1409 = vrot.slane %v247, 5
      %v1410 = vsel %vm1315, %v1408, %v1409
      %v1411 = vrot.slane %v1409, 4
      %v1412 = vrot.slane %v281, 5
      %v1413 = vsel %vm1315, %v1411, %v1412
      %v1414 = vrot.slane %v1279, 5
      %v1415 = vrot.slane %v1414, 4
      %v1416 = vrot.slane %v249, 5
      %v1417 = vsel %vm1315, %v1415, %v1416
      %v1418 = vrot.slane %v1416, 4
      %v1419 = vrot.slane %v282, 5
      %v1420 = vsel %vm1315, %v1418, %v1419
      %v1421 = vrot.slane %v1280, 5
      %v1422 = vrot.slane %v1421, 4
      %v1423 = vrot.slane %v251, 5
      %v1424 = vsel %vm1315, %v1422, %v1423
      %v1425 = vrot.slane %v1423, 4
      %v1426 = vrot.slane %v283, 5
      %v1427 = vsel %vm1315, %v1425, %v1426
      %v1428 = vld [vmem:[%s1 + $0x80] sm:$0xf]
      %v1429 = vld [vmem:[%s1 + $0x84] sm:$0xf]
      %v1430 = vld [vmem:[%s1 + $0x88] sm:$0xf]
      %v1431 = vld [vmem:[%s1 + $0x8c] sm:$0xf]
      %v1432 = vld [vmem:[%s1 + $0x90] sm:$0xf]
      %v1433 = vld [vmem:[%s1 + $0x94] sm:$0xf]
      %v1434 = vld [vmem:[%s1 + $0x98] sm:$0xf]
      %v1435 = vld [vmem:[%s1 + $0x9c] sm:$0xf]
      %v1436 = vld [vmem:[%s1 + $0xa0] sm:$0xf]
      %v1437 = vld [vmem:[%s1 + $0xa4] sm:$0xf]
      %v1438 = vld [vmem:[%s1 + $0xa8] sm:$0xf]
      %v1439 = vld [vmem:[%s1 + $0xac] sm:$0xf]
      %v1440 = vld [vmem:[%s1 + $0xb0] sm:$0xf]
      %v1441 = vld [vmem:[%s1 + $0xb4] sm:$0xf]
      %v1442 = vld [vmem:[%s1 + $0xb8] sm:$0xf]
      %v1443 = vld [vmem:[%s1 + $0xbc] sm:$0xf]
      %v1444 = vunpack.c.l.b16 %v1319
      %v1445 = vunpack.c.l.b16 %v1322
      %v1446 = vunpack.c.l.b16 %v1326
      %v1447 = vunpack.c.l.b16 %v1329
      %v1448 = vunpack.c.l.b16 %v1333
      %v1449 = vunpack.c.l.b16 %v1336
      %v1450 = vunpack.c.l.b16 %v1340
      %v1451 = vunpack.c.l.b16 %v1343
      %v1452 = vunpack.c.l.b16 %v1347
      %v1453 = vunpack.c.l.b16 %v1350
      %v1454 = vunpack.c.l.b16 %v1354
      %v1455 = vunpack.c.l.b16 %v1357
      %v1456 = vunpack.c.l.b16 %v1361
      %v1457 = vunpack.c.l.b16 %v1364
      %v1458 = vunpack.c.l.b16 %v1368
      %v1459 = vunpack.c.l.b16 %v1371
      %v1460 = vunpack.c.l.b16 %v1375
      %v1461 = vunpack.c.l.b16 %v1378
      %v1462 = vunpack.c.l.b16 %v1382
      %v1463 = vunpack.c.l.b16 %v1385
      %v1464 = vunpack.c.l.b16 %v1389
      %v1465 = vunpack.c.l.b16 %v1392
      %v1466 = vunpack.c.l.b16 %v1396
      %v1467 = vunpack.c.l.b16 %v1399
      %v1468 = vunpack.c.l.b16 %v1403
      %v1469 = vunpack.c.l.b16 %v1406
      %v1470 = vunpack.c.l.b16 %v1410
      %v1471 = vunpack.c.l.b16 %v1413
      %v1472 = vunpack.c.l.b16 %v1417
      %v1473 = vunpack.c.l.b16 %v1420
      %v1474 = vunpack.c.l.b16 %v1424
      %v1475 = vunpack.c.l.b16 %v1427
      %v1476 = vpack.c.b16 %v1445, %v1444
      %v1477 = vpack.c.b16 %v1447, %v1446
      %v1478 = vpack.c.b16 %v1449, %v1448
      %v1479 = vpack.c.b16 %v1451, %v1450
      %v1480 = vpack.c.b16 %v1453, %v1452
      %v1481 = vpack.c.b16 %v1455, %v1454
      %v1482 = vpack.c.b16 %v1457, %v1456
      %v1483 = vpack.c.b16 %v1459, %v1458
      %v1484 = vpack.c.b16 %v1461, %v1460
      %v1485 = vpack.c.b16 %v1463, %v1462
      %v1486 = vpack.c.b16 %v1465, %v1464
      %v1487 = vpack.c.b16 %v1467, %v1466
      %v1488 = vpack.c.b16 %v1469, %v1468
      %v1489 = vpack.c.b16 %v1471, %v1470
      %v1490 = vpack.c.b16 %v1473, %v1472
      %v1491 = vpack.c.b16 %v1475, %v1474
      %v1524 = vunpack.c.l.b16 %v1428
      %v1525 = vunpack.c.l.b16 %v1429
      %v1526 = vunpack.c.l.b16 %v1430
      %v1527 = vunpack.c.l.b16 %v1431
      %v1528 = vunpack.c.l.b16 %v1432
      %v1529 = vunpack.c.l.b16 %v1433
      %v1530 = vunpack.c.l.b16 %v1434
      %v1531 = vunpack.c.l.b16 %v1435
      %v1532 = vunpack.c.l.b16 %v1436
      %v1533 = vunpack.c.l.b16 %v1437
      %v1534 = vunpack.c.l.b16 %v1438
      %v1535 = vunpack.c.l.b16 %v1439
      %v1536 = vunpack.c.l.b16 %v1440
      %v1537 = vunpack.c.l.b16 %v1441
      %v1538 = vunpack.c.l.b16 %v1442
      %v1539 = vunpack.c.l.b16 %v1443
      %v1540 = vpack.c.b16 %v1525, %v1524
      %v1541 = vpack.c.b16 %v1527, %v1526
      %v1542 = vpack.c.b16 %v1529, %v1528
      %v1543 = vpack.c.b16 %v1531, %v1530
      %v1544 = vpack.c.b16 %v1533, %v1532
      %v1545 = vpack.c.b16 %v1535, %v1534
      %v1546 = vpack.c.b16 %v1537, %v1536
      %v1547 = vpack.c.b16 %v1539, %v1538
      %1556 = vmatprep.subr.bf16.mxu0 0
      %1557 = vmatpush1.bf16.msra.mxu0 %v1540
      %1558 = vmatprep.subr.bf16.mxu0 0
      %1559 = vmatpush1.bf16.msra.mxu0 %v1541
      %1560 = vmatprep.subr.bf16.mxu0 0
      %1561 = vmatpush1.bf16.msra.mxu0 %v1542
      %1562 = vmatprep.subr.bf16.mxu0 0
      %1563 = vmatpush1.bf16.msra.mxu0 %v1543
      %1564 = vmatprep.subr.bf16.mxu0 0
      %1565 = vmatpush1.bf16.msra.mxu0 %v1544
      %1566 = vmatprep.subr.bf16.mxu0 0
      %1567 = vmatpush1.bf16.msra.mxu0 %v1545
      %1568 = vmatprep.subr.bf16.mxu0 0
      %1569 = vmatpush1.bf16.msra.mxu0 %v1546
      %1570 = vmatprep.subr.bf16.mxu0 0
      %1571 = vmatpush1.bf16.msra.mxu0 %v1547
      %1572 = vmatprep.subr.bf16.mxu0 0
      %1573 = vmatpush1.bf16.msra.mxu0 0
      %1574 = vmatprep.subr.bf16.mxu0 0
      %1575 = vmatpush1.bf16.msra.mxu0 0
      %1576 = vmatprep.subr.bf16.mxu0 0
      %1577 = vmatpush1.bf16.msra.mxu0 0
      %1578 = vmatprep.subr.bf16.mxu0 0
      %1579 = vmatpush1.bf16.msra.mxu0 0
      %1580 = vmatprep.subr.bf16.mxu0 0
      %1581 = vmatpush1.bf16.msra.mxu0 0
      %1582 = vmatprep.subr.bf16.mxu0 0
      %1583 = vmatpush1.bf16.msra.mxu0 0
      %1584 = vmatprep.subr.bf16.mxu0 0
      %1585 = vmatpush1.bf16.msra.mxu0 0
      %1586 = vmatprep.subr.bf16.mxu0 0
      %1587 = vmatpush1.bf16.msra.mxu0 0
      %1588 = vmatprep.mubr.bf16.mxu0 0
      %1589 = vmatmul.mubr.bf16.gmra.mrb[0].mxu0 %v1476
      %v1590 = vpop.f32.mrb[0].mxu0
      %v1591 = vadd.f32 0.0, %v1590
      %v1592 = vpop.f32.mrb[0].mxu0
      %v1593 = vpop.f32.mrb[0].mxu0
      %v1594 = vadd.f32 0.0, %v1593
      %v1595 = vpop.f32.mrb[0].mxu0
      %1596 = vmatprep.mubr.bf16.mxu0 0
      %1597 = vmatmul.mubr.bf16.gmra.mrb[0].mxu0 %v1477
      %v1598 = vpop.f32.mrb[0].mxu0
      %v1599 = vadd.f32 0.0, %v1598
      %v1600 = vpop.f32.mrb[0].mxu0
      %v1601 = vpop.f32.mrb[0].mxu0
      %v1602 = vadd.f32 0.0, %v1601
      %v1603 = vpop.f32.mrb[0].mxu0
      %1604 = vmatprep.mubr.bf16.mxu0 0
      %1605 = vmatmul.mubr.bf16.gmra.mrb[0].mxu0 %v1478
      %v1606 = vpop.f32.mrb[0].mxu0
      %v1607 = vadd.f32 0.0, %v1606
      %v1608 = vpop.f32.mrb[0].mxu0
      %v1609 = vpop.f32.mrb[0].mxu0
      %v1610 = vadd.f32 0.0, %v1609
      %v1611 = vpop.f32.mrb[0].mxu0
      %1612 = vmatprep.mubr.bf16.mxu0 0
      %1613 = vmatmul.mubr.bf16.gmra.mrb[0].mxu0 %v1479
      %v1614 = vpop.f32.mrb[0].mxu0
      %v1615 = vadd.f32 0.0, %v1614
      %v1616 = vpop.f32.mrb[0].mxu0
      %v1617 = vpop.f32.mrb[0].mxu0
      %v1618 = vadd.f32 0.0, %v1617
      %v1619 = vpop.f32.mrb[0].mxu0
      %1620 = vmatprep.mubr.bf16.mxu0 0
      %1621 = vmatmul.mubr.bf16.gmra.mrb[0].mxu0 %v1480
      %v1622 = vpop.f32.mrb[0].mxu0
      %v1623 = vadd.f32 0.0, %v1622
      %v1624 = vpop.f32.mrb[0].mxu0
      %v1625 = vpop.f32.mrb[0].mxu0
      %v1626 = vadd.f32 0.0, %v1625
      %v1627 = vpop.f32.mrb[0].mxu0
      %1628 = vmatprep.mubr.bf16.mxu0 0
      %1629 = vmatmul.mubr.bf16.gmra.mrb[0].mxu0 %v1481
      %v1630 = vpop.f32.mrb[0].mxu0
      %v1631 = vadd.f32 0.0, %v1630
      %v1632 = vpop.f32.mrb[0].mxu0
      %v1633 = vpop.f32.mrb[0].mxu0
      %v1634 = vadd.f32 0.0, %v1633
      %v1635 = vpop.f32.mrb[0].mxu0
      %1636 = vmatprep.mubr.bf16.mxu0 0
      %1637 = vmatmul.mubr.bf16.gmra.mrb[0].mxu0 %v1482
      %v1638 = vpop.f32.mrb[0].mxu0
      %v1639 = vadd.f32 0.0, %v1638
      %v1640 = vpop.f32.mrb[0].mxu0
      %v1641 = vpop.f32.mrb[0].mxu0
      %v1642 = vadd.f32 0.0, %v1641
      %v1643 = vpop.f32.mrb[0].mxu0
      %1644 = vmatprep.mubr.bf16.mxu0 0
      %1645 = vmatmul.mubr.bf16.gmra.mrb[0].mxu0 %v1483
      %v1646 = vpop.f32.mrb[0].mxu0
      %v1647 = vadd.f32 0.0, %v1646
      %v1648 = vpop.f32.mrb[0].mxu0
      %v1649 = vpop.f32.mrb[0].mxu0
      %v1650 = vadd.f32 0.0, %v1649
      %v1651 = vpop.f32.mrb[0].mxu0
      %1652 = vmatprep.mubr.bf16.mxu0 0
      %1653 = vmatmul.mubr.bf16.gmra.mrb[0].mxu0 %v1484
      %v1654 = vpop.f32.mrb[0].mxu0
      %v1655 = vadd.f32 0.0, %v1654
      %v1656 = vpop.f32.mrb[0].mxu0
      %v1657 = vpop.f32.mrb[0].mxu0
      %v1658 = vadd.f32 0.0, %v1657
      %v1659 = vpop.f32.mrb[0].mxu0
      %1660 = vmatprep.mubr.bf16.mxu0 0
      %1661 = vmatmul.mubr.bf16.gmra.mrb[0].mxu0 %v1485
      %v1662 = vpop.f32.mrb[0].mxu0
      %v1663 = vadd.f32 0.0, %v1662
      %v1664 = vpop.f32.mrb[0].mxu0
      %v1665 = vpop.f32.mrb[0].mxu0
      %v1666 = vadd.f32 0.0, %v1665
      %v1667 = vpop.f32.mrb[0].mxu0
      %1668 = vmatprep.mubr.bf16.mxu0 0
      %1669 = vmatmul.mubr.bf16.gmra.mrb[0].mxu0 %v1486
      %v1670 = vpop.f32.mrb[0].mxu0
      %v1671 = vadd.f32 0.0, %v1670
      %v1672 = vpop.f32.mrb[0].mxu0
      %v1673 = vpop.f32.mrb[0].mxu0
      %v1674 = vadd.f32 0.0, %v1673
      %v1675 = vpop.f32.mrb[0].mxu0
      %1676 = vmatprep.mubr.bf16.mxu0 0
      %1677 = vmatmul.mubr.bf16.gmra.mrb[0].mxu0 %v1487
      %v1678 = vpop.f32.mrb[0].mxu0
      %v1679 = vadd.f32 0.0, %v1678
      %v1680 = vpop.f32.mrb[0].mxu0
      %v1681 = vpop.f32.mrb[0].mxu0
      %v1682 = vadd.f32 0.0, %v1681
      %v1683 = vpop.f32.mrb[0].mxu0
      %1684 = vmatprep.mubr.bf16.mxu0 0
      %1685 = vmatmul.mubr.bf16.gmra.mrb[0].mxu0 %v1488
      %v1686 = vpop.f32.mrb[0].mxu0
      %v1687 = vadd.f32 0.0, %v1686
      %v1688 = vpop.f32.mrb[0].mxu0
      %v1689 = vpop.f32.mrb[0].mxu0
      %v1690 = vadd.f32 0.0, %v1689
      %v1691 = vpop.f32.mrb[0].mxu0
      %1692 = vmatprep.mubr.bf16.mxu0 0
      %1693 = vmatmul.mubr.bf16.gmra.mrb[0].mxu0 %v1489
      %v1694 = vpop.f32.mrb[0].mxu0
      %v1695 = vadd.f32 0.0, %v1694
      %v1696 = vpop.f32.mrb[0].mxu0
      %v1697 = vpop.f32.mrb[0].mxu0
      %v1698 = vadd.f32 0.0, %v1697
      %v1699 = vpop.f32.mrb[0].mxu0
      %1700 = vmatprep.mubr.bf16.mxu0 0
      %1701 = vmatmul.mubr.bf16.gmra.mrb[0].mxu0 %v1490
      %v1702 = vpop.f32.mrb[0].mxu0
      %v1703 = vadd.f32 0.0, %v1702
      %v1704 = vpop.f32.mrb[0].mxu0
      %v1705 = vpop.f32.mrb[0].mxu0
      %v1706 = vadd.f32 0.0, %v1705
      %v1707 = vpop.f32.mrb[0].mxu0
      %1708 = vmatprep.mubr.bf16.mxu0 0
      %1709 = vmatmul.mubr.bf16.gmra.mrb[0].mxu0 %v1491
      %v1710 = vpop.f32.mrb[0].mxu0
      %v1711 = vadd.f32 0.0, %v1710
      %v1712 = vpop.f32.mrb[0].mxu0
      %v1713 = vpop.f32.mrb[0].mxu0
      %v1714 = vadd.f32 0.0, %v1713
      %v1715 = vpop.f32.mrb[0].mxu0
      %1716 = vdwg.mxu0
      %v1717 = vadd.f32 %v1139, %v1591
      %v1718 = vadd.f32 %v1142, %v1594
      %v1719 = vadd.f32 %v1147, %v1599
      %v1720 = vadd.f32 %v1150, %v1602
      %v1721 = vadd.f32 %v1155, %v1607
      %v1722 = vadd.f32 %v1158, %v1610
      %v1723 = vadd.f32 %v1163, %v1615
      %v1724 = vadd.f32 %v1166, %v1618
      %v1725 = vadd.f32 %v1171, %v1623
      %v1726 = vadd.f32 %v1174, %v1626
      %v1727 = vadd.f32 %v1179, %v1631
      %v1728 = vadd.f32 %v1182, %v1634
      %v1729 = vadd.f32 %v1187, %v1639
      %v1730 = vadd.f32 %v1190, %v1642
      %v1731 = vadd.f32 %v1195, %v1647
      %v1732 = vadd.f32 %v1198, %v1650
      %v1733 = vadd.f32 %v1203, %v1655
      %v1734 = vadd.f32 %v1206, %v1658
      %v1735 = vadd.f32 %v1211, %v1663
      %v1736 = vadd.f32 %v1214, %v1666
      %v1737 = vadd.f32 %v1219, %v1671
      %v1738 = vadd.f32 %v1222, %v1674
      %v1739 = vadd.f32 %v1227, %v1679
      %v1740 = vadd.f32 %v1230, %v1682
      %v1741 = vadd.f32 %v1235, %v1687
      %v1742 = vadd.f32 %v1238, %v1690
      %v1743 = vadd.f32 %v1243, %v1695
      %v1744 = vadd.f32 %v1246, %v1698
      %v1745 = vadd.f32 %v1251, %v1703
      %v1746 = vadd.f32 %v1254, %v1706
      %v1747 = vadd.f32 %v1259, %v1711
      %v1748 = vadd.f32 %v1262, %v1714
      %s1749 = sadd.s32 %s216, 1
      %s1750 = smul.u32 %s1749, 3
      %s1751 = smul.addr %s1750, 4
      %s1752 = scalar_lea.vmem %s196, %s1751
      %v1753 = vld [vmem:[%s1752] sm:$0xf]
      %v1754 = vld [vmem:[%s1752 + $0x4] sm:$0xf]
      %v1755 = vld [vmem:[%s1752 + $0xc] sm:$0xf]
      %v1756 = vld [vmem:[%s1752 + $0x10] sm:$0xf]
      %v1757 = vld [vmem:[%s1752 + $0x18] sm:$0xf]
      %v1758 = vld [vmem:[%s1752 + $0x1c] sm:$0xf]
      %v1759 = vld [vmem:[%s1752 + $0x24] sm:$0xf]
      %v1760 = vld [vmem:[%s1752 + $0x28] sm:$0xf]
      %v1761 = vld [vmem:[%s1752 + $0x30] sm:$0xf]
      %v1762 = vld [vmem:[%s1752 + $0x34] sm:$0xf]
      %v1763 = vld [vmem:[%s1752 + $0x3c] sm:$0xf]
      %v1764 = vld [vmem:[%s1752 + $0x40] sm:$0xf]
      %v1765 = vld [vmem:[%s1752 + $0x48] sm:$0xf]
      %v1766 = vld [vmem:[%s1752 + $0x4c] sm:$0xf]
      %v1767 = vld [vmem:[%s1752 + $0x54] sm:$0xf]
      %v1768 = vld [vmem:[%s1752 + $0x58] sm:$0xf]
      %v1769 = vld [vmem:[%s1752 + $0x60] sm:$0xf]
      %v1770 = vld [vmem:[%s1752 + $0x64] sm:$0xf]
      %v1771 = vld [vmem:[%s1752 + $0x6c] sm:$0xf]
      %v1772 = vld [vmem:[%s1752 + $0x70] sm:$0xf]
      %v1773 = vld [vmem:[%s1752 + $0x78] sm:$0xf]
      %v1774 = vld [vmem:[%s1752 + $0x7c] sm:$0xf]
      %v1775 = vld [vmem:[%s1752 + $0x84] sm:$0xf]
      %v1776 = vld [vmem:[%s1752 + $0x88] sm:$0xf]
      %v1777 = vld [vmem:[%s1752 + $0x90] sm:$0xf]
      %v1778 = vld [vmem:[%s1752 + $0x94] sm:$0xf]
      %v1779 = vld [vmem:[%s1752 + $0x9c] sm:$0xf]
      %v1780 = vld [vmem:[%s1752 + $0xa0] sm:$0xf]
      %v1781 = vld [vmem:[%s1752 + $0xa8] sm:$0xf]
      %v1782 = vld [vmem:[%s1752 + $0xac] sm:$0xf]
      %v1783 = vld [vmem:[%s1752 + $0xb4] sm:$0xf]
      %v1784 = vld [vmem:[%s1752 + $0xb8] sm:$0xf]
      %v1785 = vld [vmem:[%s1 + $0xc0] sm:$0xf]
      %v1786 = vld [vmem:[%s1 + $0xc4] sm:$0xf]
      %v1787 = vld [vmem:[%s1 + $0xc8] sm:$0xf]
      %v1788 = vld [vmem:[%s1 + $0xcc] sm:$0xf]
      %v1789 = vld [vmem:[%s1 + $0xd0] sm:$0xf]
      %v1790 = vld [vmem:[%s1 + $0xd4] sm:$0xf]
      %v1791 = vld [vmem:[%s1 + $0xd8] sm:$0xf]
      %v1792 = vld [vmem:[%s1 + $0xdc] sm:$0xf]
      %v1793 = vld [vmem:[%s1 + $0xe0] sm:$0xf]
      %v1794 = vld [vmem:[%s1 + $0xe4] sm:$0xf]
      %v1795 = vld [vmem:[%s1 + $0xe8] sm:$0xf]
      %v1796 = vld [vmem:[%s1 + $0xec] sm:$0xf]
      %v1797 = vld [vmem:[%s1 + $0xf0] sm:$0xf]
      %v1798 = vld [vmem:[%s1 + $0xf4] sm:$0xf]
      %v1799 = vld [vmem:[%s1 + $0xf8] sm:$0xf]
      %v1800 = vld [vmem:[%s1 + $0xfc] sm:$0xf]
      %v1833 = vunpack.c.l.b16 %v1753
      %v1834 = vunpack.c.l.b16 %v1754
      %v1835 = vunpack.c.l.b16 %v1755
      %v1836 = vunpack.c.l.b16 %v1756
      %v1837 = vunpack.c.l.b16 %v1757
      %v1838 = vunpack.c.l.b16 %v1758
      %v1839 = vunpack.c.l.b16 %v1759
      %v1840 = vunpack.c.l.b16 %v1760
      %v1841 = vunpack.c.l.b16 %v1761
      %v1842 = vunpack.c.l.b16 %v1762
      %v1843 = vunpack.c.l.b16 %v1763
      %v1844 = vunpack.c.l.b16 %v1764
      %v1845 = vunpack.c.l.b16 %v1765
      %v1846 = vunpack.c.l.b16 %v1766
      %v1847 = vunpack.c.l.b16 %v1767
      %v1848 = vunpack.c.l.b16 %v1768
      %v1849 = vunpack.c.l.b16 %v1769
      %v1850 = vunpack.c.l.b16 %v1770
      %v1851 = vunpack.c.l.b16 %v1771
      %v1852 = vunpack.c.l.b16 %v1772
      %v1853 = vunpack.c.l.b16 %v1773
      %v1854 = vunpack.c.l.b16 %v1774
      %v1855 = vunpack.c.l.b16 %v1775
      %v1856 = vunpack.c.l.b16 %v1776
      %v1857 = vunpack.c.l.b16 %v1777
      %v1858 = vunpack.c.l.b16 %v1778
      %v1859 = vunpack.c.l.b16 %v1779
      %v1860 = vunpack.c.l.b16 %v1780
      %v1861 = vunpack.c.l.b16 %v1781
      %v1862 = vunpack.c.l.b16 %v1782
      %v1863 = vunpack.c.l.b16 %v1783
      %v1864 = vunpack.c.l.b16 %v1784
      %v1865 = vpack.c.b16 %v1834, %v1833
      %v1866 = vpack.c.b16 %v1836, %v1835
      %v1867 = vpack.c.b16 %v1838, %v1837
      %v1868 = vpack.c.b16 %v1840, %v1839
      %v1869 = vpack.c.b16 %v1842, %v1841
      %v1870 = vpack.c.b16 %v1844, %v1843
      %v1871 = vpack.c.b16 %v1846, %v1845
      %v1872 = vpack.c.b16 %v1848, %v1847
      %v1873 = vpack.c.b16 %v1850, %v1849
      %v1874 = vpack.c.b16 %v1852, %v1851
      %v1875 = vpack.c.b16 %v1854, %v1853
      %v1876 = vpack.c.b16 %v1856, %v1855
      %v1877 = vpack.c.b16 %v1858, %v1857
      %v1878 = vpack.c.b16 %v1860, %v1859
      %v1879 = vpack.c.b16 %v1862, %v1861
      %v1880 = vpack.c.b16 %v1864, %v1863
      %v1913 = vunpack.c.l.b16 %v1785
      %v1914 = vunpack.c.l.b16 %v1786
      %v1915 = vunpack.c.l.b16 %v1787
      %v1916 = vunpack.c.l.b16 %v1788
      %v1917 = vunpack.c.l.b16 %v1789
      %v1918 = vunpack.c.l.b16 %v1790
      %v1919 = vunpack.c.l.b16 %v1791
      %v1920 = vunpack.c.l.b16 %v1792
      %v1921 = vunpack.c.l.b16 %v1793
      %v1922 = vunpack.c.l.b16 %v1794
      %v1923 = vunpack.c.l.b16 %v1795
      %v1924 = vunpack.c.l.b16 %v1796
      %v1925 = vunpack.c.l.b16 %v1797
      %v1926 = vunpack.c.l.b16 %v1798
      %v1927 = vunpack.c.l.b16 %v1799
      %v1928 = vunpack.c.l.b16 %v1800
      %v1929 = vpack.c.b16 %v1914, %v1913
      %v1930 = vpack.c.b16 %v1916, %v1915
      %v1931 = vpack.c.b16 %v1918, %v1917
      %v1932 = vpack.c.b16 %v1920, %v1919
      %v1933 = vpack.c.b16 %v1922, %v1921
      %v1934 = vpack.c.b16 %v1924, %v1923
      %v1935 = vpack.c.b16 %v1926, %v1925
      %v1936 = vpack.c.b16 %v1928, %v1927
      %1945 = vmatprep.subr.bf16.mxu0 0
      %1946 = vmatpush1.bf16.msra.mxu0 %v1929
      %1947 = vmatprep.subr.bf16.mxu0 0
      %1948 = vmatpush1.bf16.msra.mxu0 %v1930
      %1949 = vmatprep.subr.bf16.mxu0 0
      %1950 = vmatpush1.bf16.msra.mxu0 %v1931
      %1951 = vmatprep.subr.bf16.mxu0 0
      %1952 = vmatpush1.bf16.msra.mxu0 %v1932
      %1953 = vmatprep.subr.bf16.mxu0 0
      %1954 = vmatpush1.bf16.msra.mxu0 %v1933
      %1955 = vmatprep.subr.bf16.mxu0 0
      %1956 = vmatpush1.bf16.msra.mxu0 %v1934
      %1957 = vmatprep.subr.bf16.mxu0 0
      %1958 = vmatpush1.bf16.msra.mxu0 %v1935
      %1959 = vmatprep.subr.bf16.mxu0 0
      %1960 = vmatpush1.bf16.msra.mxu0 %v1936
      %1961 = vmatprep.subr.bf16.mxu0 0
      %1962 = vmatpush1.bf16.msra.mxu0 0
      %1963 = vmatprep.subr.bf16.mxu0 0
      %1964 = vmatpush1.bf16.msra.mxu0 0
      %1965 = vmatprep.subr.bf16.mxu0 0
      %1966 = vmatpush1.bf16.msra.mxu0 0
      %1967 = vmatprep.subr.bf16.mxu0 0
      %1968 = vmatpush1.bf16.msra.mxu0 0
      %1969 = vmatprep.subr.bf16.mxu0 0
      %1970 = vmatpush1.bf16.msra.mxu0 0
      %1971 = vmatprep.subr.bf16.mxu0 0
      %1972 = vmatpush1.bf16.msra.mxu0 0
      %1973 = vmatprep.subr.bf16.mxu0 0
      %1974 = vmatpush1.bf16.msra.mxu0 0
      %1975 = vmatprep.subr.bf16.mxu0 0
      %1976 = vmatpush1.bf16.msra.mxu0 0
      %1977 = vmatprep.mubr.bf16.mxu0 0
      %1978 = vmatmul.mubr.bf16.gmra.mrb[0].mxu0 %v1865
      %v1979 = vpop.f32.mrb[0].mxu0
      %v1980 = vadd.f32 0.0, %v1979
      %v1981 = vpop.f32.mrb[0].mxu0
      %v1982 = vpop.f32.mrb[0].mxu0
      %v1983 = vadd.f32 0.0, %v1982
      %v1984 = vpop.f32.mrb[0].mxu0
      %1985 = vmatprep.mubr.bf16.mxu0 0
      %1986 = vmatmul.mubr.bf16.gmra.mrb[0].mxu0 %v1866
      %v1987 = vpop.f32.mrb[0].mxu0
      %v1988 = vadd.f32 0.0, %v1987
      %v1989 = vpop.f32.mrb[0].mxu0
      %v1990 = vpop.f32.mrb[0].mxu0
      %v1991 = vadd.f32 0.0, %v1990
      %v1992 = vpop.f32.mrb[0].mxu0
      %1993 = vmatprep.mubr.bf16.mxu0 0
      %1994 = vmatmul.mubr.bf16.gmra.mrb[0].mxu0 %v1867
      %v1995 = vpop.f32.mrb[0].mxu0
      %v1996 = vadd.f32 0.0, %v1995
      %v1997 = vpop.f32.mrb[0].mxu0
      %v1998 = vpop.f32.mrb[0].mxu0
      %v1999 = vadd.f32 0.0, %v1998
      %v2000 = vpop.f32.mrb[0].mxu0
      %2001 = vmatprep.mubr.bf16.mxu0 0
      %2002 = vmatmul.mubr.bf16.gmra.mrb[0].mxu0 %v1868
      %v2003 = vpop.f32.mrb[0].mxu0
      %v2004 = vadd.f32 0.0, %v2003
      %v2005 = vpop.f32.mrb[0].mxu0
      %v2006 = vpop.f32.mrb[0].mxu0
      %v2007 = vadd.f32 0.0, %v2006
      %v2008 = vpop.f32.mrb[0].mxu0
      %2009 = vmatprep.mubr.bf16.mxu0 0
      %2010 = vmatmul.mubr.bf16.gmra.mrb[0].mxu0 %v1869
      %v2011 = vpop.f32.mrb[0].mxu0
      %v2012 = vadd.f32 0.0, %v2011
      %v2013 = vpop.f32.mrb[0].mxu0
      %v2014 = vpop.f32.mrb[0].mxu0
      %v2015 = vadd.f32 0.0, %v2014
      %v2016 = vpop.f32.mrb[0].mxu0
      %2017 = vmatprep.mubr.bf16.mxu0 0
      %2018 = vmatmul.mubr.bf16.gmra.mrb[0].mxu0 %v1870
      %v2019 = vpop.f32.mrb[0].mxu0
      %v2020 = vadd.f32 0.0, %v2019
      %v2021 = vpop.f32.mrb[0].mxu0
      %v2022 = vpop.f32.mrb[0].mxu0
      %v2023 = vadd.f32 0.0, %v2022
      %v2024 = vpop.f32.mrb[0].mxu0
      %2025 = vmatprep.mubr.bf16.mxu0 0
      %2026 = vmatmul.mubr.bf16.gmra.mrb[0].mxu0 %v1871
      %v2027 = vpop.f32.mrb[0].mxu0
      %v2028 = vadd.f32 0.0, %v2027
      %v2029 = vpop.f32.mrb[0].mxu0
      %v2030 = vpop.f32.mrb[0].mxu0
      %v2031 = vadd.f32 0.0, %v2030
      %v2032 = vpop.f32.mrb[0].mxu0
      %2033 = vmatprep.mubr.bf16.mxu0 0
      %2034 = vmatmul.mubr.bf16.gmra.mrb[0].mxu0 %v1872
      %v2035 = vpop.f32.mrb[0].mxu0
      %v2036 = vadd.f32 0.0, %v2035
      %v2037 = vpop.f32.mrb[0].mxu0
      %v2038 = vpop.f32.mrb[0].mxu0
      %v2039 = vadd.f32 0.0, %v2038
      %v2040 = vpop.f32.mrb[0].mxu0
      %2041 = vmatprep.mubr.bf16.mxu0 0
      %2042 = vmatmul.mubr.bf16.gmra.mrb[0].mxu0 %v1873
      %v2043 = vpop.f32.mrb[0].mxu0
      %v2044 = vadd.f32 0.0, %v2043
      %v2045 = vpop.f32.mrb[0].mxu0
      %v2046 = vpop.f32.mrb[0].mxu0
      %v2047 = vadd.f32 0.0, %v2046
      %v2048 = vpop.f32.mrb[0].mxu0
      %2049 = vmatprep.mubr.bf16.mxu0 0
      %2050 = vmatmul.mubr.bf16.gmra.mrb[0].mxu0 %v1874
      %v2051 = vpop.f32.mrb[0].mxu0
      %v2052 = vadd.f32 0.0, %v2051
      %v2053 = vpop.f32.mrb[0].mxu0
      %v2054 = vpop.f32.mrb[0].mxu0
      %v2055 = vadd.f32 0.0, %v2054
      %v2056 = vpop.f32.mrb[0].mxu0
      %2057 = vmatprep.mubr.bf16.mxu0 0
      %2058 = vmatmul.mubr.bf16.gmra.mrb[0].mxu0 %v1875
      %v2059 = vpop.f32.mrb[0].mxu0
      %v2060 = vadd.f32 0.0, %v2059
      %v2061 = vpop.f32.mrb[0].mxu0
      %v2062 = vpop.f32.mrb[0].mxu0
      %v2063 = vadd.f32 0.0, %v2062
      %v2064 = vpop.f32.mrb[0].mxu0
      %2065 = vmatprep.mubr.bf16.mxu0 0
      %2066 = vmatmul.mubr.bf16.gmra.mrb[0].mxu0 %v1876
      %v2067 = vpop.f32.mrb[0].mxu0
      %v2068 = vadd.f32 0.0, %v2067
      %v2069 = vpop.f32.mrb[0].mxu0
      %v2070 = vpop.f32.mrb[0].mxu0
      %v2071 = vadd.f32 0.0, %v2070
      %v2072 = vpop.f32.mrb[0].mxu0
      %2073 = vmatprep.mubr.bf16.mxu0 0
      %2074 = vmatmul.mubr.bf16.gmra.mrb[0].mxu0 %v1877
      %v2075 = vpop.f32.mrb[0].mxu0
      %v2076 = vadd.f32 0.0, %v2075
      %v2077 = vpop.f32.mrb[0].mxu0
      %v2078 = vpop.f32.mrb[0].mxu0
      %v2079 = vadd.f32 0.0, %v2078
      %v2080 = vpop.f32.mrb[0].mxu0
      %2081 = vmatprep.mubr.bf16.mxu0 0
      %2082 = vmatmul.mubr.bf16.gmra.mrb[0].mxu0 %v1878
      %v2083 = vpop.f32.mrb[0].mxu0
      %v2084 = vadd.f32 0.0, %v2083
      %v2085 = vpop.f32.mrb[0].mxu0
      %v2086 = vpop.f32.mrb[0].mxu0
      %v2087 = vadd.f32 0.0, %v2086
      %v2088 = vpop.f32.mrb[0].mxu0
      %2089 = vmatprep.mubr.bf16.mxu0 0
      %2090 = vmatmul.mubr.bf16.gmra.mrb[0].mxu0 %v1879
      %v2091 = vpop.f32.mrb[0].mxu0
      %v2092 = vadd.f32 0.0, %v2091
      %v2093 = vpop.f32.mrb[0].mxu0
      %v2094 = vpop.f32.mrb[0].mxu0
      %v2095 = vadd.f32 0.0, %v2094
      %v2096 = vpop.f32.mrb[0].mxu0
      %2097 = vmatprep.mubr.bf16.mxu0 0
      %2098 = vmatmul.mubr.bf16.gmra.mrb[0].mxu0 %v1880
      %v2099 = vpop.f32.mrb[0].mxu0
      %v2100 = vadd.f32 0.0, %v2099
      %v2101 = vpop.f32.mrb[0].mxu0
      %v2102 = vpop.f32.mrb[0].mxu0
      %v2103 = vadd.f32 0.0, %v2102
      %v2104 = vpop.f32.mrb[0].mxu0
      %2105 = vdwg.mxu0
      %v2106 = vadd.f32 %v1717, %v1980
      %v2107 = vadd.f32 %v1718, %v1983
      %v2108 = vadd.f32 %v1719, %v1988
      %v2109 = vadd.f32 %v1720, %v1991
      %v2110 = vadd.f32 %v1721, %v1996
      %v2111 = vadd.f32 %v1722, %v1999
      %v2112 = vadd.f32 %v1723, %v2004
      %v2113 = vadd.f32 %v1724, %v2007
      %v2114 = vadd.f32 %v1725, %v2012
      %v2115 = vadd.f32 %v1726, %v2015
      %v2116 = vadd.f32 %v1727, %v2020
      %v2117 = vadd.f32 %v1728, %v2023
      %v2118 = vadd.f32 %v1729, %v2028
      %v2119 = vadd.f32 %v1730, %v2031
      %v2120 = vadd.f32 %v1731, %v2036
      %v2121 = vadd.f32 %v1732, %v2039
      %v2122 = vadd.f32 %v1733, %v2044
      %v2123 = vadd.f32 %v1734, %v2047
      %v2124 = vadd.f32 %v1735, %v2052
      %v2125 = vadd.f32 %v1736, %v2055
      %v2126 = vadd.f32 %v1737, %v2060
      %v2127 = vadd.f32 %v1738, %v2063
      %v2128 = vadd.f32 %v1739, %v2068
      %v2129 = vadd.f32 %v1740, %v2071
      %v2130 = vadd.f32 %v1741, %v2076
      %v2131 = vadd.f32 %v1742, %v2079
      %v2132 = vadd.f32 %v1743, %v2084
      %v2133 = vadd.f32 %v1744, %v2087
      %v2134 = vadd.f32 %v1745, %v2092
      %v2135 = vadd.f32 %v1746, %v2095
      %v2136 = vadd.f32 %v1747, %v2100
      %v2137 = vadd.f32 %v1748, %v2103
      %v2138 = vld [vmem:[%s1752] sm:$0xf]
      %v2139 = vld [vmem:[%s1752 + $0x4] sm:$0xf]
      %v2140 = vld [vmem:[%s1752 + $0x8] sm:$0x1]
      %v2141 = vld [vmem:[%s1752 + $0xc] sm:$0xf]
      %v2142 = vld [vmem:[%s1752 + $0x10] sm:$0xf]
      %v2143 = vld [vmem:[%s1752 + $0x14] sm:$0x1]
      %v2144 = vld [vmem:[%s1752 + $0x18] sm:$0xf]
      %v2145 = vld [vmem:[%s1752 + $0x1c] sm:$0xf]
      %v2146 = vld [vmem:[%s1752 + $0x20] sm:$0x1]
      %v2147 = vld [vmem:[%s1752 + $0x24] sm:$0xf]
      %v2148 = vld [vmem:[%s1752 + $0x28] sm:$0xf]
      %v2149 = vld [vmem:[%s1752 + $0x2c] sm:$0x1]
      %v2150 = vld [vmem:[%s1752 + $0x30] sm:$0xf]
      %v2151 = vld [vmem:[%s1752 + $0x34] sm:$0xf]
      %v2152 = vld [vmem:[%s1752 + $0x38] sm:$0x1]
      %v2153 = vld [vmem:[%s1752 + $0x3c] sm:$0xf]
      %v2154 = vld [vmem:[%s1752 + $0x40] sm:$0xf]
      %v2155 = vld [vmem:[%s1752 + $0x44] sm:$0x1]
      %v2156 = vld [vmem:[%s1752 + $0x48] sm:$0xf]
      %v2157 = vld [vmem:[%s1752 + $0x4c] sm:$0xf]
      %v2158 = vld [vmem:[%s1752 + $0x50] sm:$0x1]
      %v2159 = vld [vmem:[%s1752 + $0x54] sm:$0xf]
      %v2160 = vld [vmem:[%s1752 + $0x58] sm:$0xf]
      %v2161 = vld [vmem:[%s1752 + $0x5c] sm:$0x1]
      %v2162 = vld [vmem:[%s1752 + $0x60] sm:$0xf]
      %v2163 = vld [vmem:[%s1752 + $0x64] sm:$0xf]
      %v2164 = vld [vmem:[%s1752 + $0x68] sm:$0x1]
      %v2165 = vld [vmem:[%s1752 + $0x6c] sm:$0xf]
      %v2166 = vld [vmem:[%s1752 + $0x70] sm:$0xf]
      %v2167 = vld [vmem:[%s1752 + $0x74] sm:$0x1]
      %v2168 = vld [vmem:[%s1752 + $0x78] sm:$0xf]
      %v2169 = vld [vmem:[%s1752 + $0x7c] sm:$0xf]
      %v2170 = vld [vmem:[%s1752 + $0x80] sm:$0x1]
      %v2171 = vld [vmem:[%s1752 + $0x84] sm:$0xf]
      %v2172 = vld [vmem:[%s1752 + $0x88] sm:$0xf]
      %v2173 = vld [vmem:[%s1752 + $0x8c] sm:$0x1]
      %v2174 = vld [vmem:[%s1752 + $0x90] sm:$0xf]
      %v2175 = vld [vmem:[%s1752 + $0x94] sm:$0xf]
      %v2176 = vld [vmem:[%s1752 + $0x98] sm:$0x1]
      %v2177 = vld [vmem:[%s1752 + $0x9c] sm:$0xf]
      %v2178 = vld [vmem:[%s1752 + $0xa0] sm:$0xf]
      %v2179 = vld [vmem:[%s1752 + $0xa4] sm:$0x1]
      %v2180 = vld [vmem:[%s1752 + $0xa8] sm:$0xf]
      %v2181 = vld [vmem:[%s1752 + $0xac] sm:$0xf]
      %v2182 = vld [vmem:[%s1752 + $0xb0] sm:$0x1]
      %v2183 = vld [vmem:[%s1752 + $0xb4] sm:$0xf]
      %v2184 = vld [vmem:[%s1752 + $0xb8] sm:$0xf]
      %v2185 = vld [vmem:[%s1752 + $0xbc] sm:$0x1]
      %v2187 = vshrl.u32 %v2138, 16
      %v2189 = vrot.slane %v2187, 4
      %v2190 = vshll.u32 %v2138, 16
      %v2192 = vrot.slane %v2190, 5
      %v2193 = vor.u32 %v2189, %v2192
      %v2194 = vrot.slane %v2193, 4
      %v2196 = vshll.u32 %v2139, 16
      %v2198 = vrot.slane %v2196, 5
      %v2199 = vsel %vm286, %v2194, %v2198
      %v2200 = vshrl.u32 %v2139, 16
      %v2202 = vrot.slane %v2200, 4
      %v2203 = vor.u32 %v2202, %v2198
      %v2204 = vrot.slane %v2203, 4
      %v2206 = vshll.u32 %v2140, 16
      %v2208 = vrot.slane %v2206, 5
      %v2209 = vsel %vm286, %v2204, %v2208
      %v2211 = vshrl.u32 %v2141, 16
      %v2213 = vrot.slane %v2211, 4
      %v2214 = vshll.u32 %v2141, 16
      %v2216 = vrot.slane %v2214, 5
      %v2217 = vor.u32 %v2213, %v2216
      %v2218 = vrot.slane %v2217, 4
      %v2220 = vshll.u32 %v2142, 16
      %v2222 = vrot.slane %v2220, 5
      %v2223 = vsel %vm286, %v2218, %v2222
      %v2224 = vshrl.u32 %v2142, 16
      %v2226 = vrot.slane %v2224, 4
      %v2227 = vor.u32 %v2226, %v2222
      %v2228 = vrot.slane %v2227, 4
      %v2230 = vshll.u32 %v2143, 16
      %v2232 = vrot.slane %v2230, 5
      %v2233 = vsel %vm286, %v2228, %v2232
      %v2235 = vshrl.u32 %v2144, 16
      %v2237 = vrot.slane %v2235, 4
      %v2238 = vshll.u32 %v2144, 16
      %v2240 = vrot.slane %v2238, 5
      %v2241 = vor.u32 %v2237, %v2240
      %v2242 = vrot.slane %v2241, 4
      %v2244 = vshll.u32 %v2145, 16
      %v2246 = vrot.slane %v2244, 5
      %v2247 = vsel %vm286, %v2242, %v2246
      %v2248 = vshrl.u32 %v2145, 16
      %v2250 = vrot.slane %v2248, 4
      %v2251 = vor.u32 %v2250, %v2246
      %v2252 = vrot.slane %v2251, 4
      %v2254 = vshll.u32 %v2146, 16
      %v2256 = vrot.slane %v2254, 5
      %v2257 = vsel %vm286, %v2252, %v2256
      %v2259 = vshrl.u32 %v2147, 16
      %v2261 = vrot.slane %v2259, 4
      %v2262 = vshll.u32 %v2147, 16
      %v2264 = vrot.slane %v2262, 5
      %v2265 = vor.u32 %v2261, %v2264
      %v2266 = vrot.slane %v2265, 4
      %v2268 = vshll.u32 %v2148, 16
      %v2270 = vrot.slane %v2268, 5
      %v2271 = vsel %vm286, %v2266, %v2270
      %v2272 = vshrl.u32 %v2148, 16
      %v2274 = vrot.slane %v2272, 4
      %v2275 = vor.u32 %v2274, %v2270
      %v2276 = vrot.slane %v2275, 4
      %v2278 = vshll.u32 %v2149, 16
      %v2280 = vrot.slane %v2278, 5
      %v2281 = vsel %vm286, %v2276, %v2280
      %v2283 = vshrl.u32 %v2150, 16
      %v2285 = vrot.slane %v2283, 4
      %v2286 = vshll.u32 %v2150, 16
      %v2288 = vrot.slane %v2286, 5
      %v2289 = vor.u32 %v2285, %v2288
      %v2290 = vrot.slane %v2289, 4
      %v2292 = vshll.u32 %v2151, 16
      %v2294 = vrot.slane %v2292, 5
      %v2295 = vsel %vm286, %v2290, %v2294
      %v2296 = vshrl.u32 %v2151, 16
      %v2298 = vrot.slane %v2296, 4
      %v2299 = vor.u32 %v2298, %v2294
      %v2300 = vrot.slane %v2299, 4
      %v2302 = vshll.u32 %v2152, 16
      %v2304 = vrot.slane %v2302, 5
      %v2305 = vsel %vm286, %v2300, %v2304
      %v2307 = vshrl.u32 %v2153, 16
      %v2309 = vrot.slane %v2307, 4
      %v2310 = vshll.u32 %v2153, 16
      %v2312 = vrot.slane %v2310, 5
      %v2313 = vor.u32 %v2309, %v2312
      %v2314 = vrot.slane %v2313, 4
      %v2316 = vshll.u32 %v2154, 16
      %v2318 = vrot.slane %v2316, 5
      %v2319 = vsel %vm286, %v2314, %v2318
      %v2320 = vshrl.u32 %v2154, 16
      %v2322 = vrot.slane %v2320, 4
      %v2323 = vor.u32 %v2322, %v2318
      %v2324 = vrot.slane %v2323, 4
      %v2326 = vshll.u32 %v2155, 16
      %v2328 = vrot.slane %v2326, 5
      %v2329 = vsel %vm286, %v2324, %v2328
      %v2331 = vshrl.u32 %v2156, 16
      %v2333 = vrot.slane %v2331, 4
      %v2334 = vshll.u32 %v2156, 16
      %v2336 = vrot.slane %v2334, 5
      %v2337 = vor.u32 %v2333, %v2336
      %v2338 = vrot.slane %v2337, 4
      %v2340 = vshll.u32 %v2157, 16
      %v2342 = vrot.slane %v2340, 5
      %v2343 = vsel %vm286, %v2338, %v2342
      %v2344 = vshrl.u32 %v2157, 16
      %v2346 = vrot.slane %v2344, 4
      %v2347 = vor.u32 %v2346, %v2342
      %v2348 = vrot.slane %v2347, 4
      %v2350 = vshll.u32 %v2158, 16
      %v2352 = vrot.slane %v2350, 5
      %v2353 = vsel %vm286, %v2348, %v2352
      %v2355 = vshrl.u32 %v2159, 16
      %v2357 = vrot.slane %v2355, 4
      %v2358 = vshll.u32 %v2159, 16
      %v2360 = vrot.slane %v2358, 5
      %v2361 = vor.u32 %v2357, %v2360
      %v2362 = vrot.slane %v2361, 4
      %v2364 = vshll.u32 %v2160, 16
      %v2366 = vrot.slane %v2364, 5
      %v2367 = vsel %vm286, %v2362, %v2366
      %v2368 = vshrl.u32 %v2160, 16
      %v2370 = vrot.slane %v2368, 4
      %v2371 = vor.u32 %v2370, %v2366
      %v2372 = vrot.slane %v2371, 4
      %v2374 = vshll.u32 %v2161, 16
      %v2376 = vrot.slane %v2374, 5
      %v2377 = vsel %vm286, %v2372, %v2376
      %v2379 = vshrl.u32 %v2162, 16
      %v2381 = vrot.slane %v2379, 4
      %v2382 = vshll.u32 %v2162, 16
      %v2384 = vrot.slane %v2382, 5
      %v2385 = vor.u32 %v2381, %v2384
      %v2386 = vrot.slane %v2385, 4
      %v2388 = vshll.u32 %v2163, 16
      %v2390 = vrot.slane %v2388, 5
      %v2391 = vsel %vm286, %v2386, %v2390
      %v2392 = vshrl.u32 %v2163, 16
      %v2394 = vrot.slane %v2392, 4
      %v2395 = vor.u32 %v2394, %v2390
      %v2396 = vrot.slane %v2395, 4
      %v2398 = vshll.u32 %v2164, 16
      %v2400 = vrot.slane %v2398, 5
      %v2401 = vsel %vm286, %v2396, %v2400
      %v2403 = vshrl.u32 %v2165, 16
      %v2405 = vrot.slane %v2403, 4
      %v2406 = vshll.u32 %v2165, 16
      %v2408 = vrot.slane %v2406, 5
      %v2409 = vor.u32 %v2405, %v2408
      %v2410 = vrot.slane %v2409, 4
      %v2412 = vshll.u32 %v2166, 16
      %v2414 = vrot.slane %v2412, 5
      %v2415 = vsel %vm286, %v2410, %v2414
      %v2416 = vshrl.u32 %v2166, 16
      %v2418 = vrot.slane %v2416, 4
      %v2419 = vor.u32 %v2418, %v2414
      %v2420 = vrot.slane %v2419, 4
      %v2422 = vshll.u32 %v2167, 16
      %v2424 = vrot.slane %v2422, 5
      %v2425 = vsel %vm286, %v2420, %v2424
      %v2427 = vshrl.u32 %v2168, 16
      %v2429 = vrot.slane %v2427, 4
      %v2430 = vshll.u32 %v2168, 16
      %v2432 = vrot.slane %v2430, 5
      %v2433 = vor.u32 %v2429, %v2432
      %v2434 = vrot.slane %v2433, 4
      %v2436 = vshll.u32 %v2169, 16
      %v2438 = vrot.slane %v2436, 5
      %v2439 = vsel %vm286, %v2434, %v2438
      %v2440 = vshrl.u32 %v2169, 16
      %v2442 = vrot.slane %v2440, 4
      %v2443 = vor.u32 %v2442, %v2438
      %v2444 = vrot.slane %v2443, 4
      %v2446 = vshll.u32 %v2170, 16
      %v2448 = vrot.slane %v2446, 5
      %v2449 = vsel %vm286, %v2444, %v2448
      %v2451 = vshrl.u32 %v2171, 16
      %v2453 = vrot.slane %v2451, 4
      %v2454 = vshll.u32 %v2171, 16
      %v2456 = vrot.slane %v2454, 5
      %v2457 = vor.u32 %v2453, %v2456
      %v2458 = vrot.slane %v2457, 4
      %v2460 = vshll.u32 %v2172, 16
      %v2462 = vrot.slane %v2460, 5
      %v2463 = vsel %vm286, %v2458, %v2462
      %v2464 = vshrl.u32 %v2172, 16
      %v2466 = vrot.slane %v2464, 4
      %v2467 = vor.u32 %v2466, %v2462
      %v2468 = vrot.slane %v2467, 4
      %v2470 = vshll.u32 %v2173, 16
      %v2472 = vrot.slane %v2470, 5
      %v2473 = vsel %vm286, %v2468, %v2472
      %v2475 = vshrl.u32 %v2174, 16
      %v2477 = vrot.slane %v2475, 4
      %v2478 = vshll.u32 %v2174, 16
      %v2480 = vrot.slane %v2478, 5
      %v2481 = vor.u32 %v2477, %v2480
      %v2482 = vrot.slane %v2481, 4
      %v2484 = vshll.u32 %v2175, 16
      %v2486 = vrot.slane %v2484, 5
      %v2487 = vsel %vm286, %v2482, %v2486
      %v2488 = vshrl.u32 %v2175, 16
      %v2490 = vrot.slane %v2488, 4
      %v2491 = vor.u32 %v2490, %v2486
      %v2492 = vrot.slane %v2491, 4
      %v2494 = vshll.u32 %v2176, 16
      %v2496 = vrot.slane %v2494, 5
      %v2497 = vsel %vm286, %v2492, %v2496
      %v2499 = vshrl.u32 %v2177, 16
      %v2501 = vrot.slane %v2499, 4
      %v2502 = vshll.u32 %v2177, 16
      %v2504 = vrot.slane %v2502, 5
      %v2505 = vor.u32 %v2501, %v2504
      %v2506 = vrot.slane %v2505, 4
      %v2508 = vshll.u32 %v2178, 16
      %v2510 = vrot.slane %v2508, 5
      %v2511 = vsel %vm286, %v2506, %v2510
      %v2512 = vshrl.u32 %v2178, 16
      %v2514 = vrot.slane %v2512, 4
      %v2515 = vor.u32 %v2514, %v2510
      %v2516 = vrot.slane %v2515, 4
      %v2518 = vshll.u32 %v2179, 16
      %v2520 = vrot.slane %v2518, 5
      %v2521 = vsel %vm286, %v2516, %v2520
      %v2523 = vshrl.u32 %v2180, 16
      %v2525 = vrot.slane %v2523, 4
      %v2526 = vshll.u32 %v2180, 16
      %v2528 = vrot.slane %v2526, 5
      %v2529 = vor.u32 %v2525, %v2528
      %v2530 = vrot.slane %v2529, 4
      %v2532 = vshll.u32 %v2181, 16
      %v2534 = vrot.slane %v2532, 5
      %v2535 = vsel %vm286, %v2530, %v2534
      %v2536 = vshrl.u32 %v2181, 16
      %v2538 = vrot.slane %v2536, 4
      %v2539 = vor.u32 %v2538, %v2534
      %v2540 = vrot.slane %v2539, 4
      %v2542 = vshll.u32 %v2182, 16
      %v2544 = vrot.slane %v2542, 5
      %v2545 = vsel %vm286, %v2540, %v2544
      %v2547 = vshrl.u32 %v2183, 16
      %v2549 = vrot.slane %v2547, 4
      %v2550 = vshll.u32 %v2183, 16
      %v2552 = vrot.slane %v2550, 5
      %v2553 = vor.u32 %v2549, %v2552
      %v2554 = vrot.slane %v2553, 4
      %v2556 = vshll.u32 %v2184, 16
      %v2558 = vrot.slane %v2556, 5
      %v2559 = vsel %vm286, %v2554, %v2558
      %v2560 = vshrl.u32 %v2184, 16
      %v2562 = vrot.slane %v2560, 4
      %v2563 = vor.u32 %v2562, %v2558
      %v2564 = vrot.slane %v2563, 4
      %v2566 = vshll.u32 %v2185, 16
      %v2568 = vrot.slane %v2566, 5
      %v2569 = vsel %vm286, %v2564, %v2568
      %v2570 = vld [vmem:[%s1 + $0x100] sm:$0xf]
      %v2571 = vld [vmem:[%s1 + $0x104] sm:$0xf]
      %v2572 = vld [vmem:[%s1 + $0x108] sm:$0xf]
      %v2573 = vld [vmem:[%s1 + $0x10c] sm:$0xf]
      %v2574 = vld [vmem:[%s1 + $0x110] sm:$0xf]
      %v2575 = vld [vmem:[%s1 + $0x114] sm:$0xf]
      %v2576 = vld [vmem:[%s1 + $0x118] sm:$0xf]
      %v2577 = vld [vmem:[%s1 + $0x11c] sm:$0xf]
      %v2578 = vld [vmem:[%s1 + $0x120] sm:$0xf]
      %v2579 = vld [vmem:[%s1 + $0x124] sm:$0xf]
      %v2580 = vld [vmem:[%s1 + $0x128] sm:$0xf]
      %v2581 = vld [vmem:[%s1 + $0x12c] sm:$0xf]
      %v2582 = vld [vmem:[%s1 + $0x130] sm:$0xf]
      %v2583 = vld [vmem:[%s1 + $0x134] sm:$0xf]
      %v2584 = vld [vmem:[%s1 + $0x138] sm:$0xf]
      %v2585 = vld [vmem:[%s1 + $0x13c] sm:$0xf]
      %v2586 = vunpack.c.l.b16 %v2199
      %v2587 = vunpack.c.l.b16 %v2209
      %v2588 = vunpack.c.l.b16 %v2223
      %v2589 = vunpack.c.l.b16 %v2233
      %v2590 = vunpack.c.l.b16 %v2247
      %v2591 = vunpack.c.l.b16 %v2257
      %v2592 = vunpack.c.l.b16 %v2271
      %v2593 = vunpack.c.l.b16 %v2281
      %v2594 = vunpack.c.l.b16 %v2295
      %v2595 = vunpack.c.l.b16 %v2305
      %v2596 = vunpack.c.l.b16 %v2319
      %v2597 = vunpack.c.l.b16 %v2329
      %v2598 = vunpack.c.l.b16 %v2343
      %v2599 = vunpack.c.l.b16 %v2353
      %v2600 = vunpack.c.l.b16 %v2367
      %v2601 = vunpack.c.l.b16 %v2377
      %v2602 = vunpack.c.l.b16 %v2391
      %v2603 = vunpack.c.l.b16 %v2401
      %v2604 = vunpack.c.l.b16 %v2415
      %v2605 = vunpack.c.l.b16 %v2425
      %v2606 = vunpack.c.l.b16 %v2439
      %v2607 = vunpack.c.l.b16 %v2449
      %v2608 = vunpack.c.l.b16 %v2463
      %v2609 = vunpack.c.l.b16 %v2473
      %v2610 = vunpack.c.l.b16 %v2487
      %v2611 = vunpack.c.l.b16 %v2497
      %v2612 = vunpack.c.l.b16 %v2511
      %v2613 = vunpack.c.l.b16 %v2521
      %v2614 = vunpack.c.l.b16 %v2535
      %v2615 = vunpack.c.l.b16 %v2545
      %v2616 = vunpack.c.l.b16 %v2559
      %v2617 = vunpack.c.l.b16 %v2569
      %v2618 = vpack.c.b16 %v2587, %v2586
      %v2619 = vpack.c.b16 %v2589, %v2588
      %v2620 = vpack.c.b16 %v2591, %v2590
      %v2621 = vpack.c.b16 %v2593, %v2592
      %v2622 = vpack.c.b16 %v2595, %v2594
      %v2623 = vpack.c.b16 %v2597, %v2596
      %v2624 = vpack.c.b16 %v2599, %v2598
      %v2625 = vpack.c.b16 %v2601, %v2600
      %v2626 = vpack.c.b16 %v2603, %v2602
      %v2627 = vpack.c.b16 %v2605, %v2604
      %v2628 = vpack.c.b16 %v2607, %v2606
      %v2629 = vpack.c.b16 %v2609, %v2608
      %v2630 = vpack.c.b16 %v2611, %v2610
      %v2631 = vpack.c.b16 %v2613, %v2612
      %v2632 = vpack.c.b16 %v2615, %v2614
      %v2633 = vpack.c.b16 %v2617, %v2616
      %v2666 = vunpack.c.l.b16 %v2570
      %v2667 = vunpack.c.l.b16 %v2571
      %v2668 = vunpack.c.l.b16 %v2572
      %v2669 = vunpack.c.l.b16 %v2573
      %v2670 = vunpack.c.l.b16 %v2574
      %v2671 = vunpack.c.l.b16 %v2575
      %v2672 = vunpack.c.l.b16 %v2576
      %v2673 = vunpack.c.l.b16 %v2577
      %v2674 = vunpack.c.l.b16 %v2578
      %v2675 = vunpack.c.l.b16 %v2579
      %v2676 = vunpack.c.l.b16 %v2580
      %v2677 = vunpack.c.l.b16 %v2581
      %v2678 = vunpack.c.l.b16 %v2582
      %v2679 = vunpack.c.l.b16 %v2583
      %v2680 = vunpack.c.l.b16 %v2584
      %v2681 = vunpack.c.l.b16 %v2585
      %v2682 = vpack.c.b16 %v2667, %v2666
      %v2683 = vpack.c.b16 %v2669, %v2668
      %v2684 = vpack.c.b16 %v2671, %v2670
      %v2685 = vpack.c.b16 %v2673, %v2672
      %v2686 = vpack.c.b16 %v2675, %v2674
      %v2687 = vpack.c.b16 %v2677, %v2676
      %v2688 = vpack.c.b16 %v2679, %v2678
      %v2689 = vpack.c.b16 %v2681, %v2680
      %2698 = vmatprep.subr.bf16.mxu0 0
      %2699 = vmatpush1.bf16.msra.mxu0 %v2682
      %2700 = vmatprep.subr.bf16.mxu0 0
      %2701 = vmatpush1.bf16.msra.mxu0 %v2683
      %2702 = vmatprep.subr.bf16.mxu0 0
      %2703 = vmatpush1.bf16.msra.mxu0 %v2684
      %2704 = vmatprep.subr.bf16.mxu0 0
      %2705 = vmatpush1.bf16.msra.mxu0 %v2685
      %2706 = vmatprep.subr.bf16.mxu0 0
      %2707 = vmatpush1.bf16.msra.mxu0 %v2686
      %2708 = vmatprep.subr.bf16.mxu0 0
      %2709 = vmatpush1.bf16.msra.mxu0 %v2687
      %2710 = vmatprep.subr.bf16.mxu0 0
      %2711 = vmatpush1.bf16.msra.mxu0 %v2688
      %2712 = vmatprep.subr.bf16.mxu0 0
      %2713 = vmatpush1.bf16.msra.mxu0 %v2689
      %2714 = vmatprep.subr.bf16.mxu0 0
      %2715 = vmatpush1.bf16.msra.mxu0 0
      %2716 = vmatprep.subr.bf16.mxu0 0
      %2717 = vmatpush1.bf16.msra.mxu0 0
      %2718 = vmatprep.subr.bf16.mxu0 0
      %2719 = vmatpush1.bf16.msra.mxu0 0
      %2720 = vmatprep.subr.bf16.mxu0 0
      %2721 = vmatpush1.bf16.msra.mxu0 0
      %2722 = vmatprep.subr.bf16.mxu0 0
      %2723 = vmatpush1.bf16.msra.mxu0 0
      %2724 = vmatprep.subr.bf16.mxu0 0
      %2725 = vmatpush1.bf16.msra.mxu0 0
      %2726 = vmatprep.subr.bf16.mxu0 0
      %2727 = vmatpush1.bf16.msra.mxu0 0
      %2728 = vmatprep.subr.bf16.mxu0 0
      %2729 = vmatpush1.bf16.msra.mxu0 0
      %2730 = vmatprep.mubr.bf16.mxu0 0
      %2731 = vmatmul.mubr.bf16.gmra.mrb[0].mxu0 %v2618
      %v2732 = vpop.f32.mrb[0].mxu0
      %v2733 = vadd.f32 0.0, %v2732
      %v2734 = vpop.f32.mrb[0].mxu0
      %v2735 = vpop.f32.mrb[0].mxu0
      %v2736 = vadd.f32 0.0, %v2735
      %v2737 = vpop.f32.mrb[0].mxu0
      %2738 = vmatprep.mubr.bf16.mxu0 0
      %2739 = vmatmul.mubr.bf16.gmra.mrb[0].mxu0 %v2619
      %v2740 = vpop.f32.mrb[0].mxu0
      %v2741 = vadd.f32 0.0, %v2740
      %v2742 = vpop.f32.mrb[0].mxu0
      %v2743 = vpop.f32.mrb[0].mxu0
      %v2744 = vadd.f32 0.0, %v2743
      %v2745 = vpop.f32.mrb[0].mxu0
      %2746 = vmatprep.mubr.bf16.mxu0 0
      %2747 = vmatmul.mubr.bf16.gmra.mrb[0].mxu0 %v2620
      %v2748 = vpop.f32.mrb[0].mxu0
      %v2749 = vadd.f32 0.0, %v2748
      %v2750 = vpop.f32.mrb[0].mxu0
      %v2751 = vpop.f32.mrb[0].mxu0
      %v2752 = vadd.f32 0.0, %v2751
      %v2753 = vpop.f32.mrb[0].mxu0
      %2754 = vmatprep.mubr.bf16.mxu0 0
      %2755 = vmatmul.mubr.bf16.gmra.mrb[0].mxu0 %v2621
      %v2756 = vpop.f32.mrb[0].mxu0
      %v2757 = vadd.f32 0.0, %v2756
      %v2758 = vpop.f32.mrb[0].mxu0
      %v2759 = vpop.f32.mrb[0].mxu0
      %v2760 = vadd.f32 0.0, %v2759
      %v2761 = vpop.f32.mrb[0].mxu0
      %2762 = vmatprep.mubr.bf16.mxu0 0
      %2763 = vmatmul.mubr.bf16.gmra.mrb[0].mxu0 %v2622
      %v2764 = vpop.f32.mrb[0].mxu0
      %v2765 = vadd.f32 0.0, %v2764
      %v2766 = vpop.f32.mrb[0].mxu0
      %v2767 = vpop.f32.mrb[0].mxu0
      %v2768 = vadd.f32 0.0, %v2767
      %v2769 = vpop.f32.mrb[0].mxu0
      %2770 = vmatprep.mubr.bf16.mxu0 0
      %2771 = vmatmul.mubr.bf16.gmra.mrb[0].mxu0 %v2623
      %v2772 = vpop.f32.mrb[0].mxu0
      %v2773 = vadd.f32 0.0, %v2772
      %v2774 = vpop.f32.mrb[0].mxu0
      %v2775 = vpop.f32.mrb[0].mxu0
      %v2776 = vadd.f32 0.0, %v2775
      %v2777 = vpop.f32.mrb[0].mxu0
      %2778 = vmatprep.mubr.bf16.mxu0 0
      %2779 = vmatmul.mubr.bf16.gmra.mrb[0].mxu0 %v2624
      %v2780 = vpop.f32.mrb[0].mxu0
      %v2781 = vadd.f32 0.0, %v2780
      %v2782 = vpop.f32.mrb[0].mxu0
      %v2783 = vpop.f32.mrb[0].mxu0
      %v2784 = vadd.f32 0.0, %v2783
      %v2785 = vpop.f32.mrb[0].mxu0
      %2786 = vmatprep.mubr.bf16.mxu0 0
      %2787 = vmatmul.mubr.bf16.gmra.mrb[0].mxu0 %v2625
      %v2788 = vpop.f32.mrb[0].mxu0
      %v2789 = vadd.f32 0.0, %v2788
      %v2790 = vpop.f32.mrb[0].mxu0
      %v2791 = vpop.f32.mrb[0].mxu0
      %v2792 = vadd.f32 0.0, %v2791
      %v2793 = vpop.f32.mrb[0].mxu0
      %2794 = vmatprep.mubr.bf16.mxu0 0
      %2795 = vmatmul.mubr.bf16.gmra.mrb[0].mxu0 %v2626
      %v2796 = vpop.f32.mrb[0].mxu0
      %v2797 = vadd.f32 0.0, %v2796
      %v2798 = vpop.f32.mrb[0].mxu0
      %v2799 = vpop.f32.mrb[0].mxu0
      %v2800 = vadd.f32 0.0, %v2799
      %v2801 = vpop.f32.mrb[0].mxu0
      %2802 = vmatprep.mubr.bf16.mxu0 0
      %2803 = vmatmul.mubr.bf16.gmra.mrb[0].mxu0 %v2627
      %v2804 = vpop.f32.mrb[0].mxu0
      %v2805 = vadd.f32 0.0, %v2804
      %v2806 = vpop.f32.mrb[0].mxu0
      %v2807 = vpop.f32.mrb[0].mxu0
      %v2808 = vadd.f32 0.0, %v2807
      %v2809 = vpop.f32.mrb[0].mxu0
      %2810 = vmatprep.mubr.bf16.mxu0 0
      %2811 = vmatmul.mubr.bf16.gmra.mrb[0].mxu0 %v2628
      %v2812 = vpop.f32.mrb[0].mxu0
      %v2813 = vadd.f32 0.0, %v2812
      %v2814 = vpop.f32.mrb[0].mxu0
      %v2815 = vpop.f32.mrb[0].mxu0
      %v2816 = vadd.f32 0.0, %v2815
      %v2817 = vpop.f32.mrb[0].mxu0
      %2818 = vmatprep.mubr.bf16.mxu0 0
      %2819 = vmatmul.mubr.bf16.gmra.mrb[0].mxu0 %v2629
      %v2820 = vpop.f32.mrb[0].mxu0
      %v2821 = vadd.f32 0.0, %v2820
      %v2822 = vpop.f32.mrb[0].mxu0
      %v2823 = vpop.f32.mrb[0].mxu0
      %v2824 = vadd.f32 0.0, %v2823
      %v2825 = vpop.f32.mrb[0].mxu0
      %2826 = vmatprep.mubr.bf16.mxu0 0
      %2827 = vmatmul.mubr.bf16.gmra.mrb[0].mxu0 %v2630
      %v2828 = vpop.f32.mrb[0].mxu0
      %v2829 = vadd.f32 0.0, %v2828
      %v2830 = vpop.f32.mrb[0].mxu0
      %v2831 = vpop.f32.mrb[0].mxu0
      %v2832 = vadd.f32 0.0, %v2831
      %v2833 = vpop.f32.mrb[0].mxu0
      %2834 = vmatprep.mubr.bf16.mxu0 0
      %2835 = vmatmul.mubr.bf16.gmra.mrb[0].mxu0 %v2631
      %v2836 = vpop.f32.mrb[0].mxu0
      %v2837 = vadd.f32 0.0, %v2836
      %v2838 = vpop.f32.mrb[0].mxu0
      %v2839 = vpop.f32.mrb[0].mxu0
      %v2840 = vadd.f32 0.0, %v2839
      %v2841 = vpop.f32.mrb[0].mxu0
      %2842 = vmatprep.mubr.bf16.mxu0 0
      %2843 = vmatmul.mubr.bf16.gmra.mrb[0].mxu0 %v2632
      %v2844 = vpop.f32.mrb[0].mxu0
      %v2845 = vadd.f32 0.0, %v2844
      %v2846 = vpop.f32.mrb[0].mxu0
      %v2847 = vpop.f32.mrb[0].mxu0
      %v2848 = vadd.f32 0.0, %v2847
      %v2849 = vpop.f32.mrb[0].mxu0
      %2850 = vmatprep.mubr.bf16.mxu0 0
      %2851 = vmatmul.mubr.bf16.gmra.mrb[0].mxu0 %v2633
      %v2852 = vpop.f32.mrb[0].mxu0
      %v2853 = vadd.f32 0.0, %v2852
      %v2854 = vpop.f32.mrb[0].mxu0
      %v2855 = vpop.f32.mrb[0].mxu0
      %v2856 = vadd.f32 0.0, %v2855
      %v2857 = vpop.f32.mrb[0].mxu0
      %2858 = vdwg.mxu0
      %v2859 = vadd.f32 %v2106, %v2733
      %v2860 = vadd.f32 %v2107, %v2736
      %v2861 = vadd.f32 %v2108, %v2741
      %v2862 = vadd.f32 %v2109, %v2744
      %v2863 = vadd.f32 %v2110, %v2749
      %v2864 = vadd.f32 %v2111, %v2752
      %v2865 = vadd.f32 %v2112, %v2757
      %v2866 = vadd.f32 %v2113, %v2760
      %v2867 = vadd.f32 %v2114, %v2765
      %v2868 = vadd.f32 %v2115, %v2768
      %v2869 = vadd.f32 %v2116, %v2773
      %v2870 = vadd.f32 %v2117, %v2776
      %v2871 = vadd.f32 %v2118, %v2781
      %v2872 = vadd.f32 %v2119, %v2784
      %v2873 = vadd.f32 %v2120, %v2789
      %v2874 = vadd.f32 %v2121, %v2792
      %v2875 = vadd.f32 %v2122, %v2797
      %v2876 = vadd.f32 %v2123, %v2800
      %v2877 = vadd.f32 %v2124, %v2805
      %v2878 = vadd.f32 %v2125, %v2808
      %v2879 = vadd.f32 %v2126, %v2813
      %v2880 = vadd.f32 %v2127, %v2816
      %v2881 = vadd.f32 %v2128, %v2821
      %v2882 = vadd.f32 %v2129, %v2824
      %v2883 = vadd.f32 %v2130, %v2829
      %v2884 = vadd.f32 %v2131, %v2832
      %v2885 = vadd.f32 %v2132, %v2837
      %v2886 = vadd.f32 %v2133, %v2840
      %v2887 = vadd.f32 %v2134, %v2845
      %v2888 = vadd.f32 %v2135, %v2848
      %v2889 = vadd.f32 %v2136, %v2853
      %v2890 = vadd.f32 %v2137, %v2856
      %v2891 = vld [vmem:[%s1752] sm:$0xe]
      %v2892 = vld [vmem:[%s1752 + $0xc] sm:$0xe]
      %v2893 = vld [vmem:[%s1752 + $0x18] sm:$0xe]
      %v2894 = vld [vmem:[%s1752 + $0x24] sm:$0xe]
      %v2895 = vld [vmem:[%s1752 + $0x30] sm:$0xe]
      %v2896 = vld [vmem:[%s1752 + $0x3c] sm:$0xe]
      %v2897 = vld [vmem:[%s1752 + $0x48] sm:$0xe]
      %v2898 = vld [vmem:[%s1752 + $0x54] sm:$0xe]
      %v2899 = vld [vmem:[%s1752 + $0x60] sm:$0xe]
      %v2900 = vld [vmem:[%s1752 + $0x6c] sm:$0xe]
      %v2901 = vld [vmem:[%s1752 + $0x78] sm:$0xe]
      %v2902 = vld [vmem:[%s1752 + $0x84] sm:$0xe]
      %v2903 = vld [vmem:[%s1752 + $0x90] sm:$0xe]
      %v2904 = vld [vmem:[%s1752 + $0x9c] sm:$0xe]
      %v2905 = vld [vmem:[%s1752 + $0xa8] sm:$0xe]
      %v2906 = vld [vmem:[%s1752 + $0xb4] sm:$0xe]
      %v2955 = vrot.slane %v2891, 5
      %v2956 = vrot.slane %v2955, 4
      %v2957 = vrot.slane %v2139, 5
      %v2958 = vsel %vm1315, %v2956, %v2957
      %v2959 = vrot.slane %v2957, 4
      %v2960 = vrot.slane %v2140, 5
      %v2961 = vsel %vm1315, %v2959, %v2960
      %v2962 = vrot.slane %v2892, 5
      %v2963 = vrot.slane %v2962, 4
      %v2964 = vrot.slane %v2142, 5
      %v2965 = vsel %vm1315, %v2963, %v2964
      %v2966 = vrot.slane %v2964, 4
      %v2967 = vrot.slane %v2143, 5
      %v2968 = vsel %vm1315, %v2966, %v2967
      %v2969 = vrot.slane %v2893, 5
      %v2970 = vrot.slane %v2969, 4
      %v2971 = vrot.slane %v2145, 5
      %v2972 = vsel %vm1315, %v2970, %v2971
      %v2973 = vrot.slane %v2971, 4
      %v2974 = vrot.slane %v2146, 5
      %v2975 = vsel %vm1315, %v2973, %v2974
      %v2976 = vrot.slane %v2894, 5
      %v2977 = vrot.slane %v2976, 4
      %v2978 = vrot.slane %v2148, 5
      %v2979 = vsel %vm1315, %v2977, %v2978
      %v2980 = vrot.slane %v2978, 4
      %v2981 = vrot.slane %v2149, 5
      %v2982 = vsel %vm1315, %v2980, %v2981
      %v2983 = vrot.slane %v2895, 5
      %v2984 = vrot.slane %v2983, 4
      %v2985 = vrot.slane %v2151, 5
      %v2986 = vsel %vm1315, %v2984, %v2985
      %v2987 = vrot.slane %v2985, 4
      %v2988 = vrot.slane %v2152, 5
      %v2989 = vsel %vm1315, %v2987, %v2988
      %v2990 = vrot.slane %v2896, 5
      %v2991 = vrot.slane %v2990, 4
      %v2992 = vrot.slane %v2154, 5
      %v2993 = vsel %vm1315, %v2991, %v2992
      %v2994 = vrot.slane %v2992, 4
      %v2995 = vrot.slane %v2155, 5
      %v2996 = vsel %vm1315, %v2994, %v2995
      %v2997 = vrot.slane %v2897, 5
      %v2998 = vrot.slane %v2997, 4
      %v2999 = vrot.slane %v2157, 5
      %v3000 = vsel %vm1315, %v2998, %v2999
      %v3001 = vrot.slane %v2999, 4
      %v3002 = vrot.slane %v2158, 5
      %v3003 = vsel %vm1315, %v3001, %v3002
      %v3004 = vrot.slane %v2898, 5
      %v3005 = vrot.slane %v3004, 4
      %v3006 = vrot.slane %v2160, 5
      %v3007 = vsel %vm1315, %v3005, %v3006
      %v3008 = vrot.slane %v3006, 4
      %v3009 = vrot.slane %v2161, 5
      %v3010 = vsel %vm1315, %v3008, %v3009
      %v3011 = vrot.slane %v2899, 5
      %v3012 = vrot.slane %v3011, 4
      %v3013 = vrot.slane %v2163, 5
      %v3014 = vsel %vm1315, %v3012, %v3013
      %v3015 = vrot.slane %v3013, 4
      %v3016 = vrot.slane %v2164, 5
      %v3017 = vsel %vm1315, %v3015, %v3016
      %v3018 = vrot.slane %v2900, 5
      %v3019 = vrot.slane %v3018, 4
      %v3020 = vrot.slane %v2166, 5
      %v3021 = vsel %vm1315, %v3019, %v3020
      %v3022 = vrot.slane %v3020, 4
      %v3023 = vrot.slane %v2167, 5
      %v3024 = vsel %vm1315, %v3022, %v3023
      %v3025 = vrot.slane %v2901, 5
      %v3026 = vrot.slane %v3025, 4
      %v3027 = vrot.slane %v2169, 5
      %v3028 = vsel %vm1315, %v3026, %v3027
      %v3029 = vrot.slane %v3027, 4
      %v3030 = vrot.slane %v2170, 5
      %v3031 = vsel %vm1315, %v3029, %v3030
      %v3032 = vrot.slane %v2902, 5
      %v3033 = vrot.slane %v3032, 4
      %v3034 = vrot.slane %v2172, 5
      %v3035 = vsel %vm1315, %v3033, %v3034
      %v3036 = vrot.slane %v3034, 4
      %v3037 = vrot.slane %v2173, 5
      %v3038 = vsel %vm1315, %v3036, %v3037
      %v3039 = vrot.slane %v2903, 5
      %v3040 = vrot.slane %v3039, 4
      %v3041 = vrot.slane %v2175, 5
      %v3042 = vsel %vm1315, %v3040, %v3041
      %v3043 = vrot.slane %v3041, 4
      %v3044 = vrot.slane %v2176, 5
      %v3045 = vsel %vm1315, %v3043, %v3044
      %v3046 = vrot.slane %v2904, 5
      %v3047 = vrot.slane %v3046, 4
      %v3048 = vrot.slane %v2178, 5
      %v3049 = vsel %vm1315, %v3047, %v3048
      %v3050 = vrot.slane %v3048, 4
      %v3051 = vrot.slane %v2179, 5
      %v3052 = vsel %vm1315, %v3050, %v3051
      %v3053 = vrot.slane %v2905, 5
      %v3054 = vrot.slane %v3053, 4
      %v3055 = vrot.slane %v2181, 5
      %v3056 = vsel %vm1315, %v3054, %v3055
      %v3057 = vrot.slane %v3055, 4
      %v3058 = vrot.slane %v2182, 5
      %v3059 = vsel %vm1315, %v3057, %v3058
      %v3060 = vrot.slane %v2906, 5
      %v3061 = vrot.slane %v3060, 4
      %v3062 = vrot.slane %v2184, 5
      %v3063 = vsel %vm1315, %v3061, %v3062
      %v3064 = vrot.slane %v3062, 4
      %v3065 = vrot.slane %v2185, 5
      %v3066 = vsel %vm1315, %v3064, %v3065
      %v3067 = vld [vmem:[%s1 + $0x140] sm:$0xf]
      %v3068 = vld [vmem:[%s1 + $0x144] sm:$0xf]
      %v3069 = vld [vmem:[%s1 + $0x148] sm:$0xf]
      %v3070 = vld [vmem:[%s1 + $0x14c] sm:$0xf]
      %v3071 = vld [vmem:[%s1 + $0x150] sm:$0xf]
      %v3072 = vld [vmem:[%s1 + $0x154] sm:$0xf]
      %v3073 = vld [vmem:[%s1 + $0x158] sm:$0xf]
      %v3074 = vld [vmem:[%s1 + $0x15c] sm:$0xf]
      %v3075 = vld [vmem:[%s1 + $0x160] sm:$0xf]
      %v3076 = vld [vmem:[%s1 + $0x164] sm:$0xf]
      %v3077 = vld [vmem:[%s1 + $0x168] sm:$0xf]
      %v3078 = vld [vmem:[%s1 + $0x16c] sm:$0xf]
      %v3079 = vld [vmem:[%s1 + $0x170] sm:$0xf]
      %v3080 = vld [vmem:[%s1 + $0x174] sm:$0xf]
      %v3081 = vld [vmem:[%s1 + $0x178] sm:$0xf]
      %v3082 = vld [vmem:[%s1 + $0x17c] sm:$0xf]
      %v3083 = vunpack.c.l.b16 %v2958
      %v3084 = vunpack.c.l.b16 %v2961
      %v3085 = vunpack.c.l.b16 %v2965
      %v3086 = vunpack.c.l.b16 %v2968
      %v3087 = vunpack.c.l.b16 %v2972
      %v3088 = vunpack.c.l.b16 %v2975
      %v3089 = vunpack.c.l.b16 %v2979
      %v3090 = vunpack.c.l.b16 %v2982
      %v3091 = vunpack.c.l.b16 %v2986
      %v3092 = vunpack.c.l.b16 %v2989
      %v3093 = vunpack.c.l.b16 %v2993
      %v3094 = vunpack.c.l.b16 %v2996
      %v3095 = vunpack.c.l.b16 %v3000
      %v3096 = vunpack.c.l.b16 %v3003
      %v3097 = vunpack.c.l.b16 %v3007
      %v3098 = vunpack.c.l.b16 %v3010
      %v3099 = vunpack.c.l.b16 %v3014
      %v3100 = vunpack.c.l.b16 %v3017
      %v3101 = vunpack.c.l.b16 %v3021
      %v3102 = vunpack.c.l.b16 %v3024
      %v3103 = vunpack.c.l.b16 %v3028
      %v3104 = vunpack.c.l.b16 %v3031
      %v3105 = vunpack.c.l.b16 %v3035
      %v3106 = vunpack.c.l.b16 %v3038
      %v3107 = vunpack.c.l.b16 %v3042
      %v3108 = vunpack.c.l.b16 %v3045
      %v3109 = vunpack.c.l.b16 %v3049
      %v3110 = vunpack.c.l.b16 %v3052
      %v3111 = vunpack.c.l.b16 %v3056
      %v3112 = vunpack.c.l.b16 %v3059
      %v3113 = vunpack.c.l.b16 %v3063
      %v3114 = vunpack.c.l.b16 %v3066
      %v3115 = vpack.c.b16 %v3084, %v3083
      %v3116 = vpack.c.b16 %v3086, %v3085
      %v3117 = vpack.c.b16 %v3088, %v3087
      %v3118 = vpack.c.b16 %v3090, %v3089
      %v3119 = vpack.c.b16 %v3092, %v3091
      %v3120 = vpack.c.b16 %v3094, %v3093
      %v3121 = vpack.c.b16 %v3096, %v3095
      %v3122 = vpack.c.b16 %v3098, %v3097
      %v3123 = vpack.c.b16 %v3100, %v3099
      %v3124 = vpack.c.b16 %v3102, %v3101
      %v3125 = vpack.c.b16 %v3104, %v3103
      %v3126 = vpack.c.b16 %v3106, %v3105
      %v3127 = vpack.c.b16 %v3108, %v3107
      %v3128 = vpack.c.b16 %v3110, %v3109
      %v3129 = vpack.c.b16 %v3112, %v3111
      %v3130 = vpack.c.b16 %v3114, %v3113
      %v3163 = vunpack.c.l.b16 %v3067
      %v3164 = vunpack.c.l.b16 %v3068
      %v3165 = vunpack.c.l.b16 %v3069
      %v3166 = vunpack.c.l.b16 %v3070
      %v3167 = vunpack.c.l.b16 %v3071
      %v3168 = vunpack.c.l.b16 %v3072
      %v3169 = vunpack.c.l.b16 %v3073
      %v3170 = vunpack.c.l.b16 %v3074
      %v3171 = vunpack.c.l.b16 %v3075
      %v3172 = vunpack.c.l.b16 %v3076
      %v3173 = vunpack.c.l.b16 %v3077
      %v3174 = vunpack.c.l.b16 %v3078
      %v3175 = vunpack.c.l.b16 %v3079
      %v3176 = vunpack.c.l.b16 %v3080
      %v3177 = vunpack.c.l.b16 %v3081
      %v3178 = vunpack.c.l.b16 %v3082
      %v3179 = vpack.c.b16 %v3164, %v3163
      %v3180 = vpack.c.b16 %v3166, %v3165
      %v3181 = vpack.c.b16 %v3168, %v3167
      %v3182 = vpack.c.b16 %v3170, %v3169
      %v3183 = vpack.c.b16 %v3172, %v3171
      %v3184 = vpack.c.b16 %v3174, %v3173
      %v3185 = vpack.c.b16 %v3176, %v3175
      %v3186 = vpack.c.b16 %v3178, %v3177
      %3195 = vmatprep.subr.bf16.mxu0 0
      %3196 = vmatpush1.bf16.msra.mxu0 %v3179
      %3197 = vmatprep.subr.bf16.mxu0 0
      %3198 = vmatpush1.bf16.msra.mxu0 %v3180
      %3199 = vmatprep.subr.bf16.mxu0 0
      %3200 = vmatpush1.bf16.msra.mxu0 %v3181
      %3201 = vmatprep.subr.bf16.mxu0 0
      %3202 = vmatpush1.bf16.msra.mxu0 %v3182
      %3203 = vmatprep.subr.bf16.mxu0 0
      %3204 = vmatpush1.bf16.msra.mxu0 %v3183
      %3205 = vmatprep.subr.bf16.mxu0 0
      %3206 = vmatpush1.bf16.msra.mxu0 %v3184
      %3207 = vmatprep.subr.bf16.mxu0 0
      %3208 = vmatpush1.bf16.msra.mxu0 %v3185
      %3209 = vmatprep.subr.bf16.mxu0 0
      %3210 = vmatpush1.bf16.msra.mxu0 %v3186
      %3211 = vmatprep.subr.bf16.mxu0 0
      %3212 = vmatpush1.bf16.msra.mxu0 0
      %3213 = vmatprep.subr.bf16.mxu0 0
      %3214 = vmatpush1.bf16.msra.mxu0 0
      %3215 = vmatprep.subr.bf16.mxu0 0
      %3216 = vmatpush1.bf16.msra.mxu0 0
      %3217 = vmatprep.subr.bf16.mxu0 0
      %3218 = vmatpush1.bf16.msra.mxu0 0
      %3219 = vmatprep.subr.bf16.mxu0 0
      %3220 = vmatpush1.bf16.msra.mxu0 0
      %3221 = vmatprep.subr.bf16.mxu0 0
      %3222 = vmatpush1.bf16.msra.mxu0 0
      %3223 = vmatprep.subr.bf16.mxu0 0
      %3224 = vmatpush1.bf16.msra.mxu0 0
      %3225 = vmatprep.subr.bf16.mxu0 0
      %3226 = vmatpush1.bf16.msra.mxu0 0
      %3227 = vmatprep.mubr.bf16.mxu0 0
      %3228 = vmatmul.mubr.bf16.gmra.mrb[0].mxu0 %v3115
      %v3229 = vpop.f32.mrb[0].mxu0
      %v3230 = vadd.f32 0.0, %v3229
      %v3231 = vpop.f32.mrb[0].mxu0
      %v3232 = vpop.f32.mrb[0].mxu0
      %v3233 = vadd.f32 0.0, %v3232
      %v3234 = vpop.f32.mrb[0].mxu0
      %3235 = vmatprep.mubr.bf16.mxu0 0
      %3236 = vmatmul.mubr.bf16.gmra.mrb[0].mxu0 %v3116
      %v3237 = vpop.f32.mrb[0].mxu0
      %v3238 = vadd.f32 0.0, %v3237
      %v3239 = vpop.f32.mrb[0].mxu0
      %v3240 = vpop.f32.mrb[0].mxu0
      %v3241 = vadd.f32 0.0, %v3240
      %v3242 = vpop.f32.mrb[0].mxu0
      %3243 = vmatprep.mubr.bf16.mxu0 0
      %3244 = vmatmul.mubr.bf16.gmra.mrb[0].mxu0 %v3117
      %v3245 = vpop.f32.mrb[0].mxu0
      %v3246 = vadd.f32 0.0, %v3245
      %v3247 = vpop.f32.mrb[0].mxu0
      %v3248 = vpop.f32.mrb[0].mxu0
      %v3249 = vadd.f32 0.0, %v3248
      %v3250 = vpop.f32.mrb[0].mxu0
      %3251 = vmatprep.mubr.bf16.mxu0 0
      %3252 = vmatmul.mubr.bf16.gmra.mrb[0].mxu0 %v3118
      %v3253 = vpop.f32.mrb[0].mxu0
      %v3254 = vadd.f32 0.0, %v3253
      %v3255 = vpop.f32.mrb[0].mxu0
      %v3256 = vpop.f32.mrb[0].mxu0
      %v3257 = vadd.f32 0.0, %v3256
      %v3258 = vpop.f32.mrb[0].mxu0
      %3259 = vmatprep.mubr.bf16.mxu0 0
      %3260 = vmatmul.mubr.bf16.gmra.mrb[0].mxu0 %v3119
      %v3261 = vpop.f32.mrb[0].mxu0
      %v3262 = vadd.f32 0.0, %v3261
      %v3263 = vpop.f32.mrb[0].mxu0
      %v3264 = vpop.f32.mrb[0].mxu0
      %v3265 = vadd.f32 0.0, %v3264
      %v3266 = vpop.f32.mrb[0].mxu0
      %3267 = vmatprep.mubr.bf16.mxu0 0
      %3268 = vmatmul.mubr.bf16.gmra.mrb[0].mxu0 %v3120
      %v3269 = vpop.f32.mrb[0].mxu0
      %v3270 = vadd.f32 0.0, %v3269
      %v3271 = vpop.f32.mrb[0].mxu0
      %v3272 = vpop.f32.mrb[0].mxu0
      %v3273 = vadd.f32 0.0, %v3272
      %v3274 = vpop.f32.mrb[0].mxu0
      %3275 = vmatprep.mubr.bf16.mxu0 0
      %3276 = vmatmul.mubr.bf16.gmra.mrb[0].mxu0 %v3121
      %v3277 = vpop.f32.mrb[0].mxu0
      %v3278 = vadd.f32 0.0, %v3277
      %v3279 = vpop.f32.mrb[0].mxu0
      %v3280 = vpop.f32.mrb[0].mxu0
      %v3281 = vadd.f32 0.0, %v3280
      %v3282 = vpop.f32.mrb[0].mxu0
      %3283 = vmatprep.mubr.bf16.mxu0 0
      %3284 = vmatmul.mubr.bf16.gmra.mrb[0].mxu0 %v3122
      %v3285 = vpop.f32.mrb[0].mxu0
      %v3286 = vadd.f32 0.0, %v3285
      %v3287 = vpop.f32.mrb[0].mxu0
      %v3288 = vpop.f32.mrb[0].mxu0
      %v3289 = vadd.f32 0.0, %v3288
      %v3290 = vpop.f32.mrb[0].mxu0
      %3291 = vmatprep.mubr.bf16.mxu0 0
      %3292 = vmatmul.mubr.bf16.gmra.mrb[0].mxu0 %v3123
      %v3293 = vpop.f32.mrb[0].mxu0
      %v3294 = vadd.f32 0.0, %v3293
      %v3295 = vpop.f32.mrb[0].mxu0
      %v3296 = vpop.f32.mrb[0].mxu0
      %v3297 = vadd.f32 0.0, %v3296
      %v3298 = vpop.f32.mrb[0].mxu0
      %3299 = vmatprep.mubr.bf16.mxu0 0
      %3300 = vmatmul.mubr.bf16.gmra.mrb[0].mxu0 %v3124
      %v3301 = vpop.f32.mrb[0].mxu0
      %v3302 = vadd.f32 0.0, %v3301
      %v3303 = vpop.f32.mrb[0].mxu0
      %v3304 = vpop.f32.mrb[0].mxu0
      %v3305 = vadd.f32 0.0, %v3304
      %v3306 = vpop.f32.mrb[0].mxu0
      %3307 = vmatprep.mubr.bf16.mxu0 0
      %3308 = vmatmul.mubr.bf16.gmra.mrb[0].mxu0 %v3125
      %v3309 = vpop.f32.mrb[0].mxu0
      %v3310 = vadd.f32 0.0, %v3309
      %v3311 = vpop.f32.mrb[0].mxu0
      %v3312 = vpop.f32.mrb[0].mxu0
      %v3313 = vadd.f32 0.0, %v3312
      %v3314 = vpop.f32.mrb[0].mxu0
      %3315 = vmatprep.mubr.bf16.mxu0 0
      %3316 = vmatmul.mubr.bf16.gmra.mrb[0].mxu0 %v3126
      %v3317 = vpop.f32.mrb[0].mxu0
      %v3318 = vadd.f32 0.0, %v3317
      %v3319 = vpop.f32.mrb[0].mxu0
      %v3320 = vpop.f32.mrb[0].mxu0
      %v3321 = vadd.f32 0.0, %v3320
      %v3322 = vpop.f32.mrb[0].mxu0
      %3323 = vmatprep.mubr.bf16.mxu0 0
      %3324 = vmatmul.mubr.bf16.gmra.mrb[0].mxu0 %v3127
      %v3325 = vpop.f32.mrb[0].mxu0
      %v3326 = vadd.f32 0.0, %v3325
      %v3327 = vpop.f32.mrb[0].mxu0
      %v3328 = vpop.f32.mrb[0].mxu0
      %v3329 = vadd.f32 0.0, %v3328
      %v3330 = vpop.f32.mrb[0].mxu0
      %3331 = vmatprep.mubr.bf16.mxu0 0
      %3332 = vmatmul.mubr.bf16.gmra.mrb[0].mxu0 %v3128
      %v3333 = vpop.f32.mrb[0].mxu0
      %v3334 = vadd.f32 0.0, %v3333
      %v3335 = vpop.f32.mrb[0].mxu0
      %v3336 = vpop.f32.mrb[0].mxu0
      %v3337 = vadd.f32 0.0, %v3336
      %v3338 = vpop.f32.mrb[0].mxu0
      %3339 = vmatprep.mubr.bf16.mxu0 0
      %3340 = vmatmul.mubr.bf16.gmra.mrb[0].mxu0 %v3129
      %v3341 = vpop.f32.mrb[0].mxu0
      %v3342 = vadd.f32 0.0, %v3341
      %v3343 = vpop.f32.mrb[0].mxu0
      %v3344 = vpop.f32.mrb[0].mxu0
      %v3345 = vadd.f32 0.0, %v3344
      %v3346 = vpop.f32.mrb[0].mxu0
      %3347 = vmatprep.mubr.bf16.mxu0 0
      %3348 = vmatmul.mubr.bf16.gmra.mrb[0].mxu0 %v3130
      %v3349 = vpop.f32.mrb[0].mxu0
      %v3350 = vadd.f32 0.0, %v3349
      %v3351 = vpop.f32.mrb[0].mxu0
      %v3352 = vpop.f32.mrb[0].mxu0
      %v3353 = vadd.f32 0.0, %v3352
      %v3354 = vpop.f32.mrb[0].mxu0
      %3355 = vdwg.mxu0
      %v3356 = vadd.f32 %v2859, %v3230
      %v3357 = vadd.f32 %v2860, %v3233
      %v3358 = vadd.f32 %v2861, %v3238
      %v3359 = vadd.f32 %v2862, %v3241
      %v3360 = vadd.f32 %v2863, %v3246
      %v3361 = vadd.f32 %v2864, %v3249
      %v3362 = vadd.f32 %v2865, %v3254
      %v3363 = vadd.f32 %v2866, %v3257
      %v3364 = vadd.f32 %v2867, %v3262
      %v3365 = vadd.f32 %v2868, %v3265
      %v3366 = vadd.f32 %v2869, %v3270
      %v3367 = vadd.f32 %v2870, %v3273
      %v3368 = vadd.f32 %v2871, %v3278
      %v3369 = vadd.f32 %v2872, %v3281
      %v3370 = vadd.f32 %v2873, %v3286
      %v3371 = vadd.f32 %v2874, %v3289
      %v3372 = vadd.f32 %v2875, %v3294
      %v3373 = vadd.f32 %v2876, %v3297
      %v3374 = vadd.f32 %v2877, %v3302
      %v3375 = vadd.f32 %v2878, %v3305
      %v3376 = vadd.f32 %v2879, %v3310
      %v3377 = vadd.f32 %v2880, %v3313
      %v3378 = vadd.f32 %v2881, %v3318
      %v3379 = vadd.f32 %v2882, %v3321
      %v3380 = vadd.f32 %v2883, %v3326
      %v3381 = vadd.f32 %v2884, %v3329
      %v3382 = vadd.f32 %v2885, %v3334
      %v3383 = vadd.f32 %v2886, %v3337
      %v3384 = vadd.f32 %v2887, %v3342
      %v3385 = vadd.f32 %v2888, %v3345
      %v3386 = vadd.f32 %v2889, %v3350
      %v3387 = vadd.f32 %v2890, %v3353
      %s3388 = sadd.s32 %s216, 2
      %s3389 = smul.u32 %s3388, 3
      %s3390 = smul.addr %s3389, 4
      %s3391 = scalar_lea.vmem %s196, %s3390
      %v3392 = vld [vmem:[%s3391] sm:$0xf]
      %v3393 = vld [vmem:[%s3391 + $0x4] sm:$0xf]
      %v3394 = vld [vmem:[%s3391 + $0xc] sm:$0xf]
      %v3395 = vld [vmem:[%s3391 + $0x10] sm:$0xf]
      %v3396 = vld [vmem:[%s3391 + $0x18] sm:$0xf]
      %v3397 = vld [vmem:[%s3391 + $0x1c] sm:$0xf]
      %v3398 = vld [vmem:[%s3391 + $0x24] sm:$0xf]
      %v3399 = vld [vmem:[%s3391 + $0x28] sm:$0xf]
      %v3400 = vld [vmem:[%s3391 + $0x30] sm:$0xf]
      %v3401 = vld [vmem:[%s3391 + $0x34] sm:$0xf]
      %v3402 = vld [vmem:[%s3391 + $0x3c] sm:$0xf]
      %v3403 = vld [vmem:[%s3391 + $0x40] sm:$0xf]
      %v3404 = vld [vmem:[%s3391 + $0x48] sm:$0xf]
      %v3405 = vld [vmem:[%s3391 + $0x4c] sm:$0xf]
      %v3406 = vld [vmem:[%s3391 + $0x54] sm:$0xf]
      %v3407 = vld [vmem:[%s3391 + $0x58] sm:$0xf]
      %v3408 = vld [vmem:[%s3391 + $0x60] sm:$0xf]
      %v3409 = vld [vmem:[%s3391 + $0x64] sm:$0xf]
      %v3410 = vld [vmem:[%s3391 + $0x6c] sm:$0xf]
      %v3411 = vld [vmem:[%s3391 + $0x70] sm:$0xf]
      %v3412 = vld [vmem:[%s3391 + $0x78] sm:$0xf]
      %v3413 = vld [vmem:[%s3391 + $0x7c] sm:$0xf]
      %v3414 = vld [vmem:[%s3391 + $0x84] sm:$0xf]
      %v3415 = vld [vmem:[%s3391 + $0x88] sm:$0xf]
      %v3416 = vld [vmem:[%s3391 + $0x90] sm:$0xf]
      %v3417 = vld [vmem:[%s3391 + $0x94] sm:$0xf]
      %v3418 = vld [vmem:[%s3391 + $0x9c] sm:$0xf]
      %v3419 = vld [vmem:[%s3391 + $0xa0] sm:$0xf]
      %v3420 = vld [vmem:[%s3391 + $0xa8] sm:$0xf]
      %v3421 = vld [vmem:[%s3391 + $0xac] sm:$0xf]
      %v3422 = vld [vmem:[%s3391 + $0xb4] sm:$0xf]
      %v3423 = vld [vmem:[%s3391 + $0xb8] sm:$0xf]
      %v3424 = vld [vmem:[%s1 + $0x180] sm:$0xf]
      %v3425 = vld [vmem:[%s1 + $0x184] sm:$0xf]
      %v3426 = vld [vmem:[%s1 + $0x188] sm:$0xf]
      %v3427 = vld [vmem:[%s1 + $0x18c] sm:$0xf]
      %v3428 = vld [vmem:[%s1 + $0x190] sm:$0xf]
      %v3429 = vld [vmem:[%s1 + $0x194] sm:$0xf]
      %v3430 = vld [vmem:[%s1 + $0x198] sm:$0xf]
      %v3431 = vld [vmem:[%s1 + $0x19c] sm:$0xf]
      %v3432 = vld [vmem:[%s1 + $0x1a0] sm:$0xf]
      %v3433 = vld [vmem:[%s1 + $0x1a4] sm:$0xf]
      %v3434 = vld [vmem:[%s1 + $0x1a8] sm:$0xf]
      %v3435 = vld [vmem:[%s1 + $0x1ac] sm:$0xf]
      %v3436 = vld [vmem:[%s1 + $0x1b0] sm:$0xf]
      %v3437 = vld [vmem:[%s1 + $0x1b4] sm:$0xf]
      %v3438 = vld [vmem:[%s1 + $0x1b8] sm:$0xf]
      %v3439 = vld [vmem:[%s1 + $0x1bc] sm:$0xf]
      %v3472 = vunpack.c.l.b16 %v3392
      %v3473 = vunpack.c.l.b16 %v3393
      %v3474 = vunpack.c.l.b16 %v3394
      %v3475 = vunpack.c.l.b16 %v3395
      %v3476 = vunpack.c.l.b16 %v3396
      %v3477 = vunpack.c.l.b16 %v3397
      %v3478 = vunpack.c.l.b16 %v3398
      %v3479 = vunpack.c.l.b16 %v3399
      %v3480 = vunpack.c.l.b16 %v3400
      %v3481 = vunpack.c.l.b16 %v3401
      %v3482 = vunpack.c.l.b16 %v3402
      %v3483 = vunpack.c.l.b16 %v3403
      %v3484 = vunpack.c.l.b16 %v3404
      %v3485 = vunpack.c.l.b16 %v3405
      %v3486 = vunpack.c.l.b16 %v3406
      %v3487 = vunpack.c.l.b16 %v3407
      %v3488 = vunpack.c.l.b16 %v3408
      %v3489 = vunpack.c.l.b16 %v3409
      %v3490 = vunpack.c.l.b16 %v3410
      %v3491 = vunpack.c.l.b16 %v3411
      %v3492 = vunpack.c.l.b16 %v3412
      %v3493 = vunpack.c.l.b16 %v3413
      %v3494 = vunpack.c.l.b16 %v3414
      %v3495 = vunpack.c.l.b16 %v3415
      %v3496 = vunpack.c.l.b16 %v3416
      %v3497 = vunpack.c.l.b16 %v3417
      %v3498 = vunpack.c.l.b16 %v3418
      %v3499 = vunpack.c.l.b16 %v3419
      %v3500 = vunpack.c.l.b16 %v3420
      %v3501 = vunpack.c.l.b16 %v3421
      %v3502 = vunpack.c.l.b16 %v3422
      %v3503 = vunpack.c.l.b16 %v3423
      %v3504 = vpack.c.b16 %v3473, %v3472
      %v3505 = vpack.c.b16 %v3475, %v3474
      %v3506 = vpack.c.b16 %v3477, %v3476
      %v3507 = vpack.c.b16 %v3479, %v3478
      %v3508 = vpack.c.b16 %v3481, %v3480
      %v3509 = vpack.c.b16 %v3483, %v3482
      %v3510 = vpack.c.b16 %v3485, %v3484
      %v3511 = vpack.c.b16 %v3487, %v3486
      %v3512 = vpack.c.b16 %v3489, %v3488
      %v3513 = vpack.c.b16 %v3491, %v3490
      %v3514 = vpack.c.b16 %v3493, %v3492
      %v3515 = vpack.c.b16 %v3495, %v3494
      %v3516 = vpack.c.b16 %v3497, %v3496
      %v3517 = vpack.c.b16 %v3499, %v3498
      %v3518 = vpack.c.b16 %v3501, %v3500
      %v3519 = vpack.c.b16 %v3503, %v3502
      %v3552 = vunpack.c.l.b16 %v3424
      %v3553 = vunpack.c.l.b16 %v3425
      %v3554 = vunpack.c.l.b16 %v3426
      %v3555 = vunpack.c.l.b16 %v3427
      %v3556 = vunpack.c.l.b16 %v3428
      %v3557 = vunpack.c.l.b16 %v3429
      %v3558 = vunpack.c.l.b16 %v3430
      %v3559 = vunpack.c.l.b16 %v3431
      %v3560 = vunpack.c.l.b16 %v3432
      %v3561 = vunpack.c.l.b16 %v3433
      %v3562 = vunpack.c.l.b16 %v3434
      %v3563 = vunpack.c.l.b16 %v3435
      %v3564 = vunpack.c.l.b16 %v3436
      %v3565 = vunpack.c.l.b16 %v3437
      %v3566 = vunpack.c.l.b16 %v3438
      %v3567 = vunpack.c.l.b16 %v3439
      %v3568 = vpack.c.b16 %v3553, %v3552
      %v3569 = vpack.c.b16 %v3555, %v3554
      %v3570 = vpack.c.b16 %v3557, %v3556
      %v3571 = vpack.c.b16 %v3559, %v3558
      %v3572 = vpack.c.b16 %v3561, %v3560
      %v3573 = vpack.c.b16 %v3563, %v3562
      %v3574 = vpack.c.b16 %v3565, %v3564
      %v3575 = vpack.c.b16 %v3567, %v3566
      %3584 = vmatprep.subr.bf16.mxu0 0
      %3585 = vmatpush1.bf16.msra.mxu0 %v3568
      %3586 = vmatprep.subr.bf16.mxu0 0
      %3587 = vmatpush1.bf16.msra.mxu0 %v3569
      %3588 = vmatprep.subr.bf16.mxu0 0
      %3589 = vmatpush1.bf16.msra.mxu0 %v3570
      %3590 = vmatprep.subr.bf16.mxu0 0
      %3591 = vmatpush1.bf16.msra.mxu0 %v3571
      %3592 = vmatprep.subr.bf16.mxu0 0
      %3593 = vmatpush1.bf16.msra.mxu0 %v3572
      %3594 = vmatprep.subr.bf16.mxu0 0
      %3595 = vmatpush1.bf16.msra.mxu0 %v3573
      %3596 = vmatprep.subr.bf16.mxu0 0
      %3597 = vmatpush1.bf16.msra.mxu0 %v3574
      %3598 = vmatprep.subr.bf16.mxu0 0
      %3599 = vmatpush1.bf16.msra.mxu0 %v3575
      %3600 = vmatprep.subr.bf16.mxu0 0
      %3601 = vmatpush1.bf16.msra.mxu0 0
      %3602 = vmatprep.subr.bf16.mxu0 0
      %3603 = vmatpush1.bf16.msra.mxu0 0
      %3604 = vmatprep.subr.bf16.mxu0 0
      %3605 = vmatpush1.bf16.msra.mxu0 0
      %3606 = vmatprep.subr.bf16.mxu0 0
      %3607 = vmatpush1.bf16.msra.mxu0 0
      %3608 = vmatprep.subr.bf16.mxu0 0
      %3609 = vmatpush1.bf16.msra.mxu0 0
      %3610 = vmatprep.subr.bf16.mxu0 0
      %3611 = vmatpush1.bf16.msra.mxu0 0
      %3612 = vmatprep.subr.bf16.mxu0 0
      %3613 = vmatpush1.bf16.msra.mxu0 0
      %3614 = vmatprep.subr.bf16.mxu0 0
      %3615 = vmatpush1.bf16.msra.mxu0 0
      %3616 = vmatprep.mubr.bf16.mxu0 0
      %3617 = vmatmul.mubr.bf16.gmra.mrb[0].mxu0 %v3504
      %v3618 = vpop.f32.mrb[0].mxu0
      %v3619 = vadd.f32 0.0, %v3618
      %v3620 = vpop.f32.mrb[0].mxu0
      %v3621 = vpop.f32.mrb[0].mxu0
      %v3622 = vadd.f32 0.0, %v3621
      %v3623 = vpop.f32.mrb[0].mxu0
      %3624 = vmatprep.mubr.bf16.mxu0 0
      %3625 = vmatmul.mubr.bf16.gmra.mrb[0].mxu0 %v3505
      %v3626 = vpop.f32.mrb[0].mxu0
      %v3627 = vadd.f32 0.0, %v3626
      %v3628 = vpop.f32.mrb[0].mxu0
      %v3629 = vpop.f32.mrb[0].mxu0
      %v3630 = vadd.f32 0.0, %v3629
      %v3631 = vpop.f32.mrb[0].mxu0
      %3632 = vmatprep.mubr.bf16.mxu0 0
      %3633 = vmatmul.mubr.bf16.gmra.mrb[0].mxu0 %v3506
      %v3634 = vpop.f32.mrb[0].mxu0
      %v3635 = vadd.f32 0.0, %v3634
      %v3636 = vpop.f32.mrb[0].mxu0
      %v3637 = vpop.f32.mrb[0].mxu0
      %v3638 = vadd.f32 0.0, %v3637
      %v3639 = vpop.f32.mrb[0].mxu0
      %3640 = vmatprep.mubr.bf16.mxu0 0
      %3641 = vmatmul.mubr.bf16.gmra.mrb[0].mxu0 %v3507
      %v3642 = vpop.f32.mrb[0].mxu0
      %v3643 = vadd.f32 0.0, %v3642
      %v3644 = vpop.f32.mrb[0].mxu0
      %v3645 = vpop.f32.mrb[0].mxu0
      %v3646 = vadd.f32 0.0, %v3645
      %v3647 = vpop.f32.mrb[0].mxu0
      %3648 = vmatprep.mubr.bf16.mxu0 0
      %3649 = vmatmul.mubr.bf16.gmra.mrb[0].mxu0 %v3508
      %v3650 = vpop.f32.mrb[0].mxu0
      %v3651 = vadd.f32 0.0, %v3650
      %v3652 = vpop.f32.mrb[0].mxu0
      %v3653 = vpop.f32.mrb[0].mxu0
      %v3654 = vadd.f32 0.0, %v3653
      %v3655 = vpop.f32.mrb[0].mxu0
      %3656 = vmatprep.mubr.bf16.mxu0 0
      %3657 = vmatmul.mubr.bf16.gmra.mrb[0].mxu0 %v3509
      %v3658 = vpop.f32.mrb[0].mxu0
      %v3659 = vadd.f32 0.0, %v3658
      %v3660 = vpop.f32.mrb[0].mxu0
      %v3661 = vpop.f32.mrb[0].mxu0
      %v3662 = vadd.f32 0.0, %v3661
      %v3663 = vpop.f32.mrb[0].mxu0
      %3664 = vmatprep.mubr.bf16.mxu0 0
      %3665 = vmatmul.mubr.bf16.gmra.mrb[0].mxu0 %v3510
      %v3666 = vpop.f32.mrb[0].mxu0
      %v3667 = vadd.f32 0.0, %v3666
      %v3668 = vpop.f32.mrb[0].mxu0
      %v3669 = vpop.f32.mrb[0].mxu0
      %v3670 = vadd.f32 0.0, %v3669
      %v3671 = vpop.f32.mrb[0].mxu0
      %3672 = vmatprep.mubr.bf16.mxu0 0
      %3673 = vmatmul.mubr.bf16.gmra.mrb[0].mxu0 %v3511
      %v3674 = vpop.f32.mrb[0].mxu0
      %v3675 = vadd.f32 0.0, %v3674
      %v3676 = vpop.f32.mrb[0].mxu0
      %v3677 = vpop.f32.mrb[0].mxu0
      %v3678 = vadd.f32 0.0, %v3677
      %v3679 = vpop.f32.mrb[0].mxu0
      %3680 = vmatprep.mubr.bf16.mxu0 0
      %3681 = vmatmul.mubr.bf16.gmra.mrb[0].mxu0 %v3512
      %v3682 = vpop.f32.mrb[0].mxu0
      %v3683 = vadd.f32 0.0, %v3682
      %v3684 = vpop.f32.mrb[0].mxu0
      %v3685 = vpop.f32.mrb[0].mxu0
      %v3686 = vadd.f32 0.0, %v3685
      %v3687 = vpop.f32.mrb[0].mxu0
      %3688 = vmatprep.mubr.bf16.mxu0 0
      %3689 = vmatmul.mubr.bf16.gmra.mrb[0].mxu0 %v3513
      %v3690 = vpop.f32.mrb[0].mxu0
      %v3691 = vadd.f32 0.0, %v3690
      %v3692 = vpop.f32.mrb[0].mxu0
      %v3693 = vpop.f32.mrb[0].mxu0
      %v3694 = vadd.f32 0.0, %v3693
      %v3695 = vpop.f32.mrb[0].mxu0
      %3696 = vmatprep.mubr.bf16.mxu0 0
      %3697 = vmatmul.mubr.bf16.gmra.mrb[0].mxu0 %v3514
      %v3698 = vpop.f32.mrb[0].mxu0
      %v3699 = vadd.f32 0.0, %v3698
      %v3700 = vpop.f32.mrb[0].mxu0
      %v3701 = vpop.f32.mrb[0].mxu0
      %v3702 = vadd.f32 0.0, %v3701
      %v3703 = vpop.f32.mrb[0].mxu0
      %3704 = vmatprep.mubr.bf16.mxu0 0
      %3705 = vmatmul.mubr.bf16.gmra.mrb[0].mxu0 %v3515
      %v3706 = vpop.f32.mrb[0].mxu0
      %v3707 = vadd.f32 0.0, %v3706
      %v3708 = vpop.f32.mrb[0].mxu0
      %v3709 = vpop.f32.mrb[0].mxu0
      %v3710 = vadd.f32 0.0, %v3709
      %v3711 = vpop.f32.mrb[0].mxu0
      %3712 = vmatprep.mubr.bf16.mxu0 0
      %3713 = vmatmul.mubr.bf16.gmra.mrb[0].mxu0 %v3516
      %v3714 = vpop.f32.mrb[0].mxu0
      %v3715 = vadd.f32 0.0, %v3714
      %v3716 = vpop.f32.mrb[0].mxu0
      %v3717 = vpop.f32.mrb[0].mxu0
      %v3718 = vadd.f32 0.0, %v3717
      %v3719 = vpop.f32.mrb[0].mxu0
      %3720 = vmatprep.mubr.bf16.mxu0 0
      %3721 = vmatmul.mubr.bf16.gmra.mrb[0].mxu0 %v3517
      %v3722 = vpop.f32.mrb[0].mxu0
      %v3723 = vadd.f32 0.0, %v3722
      %v3724 = vpop.f32.mrb[0].mxu0
      %v3725 = vpop.f32.mrb[0].mxu0
      %v3726 = vadd.f32 0.0, %v3725
      %v3727 = vpop.f32.mrb[0].mxu0
      %3728 = vmatprep.mubr.bf16.mxu0 0
      %3729 = vmatmul.mubr.bf16.gmra.mrb[0].mxu0 %v3518
      %v3730 = vpop.f32.mrb[0].mxu0
      %v3731 = vadd.f32 0.0, %v3730
      %v3732 = vpop.f32.mrb[0].mxu0
      %v3733 = vpop.f32.mrb[0].mxu0
      %v3734 = vadd.f32 0.0, %v3733
      %v3735 = vpop.f32.mrb[0].mxu0
      %3736 = vmatprep.mubr.bf16.mxu0 0
      %3737 = vmatmul.mubr.bf16.gmra.mrb[0].mxu0 %v3519
      %v3738 = vpop.f32.mrb[0].mxu0
      %v3739 = vadd.f32 0.0, %v3738
      %v3740 = vpop.f32.mrb[0].mxu0
      %v3741 = vpop.f32.mrb[0].mxu0
      %v3742 = vadd.f32 0.0, %v3741
      %v3743 = vpop.f32.mrb[0].mxu0
      %3744 = vdwg.mxu0
      %v3745 = vadd.f32 %v3356, %v3619
      %v3746 = vadd.f32 %v3357, %v3622
      %v3747 = vadd.f32 %v3358, %v3627
      %v3748 = vadd.f32 %v3359, %v3630
      %v3749 = vadd.f32 %v3360, %v3635
      %v3750 = vadd.f32 %v3361, %v3638
      %v3751 = vadd.f32 %v3362, %v3643
      %v3752 = vadd.f32 %v3363, %v3646
      %v3753 = vadd.f32 %v3364, %v3651
      %v3754 = vadd.f32 %v3365, %v3654
      %v3755 = vadd.f32 %v3366, %v3659
      %v3756 = vadd.f32 %v3367, %v3662
      %v3757 = vadd.f32 %v3368, %v3667
      %v3758 = vadd.f32 %v3369, %v3670
      %v3759 = vadd.f32 %v3370, %v3675
      %v3760 = vadd.f32 %v3371, %v3678
      %v3761 = vadd.f32 %v3372, %v3683
      %v3762 = vadd.f32 %v3373, %v3686
      %v3763 = vadd.f32 %v3374, %v3691
      %v3764 = vadd.f32 %v3375, %v3694
      %v3765 = vadd.f32 %v3376, %v3699
      %v3766 = vadd.f32 %v3377, %v3702
      %v3767 = vadd.f32 %v3378, %v3707
      %v3768 = vadd.f32 %v3379, %v3710
      %v3769 = vadd.f32 %v3380, %v3715
      %v3770 = vadd.f32 %v3381, %v3718
      %v3771 = vadd.f32 %v3382, %v3723
      %v3772 = vadd.f32 %v3383, %v3726
      %v3773 = vadd.f32 %v3384, %v3731
      %v3774 = vadd.f32 %v3385, %v3734
      %v3775 = vadd.f32 %v3386, %v3739
      %v3776 = vadd.f32 %v3387, %v3742
      %v3777 = vld [vmem:[%s3391] sm:$0xf]
      %v3778 = vld [vmem:[%s3391 + $0x4] sm:$0xf]
      %v3779 = vld [vmem:[%s3391 + $0x8] sm:$0x1]
      %v3780 = vld [vmem:[%s3391 + $0xc] sm:$0xf]
      %v3781 = vld [vmem:[%s3391 + $0x10] sm:$0xf]
      %v3782 = vld [vmem:[%s3391 + $0x14] sm:$0x1]
      %v3783 = vld [vmem:[%s3391 + $0x18] sm:$0xf]
      %v3784 = vld [vmem:[%s3391 + $0x1c] sm:$0xf]
      %v3785 = vld [vmem:[%s3391 + $0x20] sm:$0x1]
      %v3786 = vld [vmem:[%s3391 + $0x24] sm:$0xf]
      %v3787 = vld [vmem:[%s3391 + $0x28] sm:$0xf]
      %v3788 = vld [vmem:[%s3391 + $0x2c] sm:$0x1]
      %v3789 = vld [vmem:[%s3391 + $0x30] sm:$0xf]
      %v3790 = vld [vmem:[%s3391 + $0x34] sm:$0xf]
      %v3791 = vld [vmem:[%s3391 + $0x38] sm:$0x1]
      %v3792 = vld [vmem:[%s3391 + $0x3c] sm:$0xf]
      %v3793 = vld [vmem:[%s3391 + $0x40] sm:$0xf]
      %v3794 = vld [vmem:[%s3391 + $0x44] sm:$0x1]
      %v3795 = vld [vmem:[%s3391 + $0x48] sm:$0xf]
      %v3796 = vld [vmem:[%s3391 + $0x4c] sm:$0xf]
      %v3797 = vld [vmem:[%s3391 + $0x50] sm:$0x1]
      %v3798 = vld [vmem:[%s3391 + $0x54] sm:$0xf]
      %v3799 = vld [vmem:[%s3391 + $0x58] sm:$0xf]
      %v3800 = vld [vmem:[%s3391 + $0x5c] sm:$0x1]
      %v3801 = vld [vmem:[%s3391 + $0x60] sm:$0xf]
      %v3802 = vld [vmem:[%s3391 + $0x64] sm:$0xf]
      %v3803 = vld [vmem:[%s3391 + $0x68] sm:$0x1]
      %v3804 = vld [vmem:[%s3391 + $0x6c] sm:$0xf]
      %v3805 = vld [vmem:[%s3391 + $0x70] sm:$0xf]
      %v3806 = vld [vmem:[%s3391 + $0x74] sm:$0x1]
      %v3807 = vld [vmem:[%s3391 + $0x78] sm:$0xf]
      %v3808 = vld [vmem:[%s3391 + $0x7c] sm:$0xf]
      %v3809 = vld [vmem:[%s3391 + $0x80] sm:$0x1]
      %v3810 = vld [vmem:[%s3391 + $0x84] sm:$0xf]
      %v3811 = vld [vmem:[%s3391 + $0x88] sm:$0xf]
      %v3812 = vld [vmem:[%s3391 + $0x8c] sm:$0x1]
      %v3813 = vld [vmem:[%s3391 + $0x90] sm:$0xf]
      %v3814 = vld [vmem:[%s3391 + $0x94] sm:$0xf]
      %v3815 = vld [vmem:[%s3391 + $0x98] sm:$0x1]
      %v3816 = vld [vmem:[%s3391 + $0x9c] sm:$0xf]
      %v3817 = vld [vmem:[%s3391 + $0xa0] sm:$0xf]
      %v3818 = vld [vmem:[%s3391 + $0xa4] sm:$0x1]
      %v3819 = vld [vmem:[%s3391 + $0xa8] sm:$0xf]
      %v3820 = vld [vmem:[%s3391 + $0xac] sm:$0xf]
      %v3821 = vld [vmem:[%s3391 + $0xb0] sm:$0x1]
      %v3822 = vld [vmem:[%s3391 + $0xb4] sm:$0xf]
      %v3823 = vld [vmem:[%s3391 + $0xb8] sm:$0xf]
      %v3824 = vld [vmem:[%s3391 + $0xbc] sm:$0x1]
      %v3826 = vshrl.u32 %v3777, 16
      %v3828 = vrot.slane %v3826, 4
      %v3829 = vshll.u32 %v3777, 16
      %v3831 = vrot.slane %v3829, 5
      %v3832 = vor.u32 %v3828, %v3831
      %v3833 = vrot.slane %v3832, 4
      %v3835 = vshll.u32 %v3778, 16
      %v3837 = vrot.slane %v3835, 5
      %v3838 = vsel %vm286, %v3833, %v3837
      %v3839 = vshrl.u32 %v3778, 16
      %v3841 = vrot.slane %v3839, 4
      %v3842 = vor.u32 %v3841, %v3837
      %v3843 = vrot.slane %v3842, 4
      %v3845 = vshll.u32 %v3779, 16
      %v3847 = vrot.slane %v3845, 5
      %v3848 = vsel %vm286, %v3843, %v3847
      %v3850 = vshrl.u32 %v3780, 16
      %v3852 = vrot.slane %v3850, 4
      %v3853 = vshll.u32 %v3780, 16
      %v3855 = vrot.slane %v3853, 5
      %v3856 = vor.u32 %v3852, %v3855
      %v3857 = vrot.slane %v3856, 4
      %v3859 = vshll.u32 %v3781, 16
      %v3861 = vrot.slane %v3859, 5
      %v3862 = vsel %vm286, %v3857, %v3861
      %v3863 = vshrl.u32 %v3781, 16
      %v3865 = vrot.slane %v3863, 4
      %v3866 = vor.u32 %v3865, %v3861
      %v3867 = vrot.slane %v3866, 4
      %v3869 = vshll.u32 %v3782, 16
      %v3871 = vrot.slane %v3869, 5
      %v3872 = vsel %vm286, %v3867, %v3871
      %v3874 = vshrl.u32 %v3783, 16
      %v3876 = vrot.slane %v3874, 4
      %v3877 = vshll.u32 %v3783, 16
      %v3879 = vrot.slane %v3877, 5
      %v3880 = vor.u32 %v3876, %v3879
      %v3881 = vrot.slane %v3880, 4
      %v3883 = vshll.u32 %v3784, 16
      %v3885 = vrot.slane %v3883, 5
      %v3886 = vsel %vm286, %v3881, %v3885
      %v3887 = vshrl.u32 %v3784, 16
      %v3889 = vrot.slane %v3887, 4
      %v3890 = vor.u32 %v3889, %v3885
      %v3891 = vrot.slane %v3890, 4
      %v3893 = vshll.u32 %v3785, 16
      %v3895 = vrot.slane %v3893, 5
      %v3896 = vsel %vm286, %v3891, %v3895
      %v3898 = vshrl.u32 %v3786, 16
      %v3900 = vrot.slane %v3898, 4
      %v3901 = vshll.u32 %v3786, 16
      %v3903 = vrot.slane %v3901, 5
      %v3904 = vor.u32 %v3900, %v3903
      %v3905 = vrot.slane %v3904, 4
      %v3907 = vshll.u32 %v3787, 16
      %v3909 = vrot.slane %v3907, 5
      %v3910 = vsel %vm286, %v3905, %v3909
      %v3911 = vshrl.u32 %v3787, 16
      %v3913 = vrot.slane %v3911, 4
      %v3914 = vor.u32 %v3913, %v3909
      %v3915 = vrot.slane %v3914, 4
      %v3917 = vshll.u32 %v3788, 16
      %v3919 = vrot.slane %v3917, 5
      %v3920 = vsel %vm286, %v3915, %v3919
      %v3922 = vshrl.u32 %v3789, 16
      %v3924 = vrot.slane %v3922, 4
      %v3925 = vshll.u32 %v3789, 16
      %v3927 = vrot.slane %v3925, 5
      %v3928 = vor.u32 %v3924, %v3927
      %v3929 = vrot.slane %v3928, 4
      %v3931 = vshll.u32 %v3790, 16
      %v3933 = vrot.slane %v3931, 5
      %v3934 = vsel %vm286, %v3929, %v3933
      %v3935 = vshrl.u32 %v3790, 16
      %v3937 = vrot.slane %v3935, 4
      %v3938 = vor.u32 %v3937, %v3933
      %v3939 = vrot.slane %v3938, 4
      %v3941 = vshll.u32 %v3791, 16
      %v3943 = vrot.slane %v3941, 5
      %v3944 = vsel %vm286, %v3939, %v3943
      %v3946 = vshrl.u32 %v3792, 16
      %v3948 = vrot.slane %v3946, 4
      %v3949 = vshll.u32 %v3792, 16
      %v3951 = vrot.slane %v3949, 5
      %v3952 = vor.u32 %v3948, %v3951
      %v3953 = vrot.slane %v3952, 4
      %v3955 = vshll.u32 %v3793, 16
      %v3957 = vrot.slane %v3955, 5
      %v3958 = vsel %vm286, %v3953, %v3957
      %v3959 = vshrl.u32 %v3793, 16
      %v3961 = vrot.slane %v3959, 4
      %v3962 = vor.u32 %v3961, %v3957
      %v3963 = vrot.slane %v3962, 4
      %v3965 = vshll.u32 %v3794, 16
      %v3967 = vrot.slane %v3965, 5
      %v3968 = vsel %vm286, %v3963, %v3967
      %v3970 = vshrl.u32 %v3795, 16
      %v3972 = vrot.slane %v3970, 4
      %v3973 = vshll.u32 %v3795, 16
      %v3975 = vrot.slane %v3973, 5
      %v3976 = vor.u32 %v3972, %v3975
      %v3977 = vrot.slane %v3976, 4
      %v3979 = vshll.u32 %v3796, 16
      %v3981 = vrot.slane %v3979, 5
      %v3982 = vsel %vm286, %v3977, %v3981
      %v3983 = vshrl.u32 %v3796, 16
      %v3985 = vrot.slane %v3983, 4
      %v3986 = vor.u32 %v3985, %v3981
      %v3987 = vrot.slane %v3986, 4
      %v3989 = vshll.u32 %v3797, 16
      %v3991 = vrot.slane %v3989, 5
      %v3992 = vsel %vm286, %v3987, %v3991
      %v3994 = vshrl.u32 %v3798, 16
      %v3996 = vrot.slane %v3994, 4
      %v3997 = vshll.u32 %v3798, 16
      %v3999 = vrot.slane %v3997, 5
      %v4000 = vor.u32 %v3996, %v3999
      %v4001 = vrot.slane %v4000, 4
      %v4003 = vshll.u32 %v3799, 16
      %v4005 = vrot.slane %v4003, 5
      %v4006 = vsel %vm286, %v4001, %v4005
      %v4007 = vshrl.u32 %v3799, 16
      %v4009 = vrot.slane %v4007, 4
      %v4010 = vor.u32 %v4009, %v4005
      %v4011 = vrot.slane %v4010, 4
      %v4013 = vshll.u32 %v3800, 16
      %v4015 = vrot.slane %v4013, 5
      %v4016 = vsel %vm286, %v4011, %v4015
      %v4018 = vshrl.u32 %v3801, 16
      %v4020 = vrot.slane %v4018, 4
      %v4021 = vshll.u32 %v3801, 16
      %v4023 = vrot.slane %v4021, 5
      %v4024 = vor.u32 %v4020, %v4023
      %v4025 = vrot.slane %v4024, 4
      %v4027 = vshll.u32 %v3802, 16
      %v4029 = vrot.slane %v4027, 5
      %v4030 = vsel %vm286, %v4025, %v4029
      %v4031 = vshrl.u32 %v3802, 16
      %v4033 = vrot.slane %v4031, 4
      %v4034 = vor.u32 %v4033, %v4029
      %v4035 = vrot.slane %v4034, 4
      %v4037 = vshll.u32 %v3803, 16
      %v4039 = vrot.slane %v4037, 5
      %v4040 = vsel %vm286, %v4035, %v4039
      %v4042 = vshrl.u32 %v3804, 16
      %v4044 = vrot.slane %v4042, 4
      %v4045 = vshll.u32 %v3804, 16
      %v4047 = vrot.slane %v4045, 5
      %v4048 = vor.u32 %v4044, %v4047
      %v4049 = vrot.slane %v4048, 4
      %v4051 = vshll.u32 %v3805, 16
      %v4053 = vrot.slane %v4051, 5
      %v4054 = vsel %vm286, %v4049, %v4053
      %v4055 = vshrl.u32 %v3805, 16
      %v4057 = vrot.slane %v4055, 4
      %v4058 = vor.u32 %v4057, %v4053
      %v4059 = vrot.slane %v4058, 4
      %v4061 = vshll.u32 %v3806, 16
      %v4063 = vrot.slane %v4061, 5
      %v4064 = vsel %vm286, %v4059, %v4063
      %v4066 = vshrl.u32 %v3807, 16
      %v4068 = vrot.slane %v4066, 4
      %v4069 = vshll.u32 %v3807, 16
      %v4071 = vrot.slane %v4069, 5
      %v4072 = vor.u32 %v4068, %v4071
      %v4073 = vrot.slane %v4072, 4
      %v4075 = vshll.u32 %v3808, 16
      %v4077 = vrot.slane %v4075, 5
      %v4078 = vsel %vm286, %v4073, %v4077
      %v4079 = vshrl.u32 %v3808, 16
      %v4081 = vrot.slane %v4079, 4
      %v4082 = vor.u32 %v4081, %v4077
      %v4083 = vrot.slane %v4082, 4
      %v4085 = vshll.u32 %v3809, 16
      %v4087 = vrot.slane %v4085, 5
      %v4088 = vsel %vm286, %v4083, %v4087
      %v4090 = vshrl.u32 %v3810, 16
      %v4092 = vrot.slane %v4090, 4
      %v4093 = vshll.u32 %v3810, 16
      %v4095 = vrot.slane %v4093, 5
      %v4096 = vor.u32 %v4092, %v4095
      %v4097 = vrot.slane %v4096, 4
      %v4099 = vshll.u32 %v3811, 16
      %v4101 = vrot.slane %v4099, 5
      %v4102 = vsel %vm286, %v4097, %v4101
      %v4103 = vshrl.u32 %v3811, 16
      %v4105 = vrot.slane %v4103, 4
      %v4106 = vor.u32 %v4105, %v4101
      %v4107 = vrot.slane %v4106, 4
      %v4109 = vshll.u32 %v3812, 16
      %v4111 = vrot.slane %v4109, 5
      %v4112 = vsel %vm286, %v4107, %v4111
      %v4114 = vshrl.u32 %v3813, 16
      %v4116 = vrot.slane %v4114, 4
      %v4117 = vshll.u32 %v3813, 16
      %v4119 = vrot.slane %v4117, 5
      %v4120 = vor.u32 %v4116, %v4119
      %v4121 = vrot.slane %v4120, 4
      %v4123 = vshll.u32 %v3814, 16
      %v4125 = vrot.slane %v4123, 5
      %v4126 = vsel %vm286, %v4121, %v4125
      %v4127 = vshrl.u32 %v3814, 16
      %v4129 = vrot.slane %v4127, 4
      %v4130 = vor.u32 %v4129, %v4125
      %v4131 = vrot.slane %v4130, 4
      %v4133 = vshll.u32 %v3815, 16
      %v4135 = vrot.slane %v4133, 5
      %v4136 = vsel %vm286, %v4131, %v4135
      %v4138 = vshrl.u32 %v3816, 16
      %v4140 = vrot.slane %v4138, 4
      %v4141 = vshll.u32 %v3816, 16
      %v4143 = vrot.slane %v4141, 5
      %v4144 = vor.u32 %v4140, %v4143
      %v4145 = vrot.slane %v4144, 4
      %v4147 = vshll.u32 %v3817, 16
      %v4149 = vrot.slane %v4147, 5
      %v4150 = vsel %vm286, %v4145, %v4149
      %v4151 = vshrl.u32 %v3817, 16
      %v4153 = vrot.slane %v4151, 4
      %v4154 = vor.u32 %v4153, %v4149
      %v4155 = vrot.slane %v4154, 4
      %v4157 = vshll.u32 %v3818, 16
      %v4159 = vrot.slane %v4157, 5
      %v4160 = vsel %vm286, %v4155, %v4159
      %v4162 = vshrl.u32 %v3819, 16
      %v4164 = vrot.slane %v4162, 4
      %v4165 = vshll.u32 %v3819, 16
      %v4167 = vrot.slane %v4165, 5
      %v4168 = vor.u32 %v4164, %v4167
      %v4169 = vrot.slane %v4168, 4
      %v4171 = vshll.u32 %v3820, 16
      %v4173 = vrot.slane %v4171, 5
      %v4174 = vsel %vm286, %v4169, %v4173
      %v4175 = vshrl.u32 %v3820, 16
      %v4177 = vrot.slane %v4175, 4
      %v4178 = vor.u32 %v4177, %v4173
      %v4179 = vrot.slane %v4178, 4
      %v4181 = vshll.u32 %v3821, 16
      %v4183 = vrot.slane %v4181, 5
      %v4184 = vsel %vm286, %v4179, %v4183
      %v4186 = vshrl.u32 %v3822, 16
      %v4188 = vrot.slane %v4186, 4
      %v4189 = vshll.u32 %v3822, 16
      %v4191 = vrot.slane %v4189, 5
      %v4192 = vor.u32 %v4188, %v4191
      %v4193 = vrot.slane %v4192, 4
      %v4195 = vshll.u32 %v3823, 16
      %v4197 = vrot.slane %v4195, 5
      %v4198 = vsel %vm286, %v4193, %v4197
      %v4199 = vshrl.u32 %v3823, 16
      %v4201 = vrot.slane %v4199, 4
      %v4202 = vor.u32 %v4201, %v4197
      %v4203 = vrot.slane %v4202, 4
      %v4205 = vshll.u32 %v3824, 16
      %v4207 = vrot.slane %v4205, 5
      %v4208 = vsel %vm286, %v4203, %v4207
      %v4209 = vld [vmem:[%s1 + $0x1c0] sm:$0xf]
      %v4210 = vld [vmem:[%s1 + $0x1c4] sm:$0xf]
      %v4211 = vld [vmem:[%s1 + $0x1c8] sm:$0xf]
      %v4212 = vld [vmem:[%s1 + $0x1cc] sm:$0xf]
      %v4213 = vld [vmem:[%s1 + $0x1d0] sm:$0xf]
      %v4214 = vld [vmem:[%s1 + $0x1d4] sm:$0xf]
      %v4215 = vld [vmem:[%s1 + $0x1d8] sm:$0xf]
      %v4216 = vld [vmem:[%s1 + $0x1dc] sm:$0xf]
      %v4217 = vld [vmem:[%s1 + $0x1e0] sm:$0xf]
      %v4218 = vld [vmem:[%s1 + $0x1e4] sm:$0xf]
      %v4219 = vld [vmem:[%s1 + $0x1e8] sm:$0xf]
      %v4220 = vld [vmem:[%s1 + $0x1ec] sm:$0xf]
      %v4221 = vld [vmem:[%s1 + $0x1f0] sm:$0xf]
      %v4222 = vld [vmem:[%s1 + $0x1f4] sm:$0xf]
      %v4223 = vld [vmem:[%s1 + $0x1f8] sm:$0xf]
      %v4224 = vld [vmem:[%s1 + $0x1fc] sm:$0xf]
      %v4225 = vunpack.c.l.b16 %v3838
      %v4226 = vunpack.c.l.b16 %v3848
      %v4227 = vunpack.c.l.b16 %v3862
      %v4228 = vunpack.c.l.b16 %v3872
      %v4229 = vunpack.c.l.b16 %v3886
      %v4230 = vunpack.c.l.b16 %v3896
      %v4231 = vunpack.c.l.b16 %v3910
      %v4232 = vunpack.c.l.b16 %v3920
      %v4233 = vunpack.c.l.b16 %v3934
      %v4234 = vunpack.c.l.b16 %v3944
      %v4235 = vunpack.c.l.b16 %v3958
      %v4236 = vunpack.c.l.b16 %v3968
      %v4237 = vunpack.c.l.b16 %v3982
      %v4238 = vunpack.c.l.b16 %v3992
      %v4239 = vunpack.c.l.b16 %v4006
      %v4240 = vunpack.c.l.b16 %v4016
      %v4241 = vunpack.c.l.b16 %v4030
      %v4242 = vunpack.c.l.b16 %v4040
      %v4243 = vunpack.c.l.b16 %v4054
      %v4244 = vunpack.c.l.b16 %v4064
      %v4245 = vunpack.c.l.b16 %v4078
      %v4246 = vunpack.c.l.b16 %v4088
      %v4247 = vunpack.c.l.b16 %v4102
      %v4248 = vunpack.c.l.b16 %v4112
      %v4249 = vunpack.c.l.b16 %v4126
      %v4250 = vunpack.c.l.b16 %v4136
      %v4251 = vunpack.c.l.b16 %v4150
      %v4252 = vunpack.c.l.b16 %v4160
      %v4253 = vunpack.c.l.b16 %v4174
      %v4254 = vunpack.c.l.b16 %v4184
      %v4255 = vunpack.c.l.b16 %v4198
      %v4256 = vunpack.c.l.b16 %v4208
      %v4257 = vpack.c.b16 %v4226, %v4225
      %v4258 = vpack.c.b16 %v4228, %v4227
      %v4259 = vpack.c.b16 %v4230, %v4229
      %v4260 = vpack.c.b16 %v4232, %v4231
      %v4261 = vpack.c.b16 %v4234, %v4233
      %v4262 = vpack.c.b16 %v4236, %v4235
      %v4263 = vpack.c.b16 %v4238, %v4237
      %v4264 = vpack.c.b16 %v4240, %v4239
      %v4265 = vpack.c.b16 %v4242, %v4241
      %v4266 = vpack.c.b16 %v4244, %v4243
      %v4267 = vpack.c.b16 %v4246, %v4245
      %v4268 = vpack.c.b16 %v4248, %v4247
      %v4269 = vpack.c.b16 %v4250, %v4249
      %v4270 = vpack.c.b16 %v4252, %v4251
      %v4271 = vpack.c.b16 %v4254, %v4253
      %v4272 = vpack.c.b16 %v4256, %v4255
      %v4305 = vunpack.c.l.b16 %v4209
      %v4306 = vunpack.c.l.b16 %v4210
      %v4307 = vunpack.c.l.b16 %v4211
      %v4308 = vunpack.c.l.b16 %v4212
      %v4309 = vunpack.c.l.b16 %v4213
      %v4310 = vunpack.c.l.b16 %v4214
      %v4311 = vunpack.c.l.b16 %v4215
      %v4312 = vunpack.c.l.b16 %v4216
      %v4313 = vunpack.c.l.b16 %v4217
      %v4314 = vunpack.c.l.b16 %v4218
      %v4315 = vunpack.c.l.b16 %v4219
      %v4316 = vunpack.c.l.b16 %v4220
      %v4317 = vunpack.c.l.b16 %v4221
      %v4318 = vunpack.c.l.b16 %v4222
      %v4319 = vunpack.c.l.b16 %v4223
      %v4320 = vunpack.c.l.b16 %v4224
      %v4321 = vpack.c.b16 %v4306, %v4305
      %v4322 = vpack.c.b16 %v4308, %v4307
      %v4323 = vpack.c.b16 %v4310, %v4309
      %v4324 = vpack.c.b16 %v4312, %v4311
      %v4325 = vpack.c.b16 %v4314, %v4313
      %v4326 = vpack.c.b16 %v4316, %v4315
      %v4327 = vpack.c.b16 %v4318, %v4317
      %v4328 = vpack.c.b16 %v4320, %v4319
      %4337 = vmatprep.subr.bf16.mxu0 0
      %4338 = vmatpush1.bf16.msra.mxu0 %v4321
      %4339 = vmatprep.subr.bf16.mxu0 0
      %4340 = vmatpush1.bf16.msra.mxu0 %v4322
      %4341 = vmatprep.subr.bf16.mxu0 0
      %4342 = vmatpush1.bf16.msra.mxu0 %v4323
      %4343 = vmatprep.subr.bf16.mxu0 0
      %4344 = vmatpush1.bf16.msra.mxu0 %v4324
      %4345 = vmatprep.subr.bf16.mxu0 0
      %4346 = vmatpush1.bf16.msra.mxu0 %v4325
      %4347 = vmatprep.subr.bf16.mxu0 0
      %4348 = vmatpush1.bf16.msra.mxu0 %v4326
      %4349 = vmatprep.subr.bf16.mxu0 0
      %4350 = vmatpush1.bf16.msra.mxu0 %v4327
      %4351 = vmatprep.subr.bf16.mxu0 0
      %4352 = vmatpush1.bf16.msra.mxu0 %v4328
      %4353 = vmatprep.subr.bf16.mxu0 0
      %4354 = vmatpush1.bf16.msra.mxu0 0
      %4355 = vmatprep.subr.bf16.mxu0 0
      %4356 = vmatpush1.bf16.msra.mxu0 0
      %4357 = vmatprep.subr.bf16.mxu0 0
      %4358 = vmatpush1.bf16.msra.mxu0 0
      %4359 = vmatprep.subr.bf16.mxu0 0
      %4360 = vmatpush1.bf16.msra.mxu0 0
      %4361 = vmatprep.subr.bf16.mxu0 0
      %4362 = vmatpush1.bf16.msra.mxu0 0
      %4363 = vmatprep.subr.bf16.mxu0 0
      %4364 = vmatpush1.bf16.msra.mxu0 0
      %4365 = vmatprep.subr.bf16.mxu0 0
      %4366 = vmatpush1.bf16.msra.mxu0 0
      %4367 = vmatprep.subr.bf16.mxu0 0
      %4368 = vmatpush1.bf16.msra.mxu0 0
      %4369 = vmatprep.mubr.bf16.mxu0 0
      %4370 = vmatmul.mubr.bf16.gmra.mrb[0].mxu0 %v4257
      %v4371 = vpop.f32.mrb[0].mxu0
      %v4372 = vadd.f32 0.0, %v4371
      %v4373 = vpop.f32.mrb[0].mxu0
      %v4374 = vpop.f32.mrb[0].mxu0
      %v4375 = vadd.f32 0.0, %v4374
      %v4376 = vpop.f32.mrb[0].mxu0
      %4377 = vmatprep.mubr.bf16.mxu0 0
      %4378 = vmatmul.mubr.bf16.gmra.mrb[0].mxu0 %v4258
      %v4379 = vpop.f32.mrb[0].mxu0
      %v4380 = vadd.f32 0.0, %v4379
      %v4381 = vpop.f32.mrb[0].mxu0
      %v4382 = vpop.f32.mrb[0].mxu0
      %v4383 = vadd.f32 0.0, %v4382
      %v4384 = vpop.f32.mrb[0].mxu0
      %4385 = vmatprep.mubr.bf16.mxu0 0
      %4386 = vmatmul.mubr.bf16.gmra.mrb[0].mxu0 %v4259
      %v4387 = vpop.f32.mrb[0].mxu0
      %v4388 = vadd.f32 0.0, %v4387
      %v4389 = vpop.f32.mrb[0].mxu0
      %v4390 = vpop.f32.mrb[0].mxu0
      %v4391 = vadd.f32 0.0, %v4390
      %v4392 = vpop.f32.mrb[0].mxu0
      %4393 = vmatprep.mubr.bf16.mxu0 0
      %4394 = vmatmul.mubr.bf16.gmra.mrb[0].mxu0 %v4260
      %v4395 = vpop.f32.mrb[0].mxu0
      %v4396 = vadd.f32 0.0, %v4395
      %v4397 = vpop.f32.mrb[0].mxu0
      %v4398 = vpop.f32.mrb[0].mxu0
      %v4399 = vadd.f32 0.0, %v4398
      %v4400 = vpop.f32.mrb[0].mxu0
      %4401 = vmatprep.mubr.bf16.mxu0 0
      %4402 = vmatmul.mubr.bf16.gmra.mrb[0].mxu0 %v4261
      %v4403 = vpop.f32.mrb[0].mxu0
      %v4404 = vadd.f32 0.0, %v4403
      %v4405 = vpop.f32.mrb[0].mxu0
      %v4406 = vpop.f32.mrb[0].mxu0
      %v4407 = vadd.f32 0.0, %v4406
      %v4408 = vpop.f32.mrb[0].mxu0
      %4409 = vmatprep.mubr.bf16.mxu0 0
      %4410 = vmatmul.mubr.bf16.gmra.mrb[0].mxu0 %v4262
      %v4411 = vpop.f32.mrb[0].mxu0
      %v4412 = vadd.f32 0.0, %v4411
      %v4413 = vpop.f32.mrb[0].mxu0
      %v4414 = vpop.f32.mrb[0].mxu0
      %v4415 = vadd.f32 0.0, %v4414
      %v4416 = vpop.f32.mrb[0].mxu0
      %4417 = vmatprep.mubr.bf16.mxu0 0
      %4418 = vmatmul.mubr.bf16.gmra.mrb[0].mxu0 %v4263
      %v4419 = vpop.f32.mrb[0].mxu0
      %v4420 = vadd.f32 0.0, %v4419
      %v4421 = vpop.f32.mrb[0].mxu0
      %v4422 = vpop.f32.mrb[0].mxu0
      %v4423 = vadd.f32 0.0, %v4422
      %v4424 = vpop.f32.mrb[0].mxu0
      %4425 = vmatprep.mubr.bf16.mxu0 0
      %4426 = vmatmul.mubr.bf16.gmra.mrb[0].mxu0 %v4264
      %v4427 = vpop.f32.mrb[0].mxu0
      %v4428 = vadd.f32 0.0, %v4427
      %v4429 = vpop.f32.mrb[0].mxu0
      %v4430 = vpop.f32.mrb[0].mxu0
      %v4431 = vadd.f32 0.0, %v4430
      %v4432 = vpop.f32.mrb[0].mxu0
      %4433 = vmatprep.mubr.bf16.mxu0 0
      %4434 = vmatmul.mubr.bf16.gmra.mrb[0].mxu0 %v4265
      %v4435 = vpop.f32.mrb[0].mxu0
      %v4436 = vadd.f32 0.0, %v4435
      %v4437 = vpop.f32.mrb[0].mxu0
      %v4438 = vpop.f32.mrb[0].mxu0
      %v4439 = vadd.f32 0.0, %v4438
      %v4440 = vpop.f32.mrb[0].mxu0
      %4441 = vmatprep.mubr.bf16.mxu0 0
      %4442 = vmatmul.mubr.bf16.gmra.mrb[0].mxu0 %v4266
      %v4443 = vpop.f32.mrb[0].mxu0
      %v4444 = vadd.f32 0.0, %v4443
      %v4445 = vpop.f32.mrb[0].mxu0
      %v4446 = vpop.f32.mrb[0].mxu0
      %v4447 = vadd.f32 0.0, %v4446
      %v4448 = vpop.f32.mrb[0].mxu0
      %4449 = vmatprep.mubr.bf16.mxu0 0
      %4450 = vmatmul.mubr.bf16.gmra.mrb[0].mxu0 %v4267
      %v4451 = vpop.f32.mrb[0].mxu0
      %v4452 = vadd.f32 0.0, %v4451
      %v4453 = vpop.f32.mrb[0].mxu0
      %v4454 = vpop.f32.mrb[0].mxu0
      %v4455 = vadd.f32 0.0, %v4454
      %v4456 = vpop.f32.mrb[0].mxu0
      %4457 = vmatprep.mubr.bf16.mxu0 0
      %4458 = vmatmul.mubr.bf16.gmra.mrb[0].mxu0 %v4268
      %v4459 = vpop.f32.mrb[0].mxu0
      %v4460 = vadd.f32 0.0, %v4459
      %v4461 = vpop.f32.mrb[0].mxu0
      %v4462 = vpop.f32.mrb[0].mxu0
      %v4463 = vadd.f32 0.0, %v4462
      %v4464 = vpop.f32.mrb[0].mxu0
      %4465 = vmatprep.mubr.bf16.mxu0 0
      %4466 = vmatmul.mubr.bf16.gmra.mrb[0].mxu0 %v4269
      %v4467 = vpop.f32.mrb[0].mxu0
      %v4468 = vadd.f32 0.0, %v4467
      %v4469 = vpop.f32.mrb[0].mxu0
      %v4470 = vpop.f32.mrb[0].mxu0
      %v4471 = vadd.f32 0.0, %v4470
      %v4472 = vpop.f32.mrb[0].mxu0
      %4473 = vmatprep.mubr.bf16.mxu0 0
      %4474 = vmatmul.mubr.bf16.gmra.mrb[0].mxu0 %v4270
      %v4475 = vpop.f32.mrb[0].mxu0
      %v4476 = vadd.f32 0.0, %v4475
      %v4477 = vpop.f32.mrb[0].mxu0
      %v4478 = vpop.f32.mrb[0].mxu0
      %v4479 = vadd.f32 0.0, %v4478
      %v4480 = vpop.f32.mrb[0].mxu0
      %4481 = vmatprep.mubr.bf16.mxu0 0
      %4482 = vmatmul.mubr.bf16.gmra.mrb[0].mxu0 %v4271
      %v4483 = vpop.f32.mrb[0].mxu0
      %v4484 = vadd.f32 0.0, %v4483
      %v4485 = vpop.f32.mrb[0].mxu0
      %v4486 = vpop.f32.mrb[0].mxu0
      %v4487 = vadd.f32 0.0, %v4486
      %v4488 = vpop.f32.mrb[0].mxu0
      %4489 = vmatprep.mubr.bf16.mxu0 0
      %4490 = vmatmul.mubr.bf16.gmra.mrb[0].mxu0 %v4272
      %v4491 = vpop.f32.mrb[0].mxu0
      %v4492 = vadd.f32 0.0, %v4491
      %v4493 = vpop.f32.mrb[0].mxu0
      %v4494 = vpop.f32.mrb[0].mxu0
      %v4495 = vadd.f32 0.0, %v4494
      %v4496 = vpop.f32.mrb[0].mxu0
      %4497 = vdwg.mxu0
      %v4498 = vadd.f32 %v3745, %v4372
      %v4499 = vadd.f32 %v3746, %v4375
      %v4500 = vadd.f32 %v3747, %v4380
      %v4501 = vadd.f32 %v3748, %v4383
      %v4502 = vadd.f32 %v3749, %v4388
      %v4503 = vadd.f32 %v3750, %v4391
      %v4504 = vadd.f32 %v3751, %v4396
      %v4505 = vadd.f32 %v3752, %v4399
      %v4506 = vadd.f32 %v3753, %v4404
      %v4507 = vadd.f32 %v3754, %v4407
      %v4508 = vadd.f32 %v3755, %v4412
      %v4509 = vadd.f32 %v3756, %v4415
      %v4510 = vadd.f32 %v3757, %v4420
      %v4511 = vadd.f32 %v3758, %v4423
      %v4512 = vadd.f32 %v3759, %v4428
      %v4513 = vadd.f32 %v3760, %v4431
      %v4514 = vadd.f32 %v3761, %v4436
      %v4515 = vadd.f32 %v3762, %v4439
      %v4516 = vadd.f32 %v3763, %v4444
      %v4517 = vadd.f32 %v3764, %v4447
      %v4518 = vadd.f32 %v3765, %v4452
      %v4519 = vadd.f32 %v3766, %v4455
      %v4520 = vadd.f32 %v3767, %v4460
      %v4521 = vadd.f32 %v3768, %v4463
      %v4522 = vadd.f32 %v3769, %v4468
      %v4523 = vadd.f32 %v3770, %v4471
      %v4524 = vadd.f32 %v3771, %v4476
      %v4525 = vadd.f32 %v3772, %v4479
      %v4526 = vadd.f32 %v3773, %v4484
      %v4527 = vadd.f32 %v3774, %v4487
      %v4528 = vadd.f32 %v3775, %v4492
      %v4529 = vadd.f32 %v3776, %v4495
      %v4530 = vld [vmem:[%s3391] sm:$0xe]
      %v4531 = vld [vmem:[%s3391 + $0xc] sm:$0xe]
      %v4532 = vld [vmem:[%s3391 + $0x18] sm:$0xe]
      %v4533 = vld [vmem:[%s3391 + $0x24] sm:$0xe]
      %v4534 = vld [vmem:[%s3391 + $0x30] sm:$0xe]
      %v4535 = vld [vmem:[%s3391 + $0x3c] sm:$0xe]
      %v4536 = vld [vmem:[%s3391 + $0x48] sm:$0xe]
      %v4537 = vld [vmem:[%s3391 + $0x54] sm:$0xe]
      %v4538 = vld [vmem:[%s3391 + $0x60] sm:$0xe]
      %v4539 = vld [vmem:[%s3391 + $0x6c] sm:$0xe]
      %v4540 = vld [vmem:[%s3391 + $0x78] sm:$0xe]
      %v4541 = vld [vmem:[%s3391 + $0x84] sm:$0xe]
      %v4542 = vld [vmem:[%s3391 + $0x90] sm:$0xe]
      %v4543 = vld [vmem:[%s3391 + $0x9c] sm:$0xe]
      %v4544 = vld [vmem:[%s3391 + $0xa8] sm:$0xe]
      %v4545 = vld [vmem:[%s3391 + $0xb4] sm:$0xe]
      %v4594 = vrot.slane %v4530, 5
      %v4595 = vrot.slane %v4594, 4
      %v4596 = vrot.slane %v3778, 5
      %v4597 = vsel %vm1315, %v4595, %v4596
      %v4598 = vrot.slane %v4596, 4
      %v4599 = vrot.slane %v3779, 5
      %v4600 = vsel %vm1315, %v4598, %v4599
      %v4601 = vrot.slane %v4531, 5
      %v4602 = vrot.slane %v4601, 4
      %v4603 = vrot.slane %v3781, 5
      %v4604 = vsel %vm1315, %v4602, %v4603
      %v4605 = vrot.slane %v4603, 4
      %v4606 = vrot.slane %v3782, 5
      %v4607 = vsel %vm1315, %v4605, %v4606
      %v4608 = vrot.slane %v4532, 5
      %v4609 = vrot.slane %v4608, 4
      %v4610 = vrot.slane %v3784, 5
      %v4611 = vsel %vm1315, %v4609, %v4610
      %v4612 = vrot.slane %v4610, 4
      %v4613 = vrot.slane %v3785, 5
      %v4614 = vsel %vm1315, %v4612, %v4613
      %v4615 = vrot.slane %v4533, 5
      %v4616 = vrot.slane %v4615, 4
      %v4617 = vrot.slane %v3787, 5
      %v4618 = vsel %vm1315, %v4616, %v4617
      %v4619 = vrot.slane %v4617, 4
      %v4620 = vrot.slane %v3788, 5
      %v4621 = vsel %vm1315, %v4619, %v4620
      %v4622 = vrot.slane %v4534, 5
      %v4623 = vrot.slane %v4622, 4
      %v4624 = vrot.slane %v3790, 5
      %v4625 = vsel %vm1315, %v4623, %v4624
      %v4626 = vrot.slane %v4624, 4
      %v4627 = vrot.slane %v3791, 5
      %v4628 = vsel %vm1315, %v4626, %v4627
      %v4629 = vrot.slane %v4535, 5
      %v4630 = vrot.slane %v4629, 4
      %v4631 = vrot.slane %v3793, 5
      %v4632 = vsel %vm1315, %v4630, %v4631
      %v4633 = vrot.slane %v4631, 4
      %v4634 = vrot.slane %v3794, 5
      %v4635 = vsel %vm1315, %v4633, %v4634
      %v4636 = vrot.slane %v4536, 5
      %v4637 = vrot.slane %v4636, 4
      %v4638 = vrot.slane %v3796, 5
      %v4639 = vsel %vm1315, %v4637, %v4638
      %v4640 = vrot.slane %v4638, 4
      %v4641 = vrot.slane %v3797, 5
      %v4642 = vsel %vm1315, %v4640, %v4641
      %v4643 = vrot.slane %v4537, 5
      %v4644 = vrot.slane %v4643, 4
      %v4645 = vrot.slane %v3799, 5
      %v4646 = vsel %vm1315, %v4644, %v4645
      %v4647 = vrot.slane %v4645, 4
      %v4648 = vrot.slane %v3800, 5
      %v4649 = vsel %vm1315, %v4647, %v4648
      %v4650 = vrot.slane %v4538, 5
      %v4651 = vrot.slane %v4650, 4
      %v4652 = vrot.slane %v3802, 5
      %v4653 = vsel %vm1315, %v4651, %v4652
      %v4654 = vrot.slane %v4652, 4
      %v4655 = vrot.slane %v3803, 5
      %v4656 = vsel %vm1315, %v4654, %v4655
      %v4657 = vrot.slane %v4539, 5
      %v4658 = vrot.slane %v4657, 4
      %v4659 = vrot.slane %v3805, 5
      %v4660 = vsel %vm1315, %v4658, %v4659
      %v4661 = vrot.slane %v4659, 4
      %v4662 = vrot.slane %v3806, 5
      %v4663 = vsel %vm1315, %v4661, %v4662
      %v4664 = vrot.slane %v4540, 5
      %v4665 = vrot.slane %v4664, 4
      %v4666 = vrot.slane %v3808, 5
      %v4667 = vsel %vm1315, %v4665, %v4666
      %v4668 = vrot.slane %v4666, 4
      %v4669 = vrot.slane %v3809, 5
      %v4670 = vsel %vm1315, %v4668, %v4669
      %v4671 = vrot.slane %v4541, 5
      %v4672 = vrot.slane %v4671, 4
      %v4673 = vrot.slane %v3811, 5
      %v4674 = vsel %vm1315, %v4672, %v4673
      %v4675 = vrot.slane %v4673, 4
      %v4676 = vrot.slane %v3812, 5
      %v4677 = vsel %vm1315, %v4675, %v4676
      %v4678 = vrot.slane %v4542, 5
      %v4679 = vrot.slane %v4678, 4
      %v4680 = vrot.slane %v3814, 5
      %v4681 = vsel %vm1315, %v4679, %v4680
      %v4682 = vrot.slane %v4680, 4
      %v4683 = vrot.slane %v3815, 5
      %v4684 = vsel %vm1315, %v4682, %v4683
      %v4685 = vrot.slane %v4543, 5
      %v4686 = vrot.slane %v4685, 4
      %v4687 = vrot.slane %v3817, 5
      %v4688 = vsel %vm1315, %v4686, %v4687
      %v4689 = vrot.slane %v4687, 4
      %v4690 = vrot.slane %v3818, 5
      %v4691 = vsel %vm1315, %v4689, %v4690
      %v4692 = vrot.slane %v4544, 5
      %v4693 = vrot.slane %v4692, 4
      %v4694 = vrot.slane %v3820, 5
      %v4695 = vsel %vm1315, %v4693, %v4694
      %v4696 = vrot.slane %v4694, 4
      %v4697 = vrot.slane %v3821, 5
      %v4698 = vsel %vm1315, %v4696, %v4697
      %v4699 = vrot.slane %v4545, 5
      %v4700 = vrot.slane %v4699, 4
      %v4701 = vrot.slane %v3823, 5
      %v4702 = vsel %vm1315, %v4700, %v4701
      %v4703 = vrot.slane %v4701, 4
      %v4704 = vrot.slane %v3824, 5
      %v4705 = vsel %vm1315, %v4703, %v4704
      %v4706 = vld [vmem:[%s1 + $0x200] sm:$0xf]
      %v4707 = vld [vmem:[%s1 + $0x204] sm:$0xf]
      %v4708 = vld [vmem:[%s1 + $0x208] sm:$0xf]
      %v4709 = vld [vmem:[%s1 + $0x20c] sm:$0xf]
      %v4710 = vld [vmem:[%s1 + $0x210] sm:$0xf]
      %v4711 = vld [vmem:[%s1 + $0x214] sm:$0xf]
      %v4712 = vld [vmem:[%s1 + $0x218] sm:$0xf]
      %v4713 = vld [vmem:[%s1 + $0x21c] sm:$0xf]
      %v4714 = vld [vmem:[%s1 + $0x220] sm:$0xf]
      %v4715 = vld [vmem:[%s1 + $0x224] sm:$0xf]
      %v4716 = vld [vmem:[%s1 + $0x228] sm:$0xf]
      %v4717 = vld [vmem:[%s1 + $0x22c] sm:$0xf]
      %v4718 = vld [vmem:[%s1 + $0x230] sm:$0xf]
      %v4719 = vld [vmem:[%s1 + $0x234] sm:$0xf]
      %v4720 = vld [vmem:[%s1 + $0x238] sm:$0xf]
      %v4721 = vld [vmem:[%s1 + $0x23c] sm:$0xf]
      %v4722 = vunpack.c.l.b16 %v4597
      %v4723 = vunpack.c.l.b16 %v4600
      %v4724 = vunpack.c.l.b16 %v4604
      %v4725 = vunpack.c.l.b16 %v4607
      %v4726 = vunpack.c.l.b16 %v4611
      %v4727 = vunpack.c.l.b16 %v4614
      %v4728 = vunpack.c.l.b16 %v4618
      %v4729 = vunpack.c.l.b16 %v4621
      %v4730 = vunpack.c.l.b16 %v4625
      %v4731 = vunpack.c.l.b16 %v4628
      %v4732 = vunpack.c.l.b16 %v4632
      %v4733 = vunpack.c.l.b16 %v4635
      %v4734 = vunpack.c.l.b16 %v4639
      %v4735 = vunpack.c.l.b16 %v4642
      %v4736 = vunpack.c.l.b16 %v4646
      %v4737 = vunpack.c.l.b16 %v4649
      %v4738 = vunpack.c.l.b16 %v4653
      %v4739 = vunpack.c.l.b16 %v4656
      %v4740 = vunpack.c.l.b16 %v4660
      %v4741 = vunpack.c.l.b16 %v4663
      %v4742 = vunpack.c.l.b16 %v4667
      %v4743 = vunpack.c.l.b16 %v4670
      %v4744 = vunpack.c.l.b16 %v4674
      %v4745 = vunpack.c.l.b16 %v4677
      %v4746 = vunpack.c.l.b16 %v4681
      %v4747 = vunpack.c.l.b16 %v4684
      %v4748 = vunpack.c.l.b16 %v4688
      %v4749 = vunpack.c.l.b16 %v4691
      %v4750 = vunpack.c.l.b16 %v4695
      %v4751 = vunpack.c.l.b16 %v4698
      %v4752 = vunpack.c.l.b16 %v4702
      %v4753 = vunpack.c.l.b16 %v4705
      %v4754 = vpack.c.b16 %v4723, %v4722
      %v4755 = vpack.c.b16 %v4725, %v4724
      %v4756 = vpack.c.b16 %v4727, %v4726
      %v4757 = vpack.c.b16 %v4729, %v4728
      %v4758 = vpack.c.b16 %v4731, %v4730
      %v4759 = vpack.c.b16 %v4733, %v4732
      %v4760 = vpack.c.b16 %v4735, %v4734
      %v4761 = vpack.c.b16 %v4737, %v4736
      %v4762 = vpack.c.b16 %v4739, %v4738
      %v4763 = vpack.c.b16 %v4741, %v4740
      %v4764 = vpack.c.b16 %v4743, %v4742
      %v4765 = vpack.c.b16 %v4745, %v4744
      %v4766 = vpack.c.b16 %v4747, %v4746
      %v4767 = vpack.c.b16 %v4749, %v4748
      %v4768 = vpack.c.b16 %v4751, %v4750
      %v4769 = vpack.c.b16 %v4753, %v4752
      %v4802 = vunpack.c.l.b16 %v4706
      %v4803 = vunpack.c.l.b16 %v4707
      %v4804 = vunpack.c.l.b16 %v4708
      %v4805 = vunpack.c.l.b16 %v4709
      %v4806 = vunpack.c.l.b16 %v4710
      %v4807 = vunpack.c.l.b16 %v4711
      %v4808 = vunpack.c.l.b16 %v4712
      %v4809 = vunpack.c.l.b16 %v4713
      %v4810 = vunpack.c.l.b16 %v4714
      %v4811 = vunpack.c.l.b16 %v4715
      %v4812 = vunpack.c.l.b16 %v4716
      %v4813 = vunpack.c.l.b16 %v4717
      %v4814 = vunpack.c.l.b16 %v4718
      %v4815 = vunpack.c.l.b16 %v4719
      %v4816 = vunpack.c.l.b16 %v4720
      %v4817 = vunpack.c.l.b16 %v4721
      %v4818 = vpack.c.b16 %v4803, %v4802
      %v4819 = vpack.c.b16 %v4805, %v4804
      %v4820 = vpack.c.b16 %v4807, %v4806
      %v4821 = vpack.c.b16 %v4809, %v4808
      %v4822 = vpack.c.b16 %v4811, %v4810
      %v4823 = vpack.c.b16 %v4813, %v4812
      %v4824 = vpack.c.b16 %v4815, %v4814
      %v4825 = vpack.c.b16 %v4817, %v4816
      %4834 = vmatprep.subr.bf16.mxu0 0
      %4835 = vmatpush1.bf16.msra.mxu0 %v4818
      %4836 = vmatprep.subr.bf16.mxu0 0
      %4837 = vmatpush1.bf16.msra.mxu0 %v4819
      %4838 = vmatprep.subr.bf16.mxu0 0
      %4839 = vmatpush1.bf16.msra.mxu0 %v4820
      %4840 = vmatprep.subr.bf16.mxu0 0
      %4841 = vmatpush1.bf16.msra.mxu0 %v4821
      %4842 = vmatprep.subr.bf16.mxu0 0
      %4843 = vmatpush1.bf16.msra.mxu0 %v4822
      %4844 = vmatprep.subr.bf16.mxu0 0
      %4845 = vmatpush1.bf16.msra.mxu0 %v4823
      %4846 = vmatprep.subr.bf16.mxu0 0
      %4847 = vmatpush1.bf16.msra.mxu0 %v4824
      %4848 = vmatprep.subr.bf16.mxu0 0
      %4849 = vmatpush1.bf16.msra.mxu0 %v4825
      %4850 = vmatprep.subr.bf16.mxu0 0
      %4851 = vmatpush1.bf16.msra.mxu0 0
      %4852 = vmatprep.subr.bf16.mxu0 0
      %4853 = vmatpush1.bf16.msra.mxu0 0
      %4854 = vmatprep.subr.bf16.mxu0 0
      %4855 = vmatpush1.bf16.msra.mxu0 0
      %4856 = vmatprep.subr.bf16.mxu0 0
      %4857 = vmatpush1.bf16.msra.mxu0 0
      %4858 = vmatprep.subr.bf16.mxu0 0
      %4859 = vmatpush1.bf16.msra.mxu0 0
      %4860 = vmatprep.subr.bf16.mxu0 0
      %4861 = vmatpush1.bf16.msra.mxu0 0
      %4862 = vmatprep.subr.bf16.mxu0 0
      %4863 = vmatpush1.bf16.msra.mxu0 0
      %4864 = vmatprep.subr.bf16.mxu0 0
      %4865 = vmatpush1.bf16.msra.mxu0 0
      %4866 = vmatprep.mubr.bf16.mxu0 0
      %4867 = vmatmul.mubr.bf16.gmra.mrb[0].mxu0 %v4754
      %v4868 = vpop.f32.mrb[0].mxu0
      %v4869 = vadd.f32 0.0, %v4868
      %v4870 = vpop.f32.mrb[0].mxu0
      %v4871 = vpop.f32.mrb[0].mxu0
      %v4872 = vadd.f32 0.0, %v4871
      %v4873 = vpop.f32.mrb[0].mxu0
      %4874 = vmatprep.mubr.bf16.mxu0 0
      %4875 = vmatmul.mubr.bf16.gmra.mrb[0].mxu0 %v4755
      %v4876 = vpop.f32.mrb[0].mxu0
      %v4877 = vadd.f32 0.0, %v4876
      %v4878 = vpop.f32.mrb[0].mxu0
      %v4879 = vpop.f32.mrb[0].mxu0
      %v4880 = vadd.f32 0.0, %v4879
      %v4881 = vpop.f32.mrb[0].mxu0
      %4882 = vmatprep.mubr.bf16.mxu0 0
      %4883 = vmatmul.mubr.bf16.gmra.mrb[0].mxu0 %v4756
      %v4884 = vpop.f32.mrb[0].mxu0
      %v4885 = vadd.f32 0.0, %v4884
      %v4886 = vpop.f32.mrb[0].mxu0
      %v4887 = vpop.f32.mrb[0].mxu0
      %v4888 = vadd.f32 0.0, %v4887
      %v4889 = vpop.f32.mrb[0].mxu0
      %4890 = vmatprep.mubr.bf16.mxu0 0
      %4891 = vmatmul.mubr.bf16.gmra.mrb[0].mxu0 %v4757
      %v4892 = vpop.f32.mrb[0].mxu0
      %v4893 = vadd.f32 0.0, %v4892
      %v4894 = vpop.f32.mrb[0].mxu0
      %v4895 = vpop.f32.mrb[0].mxu0
      %v4896 = vadd.f32 0.0, %v4895
      %v4897 = vpop.f32.mrb[0].mxu0
      %4898 = vmatprep.mubr.bf16.mxu0 0
      %4899 = vmatmul.mubr.bf16.gmra.mrb[0].mxu0 %v4758
      %v4900 = vpop.f32.mrb[0].mxu0
      %v4901 = vadd.f32 0.0, %v4900
      %v4902 = vpop.f32.mrb[0].mxu0
      %v4903 = vpop.f32.mrb[0].mxu0
      %v4904 = vadd.f32 0.0, %v4903
      %v4905 = vpop.f32.mrb[0].mxu0
      %4906 = vmatprep.mubr.bf16.mxu0 0
      %4907 = vmatmul.mubr.bf16.gmra.mrb[0].mxu0 %v4759
      %v4908 = vpop.f32.mrb[0].mxu0
      %v4909 = vadd.f32 0.0, %v4908
      %v4910 = vpop.f32.mrb[0].mxu0
      %v4911 = vpop.f32.mrb[0].mxu0
      %v4912 = vadd.f32 0.0, %v4911
      %v4913 = vpop.f32.mrb[0].mxu0
      %4914 = vmatprep.mubr.bf16.mxu0 0
      %4915 = vmatmul.mubr.bf16.gmra.mrb[0].mxu0 %v4760
      %v4916 = vpop.f32.mrb[0].mxu0
      %v4917 = vadd.f32 0.0, %v4916
      %v4918 = vpop.f32.mrb[0].mxu0
      %v4919 = vpop.f32.mrb[0].mxu0
      %v4920 = vadd.f32 0.0, %v4919
      %v4921 = vpop.f32.mrb[0].mxu0
      %4922 = vmatprep.mubr.bf16.mxu0 0
      %4923 = vmatmul.mubr.bf16.gmra.mrb[0].mxu0 %v4761
      %v4924 = vpop.f32.mrb[0].mxu0
      %v4925 = vadd.f32 0.0, %v4924
      %v4926 = vpop.f32.mrb[0].mxu0
      %v4927 = vpop.f32.mrb[0].mxu0
      %v4928 = vadd.f32 0.0, %v4927
      %v4929 = vpop.f32.mrb[0].mxu0
      %4930 = vmatprep.mubr.bf16.mxu0 0
      %4931 = vmatmul.mubr.bf16.gmra.mrb[0].mxu0 %v4762
      %v4932 = vpop.f32.mrb[0].mxu0
      %v4933 = vadd.f32 0.0, %v4932
      %v4934 = vpop.f32.mrb[0].mxu0
      %v4935 = vpop.f32.mrb[0].mxu0
      %v4936 = vadd.f32 0.0, %v4935
      %v4937 = vpop.f32.mrb[0].mxu0
      %4938 = vmatprep.mubr.bf16.mxu0 0
      %4939 = vmatmul.mubr.bf16.gmra.mrb[0].mxu0 %v4763
      %v4940 = vpop.f32.mrb[0].mxu0
      %v4941 = vadd.f32 0.0, %v4940
      %v4942 = vpop.f32.mrb[0].mxu0
      %v4943 = vpop.f32.mrb[0].mxu0
      %v4944 = vadd.f32 0.0, %v4943
      %v4945 = vpop.f32.mrb[0].mxu0
      %4946 = vmatprep.mubr.bf16.mxu0 0
      %4947 = vmatmul.mubr.bf16.gmra.mrb[0].mxu0 %v4764
      %v4948 = vpop.f32.mrb[0].mxu0
      %v4949 = vadd.f32 0.0, %v4948
      %v4950 = vpop.f32.mrb[0].mxu0
      %v4951 = vpop.f32.mrb[0].mxu0
      %v4952 = vadd.f32 0.0, %v4951
      %v4953 = vpop.f32.mrb[0].mxu0
      %4954 = vmatprep.mubr.bf16.mxu0 0
      %4955 = vmatmul.mubr.bf16.gmra.mrb[0].mxu0 %v4765
      %v4956 = vpop.f32.mrb[0].mxu0
      %v4957 = vadd.f32 0.0, %v4956
      %v4958 = vpop.f32.mrb[0].mxu0
      %v4959 = vpop.f32.mrb[0].mxu0
      %v4960 = vadd.f32 0.0, %v4959
      %v4961 = vpop.f32.mrb[0].mxu0
      %4962 = vmatprep.mubr.bf16.mxu0 0
      %4963 = vmatmul.mubr.bf16.gmra.mrb[0].mxu0 %v4766
      %v4964 = vpop.f32.mrb[0].mxu0
      %v4965 = vadd.f32 0.0, %v4964
      %v4966 = vpop.f32.mrb[0].mxu0
      %v4967 = vpop.f32.mrb[0].mxu0
      %v4968 = vadd.f32 0.0, %v4967
      %v4969 = vpop.f32.mrb[0].mxu0
      %4970 = vmatprep.mubr.bf16.mxu0 0
      %4971 = vmatmul.mubr.bf16.gmra.mrb[0].mxu0 %v4767
      %v4972 = vpop.f32.mrb[0].mxu0
      %v4973 = vadd.f32 0.0, %v4972
      %v4974 = vpop.f32.mrb[0].mxu0
      %v4975 = vpop.f32.mrb[0].mxu0
      %v4976 = vadd.f32 0.0, %v4975
      %v4977 = vpop.f32.mrb[0].mxu0
      %4978 = vmatprep.mubr.bf16.mxu0 0
      %4979 = vmatmul.mubr.bf16.gmra.mrb[0].mxu0 %v4768
      %v4980 = vpop.f32.mrb[0].mxu0
      %v4981 = vadd.f32 0.0, %v4980
      %v4982 = vpop.f32.mrb[0].mxu0
      %v4983 = vpop.f32.mrb[0].mxu0
      %v4984 = vadd.f32 0.0, %v4983
      %v4985 = vpop.f32.mrb[0].mxu0
      %4986 = vmatprep.mubr.bf16.mxu0 0
      %4987 = vmatmul.mubr.bf16.gmra.mrb[0].mxu0 %v4769
      %v4988 = vpop.f32.mrb[0].mxu0
      %v4989 = vadd.f32 0.0, %v4988
      %v4990 = vpop.f32.mrb[0].mxu0
      %v4991 = vpop.f32.mrb[0].mxu0
      %v4992 = vadd.f32 0.0, %v4991
      %v4993 = vpop.f32.mrb[0].mxu0
      %4994 = vdwg.mxu0
      %v4995 = vadd.f32 %v4498, %v4869
      %v4996 = vadd.f32 %v4499, %v4872
      %v4997 = vadd.f32 %v4500, %v4877
      %v4998 = vadd.f32 %v4501, %v4880
      %v4999 = vadd.f32 %v4502, %v4885
      %v5000 = vadd.f32 %v4503, %v4888
      %v5001 = vadd.f32 %v4504, %v4893
      %v5002 = vadd.f32 %v4505, %v4896
      %v5003 = vadd.f32 %v4506, %v4901
      %v5004 = vadd.f32 %v4507, %v4904
      %v5005 = vadd.f32 %v4508, %v4909
      %v5006 = vadd.f32 %v4509, %v4912
      %v5007 = vadd.f32 %v4510, %v4917
      %v5008 = vadd.f32 %v4511, %v4920
      %v5009 = vadd.f32 %v4512, %v4925
      %v5010 = vadd.f32 %v4513, %v4928
      %v5011 = vadd.f32 %v4514, %v4933
      %v5012 = vadd.f32 %v4515, %v4936
      %v5013 = vadd.f32 %v4516, %v4941
      %v5014 = vadd.f32 %v4517, %v4944
      %v5015 = vadd.f32 %v4518, %v4949
      %v5016 = vadd.f32 %v4519, %v4952
      %v5017 = vadd.f32 %v4520, %v4957
      %v5018 = vadd.f32 %v4521, %v4960
      %v5019 = vadd.f32 %v4522, %v4965
      %v5020 = vadd.f32 %v4523, %v4968
      %v5021 = vadd.f32 %v4524, %v4973
      %v5022 = vadd.f32 %v4525, %v4976
      %v5023 = vadd.f32 %v4526, %v4981
      %v5024 = vadd.f32 %v4527, %v4984
      %v5025 = vadd.f32 %v4528, %v4989
      %v5026 = vadd.f32 %v4529, %v4992
      %v5027 = vpack.c.bf16 %v4996, %v4995
      %v5028 = vpack.c.bf16 %v4998, %v4997
      %v5029 = vpack.c.bf16 %v5000, %v4999
      %v5030 = vpack.c.bf16 %v5002, %v5001
      %v5031 = vpack.c.bf16 %v5004, %v5003
      %v5032 = vpack.c.bf16 %v5006, %v5005
      %v5033 = vpack.c.bf16 %v5008, %v5007
      %v5034 = vpack.c.bf16 %v5010, %v5009
      %v5035 = vpack.c.bf16 %v5012, %v5011
      %v5036 = vpack.c.bf16 %v5014, %v5013
      %v5037 = vpack.c.bf16 %v5016, %v5015
      %v5038 = vpack.c.bf16 %v5018, %v5017
      %v5039 = vpack.c.bf16 %v5020, %v5019
      %v5040 = vpack.c.bf16 %v5022, %v5021
      %v5041 = vpack.c.bf16 %v5024, %v5023
      %v5042 = vpack.c.bf16 %v5026, %v5025
      %v5059 = vunpack.c.l.b16 %v5027
      %v5060 = vunpack.c.h.b16 %v5027
      %v5061 = vunpack.c.l.b16 %v5028
      %v5062 = vunpack.c.h.b16 %v5028
      %v5063 = vunpack.c.l.b16 %v5029
      %v5064 = vunpack.c.h.b16 %v5029
      %v5065 = vunpack.c.l.b16 %v5030
      %v5066 = vunpack.c.h.b16 %v5030
      %v5067 = vunpack.c.l.b16 %v5031
      %v5068 = vunpack.c.h.b16 %v5031
      %v5069 = vunpack.c.l.b16 %v5032
      %v5070 = vunpack.c.h.b16 %v5032
      %v5071 = vunpack.c.l.b16 %v5033
      %v5072 = vunpack.c.h.b16 %v5033
      %v5073 = vunpack.c.l.b16 %v5034
      %v5074 = vunpack.c.h.b16 %v5034
      %v5075 = vunpack.c.l.b16 %v5035
      %v5076 = vunpack.c.h.b16 %v5035
      %v5077 = vunpack.c.l.b16 %v5036
      %v5078 = vunpack.c.h.b16 %v5036
      %v5079 = vunpack.c.l.b16 %v5037
      %v5080 = vunpack.c.h.b16 %v5037
      %v5081 = vunpack.c.l.b16 %v5038
      %v5082 = vunpack.c.h.b16 %v5038
      %v5083 = vunpack.c.l.b16 %v5039
      %v5084 = vunpack.c.h.b16 %v5039
      %v5085 = vunpack.c.l.b16 %v5040
      %v5086 = vunpack.c.h.b16 %v5040
      %v5087 = vunpack.c.l.b16 %v5041
      %v5088 = vunpack.c.h.b16 %v5041
      %v5089 = vunpack.c.l.b16 %v5042
      %v5090 = vunpack.c.h.b16 %v5042
      %v5091 = vpack.c.b16 %v5059, %v5059
      %v5092 = vpack.c.b16 %v5060, %v5060
      %v5093 = vpack.c.b16 %v5061, %v5061
      %v5094 = vpack.c.b16 %v5062, %v5062
      %v5095 = vpack.c.b16 %v5063, %v5063
      %v5096 = vpack.c.b16 %v5064, %v5064
      %v5097 = vpack.c.b16 %v5065, %v5065
      %v5098 = vpack.c.b16 %v5066, %v5066
      %v5099 = vpack.c.b16 %v5067, %v5067
      %v5100 = vpack.c.b16 %v5068, %v5068
      %v5101 = vpack.c.b16 %v5069, %v5069
      %v5102 = vpack.c.b16 %v5070, %v5070
      %v5103 = vpack.c.b16 %v5071, %v5071
      %v5104 = vpack.c.b16 %v5072, %v5072
      %v5105 = vpack.c.b16 %v5073, %v5073
      %v5106 = vpack.c.b16 %v5074, %v5074
      %v5107 = vpack.c.b16 %v5075, %v5075
      %v5108 = vpack.c.b16 %v5076, %v5076
      %v5109 = vpack.c.b16 %v5077, %v5077
      %v5110 = vpack.c.b16 %v5078, %v5078
      %v5111 = vpack.c.b16 %v5079, %v5079
      %v5112 = vpack.c.b16 %v5080, %v5080
      %v5113 = vpack.c.b16 %v5081, %v5081
      %v5114 = vpack.c.b16 %v5082, %v5082
      %v5115 = vpack.c.b16 %v5083, %v5083
      %v5116 = vpack.c.b16 %v5084, %v5084
      %v5117 = vpack.c.b16 %v5085, %v5085
      %v5118 = vpack.c.b16 %v5086, %v5086
      %v5119 = vpack.c.b16 %v5087, %v5087
      %v5120 = vpack.c.b16 %v5088, %v5088
      %v5121 = vpack.c.b16 %v5089, %v5089
      %v5122 = vpack.c.b16 %v5090, %v5090
      %5155 = vst [vmem:[%s206] sm:$0xf] %v5091
      %5156 = vst [vmem:[%s206 + $0x4] sm:$0xf] %v5092
      %5157 = vst [vmem:[%s206 + $0x8] sm:$0xf] %v5093
      %5158 = vst [vmem:[%s206 + $0xc] sm:$0xf] %v5094
      %5159 = vst [vmem:[%s206 + $0x10] sm:$0xf] %v5095
      %5160 = vst [vmem:[%s206 + $0x14] sm:$0xf] %v5096
      %5161 = vst [vmem:[%s206 + $0x18] sm:$0xf] %v5097
      %5162 = vst [vmem:[%s206 + $0x1c] sm:$0xf] %v5098
      %5163 = vst [vmem:[%s206 + $0x20] sm:$0xf] %v5099
      %5164 = vst [vmem:[%s206 + $0x24] sm:$0xf] %v5100
      %5165 = vst [vmem:[%s206 + $0x28] sm:$0xf] %v5101
      %5166 = vst [vmem:[%s206 + $0x2c] sm:$0xf] %v5102
      %5167 = vst [vmem:[%s206 + $0x30] sm:$0xf] %v5103
      %5168 = vst [vmem:[%s206 + $0x34] sm:$0xf] %v5104
      %5169 = vst [vmem:[%s206 + $0x38] sm:$0xf] %v5105
      %5170 = vst [vmem:[%s206 + $0x3c] sm:$0xf] %v5106
      %5171 = vst [vmem:[%s206 + $0x40] sm:$0xf] %v5107
      %5172 = vst [vmem:[%s206 + $0x44] sm:$0xf] %v5108
      %5173 = vst [vmem:[%s206 + $0x48] sm:$0xf] %v5109
      %5174 = vst [vmem:[%s206 + $0x4c] sm:$0xf] %v5110
      %5175 = vst [vmem:[%s206 + $0x50] sm:$0xf] %v5111
      %5176 = vst [vmem:[%s206 + $0x54] sm:$0xf] %v5112
      %5177 = vst [vmem:[%s206 + $0x58] sm:$0xf] %v5113
      %5178 = vst [vmem:[%s206 + $0x5c] sm:$0xf] %v5114
      %5179 = vst [vmem:[%s206 + $0x60] sm:$0xf] %v5115
      %5180 = vst [vmem:[%s206 + $0x64] sm:$0xf] %v5116
      %5181 = vst [vmem:[%s206 + $0x68] sm:$0xf] %v5117
      %5182 = vst [vmem:[%s206 + $0x6c] sm:$0xf] %v5118
      %5183 = vst [vmem:[%s206 + $0x70] sm:$0xf] %v5119
      %5184 = vst [vmem:[%s206 + $0x74] sm:$0xf] %v5120
      %5185 = vst [vmem:[%s206 + $0x78] sm:$0xf] %v5121
      %5186 = vst [vmem:[%s206 + $0x7c] sm:$0xf] %v5122
      %v5187 = vadd.f32 %v4995, %v4996
      %v5188 = vadd.f32 %v5187, %v4997
      %v5189 = vadd.f32 %v5188, %v4998
      %v5190 = vadd.f32 %v5189, %v4999
      %v5191 = vadd.f32 %v5190, %v5000
      %v5192 = vadd.f32 %v5191, %v5001
      %v5193 = vadd.f32 %v5192, %v5002
      %v5194 = vadd.f32 %v5193, %v5003
      %v5195 = vadd.f32 %v5194, %v5004
      %v5196 = vadd.f32 %v5195, %v5005
      %v5197 = vadd.f32 %v5196, %v5006
      %v5198 = vadd.f32 %v5197, %v5007
      %v5199 = vadd.f32 %v5198, %v5008
      %v5200 = vadd.f32 %v5199, %v5009
      %v5201 = vadd.f32 %v5200, %v5010
      %v5202 = vadd.f32 %v5201, %v5011
      %v5203 = vadd.f32 %v5202, %v5012
      %v5204 = vadd.f32 %v5203, %v5013
      %v5205 = vadd.f32 %v5204, %v5014
      %v5206 = vadd.f32 %v5205, %v5015
      %v5207 = vadd.f32 %v5206, %v5016
      %v5208 = vadd.f32 %v5207, %v5017
      %v5209 = vadd.f32 %v5208, %v5018
      %v5210 = vadd.f32 %v5209, %v5019
      %v5211 = vadd.f32 %v5210, %v5020
      %v5212 = vadd.f32 %v5211, %v5021
      %v5213 = vadd.f32 %v5212, %v5022
      %v5214 = vadd.f32 %v5213, %v5023
      %v5215 = vadd.f32 %v5214, %v5024
      %v5216 = vadd.f32 %v5215, %v5025
      %v5217 = vadd.f32 %v5216, %v5026
      %v5218 = vrot.slane %v5217, 4
      %v5219 = vadd.f32 %v5217, %v5218
      %v5220 = vrot.slane %v5219, 2
      %v5221 = vadd.f32 %v5219, %v5220
      %v5222 = vrot.slane %v5221, 1
      %v5223 = vadd.f32 %v5221, %v5222
      %v5224 = vmul.f32 %v5223, 0.00390625
      %v5225 = vsub.f32 %v4995, %v5224
      %v5226 = vsub.f32 %v4996, %v5224
      %v5227 = vsub.f32 %v4997, %v5224
      %v5228 = vsub.f32 %v4998, %v5224
      %v5229 = vsub.f32 %v4999, %v5224
      %v5230 = vsub.f32 %v5000, %v5224
      %v5231 = vsub.f32 %v5001, %v5224
      %v5232 = vsub.f32 %v5002, %v5224
      %v5233 = vsub.f32 %v5003, %v5224
      %v5234 = vsub.f32 %v5004, %v5224
      %v5235 = vsub.f32 %v5005, %v5224
      %v5236 = vsub.f32 %v5006, %v5224
      %v5237 = vsub.f32 %v5007, %v5224
      %v5238 = vsub.f32 %v5008, %v5224
      %v5239 = vsub.f32 %v5009, %v5224
      %v5240 = vsub.f32 %v5010, %v5224
      %v5241 = vsub.f32 %v5011, %v5224
      %v5242 = vsub.f32 %v5012, %v5224
      %v5243 = vsub.f32 %v5013, %v5224
      %v5244 = vsub.f32 %v5014, %v5224
      %v5245 = vsub.f32 %v5015, %v5224
      %v5246 = vsub.f32 %v5016, %v5224
      %v5247 = vsub.f32 %v5017, %v5224
      %v5248 = vsub.f32 %v5018, %v5224
      %v5249 = vsub.f32 %v5019, %v5224
      %v5250 = vsub.f32 %v5020, %v5224
      %v5251 = vsub.f32 %v5021, %v5224
      %v5252 = vsub.f32 %v5022, %v5224
      %v5253 = vsub.f32 %v5023, %v5224
      %v5254 = vsub.f32 %v5024, %v5224
      %v5255 = vsub.f32 %v5025, %v5224
      %v5256 = vsub.f32 %v5026, %v5224
      %v5257 = vmul.f32 %v5225, %v5225
      %v5258 = vmul.f32 %v5226, %v5226
      %v5259 = vmul.f32 %v5227, %v5227
      %v5260 = vmul.f32 %v5228, %v5228
      %v5261 = vmul.f32 %v5229, %v5229
      %v5262 = vmul.f32 %v5230, %v5230
      %v5263 = vmul.f32 %v5231, %v5231
      %v5264 = vmul.f32 %v5232, %v5232
      %v5265 = vmul.f32 %v5233, %v5233
      %v5266 = vmul.f32 %v5234, %v5234
      %v5267 = vmul.f32 %v5235, %v5235
      %v5268 = vmul.f32 %v5236, %v5236
      %v5269 = vmul.f32 %v5237, %v5237
      %v5270 = vmul.f32 %v5238, %v5238
      %v5271 = vmul.f32 %v5239, %v5239
      %v5272 = vmul.f32 %v5240, %v5240
      %v5273 = vmul.f32 %v5241, %v5241
      %v5274 = vmul.f32 %v5242, %v5242
      %v5275 = vmul.f32 %v5243, %v5243
      %v5276 = vmul.f32 %v5244, %v5244
      %v5277 = vmul.f32 %v5245, %v5245
      %v5278 = vmul.f32 %v5246, %v5246
      %v5279 = vmul.f32 %v5247, %v5247
      %v5280 = vmul.f32 %v5248, %v5248
      %v5281 = vmul.f32 %v5249, %v5249
      %v5282 = vmul.f32 %v5250, %v5250
      %v5283 = vmul.f32 %v5251, %v5251
      %v5284 = vmul.f32 %v5252, %v5252
      %v5285 = vmul.f32 %v5253, %v5253
      %v5286 = vmul.f32 %v5254, %v5254
      %v5287 = vmul.f32 %v5255, %v5255
      %v5288 = vmul.f32 %v5256, %v5256
      %v5289 = vadd.f32 %v5257, %v5258
      %v5290 = vadd.f32 %v5289, %v5259
      %v5291 = vadd.f32 %v5290, %v5260
      %v5292 = vadd.f32 %v5291, %v5261
      %v5293 = vadd.f32 %v5292, %v5262
      %v5294 = vadd.f32 %v5293, %v5263
      %v5295 = vadd.f32 %v5294, %v5264
      %v5296 = vadd.f32 %v5295, %v5265
      %v5297 = vadd.f32 %v5296, %v5266
      %v5298 = vadd.f32 %v5297, %v5267
      %v5299 = vadd.f32 %v5298, %v5268
      %v5300 = vadd.f32 %v5299, %v5269
      %v5301 = vadd.f32 %v5300, %v5270
      %v5302 = vadd.f32 %v5301, %v5271
      %v5303 = vadd.f32 %v5302, %v5272
      %v5304 = vadd.f32 %v5303, %v5273
      %v5305 = vadd.f32 %v5304, %v5274
      %v5306 = vadd.f32 %v5305, %v5275
      %v5307 = vadd.f32 %v5306, %v5276
      %v5308 = vadd.f32 %v5307, %v5277
      %v5309 = vadd.f32 %v5308, %v5278
      %v5310 = vadd.f32 %v5309, %v5279
      %v5311 = vadd.f32 %v5310, %v5280
      %v5312 = vadd.f32 %v5311, %v5281
      %v5313 = vadd.f32 %v5312, %v5282
      %v5314 = vadd.f32 %v5313, %v5283
      %v5315 = vadd.f32 %v5314, %v5284
      %v5316 = vadd.f32 %v5315, %v5285
      %v5317 = vadd.f32 %v5316, %v5286
      %v5318 = vadd.f32 %v5317, %v5287
      %v5319 = vadd.f32 %v5318, %v5288
      %v5320 = vrot.slane %v5319, 4
      %v5321 = vadd.f32 %v5319, %v5320
      %v5322 = vrot.slane %v5321, 2
      %v5323 = vadd.f32 %v5321, %v5322
      %v5324 = vrot.slane %v5323, 1
      %v5325 = vadd.f32 %v5323, %v5324
      %5326 = vst [vmem:[%s214] sm:$0x1] %v5223
      %5327 = vst [vmem:[%s214 + $0x1] sm:$0x1] %v5325
      %s5328 = smul.u32 16, %s20
      %p5329 = scmp.lt.s32.totalorder %s19, 1
      %s5330 = scalar_select %p5329, %s19, 1
      %p5331 = scmp.lt.s32.totalorder %s5328, 15
      %s5332 = scalar_select %p5331, %s5328, 15
      %s5333 = smul.addr %s5332, 2
      %s5334 = smul.addr %s5330, 32
      %s5335 = sadd.s32 %s5333, %s5334
      %s5336 = smul.addr %s5335, 4
      %s5337 = scalar_lea.vmem %s2, %s5336
      %p5338 = scmp.lt.s32.totalorder %s19, 1
      %s5339 = scalar_select %p5338, %s19, 1
      %p5340 = scmp.lt.s32.totalorder %s20, 0
      %s5341 = scalar_select %p5340, %s20, 0
      %s5342 = sadd.s32 %s5341, %s5339
      %s5343 = smul.addr %s5342, 2
      %s5344 = scalar_lea.vmem %s3, %s5343
      // Predicated region
      $region29: #{block_forward.6} parent=27 // pred_check
        %p5345 = pneg %p94
      $region30: #{block_forward.6} parent=27 // pred_check_branch
        %5347 = sbr.rel (%p5345) target = $region32
      $region31: #{block_forward.6} parent=27 // pred_region
        %s5348 = smul.u32 16, %s20
      $region32: #{block_forward.6} parent=27 // pred_fallthru
        _
      // Predicated region
      $region33: #{block_forward.6} parent=27 // pred_check
        %p5349 = pneg %p122
      $region34: #{block_forward.6} parent=27 // pred_check_branch
        %5351 = sbr.rel (%p5349) target = $region36
      $region35: #{block_forward.6} parent=27 // pred_region
        _
      $region36: #{block_forward.6} parent=27 // pred_fallthru
        _
    $region28: #{block_forward.6} parent=5 // pred_fallthru
      _
    %p5352 = scmp.le.s32.totalorder 2, %s10
    // Predicated region
    $region37: #{block_forward.6} parent=5 // pred_check
      %p5353 = pneg %p5352
    $region38: #{block_forward.6} parent=5 // pred_check_branch
      %5355 = sbr.rel (%p5353) target = $region40
    $region39: #{block_forward.6} parent=5 // pred_region
      %s5356 = ssub.s32 %s10, 2
      // Predicated region
      $region41: #{block_forward.6} parent=39 // pred_check
        %p5357 = pneg %p100
      $region42: #{block_forward.6} parent=39 // pred_check_branch
        %5359 = sbr.rel (%p5357) target = $region44
      $region43: #{block_forward.6} parent=39 // pred_region
        %s5360 = smul.u32 16, %s22
        %p5361 = scmp.lt.s32.totalorder %s21, 1
        %s5362 = scalar_select %p5361, %s21, 1
        %p5363 = scmp.lt.s32.totalorder %s5360, 15
        %s5364 = scalar_select %p5363, %s5360, 15
        %s5365 = smul.addr %s5364, 2
        %s5366 = smul.addr %s5362, 32
        %s5367 = sadd.s32 %s5365, %s5366
        %s5368 = smul.addr %s5367, 4
        %s5369 = scalar_lea.vmem %s2, %s5368
      $region44: #{block_forward.6} parent=39 // pred_fallthru
        _
      // Predicated region
      $region45: #{block_forward.6} parent=39 // pred_check
        %p5370 = pneg %p128
      $region46: #{block_forward.6} parent=39 // pred_check_branch
        %5372 = sbr.rel (%p5370) target = $region48
      $region47: #{block_forward.6} parent=39 // pred_region
        %p5373 = scmp.lt.s32.totalorder %s21, 1
        %s5374 = scalar_select %p5373, %s21, 1
        %p5375 = scmp.lt.s32.totalorder %s22, 0
        %s5376 = scalar_select %p5375, %s22, 0
        %s5377 = sadd.s32 %s5376, %s5374
        %s5378 = smul.addr %s5377, 2
        %s5379 = scalar_lea.vmem %s3, %s5378
      $region48: #{block_forward.6} parent=39 // pred_fallthru
        _
    $region40: #{block_forward.6} parent=5 // pred_fallthru
      _
  $region6: #{block_forward.6} parent=0 // loop_footer
    %s14 = sadd.s32 1, %s10
  $region7: #{block_forward.6} parent=0 // loop_footer_branch
    %9 = sbr.rel target = $region3
  $region8: #{block_forward.6} parent=0 // loop_exit
    _

</llo_original>
